<compile_context>
chip_gen: v7x
topology: tpu7x:2x2x1
jax: 0.10.0
libtpu: 0.0.40
codegen_flags: <defaults>
</compile_context>

<pallas_src>
import functools

import jax
import jax.numpy as jnp
from jax import lax
from jax.experimental import pallas as pl
from jax.experimental.pallas import tpu as pltpu

NEG_SLOPE = 0.01  # F.leaky_relu default


def _glconv_kernel(x_ref, wg_ref, wl_ref, o_ref, *,
                   h, w, ci, co_p, split, halving, fm_sign, negative_slope):
    """One (batch, output-frame) grid step.

    x_ref  : [1, s+2, h+2, w+2, ci]  full padded clip (resident: constant index along t)
    wg_ref : [27*ci, co_p]           global conv weights, rows ordered (kd, kh, kw, ci)
    wl_ref : [27*ci, co_p]           local conv weights, same layout
    o_ref  : [1, 1, h*w (or 2*h*w), co_p]
    """
    t = pl.program_id(1)

    if halving > 0:
        # Row masks that reproduce the per-chunk zero padding of the local conv:
        # kh=0 taps vanish on each chunk's first row, kh=2 taps on each chunk's last row.
        row = lax.broadcasted_iota(jnp.int32, (h, w, ci), 0)
        keep_top = (row % split) != 0
        keep_bot = (row % split) != (split - 1)

    g_pieces = []
    l_pieces = []
    for kd in range(3):
        plane = x_ref[0, t + kd]                       # [h+2, w+2, ci]
        for kh in range(3):
            for kw in range(3):
                p = plane[kh:kh + h, kw:kw + w, :]     # [h, w, ci]
                g_pieces.append(p)
                if halving > 0:
                    if kh == 0:
                        l_pieces.append(jnp.where(keep_top, p, 0))
                    elif kh == 2:
                        l_pieces.append(jnp.where(keep_bot, p, 0))
                    else:
                        l_pieces.append(p)

    def im2col_dot(pieces, w_ref):
        # Lane-concat of the 27 shifted windows -> one big-K MXU matmul (f32 acc).
        patch = jnp.concatenate(pieces, axis=-1)       # [h, w, 27*ci]
        patch = patch.reshape(h * w, 27 * ci)
        return jnp.dot(patch, w_ref[...], preferred_element_type=jnp.float32)

    acc_g = im2col_dot(g_pieces, wg_ref)                                   # [h*w, co_p]
    acc_l = im2col_dot(g_pieces if halving == 0 else l_pieces, wl_ref)     # [h*w, co_p]

    def lrelu(v):
        return jnp.where(v >= 0, v, negative_slope * v)

    if fm_sign:
        # leaky_relu(cat(gob, lcl, dim=H)) == cat(lrelu(gob), lrelu(lcl), dim=H);
        # write each half straight into its output slice.
        o_ref[0, 0, :h * w] = lrelu(acc_g).astype(o_ref.dtype)
        o_ref[0, 0, h * w:] = lrelu(acc_l).astype(o_ref.dtype)
    else:
        o_ref[0, 0] = (lrelu(acc_g) + lrelu(acc_l)).astype(o_ref.dtype)


def gl_conv(x, w_global, w_local, *, halving, fm_sign=False,
            negative_slope=NEG_SLOPE):
    """x: [n, ci, s, h, w]; w_*: [co, ci, 3, 3, 3] (PyTorch layout). Returns NCDHW."""
    n, ci, s, h, w = x.shape
    co = w_global.shape[0]
    assert w_global.shape == (co, ci, 3, 3, 3) and w_local.shape == (co, ci, 3, 3, 3)
    out_dtype = x.dtype
    itemsize = x.dtype.itemsize

    if halving == 0:
        split = h
    else:
        nch = 2 ** halving
        split = h // nch
        assert split * nch == h, "H must be divisible by 2**halving"

    # Lane-dense output channels (multiple of 128); sliced back after the call.
    co_p = ((co + 127) // 128) * 128

    # [co, ci, 3, 3, 3] -> [27*ci, co_p], rows ordered (kd, kh, kw, ci).
    def prep_w(wt):
        wt = jnp.transpose(wt, (2, 3, 4, 1, 0)).reshape(27 * ci, co)
        if co_p != co:
            wt = jnp.pad(wt, ((0, 0), (0, co_p - co)))
        return wt

    wg = prep_w(w_global)
    wl = prep_w(w_local)

    # Channels-last, zero-padded once (single activation copy in HBM).
    xg = jnp.transpose(x, (0, 2, 3, 4, 1))                       # [n, s, h, w, ci]
    xg = jnp.pad(xg, ((0, 0), (1, 1), (1, 1), (1, 1), (0, 0)))    # [n, s+2, h+2, w+2, ci]
    sp, hp, wp = s + 2, h + 2, w + 2

    m_out = (2 * h * w) if fm_sign else (h * w)

    kernel = functools.partial(
        _glconv_kernel, h=h, w=w, ci=ci, co_p=co_p, split=split,
        halving=halving, fm_sign=fm_sign, negative_slope=negative_slope)

    # Whole padded clip resident per batch element (index map constant along t):
    # activations are DMA'd from HBM once per batch element.
    x_spec = pl.BlockSpec((1, sp, hp, wp, ci), lambda b, t: (b, 0, 0, 0, 0))
    # Weights fetched once, kept VMEM-resident.
    w_spec = pl.BlockSpec((27 * ci, co_p), lambda b, t: (0, 0))
    o_spec = pl.BlockSpec((1, 1, m_out, co_p), lambda b, t: (b, t, 0, 0))

    flops = int(2 * 2 * n * s * h * w * 27 * ci * co_p)           # two convs
    bytes_accessed = int(
        xg.size * itemsize                                         # activations read once
        + (wg.size + wl.size) * wg.dtype.itemsize
        + n * s * m_out * co_p * itemsize)

    # VMEM budget: resident clip (x2 buffers) + output block (x2) + weights + headroom.
    need = (2 * sp * hp * wp * ci * itemsize
            + 2 * m_out * co_p * itemsize
            + 2 * 27 * ci * co_p * wg.dtype.itemsize
            + (16 << 20))
    try:
        cap = int(pltpu.get_tpu_info().vmem_capacity_bytes) * 3 // 4   # ~96MiB v5e/v6e, ~48MiB v7x
    except Exception:
        cap = 48 << 20
    vmem_limit = int(max(32 << 20, min(need, cap)))

    out = pl.pallas_call(
        kernel,
        out_shape=jax.ShapeDtypeStruct((n, s, m_out, co_p), out_dtype),
        grid=(n, s),
        in_specs=[x_spec, w_spec, w_spec],
        out_specs=o_spec,
        compiler_params=pltpu.CompilerParams(
            dimension_semantics=("parallel", "parallel"),
            vmem_limit_bytes=vmem_limit),
        cost_estimate=pl.CostEstimate(flops=flops, transcendentals=0,
                                      bytes_accessed=bytes_accessed),
    )(xg, wg, wl)

    # Drop lane padding and return in PyTorch NCDHW layout.
    h_cat = 2 * h if fm_sign else h
    out = out[..., :co].reshape(n, s, h_cat, w, co)
    return jnp.transpose(out, (0, 4, 1, 2, 3))                    # [n, co, s, h_cat, w]


# ----------------------------- pure-JAX reference -----------------------------

def _conv3d_ref(x, w):
    return lax.conv_general_dilated(
        x, w, window_strides=(1, 1, 1),
        padding=((1, 1), (1, 1), (1, 1)),
        dimension_numbers=("NCDHW", "OIDHW", "NCDHW"),
        precision=lax.Precision.HIGHEST)


def gl_conv_ref(x, w_global, w_local, *, halving, fm_sign):
    gob = _conv3d_ref(x, w_global)
    if halving == 0:
        lcl = _conv3d_ref(x, w_local)
    else:
        chunks = jnp.split(x, 2 ** halving, axis=3)
        lcl = jnp.concatenate([_conv3d_ref(c, w_local) for c in chunks], axis=3)
    lrelu = lambda v: jnp.where(v >= 0, v, NEG_SLOPE * v)
    if fm_sign:
        return lrelu(jnp.concatenate([gob, lcl], axis=3))
    return lrelu(gob) + lrelu(lcl)


if __name__ == "__main__":
    n, ci, co, s, h, w = 2, 4, 8, 4, 16, 16
    key = jax.random.PRNGKey(0)
    kx, kg, kl = jax.random.split(key, 3)

    # Round demo data to bf16-representable f32 so the check is insensitive to the MXU's
    # internal multiplication strategy.
    def q(a):
        return a.astype(jnp.bfloat16).astype(jnp.float32)

    x = q(jax.random.normal(kx, (n, ci, s, h, w), dtype=jnp.float32))
    wscale = 1.0 / (27 * ci) ** 0.5
    w_global = q(jax.random.normal(kg, (co, ci, 3, 3, 3), jnp.float32) * wscale)
    w_local = q(jax.random.normal(kl, (co, ci, 3, 3, 3), jnp.float32) * wscale)

    # Exercise: chunked local conv, plain path with H-concat, and deeper chunking + concat.
    for halving, fm_sign in ((1, False), (0, True), (2, True)):
        out = gl_conv(x, w_global, w_local, halving=halving, fm_sign=fm_sign)
        out = jax.block_until_ready(out)
        ref = gl_conv_ref(x, w_global, w_local, halving=halving, fm_sign=fm_sign)
        assert out.shape == ref.shape, (out.shape, ref.shape)
        assert jnp.allclose(out, ref, atol=1e-4, rtol=1e-4), (
            f"halving={halving} fm_sign={fm_sign} "
            f"max_err={jnp.max(jnp.abs(out - ref))}")

    print("KERNEL_OK")
</pallas_src>

<mosaic_0001>
module attributes {stable_mosaic.version = 11 : i64} {
  func.func @_glconv_kernel(%arg0: i32, %arg1: i32, %arg2: memref<1x6x18x18x4xf32, #tpu.memory_space<vmem>>, %arg3: memref<108x128xf32, #tpu.memory_space<vmem>>, %arg4: memref<108x128xf32, #tpu.memory_space<vmem>>, %arg5: memref<1x1x256x128xf32, #tpu.memory_space<vmem>>) attributes {dimension_semantics = [#tpu.dimension_semantics<parallel>, #tpu.dimension_semantics<parallel>], iteration_bounds = array<i64: 2, 4>, scalar_prefetch = 0 : i64, scratch_operands = 0 : i64, tpu.core_type = #tpu.core_type<tc>, window_params = [{transform_indices = @transform_0, window_bounds = array<i64: 1, 6, 18, 18, 4>}, {pipeline_mode = #tpu.pipeline_mode<synchronous>, transform_indices = @transform_1, window_bounds = array<i64: 108, 128>}, {pipeline_mode = #tpu.pipeline_mode<synchronous>, transform_indices = @transform_2, window_bounds = array<i64: 108, 128>}, {transform_indices = @transform_3, window_bounds = array<i64: 1, 1, 256, 128>}]} {
    %0 = tpu.iota {dimensions = array<i32: 0>} : vector<16x16x4xi32>
    %c8_i32 = arith.constant 8 : i32
    %c0_i32 = arith.constant 0 : i32
    %1 = arith.cmpi eq, %c8_i32, %c0_i32 : i32
    %c1_i32 = arith.constant 1 : i32
    %2 = arith.select %1, %c1_i32, %c8_i32 : i32
    %3 = vector.broadcast %2 : i32 to vector<16x16x4xi32>
    %4 = arith.remsi %0, %3 : vector<16x16x4xi32>
    %c0_i32_0 = arith.constant 0 : i32
    %5 = vector.broadcast %c0_i32_0 : i32 to vector<16x16x4xi32>
    %6 = arith.cmpi ne, %4, %5 : vector<16x16x4xi32>
    %c0_i32_1 = arith.constant 0 : i32
    %7 = vector.broadcast %c0_i32_1 : i32 to vector<16x16x4xi32>
    %8 = arith.cmpi slt, %4, %7 : vector<16x16x4xi32>
    %c0_i32_2 = arith.constant 0 : i32
    %9 = arith.cmpi slt, %2, %c0_i32_2 : i32
    %10 = vector.broadcast %9 : i1 to vector<16x16x4xi1>
    %11 = vector.broadcast %10 : vector<16x16x4xi1> to vector<16x16x4xi1>
    %12 = arith.xori %8, %11 : vector<16x16x4xi1>
    %13 = arith.andi %12, %6 : vector<16x16x4xi1>
    %14 = vector.broadcast %2 : i32 to vector<16x16x4xi32>
    %15 = arith.addi %4, %14 : vector<16x16x4xi32>
    %16 = arith.select %13, %15, %4 : vector<16x16x4xi1>, vector<16x16x4xi32>
    %c0_i32_3 = arith.constant 0 : i32
    %17 = vector.broadcast %c0_i32_3 : i32 to vector<16x16x4xi32>
    %18 = arith.cmpi ne, %16, %17 : vector<16x16x4xi32>
    %c8_i32_4 = arith.constant 8 : i32
    %c0_i32_5 = arith.constant 0 : i32
    %19 = arith.cmpi eq, %c8_i32_4, %c0_i32_5 : i32
    %c1_i32_6 = arith.constant 1 : i32
    %20 = arith.select %19, %c1_i32_6, %c8_i32_4 : i32
    %21 = vector.broadcast %20 : i32 to vector<16x16x4xi32>
    %22 = arith.remsi %0, %21 : vector<16x16x4xi32>
    %c0_i32_7 = arith.constant 0 : i32
    %23 = vector.broadcast %c0_i32_7 : i32 to vector<16x16x4xi32>
    %24 = arith.cmpi ne, %22, %23 : vector<16x16x4xi32>
    %c0_i32_8 = arith.constant 0 : i32
    %25 = vector.broadcast %c0_i32_8 : i32 to vector<16x16x4xi32>
    %26 = arith.cmpi slt, %22, %25 : vector<16x16x4xi32>
    %c0_i32_9 = arith.constant 0 : i32
    %27 = arith.cmpi slt, %20, %c0_i32_9 : i32
    %28 = vector.broadcast %27 : i1 to vector<16x16x4xi1>
    %29 = vector.broadcast %28 : vector<16x16x4xi1> to vector<16x16x4xi1>
    %30 = arith.xori %26, %29 : vector<16x16x4xi1>
    %31 = arith.andi %30, %24 : vector<16x16x4xi1>
    %32 = vector.broadcast %20 : i32 to vector<16x16x4xi32>
    %33 = arith.addi %22, %32 : vector<16x16x4xi32>
    %34 = arith.select %31, %33, %22 : vector<16x16x4xi1>, vector<16x16x4xi32>
    %c7_i32 = arith.constant 7 : i32
    %35 = vector.broadcast %c7_i32 : i32 to vector<16x16x4xi32>
    %36 = arith.cmpi ne, %34, %35 : vector<16x16x4xi32>
    %c0_i32_10 = arith.constant 0 : i32
    %37 = arith.addi %arg1, %c0_i32_10 : i32
    %c0 = arith.constant 0 : index
    %38 = arith.index_cast %37 : i32 to index
    %c0_11 = arith.constant 0 : index
    %c0_12 = arith.constant 0 : index
    %c0_13 = arith.constant 0 : index
    %39 = vector.load %arg2[%c0, %38, %c0_11, %c0_12, %c0_13] : memref<1x6x18x18x4xf32, #tpu.memory_space<vmem>>, vector<1x1x18x18x4xf32>
    %40 = vector.shape_cast %39 : vector<1x1x18x18x4xf32> to vector<18x18x4xf32>
    %41 = vector.extract_strided_slice %40 {offsets = [0, 0, 0], sizes = [16, 16, 4], strides = [1, 1, 1]} : vector<18x18x4xf32> to vector<16x16x4xf32>
    %c0_i32_14 = arith.constant 0 : i32
    %42 = arith.sitofp %c0_i32_14 : i32 to f32
    %43 = vector.broadcast %42 : f32 to vector<16x16x4xf32>
    %44 = arith.select %18, %41, %43 : vector<16x16x4xi1>, vector<16x16x4xf32>
    %45 = vector.extract_strided_slice %40 {offsets = [0, 1, 0], sizes = [16, 16, 4], strides = [1, 1, 1]} : vector<18x18x4xf32> to vector<16x16x4xf32>
    %c0_i32_15 = arith.constant 0 : i32
    %46 = arith.sitofp %c0_i32_15 : i32 to f32
    %47 = vector.broadcast %46 : f32 to vector<16x16x4xf32>
    %48 = arith.select %18, %45, %47 : vector<16x16x4xi1>, vector<16x16x4xf32>
    %49 = vector.extract_strided_slice %40 {offsets = [0, 2, 0], sizes = [16, 16, 4], strides = [1, 1, 1]} : vector<18x18x4xf32> to vector<16x16x4xf32>
    %c0_i32_16 = arith.constant 0 : i32
    %50 = arith.sitofp %c0_i32_16 : i32 to f32
    %51 = vector.broadcast %50 : f32 to vector<16x16x4xf32>
    %52 = arith.select %18, %49, %51 : vector<16x16x4xi1>, vector<16x16x4xf32>
    %53 = vector.extract_strided_slice %40 {offsets = [1, 0, 0], sizes = [16, 16, 4], strides = [1, 1, 1]} : vector<18x18x4xf32> to vector<16x16x4xf32>
    %54 = vector.extract_strided_slice %40 {offsets = [1, 1, 0], sizes = [16, 16, 4], strides = [1, 1, 1]} : vector<18x18x4xf32> to vector<16x16x4xf32>
    %55 = vector.extract_strided_slice %40 {offsets = [1, 2, 0], sizes = [16, 16, 4], strides = [1, 1, 1]} : vector<18x18x4xf32> to vector<16x16x4xf32>
    %56 = vector.extract_strided_slice %40 {offsets = [2, 0, 0], sizes = [16, 16, 4], strides = [1, 1, 1]} : vector<18x18x4xf32> to vector<16x16x4xf32>
    %c0_i32_17 = arith.constant 0 : i32
    %57 = arith.sitofp %c0_i32_17 : i32 to f32
    %58 = vector.broadcast %57 : f32 to vector<16x16x4xf32>
    %59 = arith.select %36, %56, %58 : vector<16x16x4xi1>, vector<16x16x4xf32>
    %60 = vector.extract_strided_slice %40 {offsets = [2, 1, 0], sizes = [16, 16, 4], strides = [1, 1, 1]} : vector<18x18x4xf32> to vector<16x16x4xf32>
    %c0_i32_18 = arith.constant 0 : i32
    %61 = arith.sitofp %c0_i32_18 : i32 to f32
    %62 = vector.broadcast %61 : f32 to vector<16x16x4xf32>
    %63 = arith.select %36, %60, %62 : vector<16x16x4xi1>, vector<16x16x4xf32>
    %64 = vector.extract_strided_slice %40 {offsets = [2, 2, 0], sizes = [16, 16, 4], strides = [1, 1, 1]} : vector<18x18x4xf32> to vector<16x16x4xf32>
    %c0_i32_19 = arith.constant 0 : i32
    %65 = arith.sitofp %c0_i32_19 : i32 to f32
    %66 = vector.broadcast %65 : f32 to vector<16x16x4xf32>
    %67 = arith.select %36, %64, %66 : vector<16x16x4xi1>, vector<16x16x4xf32>
    %c1_i32_20 = arith.constant 1 : i32
    %68 = arith.addi %arg1, %c1_i32_20 : i32
    %c0_21 = arith.constant 0 : index
    %69 = arith.index_cast %68 : i32 to index
    %c0_22 = arith.constant 0 : index
    %c0_23 = arith.constant 0 : index
    %c0_24 = arith.constant 0 : index
    %70 = vector.load %arg2[%c0_21, %69, %c0_22, %c0_23, %c0_24] : memref<1x6x18x18x4xf32, #tpu.memory_space<vmem>>, vector<1x1x18x18x4xf32>
    %71 = vector.shape_cast %70 : vector<1x1x18x18x4xf32> to vector<18x18x4xf32>
    %72 = vector.extract_strided_slice %71 {offsets = [0, 0, 0], sizes = [16, 16, 4], strides = [1, 1, 1]} : vector<18x18x4xf32> to vector<16x16x4xf32>
    %c0_i32_25 = arith.constant 0 : i32
    %73 = arith.sitofp %c0_i32_25 : i32 to f32
    %74 = vector.broadcast %73 : f32 to vector<16x16x4xf32>
    %75 = arith.select %18, %72, %74 : vector<16x16x4xi1>, vector<16x16x4xf32>
    %76 = vector.extract_strided_slice %71 {offsets = [0, 1, 0], sizes = [16, 16, 4], strides = [1, 1, 1]} : vector<18x18x4xf32> to vector<16x16x4xf32>
    %c0_i32_26 = arith.constant 0 : i32
    %77 = arith.sitofp %c0_i32_26 : i32 to f32
    %78 = vector.broadcast %77 : f32 to vector<16x16x4xf32>
    %79 = arith.select %18, %76, %78 : vector<16x16x4xi1>, vector<16x16x4xf32>
    %80 = vector.extract_strided_slice %71 {offsets = [0, 2, 0], sizes = [16, 16, 4], strides = [1, 1, 1]} : vector<18x18x4xf32> to vector<16x16x4xf32>
    %c0_i32_27 = arith.constant 0 : i32
    %81 = arith.sitofp %c0_i32_27 : i32 to f32
    %82 = vector.broadcast %81 : f32 to vector<16x16x4xf32>
    %83 = arith.select %18, %80, %82 : vector<16x16x4xi1>, vector<16x16x4xf32>
    %84 = vector.extract_strided_slice %71 {offsets = [1, 0, 0], sizes = [16, 16, 4], strides = [1, 1, 1]} : vector<18x18x4xf32> to vector<16x16x4xf32>
    %85 = vector.extract_strided_slice %71 {offsets = [1, 1, 0], sizes = [16, 16, 4], strides = [1, 1, 1]} : vector<18x18x4xf32> to vector<16x16x4xf32>
    %86 = vector.extract_strided_slice %71 {offsets = [1, 2, 0], sizes = [16, 16, 4], strides = [1, 1, 1]} : vector<18x18x4xf32> to vector<16x16x4xf32>
    %87 = vector.extract_strided_slice %71 {offsets = [2, 0, 0], sizes = [16, 16, 4], strides = [1, 1, 1]} : vector<18x18x4xf32> to vector<16x16x4xf32>
    %c0_i32_28 = arith.constant 0 : i32
    %88 = arith.sitofp %c0_i32_28 : i32 to f32
    %89 = vector.broadcast %88 : f32 to vector<16x16x4xf32>
    %90 = arith.select %36, %87, %89 : vector<16x16x4xi1>, vector<16x16x4xf32>
    %91 = vector.extract_strided_slice %71 {offsets = [2, 1, 0], sizes = [16, 16, 4], strides = [1, 1, 1]} : vector<18x18x4xf32> to vector<16x16x4xf32>
    %c0_i32_29 = arith.constant 0 : i32
    %92 = arith.sitofp %c0_i32_29 : i32 to f32
    %93 = vector.broadcast %92 : f32 to vector<16x16x4xf32>
    %94 = arith.select %36, %91, %93 : vector<16x16x4xi1>, vector<16x16x4xf32>
    %95 = vector.extract_strided_slice %71 {offsets = [2, 2, 0], sizes = [16, 16, 4], strides = [1, 1, 1]} : vector<18x18x4xf32> to vector<16x16x4xf32>
    %c0_i32_30 = arith.constant 0 : i32
    %96 = arith.sitofp %c0_i32_30 : i32 to f32
    %97 = vector.broadcast %96 : f32 to vector<16x16x4xf32>
    %98 = arith.select %36, %95, %97 : vector<16x16x4xi1>, vector<16x16x4xf32>
    %c2_i32 = arith.constant 2 : i32
    %99 = arith.addi %arg1, %c2_i32 : i32
    %c0_31 = arith.constant 0 : index
    %100 = arith.index_cast %99 : i32 to index
    %c0_32 = arith.constant 0 : index
    %c0_33 = arith.constant 0 : index
    %c0_34 = arith.constant 0 : index
    %101 = vector.load %arg2[%c0_31, %100, %c0_32, %c0_33, %c0_34] : memref<1x6x18x18x4xf32, #tpu.memory_space<vmem>>, vector<1x1x18x18x4xf32>
    %102 = vector.shape_cast %101 : vector<1x1x18x18x4xf32> to vector<18x18x4xf32>
    %103 = vector.extract_strided_slice %102 {offsets = [0, 0, 0], sizes = [16, 16, 4], strides = [1, 1, 1]} : vector<18x18x4xf32> to vector<16x16x4xf32>
    %c0_i32_35 = arith.constant 0 : i32
    %104 = arith.sitofp %c0_i32_35 : i32 to f32
    %105 = vector.broadcast %104 : f32 to vector<16x16x4xf32>
    %106 = arith.select %18, %103, %105 : vector<16x16x4xi1>, vector<16x16x4xf32>
    %107 = vector.extract_strided_slice %102 {offsets = [0, 1, 0], sizes = [16, 16, 4], strides = [1, 1, 1]} : vector<18x18x4xf32> to vector<16x16x4xf32>
    %c0_i32_36 = arith.constant 0 : i32
    %108 = arith.sitofp %c0_i32_36 : i32 to f32
    %109 = vector.broadcast %108 : f32 to vector<16x16x4xf32>
    %110 = arith.select %18, %107, %109 : vector<16x16x4xi1>, vector<16x16x4xf32>
    %111 = vector.extract_strided_slice %102 {offsets = [0, 2, 0], sizes = [16, 16, 4], strides = [1, 1, 1]} : vector<18x18x4xf32> to vector<16x16x4xf32>
    %c0_i32_37 = arith.constant 0 : i32
    %112 = arith.sitofp %c0_i32_37 : i32 to f32
    %113 = vector.broadcast %112 : f32 to vector<16x16x4xf32>
    %114 = arith.select %18, %111, %113 : vector<16x16x4xi1>, vector<16x16x4xf32>
    %115 = vector.extract_strided_slice %102 {offsets = [1, 0, 0], sizes = [16, 16, 4], strides = [1, 1, 1]} : vector<18x18x4xf32> to vector<16x16x4xf32>
    %116 = vector.extract_strided_slice %102 {offsets = [1, 1, 0], sizes = [16, 16, 4], strides = [1, 1, 1]} : vector<18x18x4xf32> to vector<16x16x4xf32>
    %117 = vector.extract_strided_slice %102 {offsets = [1, 2, 0], sizes = [16, 16, 4], strides = [1, 1, 1]} : vector<18x18x4xf32> to vector<16x16x4xf32>
    %118 = vector.extract_strided_slice %102 {offsets = [2, 0, 0], sizes = [16, 16, 4], strides = [1, 1, 1]} : vector<18x18x4xf32> to vector<16x16x4xf32>
    %c0_i32_38 = arith.constant 0 : i32
    %119 = arith.sitofp %c0_i32_38 : i32 to f32
    %120 = vector.broadcast %119 : f32 to vector<16x16x4xf32>
    %121 = arith.select %36, %118, %120 : vector<16x16x4xi1>, vector<16x16x4xf32>
    %122 = vector.extract_strided_slice %102 {offsets = [2, 1, 0], sizes = [16, 16, 4], strides = [1, 1, 1]} : vector<18x18x4xf32> to vector<16x16x4xf32>
    %c0_i32_39 = arith.constant 0 : i32
    %123 = arith.sitofp %c0_i32_39 : i32 to f32
    %124 = vector.broadcast %123 : f32 to vector<16x16x4xf32>
    %125 = arith.select %36, %122, %124 : vector<16x16x4xi1>, vector<16x16x4xf32>
    %126 = vector.extract_strided_slice %102 {offsets = [2, 2, 0], sizes = [16, 16, 4], strides = [1, 1, 1]} : vector<18x18x4xf32> to vector<16x16x4xf32>
    %c0_i32_40 = arith.constant 0 : i32
    %127 = arith.sitofp %c0_i32_40 : i32 to f32
    %128 = vector.broadcast %127 : f32 to vector<16x16x4xf32>
    %129 = arith.select %36, %126, %128 : vector<16x16x4xi1>, vector<16x16x4xf32>
    %130 = tpu.concatenate %41, %45, %49, %53, %54, %55, %56, %60, %64, %72, %76, %80, %84, %85, %86, %87 in 2 : vector<16x16x4xf32>, vector<16x16x4xf32>, vector<16x16x4xf32>, vector<16x16x4xf32>, vector<16x16x4xf32>, vector<16x16x4xf32>, vector<16x16x4xf32>, vector<16x16x4xf32>, vector<16x16x4xf32>, vector<16x16x4xf32>, vector<16x16x4xf32>, vector<16x16x4xf32>, vector<16x16x4xf32>, vector<16x16x4xf32>, vector<16x16x4xf32>, vector<16x16x4xf32> -> vector<16x16x64xf32>
    %131 = tpu.concatenate %91, %95, %103, %107, %111, %115, %116, %117, %118, %122, %126 in 2 : vector<16x16x4xf32>, vector<16x16x4xf32>, vector<16x16x4xf32>, vector<16x16x4xf32>, vector<16x16x4xf32>, vector<16x16x4xf32>, vector<16x16x4xf32>, vector<16x16x4xf32>, vector<16x16x4xf32>, vector<16x16x4xf32>, vector<16x16x4xf32> -> vector<16x16x44xf32>
    %132 = tpu.concatenate %130, %131 in 2 : vector<16x16x64xf32>, vector<16x16x44xf32> -> vector<16x16x108xf32>
    %133 = vector.shape_cast %132 : vector<16x16x108xf32> to vector<256x108xf32>
    %c0_41 = arith.constant 0 : index
    %c0_42 = arith.constant 0 : index
    %134 = vector.load %arg3[%c0_41, %c0_42] : memref<108x128xf32, #tpu.memory_space<vmem>>, vector<108x128xf32>
    %cst = arith.constant dense<0.000000e+00> : vector<256x128xf32>
    %135 = tpu.matmul %133, %134, %cst {dimension_numbers = #tpu.dot_dimension_numbers<[1], [0], [0], [1], [0, 0, 1, 1], [], []>} : vector<256x108xf32>, vector<108x128xf32>, vector<256x128xf32> -> vector<256x128xf32>
    %136 = tpu.concatenate %44, %48, %52, %53, %54, %55, %59, %63, %67, %75, %79, %83, %84, %85, %86, %90 in 2 : vector<16x16x4xf32>, vector<16x16x4xf32>, vector<16x16x4xf32>, vector<16x16x4xf32>, vector<16x16x4xf32>, vector<16x16x4xf32>, vector<16x16x4xf32>, vector<16x16x4xf32>, vector<16x16x4xf32>, vector<16x16x4xf32>, vector<16x16x4xf32>, vector<16x16x4xf32>, vector<16x16x4xf32>, vector<16x16x4xf32>, vector<16x16x4xf32>, vector<16x16x4xf32> -> vector<16x16x64xf32>
    %137 = tpu.concatenate %94, %98, %106, %110, %114, %115, %116, %117, %121, %125, %129 in 2 : vector<16x16x4xf32>, vector<16x16x4xf32>, vector<16x16x4xf32>, vector<16x16x4xf32>, vector<16x16x4xf32>, vector<16x16x4xf32>, vector<16x16x4xf32>, vector<16x16x4xf32>, vector<16x16x4xf32>, vector<16x16x4xf32>, vector<16x16x4xf32> -> vector<16x16x44xf32>
    %138 = tpu.concatenate %136, %137 in 2 : vector<16x16x64xf32>, vector<16x16x44xf32> -> vector<16x16x108xf32>
    %139 = vector.shape_cast %138 : vector<16x16x108xf32> to vector<256x108xf32>
    %c0_43 = arith.constant 0 : index
    %c0_44 = arith.constant 0 : index
    %140 = vector.load %arg4[%c0_43, %c0_44] : memref<108x128xf32, #tpu.memory_space<vmem>>, vector<108x128xf32>
    %cst_45 = arith.constant dense<0.000000e+00> : vector<256x128xf32>
    %141 = tpu.matmul %139, %140, %cst_45 {dimension_numbers = #tpu.dot_dimension_numbers<[1], [0], [0], [1], [0, 0, 1, 1], [], []>} : vector<256x108xf32>, vector<108x128xf32>, vector<256x128xf32> -> vector<256x128xf32>
    %cst_46 = arith.constant 0.000000e+00 : f32
    %142 = vector.broadcast %cst_46 : f32 to vector<256x128xf32>
    %143 = arith.cmpf oge, %135, %142 : vector<256x128xf32>
    %cst_47 = arith.constant 0.00999999977 : f32
    %144 = vector.broadcast %cst_47 : f32 to vector<256x128xf32>
    %145 = arith.mulf %144, %135 : vector<256x128xf32>
    %146 = arith.select %143, %135, %145 : vector<256x128xi1>, vector<256x128xf32>
    %cst_48 = arith.constant 0.000000e+00 : f32
    %147 = vector.broadcast %cst_48 : f32 to vector<256x128xf32>
    %148 = arith.cmpf oge, %141, %147 : vector<256x128xf32>
    %cst_49 = arith.constant 0.00999999977 : f32
    %149 = vector.broadcast %cst_49 : f32 to vector<256x128xf32>
    %150 = arith.mulf %149, %141 : vector<256x128xf32>
    %151 = arith.select %148, %141, %150 : vector<256x128xi1>, vector<256x128xf32>
    %152 = arith.addf %146, %151 : vector<256x128xf32>
    %c0_50 = arith.constant 0 : index
    %c0_51 = arith.constant 0 : index
    %c0_52 = arith.constant 0 : index
    %c0_53 = arith.constant 0 : index
    %153 = vector.load %arg5[%c0_50, %c0_51, %c0_52, %c0_53] : memref<1x1x256x128xf32, #tpu.memory_space<vmem>>, vector<1x1x256x128xf32>
    %154 = vector.shape_cast %153 : vector<1x1x256x128xf32> to vector<256x128xf32>
    %155 = vector.shape_cast %152 : vector<256x128xf32> to vector<1x1x256x128xf32>
    tpu.vector_store %arg5[%c0_50, %c0_51, %c0_52, %c0_53], %155 {strides = array<i32>} : memref<1x1x256x128xf32, #tpu.memory_space<vmem>>, vector<1x1x256x128xf32>,
    return
  }
  func.func @transform_0(%arg0: i32, %arg1: i32) -> (i32, i32, i32, i32, i32) {
    %c0_i32 = arith.constant 0 : i32
    %c0_i32_0 = arith.constant 0 : i32
    %c0_i32_1 = arith.constant 0 : i32
    %c0_i32_2 = arith.constant 0 : i32
    %c0_i32_3 = arith.constant 0 : i32
    return %arg0, %c0_i32, %c0_i32_0, %c0_i32_1, %c0_i32_2 : i32, i32, i32, i32, i32
  }
  func.func @transform_1(%arg0: i32, %arg1: i32) -> (i32, i32) {
    %c0_i32 = arith.constant 0 : i32
    %c0_i32_0 = arith.constant 0 : i32
    %c0_i32_1 = arith.constant 0 : i32
    return %c0_i32, %c0_i32_0 : i32, i32
  }
  func.func @transform_2(%arg0: i32, %arg1: i32) -> (i32, i32) {
    %c0_i32 = arith.constant 0 : i32
    %c0_i32_0 = arith.constant 0 : i32
    %c0_i32_1 = arith.constant 0 : i32
    return %c0_i32, %c0_i32_0 : i32, i32
  }
  func.func @transform_3(%arg0: i32, %arg1: i32) -> (i32, i32, i32, i32) {
    %c0_i32 = arith.constant 0 : i32
    %c0_i32_0 = arith.constant 0 : i32
    %c0_i32_1 = arith.constant 0 : i32
    return %arg0, %arg1, %c0_i32, %c0_i32_0 : i32, i32, i32, i32
  }
}

</mosaic_0001>

<llo_original>
// kernel: tpu_custom_call.1
$region0: #{tpu_custom_call.1}
  #allocation0 [shape = 'u32[]', space=smem, size = 0x4, offset = 0x4, fixed_abs, tag = 'smem constant byte address 0x4 - core index']
  #allocation1 [shape = 'u32[144,128]{1,0:T(1,128)}', space=vmem, size = 0x12000, scoped, tag = 'internal scratch']
  %s0 = inlined_call_operand.vmem [shape: f32[2,6,18,18,4], index: 0, kind: input, shape index: {}]
  %s1 = inlined_call_operand.vmem [shape: f32[108,128], index: 1, kind: input, shape index: {}]
  %s2 = inlined_call_operand.vmem [shape: f32[108,128], index: 2, kind: input, shape index: {}]
  %s3 = inlined_call_operand.hbm [shape: f32[2,4,256,128], index: 3, kind: output, shape index: {}]
  %s4 = sld [smem:[#allocation0]]
  $region45: #{tpu_custom_call.1} parent=0
    _
  %s6 = ssub.s32 1, %s4
  %s7 = scalar_select 0, %s6, %s4
  $region1: #{tpu_custom_call.1} parent=0
    #allocation2 [shape = 'u8[262144]{0}', space=vmem, size = 0x40000, scoped, tag = 'output window, operand 0']
    #allocation3 [shape = 's32[2]{0}', space=sflag, size = 0x8, scoped, tag = 'scoped memory for tpu_custom_call.1']
    %8 = vsyncpa [#allocation3], 0
    %s9 = scalar_lea.sflag [#allocation3], 1
    %10 = vsyncpa %s9, 0
    loop: start=0, step=1, limit=10
    $region2: #{tpu_custom_call.1} parent=1 // loop_pre_header
      _
    $region3: #{tpu_custom_call.1} parent=1 // loop_header
      %s12 = sphi 0, %s16
      %p13 = scmp.ge.s32.totalorder %s12, 10
      %s19 = sphi 0, %s31
      %s20 = sphi 0, %s27
      %s21 = sphi 0, %s19
      %s22 = sphi 0, %s20
      %s23 = sphi 0, %s21
      %s24 = sphi 0, %s22
      %s34 = sphi 0, %s36
      %s37 = sphi 0, %s34
      %s38 = sphi 0, %s37
      %s54 = sphi 0, %s38
      %s58 = sphi 0, %s58
      %s60 = sphi 0, %s58
      %s61 = sphi 0, %s60
      %s75 = sphi 0, %s61
      %s79 = sphi 0, %s79
      %s81 = sphi 0, %s79
      %s82 = sphi 0, %s81
      %s96 = sphi 0, %s82
      %s104 = sphi 0, %s106
      %s107 = sphi 0, %s104
      %s108 = sphi 0, %s107
      %s124 = sphi 0, %s108
    $region4: #{tpu_custom_call.1} parent=1 // loop_header_branch
      %15 = sbr.rel (%p13) target = $region8
    $region5: #{tpu_custom_call.1} parent=1 // loop_body
      %s17 = ssub.s32 %s12, 1
      %s18 = ssub.s32 %s12, 2
      %s25 = sadd.s32 1, %s20
      %p26 = scmp.ge.s32.totalorder %s25, 4
      %s27 = scalar_select %p26, 0, %s25
      %s28 = sadd.s32 1, %s19
      %s29 = scalar_select %p26, %s28, %s19
      %p30 = scmp.ge.s32.totalorder %s29, 2
      %s31 = scalar_select %p30, 0, %s29
      %s32 = ssub.s32 %s19, %s31
      %p33 = scmp.eq.s32.totalorder %s32, 0
      %s35 = sadd.s32 %s34, 1
      %s36 = scalar_select %p33, %s34, %s35
      %p39 = pneg %p33
      %p40 = scmp.eq.s32.totalorder %s12, 7
      %p41 = por %p39, %p40
      %p42 = scmp.ne.s32.totalorder %s34, %s37
      %p43 = scmp.eq.s32.totalorder %s12, 0
      %p44 = por %p42, %p43
      %p45 = scmp.ne.s32.totalorder %s34, %s37
      %p46 = scmp.eq.s32.totalorder %s17, 7
      %p47 = por %p45, %p46
      %p48 = scmp.ne.s32.totalorder %s37, %s38
      %p49 = scmp.eq.s32.totalorder %s17, 0
      %p50 = por %p48, %p49
      %p51 = scmp.ne.s32.totalorder %s37, %s38
      %p52 = scmp.eq.s32.totalorder %s18, 7
      %p53 = por %p51, %p52
      %p55 = scmp.ne.s32.totalorder %s38, %s54
      %p56 = scmp.eq.s32.totalorder %s18, 0
      %p57 = por %p55, %p56
      %s59 = sadd.s32 %s58, 1
      %p62 = scmp.eq.s32.totalorder %s12, 7
      %p63 = scmp.ne.s32.totalorder %s58, %s60
      %p64 = scmp.eq.s32.totalorder %s12, 0
      %p65 = por %p63, %p64
      %p66 = scmp.ne.s32.totalorder %s58, %s60
      %p67 = scmp.eq.s32.totalorder %s17, 7
      %p68 = por %p66, %p67
      %p69 = scmp.ne.s32.totalorder %s60, %s61
      %p70 = scmp.eq.s32.totalorder %s17, 0
      %p71 = por %p69, %p70
      %p72 = scmp.ne.s32.totalorder %s60, %s61
      %p73 = scmp.eq.s32.totalorder %s18, 7
      %p74 = por %p72, %p73
      %p76 = scmp.ne.s32.totalorder %s61, %s75
      %p77 = scmp.eq.s32.totalorder %s18, 0
      %p78 = por %p76, %p77
      %s80 = sadd.s32 %s79, 1
      %p83 = scmp.eq.s32.totalorder %s12, 7
      %p84 = scmp.ne.s32.totalorder %s79, %s81
      %p85 = scmp.eq.s32.totalorder %s12, 0
      %p86 = por %p84, %p85
      %p87 = scmp.ne.s32.totalorder %s79, %s81
      %p88 = scmp.eq.s32.totalorder %s17, 7
      %p89 = por %p87, %p88
      %p90 = scmp.ne.s32.totalorder %s81, %s82
      %p91 = scmp.eq.s32.totalorder %s17, 0
      %p92 = por %p90, %p91
      %p93 = scmp.ne.s32.totalorder %s81, %s82
      %p94 = scmp.eq.s32.totalorder %s18, 7
      %p95 = por %p93, %p94
      %p97 = scmp.ne.s32.totalorder %s82, %s96
      %p98 = scmp.eq.s32.totalorder %s18, 0
      %p99 = por %p97, %p98
      %s100 = ssub.s32 %s19, %s31
      %s101 = ssub.s32 %s20, %s27
      %s102 = sor.u32 %s100, %s101
      %p103 = scmp.eq.s32.totalorder %s102, 0
      %s105 = sadd.s32 %s104, 1
      %s106 = scalar_select %p103, %s104, %s105
      %p109 = pneg %p103
      %p110 = scmp.eq.s32.totalorder %s12, 7
      %p111 = por %p109, %p110
      %p112 = scmp.ne.s32.totalorder %s104, %s107
      %p113 = scmp.eq.s32.totalorder %s12, 0
      %p114 = por %p112, %p113
      %p115 = scmp.ne.s32.totalorder %s104, %s107
      %p116 = scmp.eq.s32.totalorder %s17, 7
      %p117 = por %p115, %p116
      %p118 = scmp.ne.s32.totalorder %s107, %s108
      %p119 = scmp.eq.s32.totalorder %s17, 0
      %p120 = por %p118, %p119
      %p121 = scmp.ne.s32.totalorder %s107, %s108
      %p122 = scmp.eq.s32.totalorder %s18, 7
      %p123 = por %p121, %p122
      %p125 = scmp.ne.s32.totalorder %s108, %s124
      %p126 = scmp.eq.s32.totalorder %s18, 0
      %p127 = por %p125, %p126
      %p128 = scmp.le.s32.totalorder 1, %s12
      %p129 = scmp.lt.s32.totalorder %s12, 9
      %p130 = pnand %p128, %p129
      %p131 = pneg %p130
      // Predicated region
      $region9: #{tpu_custom_call.1} parent=5 // pred_check
        _
      $region10: #{tpu_custom_call.1} parent=5 // pred_check_branch
        %133 = sbr.rel (%p130) target = $region12
      $region11: #{tpu_custom_call.1} parent=5 // pred_region
        %s134 = ssub.s32 %s12, 1
        // Predicated region
        $region13: #{tpu_custom_call.1} parent=11 // pred_check
          %p135 = pneg %p71
        $region14: #{tpu_custom_call.1} parent=11 // pred_check_branch
          %137 = sbr.rel (%p135) target = $region16
        $region15: #{tpu_custom_call.1} parent=11 // pred_region
          _
        $region16: #{tpu_custom_call.1} parent=11 // pred_fallthru
          _
        // Predicated region
        $region17: #{tpu_custom_call.1} parent=11 // pred_check
          %p138 = pneg %p92
        $region18: #{tpu_custom_call.1} parent=11 // pred_check_branch
          %140 = sbr.rel (%p138) target = $region20
        $region19: #{tpu_custom_call.1} parent=11 // pred_region
          _
        $region20: #{tpu_custom_call.1} parent=11 // pred_fallthru
          _
      $region12: #{tpu_custom_call.1} parent=5 // pred_fallthru
        _
      %p141 = scmp.lt.s32.totalorder %s12, 8
      // Predicated region
      $region21: #{tpu_custom_call.1} parent=5 // pred_check
        %p142 = pneg %p141
      $region22: #{tpu_custom_call.1} parent=5 // pred_check_branch
        %144 = sbr.rel (%p142) target = $region24
      $region23: #{tpu_custom_call.1} parent=5 // pred_region
        // Predicated region
        $region25: #{tpu_custom_call.1} parent=23 // pred_check
          %p145 = pneg %p44
        $region26: #{tpu_custom_call.1} parent=23 // pred_check_branch
          %147 = sbr.rel (%p145) target = $region28
        $region27: #{tpu_custom_call.1} parent=23 // pred_region
          %p148 = scmp.lt.s32.totalorder %s19, 1
          %s149 = scalar_select %p148, %s19, 1
          %s150 = smul.addr %s149, 324
          %s151 = smul.addr %s150, 8
          %s152 = scalar_lea.vmem %s0, %s151
        $region28: #{tpu_custom_call.1} parent=23 // pred_fallthru
          _
      $region24: #{tpu_custom_call.1} parent=5 // pred_fallthru
        _
      %p153 = scmp.le.s32.totalorder 1, %s12
      %p154 = scmp.lt.s32.totalorder %s12, 9
      %p155 = pnand %p153, %p154
      %p156 = pneg %p155
      // Predicated region
      $region29: #{tpu_custom_call.1} parent=5 // pred_check
        _
      $region30: #{tpu_custom_call.1} parent=5 // pred_check_branch
        %158 = sbr.rel (%p155) target = $region32
      $region31: #{tpu_custom_call.1} parent=5 // pred_region
        %s159 = ssub.s32 %s12, 1
        %p160 = scmp.lt.s32.totalorder %s21, 1
        %s161 = scalar_select %p160, %s21, 1
        %s162 = smul.addr %s161, 324
        %s163 = smul.addr %s162, 8
        %s164 = scalar_lea.vmem %s0, %s163
        %p165 = pneg %p50
        %p166 = pneg %p47
        %p167 = pneg %p71
        %p168 = pneg %p68
        %p169 = pneg %p92
        %p170 = pneg %p89
        %p171 = pneg %p120
        %p172 = pneg %p117
        %s173 = sand.u32 %s107, 1
        %s174 = scalar_lea.sflag [#allocation3], %s173
        %s175 = sand.u32 %s107, 1
        %s176 = smul.addr %s175, 256
        %s177 = scalar_lea.vmem [#allocation2], %s176
        %p178 = scmp.lt.s32.totalorder %s21, 1
        %s179 = scalar_select %p178, %s21, 1
        %s180 = smul.addr %s179, 324
        %s181 = smul.addr %s180, 8
        %s182 = scalar_lea.vmem %s0, %s181
        %s183 = smul.u32 %s22, 432
        %s184 = scalar_lea.vmem %s182, %s183
        %v185 = vld [vmem:[%s184] sm:$0xff]
        %v186 = vld [vmem:[%s184 + $0x8] sm:$0xff]
        %v187 = vld [vmem:[%s184 + $0x10] sm:$0x3]
        %v188 = vld [vmem:[%s184 + $0x18] sm:$0xff]
        %v189 = vld [vmem:[%s184 + $0x20] sm:$0xff]
        %v190 = vld [vmem:[%s184 + $0x28] sm:$0x3]
        %v191 = vld [vmem:[%s184 + $0x30] sm:$0xff]
        %v192 = vld [vmem:[%s184 + $0x38] sm:$0xff]
        %v193 = vld [vmem:[%s184 + $0x40] sm:$0x3]
        %v194 = vld [vmem:[%s184 + $0x48] sm:$0xff]
        %v195 = vld [vmem:[%s184 + $0x50] sm:$0xff]
        %v196 = vld [vmem:[%s184 + $0x58] sm:$0x3]
        %v197 = vld [vmem:[%s184 + $0x60] sm:$0xff]
        %v198 = vld [vmem:[%s184 + $0x68] sm:$0xff]
        %v199 = vld [vmem:[%s184 + $0x70] sm:$0x3]
        %v200 = vld [vmem:[%s184 + $0x78] sm:$0xff]
        %v201 = vld [vmem:[%s184 + $0x80] sm:$0xff]
        %v202 = vld [vmem:[%s184 + $0x88] sm:$0x3]
        %v203 = vld [vmem:[%s184 + $0x90] sm:$0xff]
        %v204 = vld [vmem:[%s184 + $0x98] sm:$0xff]
        %v205 = vld [vmem:[%s184 + $0xa0] sm:$0x3]
        %v206 = vld [vmem:[%s184 + $0xa8] sm:$0xff]
        %v207 = vld [vmem:[%s184 + $0xb0] sm:$0xff]
        %v208 = vld [vmem:[%s184 + $0xb8] sm:$0x3]
        %v209 = vld [vmem:[%s184 + $0xc0] sm:$0xff]
        %v210 = vld [vmem:[%s184 + $0xc8] sm:$0xff]
        %v211 = vld [vmem:[%s184 + $0xd0] sm:$0x3]
        %v212 = vld [vmem:[%s184 + $0xd8] sm:$0xff]
        %v213 = vld [vmem:[%s184 + $0xe0] sm:$0xff]
        %v214 = vld [vmem:[%s184 + $0xe8] sm:$0x3]
        %v215 = vld [vmem:[%s184 + $0xf0] sm:$0xff]
        %v216 = vld [vmem:[%s184 + $0xf8] sm:$0xff]
        %v217 = vld [vmem:[%s184 + $0x100] sm:$0x3]
        %v218 = vld [vmem:[%s184 + $0x108] sm:$0xff]
        %v219 = vld [vmem:[%s184 + $0x110] sm:$0xff]
        %v220 = vld [vmem:[%s184 + $0x118] sm:$0x3]
        %v221 = vld [vmem:[%s184 + $0x120] sm:$0xff]
        %v222 = vld [vmem:[%s184 + $0x128] sm:$0xff]
        %v223 = vld [vmem:[%s184 + $0x130] sm:$0x3]
        %v224 = vld [vmem:[%s184 + $0x138] sm:$0xff]
        %v225 = vld [vmem:[%s184 + $0x140] sm:$0xff]
        %v226 = vld [vmem:[%s184 + $0x148] sm:$0x3]
        %v227 = vld [vmem:[%s184 + $0x150] sm:$0xff]
        %v228 = vld [vmem:[%s184 + $0x158] sm:$0xff]
        %v229 = vld [vmem:[%s184 + $0x160] sm:$0x3]
        %v230 = vld [vmem:[%s184 + $0x168] sm:$0xff]
        %v231 = vld [vmem:[%s184 + $0x170] sm:$0xff]
        %v232 = vld [vmem:[%s184 + $0x178] sm:$0x3]
        %v233 = vld [vmem:[%s184 + $0x180] sm:$0xff]
        %v234 = vld [vmem:[%s184 + $0x188] sm:$0xff]
        %v235 = vld [vmem:[%s184 + $0x190] sm:$0x3]
        %v236 = vld [vmem:[%s184 + $0x198] sm:$0xff]
        %v237 = vld [vmem:[%s184 + $0x1a0] sm:$0xff]
        %v238 = vld [vmem:[%s184 + $0x1a8] sm:$0x3]
        %v239 = vsel 0, %v185, 0.0
        %v240 = vsel 0, %v186, 0.0
        %v241 = vsel 1, %v188, 0.0
        %v242 = vsel 1, %v189, 0.0
        %v243 = vsel 1, %v191, 0.0
        %v244 = vsel 1, %v192, 0.0
        %v245 = vsel 1, %v194, 0.0
        %v246 = vsel 1, %v195, 0.0
        %v247 = vsel 1, %v197, 0.0
        %v248 = vsel 1, %v198, 0.0
        %v249 = vsel 1, %v200, 0.0
        %v250 = vsel 1, %v201, 0.0
        %v251 = vsel 1, %v203, 0.0
        %v252 = vsel 1, %v204, 0.0
        %v253 = vsel 1, %v206, 0.0
        %v254 = vsel 1, %v207, 0.0
        %v255 = vsel 0, %v209, 0.0
        %v256 = vsel 0, %v210, 0.0
        %v257 = vsel 1, %v212, 0.0
        %v258 = vsel 1, %v213, 0.0
        %v259 = vsel 1, %v215, 0.0
        %v260 = vsel 1, %v216, 0.0
        %v261 = vsel 1, %v218, 0.0
        %v262 = vsel 1, %v219, 0.0
        %v263 = vsel 1, %v221, 0.0
        %v264 = vsel 1, %v222, 0.0
        %v265 = vsel 1, %v224, 0.0
        %v266 = vsel 1, %v225, 0.0
        %v267 = vsel 1, %v227, 0.0
        %v268 = vsel 1, %v228, 0.0
        %v269 = vsel 1, %v230, 0.0
        %v270 = vsel 1, %v231, 0.0
        %v271 = vsel 0, %v187, 0.0
        %v272 = vsel 1, %v190, 0.0
        %v273 = vsel 1, %v193, 0.0
        %v274 = vsel 1, %v196, 0.0
        %v275 = vsel 1, %v199, 0.0
        %v276 = vsel 1, %v202, 0.0
        %v277 = vsel 1, %v205, 0.0
        %v278 = vsel 1, %v208, 0.0
        %v279 = vsel 0, %v211, 0.0
        %v280 = vsel 1, %v214, 0.0
        %v281 = vsel 1, %v217, 0.0
        %v282 = vsel 1, %v220, 0.0
        %v283 = vsel 1, %v223, 0.0
        %v284 = vsel 1, %v226, 0.0
        %v285 = vsel 1, %v229, 0.0
        %v286 = vsel 1, %v232, 0.0
        %v287 = vsel 1, %v209, 0.0
        %v288 = vsel 1, %v210, 0.0
        %v289 = vsel 0, %v212, 0.0
        %v290 = vsel 0, %v213, 0.0
        %v291 = vsel 1, %v233, 0.0
        %v292 = vsel 1, %v234, 0.0
        %v293 = vsel 0, %v236, 0.0
        %v294 = vsel 0, %v237, 0.0
        %v295 = vsel 1, %v211, 0.0
        %v296 = vsel 0, %v214, 0.0
        %v297 = vsel 1, %v235, 0.0
        %v298 = vsel 0, %v238, 0.0
        %s299 = sadd.s32 %s22, 1
        %s300 = smul.u32 %s299, 432
        %s301 = scalar_lea.vmem %s182, %s300
        %v302 = vld [vmem:[%s301] sm:$0xff]
        %v303 = vld [vmem:[%s301 + $0x8] sm:$0xff]
        %v304 = vld [vmem:[%s301 + $0x10] sm:$0x3]
        %v305 = vld [vmem:[%s301 + $0x18] sm:$0xff]
        %v306 = vld [vmem:[%s301 + $0x20] sm:$0xff]
        %v307 = vld [vmem:[%s301 + $0x28] sm:$0x3]
        %v308 = vld [vmem:[%s301 + $0x30] sm:$0xff]
        %v309 = vld [vmem:[%s301 + $0x38] sm:$0xff]
        %v310 = vld [vmem:[%s301 + $0x40] sm:$0x3]
        %v311 = vld [vmem:[%s301 + $0x48] sm:$0xff]
        %v312 = vld [vmem:[%s301 + $0x50] sm:$0xff]
        %v313 = vld [vmem:[%s301 + $0x58] sm:$0x3]
        %v314 = vld [vmem:[%s301 + $0x60] sm:$0xff]
        %v315 = vld [vmem:[%s301 + $0x68] sm:$0xff]
        %v316 = vld [vmem:[%s301 + $0x70] sm:$0x3]
        %v317 = vld [vmem:[%s301 + $0x78] sm:$0xff]
        %v318 = vld [vmem:[%s301 + $0x80] sm:$0xff]
        %v319 = vld [vmem:[%s301 + $0x88] sm:$0x3]
        %v320 = vld [vmem:[%s301 + $0x90] sm:$0xff]
        %v321 = vld [vmem:[%s301 + $0x98] sm:$0xff]
        %v322 = vld [vmem:[%s301 + $0xa0] sm:$0x3]
        %v323 = vld [vmem:[%s301 + $0xa8] sm:$0xff]
        %v324 = vld [vmem:[%s301 + $0xb0] sm:$0xff]
        %v325 = vld [vmem:[%s301 + $0xb8] sm:$0x3]
        %v326 = vld [vmem:[%s301 + $0xc0] sm:$0xff]
        %v327 = vld [vmem:[%s301 + $0xc8] sm:$0xff]
        %v328 = vld [vmem:[%s301 + $0xd0] sm:$0x3]
        %v329 = vld [vmem:[%s301 + $0xd8] sm:$0xff]
        %v330 = vld [vmem:[%s301 + $0xe0] sm:$0xff]
        %v331 = vld [vmem:[%s301 + $0xe8] sm:$0x3]
        %v332 = vld [vmem:[%s301 + $0xf0] sm:$0xff]
        %v333 = vld [vmem:[%s301 + $0xf8] sm:$0xff]
        %v334 = vld [vmem:[%s301 + $0x100] sm:$0x3]
        %v335 = vld [vmem:[%s301 + $0x108] sm:$0xff]
        %v336 = vld [vmem:[%s301 + $0x110] sm:$0xff]
        %v337 = vld [vmem:[%s301 + $0x118] sm:$0x3]
        %v338 = vld [vmem:[%s301 + $0x120] sm:$0xff]
        %v339 = vld [vmem:[%s301 + $0x128] sm:$0xff]
        %v340 = vld [vmem:[%s301 + $0x130] sm:$0x3]
        %v341 = vld [vmem:[%s301 + $0x138] sm:$0xff]
        %v342 = vld [vmem:[%s301 + $0x140] sm:$0xff]
        %v343 = vld [vmem:[%s301 + $0x148] sm:$0x3]
        %v344 = vld [vmem:[%s301 + $0x150] sm:$0xff]
        %v345 = vld [vmem:[%s301 + $0x158] sm:$0xff]
        %v346 = vld [vmem:[%s301 + $0x160] sm:$0x3]
        %v347 = vld [vmem:[%s301 + $0x168] sm:$0xff]
        %v348 = vld [vmem:[%s301 + $0x170] sm:$0xff]
        %v349 = vld [vmem:[%s301 + $0x178] sm:$0x3]
        %v350 = vld [vmem:[%s301 + $0x180] sm:$0xff]
        %v351 = vld [vmem:[%s301 + $0x188] sm:$0xff]
        %v352 = vld [vmem:[%s301 + $0x190] sm:$0x3]
        %v353 = vld [vmem:[%s301 + $0x198] sm:$0xff]
        %v354 = vld [vmem:[%s301 + $0x1a0] sm:$0xff]
        %v355 = vld [vmem:[%s301 + $0x1a8] sm:$0x3]
        %v356 = vsel 0, %v302, 0.0
        %v357 = vsel 0, %v303, 0.0
        %v358 = vsel 1, %v305, 0.0
        %v359 = vsel 1, %v306, 0.0
        %v360 = vsel 1, %v308, 0.0
        %v361 = vsel 1, %v309, 0.0
        %v362 = vsel 1, %v311, 0.0
        %v363 = vsel 1, %v312, 0.0
        %v364 = vsel 1, %v314, 0.0
        %v365 = vsel 1, %v315, 0.0
        %v366 = vsel 1, %v317, 0.0
        %v367 = vsel 1, %v318, 0.0
        %v368 = vsel 1, %v320, 0.0
        %v369 = vsel 1, %v321, 0.0
        %v370 = vsel 1, %v323, 0.0
        %v371 = vsel 1, %v324, 0.0
        %v372 = vsel 0, %v326, 0.0
        %v373 = vsel 0, %v327, 0.0
        %v374 = vsel 1, %v329, 0.0
        %v375 = vsel 1, %v330, 0.0
        %v376 = vsel 1, %v332, 0.0
        %v377 = vsel 1, %v333, 0.0
        %v378 = vsel 1, %v335, 0.0
        %v379 = vsel 1, %v336, 0.0
        %v380 = vsel 1, %v338, 0.0
        %v381 = vsel 1, %v339, 0.0
        %v382 = vsel 1, %v341, 0.0
        %v383 = vsel 1, %v342, 0.0
        %v384 = vsel 1, %v344, 0.0
        %v385 = vsel 1, %v345, 0.0
        %v386 = vsel 1, %v347, 0.0
        %v387 = vsel 1, %v348, 0.0
        %v388 = vsel 0, %v304, 0.0
        %v389 = vsel 1, %v307, 0.0
        %v390 = vsel 1, %v310, 0.0
        %v391 = vsel 1, %v313, 0.0
        %v392 = vsel 1, %v316, 0.0
        %v393 = vsel 1, %v319, 0.0
        %v394 = vsel 1, %v322, 0.0
        %v395 = vsel 1, %v325, 0.0
        %v396 = vsel 0, %v328, 0.0
        %v397 = vsel 1, %v331, 0.0
        %v398 = vsel 1, %v334, 0.0
        %v399 = vsel 1, %v337, 0.0
        %v400 = vsel 1, %v340, 0.0
        %v401 = vsel 1, %v343, 0.0
        %v402 = vsel 1, %v346, 0.0
        %v403 = vsel 1, %v349, 0.0
        %v404 = vsel 1, %v326, 0.0
        %v405 = vsel 1, %v327, 0.0
        %v406 = vsel 0, %v329, 0.0
        %v407 = vsel 0, %v330, 0.0
        %v408 = vsel 1, %v350, 0.0
        %v409 = vsel 1, %v351, 0.0
        %v410 = vsel 0, %v353, 0.0
        %v411 = vsel 0, %v354, 0.0
        %v412 = vsel 1, %v328, 0.0
        %v413 = vsel 0, %v331, 0.0
        %v414 = vsel 1, %v352, 0.0
        %v415 = vsel 0, %v355, 0.0
        %s416 = sadd.s32 %s22, 2
        %s417 = smul.u32 %s416, 432
        %s418 = scalar_lea.vmem %s182, %s417
        %v419 = vld [vmem:[%s418] sm:$0xff]
        %v420 = vld [vmem:[%s418 + $0x8] sm:$0xff]
        %v421 = vld [vmem:[%s418 + $0x10] sm:$0x3]
        %v422 = vld [vmem:[%s418 + $0x18] sm:$0xff]
        %v423 = vld [vmem:[%s418 + $0x20] sm:$0xff]
        %v424 = vld [vmem:[%s418 + $0x28] sm:$0x3]
        %v425 = vld [vmem:[%s418 + $0x30] sm:$0xff]
        %v426 = vld [vmem:[%s418 + $0x38] sm:$0xff]
        %v427 = vld [vmem:[%s418 + $0x40] sm:$0x3]
        %v428 = vld [vmem:[%s418 + $0x48] sm:$0xff]
        %v429 = vld [vmem:[%s418 + $0x50] sm:$0xff]
        %v430 = vld [vmem:[%s418 + $0x58] sm:$0x3]
        %v431 = vld [vmem:[%s418 + $0x60] sm:$0xff]
        %v432 = vld [vmem:[%s418 + $0x68] sm:$0xff]
        %v433 = vld [vmem:[%s418 + $0x70] sm:$0x3]
        %v434 = vld [vmem:[%s418 + $0x78] sm:$0xff]
        %v435 = vld [vmem:[%s418 + $0x80] sm:$0xff]
        %v436 = vld [vmem:[%s418 + $0x88] sm:$0x3]
        %v437 = vld [vmem:[%s418 + $0x90] sm:$0xff]
        %v438 = vld [vmem:[%s418 + $0x98] sm:$0xff]
        %v439 = vld [vmem:[%s418 + $0xa0] sm:$0x3]
        %v440 = vld [vmem:[%s418 + $0xa8] sm:$0xff]
        %v441 = vld [vmem:[%s418 + $0xb0] sm:$0xff]
        %v442 = vld [vmem:[%s418 + $0xb8] sm:$0x3]
        %v443 = vld [vmem:[%s418 + $0xc0] sm:$0xff]
        %v444 = vld [vmem:[%s418 + $0xc8] sm:$0xff]
        %v445 = vld [vmem:[%s418 + $0xd0] sm:$0x3]
        %v446 = vld [vmem:[%s418 + $0xd8] sm:$0xff]
        %v447 = vld [vmem:[%s418 + $0xe0] sm:$0xff]
        %v448 = vld [vmem:[%s418 + $0xe8] sm:$0x3]
        %v449 = vld [vmem:[%s418 + $0xf0] sm:$0xff]
        %v450 = vld [vmem:[%s418 + $0xf8] sm:$0xff]
        %v451 = vld [vmem:[%s418 + $0x100] sm:$0x3]
        %v452 = vld [vmem:[%s418 + $0x108] sm:$0xff]
        %v453 = vld [vmem:[%s418 + $0x110] sm:$0xff]
        %v454 = vld [vmem:[%s418 + $0x118] sm:$0x3]
        %v455 = vld [vmem:[%s418 + $0x120] sm:$0xff]
        %v456 = vld [vmem:[%s418 + $0x128] sm:$0xff]
        %v457 = vld [vmem:[%s418 + $0x130] sm:$0x3]
        %v458 = vld [vmem:[%s418 + $0x138] sm:$0xff]
        %v459 = vld [vmem:[%s418 + $0x140] sm:$0xff]
        %v460 = vld [vmem:[%s418 + $0x148] sm:$0x3]
        %v461 = vld [vmem:[%s418 + $0x150] sm:$0xff]
        %v462 = vld [vmem:[%s418 + $0x158] sm:$0xff]
        %v463 = vld [vmem:[%s418 + $0x160] sm:$0x3]
        %v464 = vld [vmem:[%s418 + $0x168] sm:$0xff]
        %v465 = vld [vmem:[%s418 + $0x170] sm:$0xff]
        %v466 = vld [vmem:[%s418 + $0x178] sm:$0x3]
        %v467 = vld [vmem:[%s418 + $0x180] sm:$0xff]
        %v468 = vld [vmem:[%s418 + $0x188] sm:$0xff]
        %v469 = vld [vmem:[%s418 + $0x190] sm:$0x3]
        %v470 = vld [vmem:[%s418 + $0x198] sm:$0xff]
        %v471 = vld [vmem:[%s418 + $0x1a0] sm:$0xff]
        %v472 = vld [vmem:[%s418 + $0x1a8] sm:$0x3]
        %v473 = vsel 0, %v419, 0.0
        %v474 = vsel 0, %v420, 0.0
        %v475 = vsel 1, %v422, 0.0
        %v476 = vsel 1, %v423, 0.0
        %v477 = vsel 1, %v425, 0.0
        %v478 = vsel 1, %v426, 0.0
        %v479 = vsel 1, %v428, 0.0
        %v480 = vsel 1, %v429, 0.0
        %v481 = vsel 1, %v431, 0.0
        %v482 = vsel 1, %v432, 0.0
        %v483 = vsel 1, %v434, 0.0
        %v484 = vsel 1, %v435, 0.0
        %v485 = vsel 1, %v437, 0.0
        %v486 = vsel 1, %v438, 0.0
        %v487 = vsel 1, %v440, 0.0
        %v488 = vsel 1, %v441, 0.0
        %v489 = vsel 0, %v443, 0.0
        %v490 = vsel 0, %v444, 0.0
        %v491 = vsel 1, %v446, 0.0
        %v492 = vsel 1, %v447, 0.0
        %v493 = vsel 1, %v449, 0.0
        %v494 = vsel 1, %v450, 0.0
        %v495 = vsel 1, %v452, 0.0
        %v496 = vsel 1, %v453, 0.0
        %v497 = vsel 1, %v455, 0.0
        %v498 = vsel 1, %v456, 0.0
        %v499 = vsel 1, %v458, 0.0
        %v500 = vsel 1, %v459, 0.0
        %v501 = vsel 1, %v461, 0.0
        %v502 = vsel 1, %v462, 0.0
        %v503 = vsel 1, %v464, 0.0
        %v504 = vsel 1, %v465, 0.0
        %v505 = vsel 0, %v421, 0.0
        %v506 = vsel 1, %v424, 0.0
        %v507 = vsel 1, %v427, 0.0
        %v508 = vsel 1, %v430, 0.0
        %v509 = vsel 1, %v433, 0.0
        %v510 = vsel 1, %v436, 0.0
        %v511 = vsel 1, %v439, 0.0
        %v512 = vsel 1, %v442, 0.0
        %v513 = vsel 0, %v445, 0.0
        %v514 = vsel 1, %v448, 0.0
        %v515 = vsel 1, %v451, 0.0
        %v516 = vsel 1, %v454, 0.0
        %v517 = vsel 1, %v457, 0.0
        %v518 = vsel 1, %v460, 0.0
        %v519 = vsel 1, %v463, 0.0
        %v520 = vsel 1, %v466, 0.0
        %v521 = vsel 1, %v443, 0.0
        %v522 = vsel 1, %v444, 0.0
        %v523 = vsel 0, %v446, 0.0
        %v524 = vsel 0, %v447, 0.0
        %v525 = vsel 1, %v467, 0.0
        %v526 = vsel 1, %v468, 0.0
        %v527 = vsel 0, %v470, 0.0
        %v528 = vsel 0, %v471, 0.0
        %v529 = vsel 1, %v445, 0.0
        %v530 = vsel 0, %v448, 0.0
        %v531 = vsel 1, %v469, 0.0
        %v532 = vsel 0, %v472, 0.0
        %vm581 = vcmask 1046528
        %v582 = vrot.slane %v185, 1
        %v583 = vrot.slane %v186, 1
        %v584 = vsel %vm581, %v582, %v583
        %v585 = vrot.slane %v187, 1
        %v586 = vsel %vm581, %v583, %v585
        %v587 = vrot.slane %v188, 1
        %v588 = vrot.slane %v189, 1
        %v589 = vsel %vm581, %v587, %v588
        %v590 = vrot.slane %v190, 1
        %v591 = vsel %vm581, %v588, %v590
        %v592 = vrot.slane %v191, 1
        %v593 = vrot.slane %v192, 1
        %v594 = vsel %vm581, %v592, %v593
        %v595 = vrot.slane %v193, 1
        %v596 = vsel %vm581, %v593, %v595
        %v597 = vrot.slane %v194, 1
        %v598 = vrot.slane %v195, 1
        %v599 = vsel %vm581, %v597, %v598
        %v600 = vrot.slane %v196, 1
        %v601 = vsel %vm581, %v598, %v600
        %v602 = vrot.slane %v197, 1
        %v603 = vrot.slane %v198, 1
        %v604 = vsel %vm581, %v602, %v603
        %v605 = vrot.slane %v199, 1
        %v606 = vsel %vm581, %v603, %v605
        %v607 = vrot.slane %v200, 1
        %v608 = vrot.slane %v201, 1
        %v609 = vsel %vm581, %v607, %v608
        %v610 = vrot.slane %v202, 1
        %v611 = vsel %vm581, %v608, %v610
        %v612 = vrot.slane %v203, 1
        %v613 = vrot.slane %v204, 1
        %v614 = vsel %vm581, %v612, %v613
        %v615 = vrot.slane %v205, 1
        %v616 = vsel %vm581, %v613, %v615
        %v617 = vrot.slane %v206, 1
        %v618 = vrot.slane %v207, 1
        %v619 = vsel %vm581, %v617, %v618
        %v620 = vrot.slane %v208, 1
        %v621 = vsel %vm581, %v618, %v620
        %v622 = vrot.slane %v209, 1
        %v623 = vrot.slane %v210, 1
        %v624 = vsel %vm581, %v622, %v623
        %v625 = vrot.slane %v211, 1
        %v626 = vsel %vm581, %v623, %v625
        %v627 = vrot.slane %v212, 1
        %v628 = vrot.slane %v213, 1
        %v629 = vsel %vm581, %v627, %v628
        %v630 = vrot.slane %v214, 1
        %v631 = vsel %vm581, %v628, %v630
        %v632 = vrot.slane %v215, 1
        %v633 = vrot.slane %v216, 1
        %v634 = vsel %vm581, %v632, %v633
        %v635 = vrot.slane %v217, 1
        %v636 = vsel %vm581, %v633, %v635
        %v637 = vrot.slane %v218, 1
        %v638 = vrot.slane %v219, 1
        %v639 = vsel %vm581, %v637, %v638
        %v640 = vrot.slane %v220, 1
        %v641 = vsel %vm581, %v638, %v640
        %v642 = vrot.slane %v221, 1
        %v643 = vrot.slane %v222, 1
        %v644 = vsel %vm581, %v642, %v643
        %v645 = vrot.slane %v223, 1
        %v646 = vsel %vm581, %v643, %v645
        %v647 = vrot.slane %v224, 1
        %v648 = vrot.slane %v225, 1
        %v649 = vsel %vm581, %v647, %v648
        %v650 = vrot.slane %v226, 1
        %v651 = vsel %vm581, %v648, %v650
        %v652 = vrot.slane %v227, 1
        %v653 = vrot.slane %v228, 1
        %v654 = vsel %vm581, %v652, %v653
        %v655 = vrot.slane %v229, 1
        %v656 = vsel %vm581, %v653, %v655
        %v657 = vrot.slane %v230, 1
        %v658 = vrot.slane %v231, 1
        %v659 = vsel %vm581, %v657, %v658
        %v660 = vrot.slane %v232, 1
        %v661 = vsel %vm581, %v658, %v660
        %662 = vrot.lane.b32.xlu0 %v584, 4
        %v663 = vpop.permute.xlu0 %662
        %664 = vrot.lane.b32.xlu0 %v586, 4
        %v665 = vpop.permute.xlu0 %664
        %666 = vrot.lane.b32.xlu0 %v589, 4
        %v667 = vpop.permute.xlu0 %666
        %668 = vrot.lane.b32.xlu0 %v591, 4
        %v669 = vpop.permute.xlu0 %668
        %670 = vrot.lane.b32.xlu0 %v594, 4
        %v671 = vpop.permute.xlu0 %670
        %672 = vrot.lane.b32.xlu0 %v596, 4
        %v673 = vpop.permute.xlu0 %672
        %674 = vrot.lane.b32.xlu0 %v599, 4
        %v675 = vpop.permute.xlu0 %674
        %676 = vrot.lane.b32.xlu0 %v601, 4
        %v677 = vpop.permute.xlu0 %676
        %678 = vrot.lane.b32.xlu0 %v604, 4
        %v679 = vpop.permute.xlu0 %678
        %680 = vrot.lane.b32.xlu0 %v606, 4
        %v681 = vpop.permute.xlu0 %680
        %682 = vrot.lane.b32.xlu0 %v609, 4
        %v683 = vpop.permute.xlu0 %682
        %684 = vrot.lane.b32.xlu0 %v611, 4
        %v685 = vpop.permute.xlu0 %684
        %686 = vrot.lane.b32.xlu0 %v614, 4
        %v687 = vpop.permute.xlu0 %686
        %688 = vrot.lane.b32.xlu0 %v616, 4
        %v689 = vpop.permute.xlu0 %688
        %690 = vrot.lane.b32.xlu0 %v619, 4
        %v691 = vpop.permute.xlu0 %690
        %692 = vrot.lane.b32.xlu0 %v621, 4
        %v693 = vpop.permute.xlu0 %692
        %694 = vrot.lane.b32.xlu0 %v624, 4
        %v695 = vpop.permute.xlu0 %694
        %696 = vrot.lane.b32.xlu0 %v626, 4
        %v697 = vpop.permute.xlu0 %696
        %698 = vrot.lane.b32.xlu0 %v629, 4
        %v699 = vpop.permute.xlu0 %698
        %700 = vrot.lane.b32.xlu0 %v631, 4
        %v701 = vpop.permute.xlu0 %700
        %702 = vrot.lane.b32.xlu0 %v634, 4
        %v703 = vpop.permute.xlu0 %702
        %704 = vrot.lane.b32.xlu0 %v636, 4
        %v705 = vpop.permute.xlu0 %704
        %706 = vrot.lane.b32.xlu0 %v639, 4
        %v707 = vpop.permute.xlu0 %706
        %708 = vrot.lane.b32.xlu0 %v641, 4
        %v709 = vpop.permute.xlu0 %708
        %710 = vrot.lane.b32.xlu0 %v644, 4
        %v711 = vpop.permute.xlu0 %710
        %712 = vrot.lane.b32.xlu0 %v646, 4
        %v713 = vpop.permute.xlu0 %712
        %714 = vrot.lane.b32.xlu0 %v649, 4
        %v715 = vpop.permute.xlu0 %714
        %716 = vrot.lane.b32.xlu0 %v651, 4
        %v717 = vpop.permute.xlu0 %716
        %718 = vrot.lane.b32.xlu0 %v654, 4
        %v719 = vpop.permute.xlu0 %718
        %720 = vrot.lane.b32.xlu0 %v656, 4
        %v721 = vpop.permute.xlu0 %720
        %722 = vrot.lane.b32.xlu0 %v659, 4
        %v723 = vpop.permute.xlu0 %722
        %724 = vrot.lane.b32.xlu0 %v661, 4
        %v725 = vpop.permute.xlu0 %724
        %vm758 = vcmask 1045504
        %v759 = vrot.slane %v185, 2
        %v760 = vrot.slane %v186, 2
        %v761 = vsel %vm758, %v759, %v760
        %v762 = vrot.slane %v187, 2
        %v763 = vsel %vm758, %v760, %v762
        %v764 = vrot.slane %v188, 2
        %v765 = vrot.slane %v189, 2
        %v766 = vsel %vm758, %v764, %v765
        %v767 = vrot.slane %v190, 2
        %v768 = vsel %vm758, %v765, %v767
        %v769 = vrot.slane %v191, 2
        %v770 = vrot.slane %v192, 2
        %v771 = vsel %vm758, %v769, %v770
        %v772 = vrot.slane %v193, 2
        %v773 = vsel %vm758, %v770, %v772
        %v774 = vrot.slane %v194, 2
        %v775 = vrot.slane %v195, 2
        %v776 = vsel %vm758, %v774, %v775
        %v777 = vrot.slane %v196, 2
        %v778 = vsel %vm758, %v775, %v777
        %v779 = vrot.slane %v197, 2
        %v780 = vrot.slane %v198, 2
        %v781 = vsel %vm758, %v779, %v780
        %v782 = vrot.slane %v199, 2
        %v783 = vsel %vm758, %v780, %v782
        %v784 = vrot.slane %v200, 2
        %v785 = vrot.slane %v201, 2
        %v786 = vsel %vm758, %v784, %v785
        %v787 = vrot.slane %v202, 2
        %v788 = vsel %vm758, %v785, %v787
        %v789 = vrot.slane %v203, 2
        %v790 = vrot.slane %v204, 2
        %v791 = vsel %vm758, %v789, %v790
        %v792 = vrot.slane %v205, 2
        %v793 = vsel %vm758, %v790, %v792
        %v794 = vrot.slane %v206, 2
        %v795 = vrot.slane %v207, 2
        %v796 = vsel %vm758, %v794, %v795
        %v797 = vrot.slane %v208, 2
        %v798 = vsel %vm758, %v795, %v797
        %v799 = vrot.slane %v209, 2
        %v800 = vrot.slane %v210, 2
        %v801 = vsel %vm758, %v799, %v800
        %v802 = vrot.slane %v211, 2
        %v803 = vsel %vm758, %v800, %v802
        %v804 = vrot.slane %v212, 2
        %v805 = vrot.slane %v213, 2
        %v806 = vsel %vm758, %v804, %v805
        %v807 = vrot.slane %v214, 2
        %v808 = vsel %vm758, %v805, %v807
        %v809 = vrot.slane %v215, 2
        %v810 = vrot.slane %v216, 2
        %v811 = vsel %vm758, %v809, %v810
        %v812 = vrot.slane %v217, 2
        %v813 = vsel %vm758, %v810, %v812
        %v814 = vrot.slane %v218, 2
        %v815 = vrot.slane %v219, 2
        %v816 = vsel %vm758, %v814, %v815
        %v817 = vrot.slane %v220, 2
        %v818 = vsel %vm758, %v815, %v817
        %v819 = vrot.slane %v221, 2
        %v820 = vrot.slane %v222, 2
        %v821 = vsel %vm758, %v819, %v820
        %v822 = vrot.slane %v223, 2
        %v823 = vsel %vm758, %v820, %v822
        %v824 = vrot.slane %v224, 2
        %v825 = vrot.slane %v225, 2
        %v826 = vsel %vm758, %v824, %v825
        %v827 = vrot.slane %v226, 2
        %v828 = vsel %vm758, %v825, %v827
        %v829 = vrot.slane %v227, 2
        %v830 = vrot.slane %v228, 2
        %v831 = vsel %vm758, %v829, %v830
        %v832 = vrot.slane %v229, 2
        %v833 = vsel %vm758, %v830, %v832
        %v834 = vrot.slane %v230, 2
        %v835 = vrot.slane %v231, 2
        %v836 = vsel %vm758, %v834, %v835
        %v837 = vrot.slane %v232, 2
        %v838 = vsel %vm758, %v835, %v837
        %839 = vrot.lane.b32.xlu0 %v761, 8
        %v840 = vpop.permute.xlu0 %839
        %841 = vrot.lane.b32.xlu0 %v763, 8
        %v842 = vpop.permute.xlu0 %841
        %843 = vrot.lane.b32.xlu0 %v766, 8
        %v844 = vpop.permute.xlu0 %843
        %845 = vrot.lane.b32.xlu0 %v768, 8
        %v846 = vpop.permute.xlu0 %845
        %847 = vrot.lane.b32.xlu0 %v771, 8
        %v848 = vpop.permute.xlu0 %847
        %849 = vrot.lane.b32.xlu0 %v773, 8
        %v850 = vpop.permute.xlu0 %849
        %851 = vrot.lane.b32.xlu0 %v776, 8
        %v852 = vpop.permute.xlu0 %851
        %853 = vrot.lane.b32.xlu0 %v778, 8
        %v854 = vpop.permute.xlu0 %853
        %855 = vrot.lane.b32.xlu0 %v781, 8
        %v856 = vpop.permute.xlu0 %855
        %857 = vrot.lane.b32.xlu0 %v783, 8
        %v858 = vpop.permute.xlu0 %857
        %859 = vrot.lane.b32.xlu0 %v786, 8
        %v860 = vpop.permute.xlu0 %859
        %861 = vrot.lane.b32.xlu0 %v788, 8
        %v862 = vpop.permute.xlu0 %861
        %863 = vrot.lane.b32.xlu0 %v791, 8
        %v864 = vpop.permute.xlu0 %863
        %865 = vrot.lane.b32.xlu0 %v793, 8
        %v866 = vpop.permute.xlu0 %865
        %867 = vrot.lane.b32.xlu0 %v796, 8
        %v868 = vpop.permute.xlu0 %867
        %869 = vrot.lane.b32.xlu0 %v798, 8
        %v870 = vpop.permute.xlu0 %869
        %871 = vrot.lane.b32.xlu0 %v801, 8
        %v872 = vpop.permute.xlu0 %871
        %873 = vrot.lane.b32.xlu0 %v803, 8
        %v874 = vpop.permute.xlu0 %873
        %875 = vrot.lane.b32.xlu0 %v806, 8
        %v876 = vpop.permute.xlu0 %875
        %877 = vrot.lane.b32.xlu0 %v808, 8
        %v878 = vpop.permute.xlu0 %877
        %879 = vrot.lane.b32.xlu0 %v811, 8
        %v880 = vpop.permute.xlu0 %879
        %881 = vrot.lane.b32.xlu0 %v813, 8
        %v882 = vpop.permute.xlu0 %881
        %883 = vrot.lane.b32.xlu0 %v816, 8
        %v884 = vpop.permute.xlu0 %883
        %885 = vrot.lane.b32.xlu0 %v818, 8
        %v886 = vpop.permute.xlu0 %885
        %887 = vrot.lane.b32.xlu0 %v821, 8
        %v888 = vpop.permute.xlu0 %887
        %889 = vrot.lane.b32.xlu0 %v823, 8
        %v890 = vpop.permute.xlu0 %889
        %891 = vrot.lane.b32.xlu0 %v826, 8
        %v892 = vpop.permute.xlu0 %891
        %893 = vrot.lane.b32.xlu0 %v828, 8
        %v894 = vpop.permute.xlu0 %893
        %895 = vrot.lane.b32.xlu0 %v831, 8
        %v896 = vpop.permute.xlu0 %895
        %897 = vrot.lane.b32.xlu0 %v833, 8
        %v898 = vpop.permute.xlu0 %897
        %899 = vrot.lane.b32.xlu0 %v836, 8
        %v900 = vpop.permute.xlu0 %899
        %901 = vrot.lane.b32.xlu0 %v838, 8
        %v902 = vpop.permute.xlu0 %901
        %937 = vrot.lane.b32.xlu0 %v188, 12
        %v938 = vpop.permute.xlu0 %937
        %939 = vrot.lane.b32.xlu0 %v189, 12
        %v940 = vpop.permute.xlu0 %939
        %941 = vrot.lane.b32.xlu0 %v191, 12
        %v942 = vpop.permute.xlu0 %941
        %943 = vrot.lane.b32.xlu0 %v192, 12
        %v944 = vpop.permute.xlu0 %943
        %945 = vrot.lane.b32.xlu0 %v194, 12
        %v946 = vpop.permute.xlu0 %945
        %947 = vrot.lane.b32.xlu0 %v195, 12
        %v948 = vpop.permute.xlu0 %947
        %949 = vrot.lane.b32.xlu0 %v197, 12
        %v950 = vpop.permute.xlu0 %949
        %951 = vrot.lane.b32.xlu0 %v198, 12
        %v952 = vpop.permute.xlu0 %951
        %953 = vrot.lane.b32.xlu0 %v200, 12
        %v954 = vpop.permute.xlu0 %953
        %955 = vrot.lane.b32.xlu0 %v201, 12
        %v956 = vpop.permute.xlu0 %955
        %957 = vrot.lane.b32.xlu0 %v203, 12
        %v958 = vpop.permute.xlu0 %957
        %959 = vrot.lane.b32.xlu0 %v204, 12
        %v960 = vpop.permute.xlu0 %959
        %961 = vrot.lane.b32.xlu0 %v206, 12
        %v962 = vpop.permute.xlu0 %961
        %963 = vrot.lane.b32.xlu0 %v207, 12
        %v964 = vpop.permute.xlu0 %963
        %965 = vrot.lane.b32.xlu0 %v209, 12
        %v966 = vpop.permute.xlu0 %965
        %967 = vrot.lane.b32.xlu0 %v210, 12
        %v968 = vpop.permute.xlu0 %967
        %969 = vrot.lane.b32.xlu0 %v212, 12
        %v970 = vpop.permute.xlu0 %969
        %971 = vrot.lane.b32.xlu0 %v213, 12
        %v972 = vpop.permute.xlu0 %971
        %973 = vrot.lane.b32.xlu0 %v215, 12
        %v974 = vpop.permute.xlu0 %973
        %975 = vrot.lane.b32.xlu0 %v216, 12
        %v976 = vpop.permute.xlu0 %975
        %977 = vrot.lane.b32.xlu0 %v218, 12
        %v978 = vpop.permute.xlu0 %977
        %979 = vrot.lane.b32.xlu0 %v219, 12
        %v980 = vpop.permute.xlu0 %979
        %981 = vrot.lane.b32.xlu0 %v221, 12
        %v982 = vpop.permute.xlu0 %981
        %983 = vrot.lane.b32.xlu0 %v222, 12
        %v984 = vpop.permute.xlu0 %983
        %985 = vrot.lane.b32.xlu0 %v224, 12
        %v986 = vpop.permute.xlu0 %985
        %987 = vrot.lane.b32.xlu0 %v225, 12
        %v988 = vpop.permute.xlu0 %987
        %989 = vrot.lane.b32.xlu0 %v227, 12
        %v990 = vpop.permute.xlu0 %989
        %991 = vrot.lane.b32.xlu0 %v228, 12
        %v992 = vpop.permute.xlu0 %991
        %993 = vrot.lane.b32.xlu0 %v230, 12
        %v994 = vpop.permute.xlu0 %993
        %995 = vrot.lane.b32.xlu0 %v231, 12
        %v996 = vpop.permute.xlu0 %995
        %997 = vrot.lane.b32.xlu0 %v233, 12
        %v998 = vpop.permute.xlu0 %997
        %999 = vrot.lane.b32.xlu0 %v234, 12
        %v1000 = vpop.permute.xlu0 %999
        %v1034 = vrot.slane %v233, 1
        %v1035 = vrot.slane %v234, 1
        %v1036 = vsel %vm581, %v1034, %v1035
        %v1037 = vrot.slane %v235, 1
        %v1038 = vsel %vm581, %v1035, %v1037
        %1039 = vrot.lane.b32.xlu0 %v589, 16
        %v1040 = vpop.permute.xlu0 %1039
        %1041 = vrot.lane.b32.xlu0 %v591, 16
        %v1042 = vpop.permute.xlu0 %1041
        %1043 = vrot.lane.b32.xlu0 %v594, 16
        %v1044 = vpop.permute.xlu0 %1043
        %1045 = vrot.lane.b32.xlu0 %v596, 16
        %v1046 = vpop.permute.xlu0 %1045
        %1047 = vrot.lane.b32.xlu0 %v599, 16
        %v1048 = vpop.permute.xlu0 %1047
        %1049 = vrot.lane.b32.xlu0 %v601, 16
        %v1050 = vpop.permute.xlu0 %1049
        %1051 = vrot.lane.b32.xlu0 %v604, 16
        %v1052 = vpop.permute.xlu0 %1051
        %1053 = vrot.lane.b32.xlu0 %v606, 16
        %v1054 = vpop.permute.xlu0 %1053
        %1055 = vrot.lane.b32.xlu0 %v609, 16
        %v1056 = vpop.permute.xlu0 %1055
        %1057 = vrot.lane.b32.xlu0 %v611, 16
        %v1058 = vpop.permute.xlu0 %1057
        %1059 = vrot.lane.b32.xlu0 %v614, 16
        %v1060 = vpop.permute.xlu0 %1059
        %1061 = vrot.lane.b32.xlu0 %v616, 16
        %v1062 = vpop.permute.xlu0 %1061
        %1063 = vrot.lane.b32.xlu0 %v619, 16
        %v1064 = vpop.permute.xlu0 %1063
        %1065 = vrot.lane.b32.xlu0 %v621, 16
        %v1066 = vpop.permute.xlu0 %1065
        %1067 = vrot.lane.b32.xlu0 %v624, 16
        %v1068 = vpop.permute.xlu0 %1067
        %1069 = vrot.lane.b32.xlu0 %v626, 16
        %v1070 = vpop.permute.xlu0 %1069
        %1071 = vrot.lane.b32.xlu0 %v629, 16
        %v1072 = vpop.permute.xlu0 %1071
        %1073 = vrot.lane.b32.xlu0 %v631, 16
        %v1074 = vpop.permute.xlu0 %1073
        %1075 = vrot.lane.b32.xlu0 %v634, 16
        %v1076 = vpop.permute.xlu0 %1075
        %1077 = vrot.lane.b32.xlu0 %v636, 16
        %v1078 = vpop.permute.xlu0 %1077
        %1079 = vrot.lane.b32.xlu0 %v639, 16
        %v1080 = vpop.permute.xlu0 %1079
        %1081 = vrot.lane.b32.xlu0 %v641, 16
        %v1082 = vpop.permute.xlu0 %1081
        %1083 = vrot.lane.b32.xlu0 %v644, 16
        %v1084 = vpop.permute.xlu0 %1083
        %1085 = vrot.lane.b32.xlu0 %v646, 16
        %v1086 = vpop.permute.xlu0 %1085
        %1087 = vrot.lane.b32.xlu0 %v649, 16
        %v1088 = vpop.permute.xlu0 %1087
        %1089 = vrot.lane.b32.xlu0 %v651, 16
        %v1090 = vpop.permute.xlu0 %1089
        %1091 = vrot.lane.b32.xlu0 %v654, 16
        %v1092 = vpop.permute.xlu0 %1091
        %1093 = vrot.lane.b32.xlu0 %v656, 16
        %v1094 = vpop.permute.xlu0 %1093
        %1095 = vrot.lane.b32.xlu0 %v659, 16
        %v1096 = vpop.permute.xlu0 %1095
        %1097 = vrot.lane.b32.xlu0 %v661, 16
        %v1098 = vpop.permute.xlu0 %1097
        %1099 = vrot.lane.b32.xlu0 %v1036, 16
        %v1100 = vpop.permute.xlu0 %1099
        %1101 = vrot.lane.b32.xlu0 %v1038, 16
        %v1102 = vpop.permute.xlu0 %1101
        %v1135 = vrot.slane %v233, 2
        %v1136 = vrot.slane %v234, 2
        %v1137 = vsel %vm758, %v1135, %v1136
        %v1138 = vrot.slane %v235, 2
        %v1139 = vsel %vm758, %v1136, %v1138
        %1140 = vrot.lane.b32.xlu0 %v766, 20
        %v1141 = vpop.permute.xlu0 %1140
        %1142 = vrot.lane.b32.xlu0 %v768, 20
        %v1143 = vpop.permute.xlu0 %1142
        %1144 = vrot.lane.b32.xlu0 %v771, 20
        %v1145 = vpop.permute.xlu0 %1144
        %1146 = vrot.lane.b32.xlu0 %v773, 20
        %v1147 = vpop.permute.xlu0 %1146
        %1148 = vrot.lane.b32.xlu0 %v776, 20
        %v1149 = vpop.permute.xlu0 %1148
        %1150 = vrot.lane.b32.xlu0 %v778, 20
        %v1151 = vpop.permute.xlu0 %1150
        %1152 = vrot.lane.b32.xlu0 %v781, 20
        %v1153 = vpop.permute.xlu0 %1152
        %1154 = vrot.lane.b32.xlu0 %v783, 20
        %v1155 = vpop.permute.xlu0 %1154
        %1156 = vrot.lane.b32.xlu0 %v786, 20
        %v1157 = vpop.permute.xlu0 %1156
        %1158 = vrot.lane.b32.xlu0 %v788, 20
        %v1159 = vpop.permute.xlu0 %1158
        %1160 = vrot.lane.b32.xlu0 %v791, 20
        %v1161 = vpop.permute.xlu0 %1160
        %1162 = vrot.lane.b32.xlu0 %v793, 20
        %v1163 = vpop.permute.xlu0 %1162
        %1164 = vrot.lane.b32.xlu0 %v796, 20
        %v1165 = vpop.permute.xlu0 %1164
        %1166 = vrot.lane.b32.xlu0 %v798, 20
        %v1167 = vpop.permute.xlu0 %1166
        %1168 = vrot.lane.b32.xlu0 %v801, 20
        %v1169 = vpop.permute.xlu0 %1168
        %1170 = vrot.lane.b32.xlu0 %v803, 20
        %v1171 = vpop.permute.xlu0 %1170
        %1172 = vrot.lane.b32.xlu0 %v806, 20
        %v1173 = vpop.permute.xlu0 %1172
        %1174 = vrot.lane.b32.xlu0 %v808, 20
        %v1175 = vpop.permute.xlu0 %1174
        %1176 = vrot.lane.b32.xlu0 %v811, 20
        %v1177 = vpop.permute.xlu0 %1176
        %1178 = vrot.lane.b32.xlu0 %v813, 20
        %v1179 = vpop.permute.xlu0 %1178
        %1180 = vrot.lane.b32.xlu0 %v816, 20
        %v1181 = vpop.permute.xlu0 %1180
        %1182 = vrot.lane.b32.xlu0 %v818, 20
        %v1183 = vpop.permute.xlu0 %1182
        %1184 = vrot.lane.b32.xlu0 %v821, 20
        %v1185 = vpop.permute.xlu0 %1184
        %1186 = vrot.lane.b32.xlu0 %v823, 20
        %v1187 = vpop.permute.xlu0 %1186
        %1188 = vrot.lane.b32.xlu0 %v826, 20
        %v1189 = vpop.permute.xlu0 %1188
        %1190 = vrot.lane.b32.xlu0 %v828, 20
        %v1191 = vpop.permute.xlu0 %1190
        %1192 = vrot.lane.b32.xlu0 %v831, 20
        %v1193 = vpop.permute.xlu0 %1192
        %1194 = vrot.lane.b32.xlu0 %v833, 20
        %v1195 = vpop.permute.xlu0 %1194
        %1196 = vrot.lane.b32.xlu0 %v836, 20
        %v1197 = vpop.permute.xlu0 %1196
        %1198 = vrot.lane.b32.xlu0 %v838, 20
        %v1199 = vpop.permute.xlu0 %1198
        %1200 = vrot.lane.b32.xlu0 %v1137, 20
        %v1201 = vpop.permute.xlu0 %1200
        %1202 = vrot.lane.b32.xlu0 %v1139, 20
        %v1203 = vpop.permute.xlu0 %1202
        %1238 = vrot.lane.b32.xlu0 %v191, 24
        %v1239 = vpop.permute.xlu0 %1238
        %1240 = vrot.lane.b32.xlu0 %v192, 24
        %v1241 = vpop.permute.xlu0 %1240
        %1242 = vrot.lane.b32.xlu0 %v194, 24
        %v1243 = vpop.permute.xlu0 %1242
        %1244 = vrot.lane.b32.xlu0 %v195, 24
        %v1245 = vpop.permute.xlu0 %1244
        %1246 = vrot.lane.b32.xlu0 %v197, 24
        %v1247 = vpop.permute.xlu0 %1246
        %1248 = vrot.lane.b32.xlu0 %v198, 24
        %v1249 = vpop.permute.xlu0 %1248
        %1250 = vrot.lane.b32.xlu0 %v200, 24
        %v1251 = vpop.permute.xlu0 %1250
        %1252 = vrot.lane.b32.xlu0 %v201, 24
        %v1253 = vpop.permute.xlu0 %1252
        %1254 = vrot.lane.b32.xlu0 %v203, 24
        %v1255 = vpop.permute.xlu0 %1254
        %1256 = vrot.lane.b32.xlu0 %v204, 24
        %v1257 = vpop.permute.xlu0 %1256
        %1258 = vrot.lane.b32.xlu0 %v206, 24
        %v1259 = vpop.permute.xlu0 %1258
        %1260 = vrot.lane.b32.xlu0 %v207, 24
        %v1261 = vpop.permute.xlu0 %1260
        %1262 = vrot.lane.b32.xlu0 %v209, 24
        %v1263 = vpop.permute.xlu0 %1262
        %1264 = vrot.lane.b32.xlu0 %v210, 24
        %v1265 = vpop.permute.xlu0 %1264
        %1266 = vrot.lane.b32.xlu0 %v212, 24
        %v1267 = vpop.permute.xlu0 %1266
        %1268 = vrot.lane.b32.xlu0 %v213, 24
        %v1269 = vpop.permute.xlu0 %1268
        %1270 = vrot.lane.b32.xlu0 %v215, 24
        %v1271 = vpop.permute.xlu0 %1270
        %1272 = vrot.lane.b32.xlu0 %v216, 24
        %v1273 = vpop.permute.xlu0 %1272
        %1274 = vrot.lane.b32.xlu0 %v218, 24
        %v1275 = vpop.permute.xlu0 %1274
        %1276 = vrot.lane.b32.xlu0 %v219, 24
        %v1277 = vpop.permute.xlu0 %1276
        %1278 = vrot.lane.b32.xlu0 %v221, 24
        %v1279 = vpop.permute.xlu0 %1278
        %1280 = vrot.lane.b32.xlu0 %v222, 24
        %v1281 = vpop.permute.xlu0 %1280
        %1282 = vrot.lane.b32.xlu0 %v224, 24
        %v1283 = vpop.permute.xlu0 %1282
        %1284 = vrot.lane.b32.xlu0 %v225, 24
        %v1285 = vpop.permute.xlu0 %1284
        %1286 = vrot.lane.b32.xlu0 %v227, 24
        %v1287 = vpop.permute.xlu0 %1286
        %1288 = vrot.lane.b32.xlu0 %v228, 24
        %v1289 = vpop.permute.xlu0 %1288
        %1290 = vrot.lane.b32.xlu0 %v230, 24
        %v1291 = vpop.permute.xlu0 %1290
        %1292 = vrot.lane.b32.xlu0 %v231, 24
        %v1293 = vpop.permute.xlu0 %1292
        %1294 = vrot.lane.b32.xlu0 %v233, 24
        %v1295 = vpop.permute.xlu0 %1294
        %1296 = vrot.lane.b32.xlu0 %v234, 24
        %v1297 = vpop.permute.xlu0 %1296
        %1298 = vrot.lane.b32.xlu0 %v236, 24
        %v1299 = vpop.permute.xlu0 %1298
        %1300 = vrot.lane.b32.xlu0 %v237, 24
        %v1301 = vpop.permute.xlu0 %1300
        %v1335 = vrot.slane %v236, 1
        %v1336 = vrot.slane %v237, 1
        %v1337 = vsel %vm581, %v1335, %v1336
        %v1338 = vrot.slane %v238, 1
        %v1339 = vsel %vm581, %v1336, %v1338
        %1340 = vrot.lane.b32.xlu0 %v594, 28
        %v1341 = vpop.permute.xlu0 %1340
        %1342 = vrot.lane.b32.xlu0 %v596, 28
        %v1343 = vpop.permute.xlu0 %1342
        %1344 = vrot.lane.b32.xlu0 %v599, 28
        %v1345 = vpop.permute.xlu0 %1344
        %1346 = vrot.lane.b32.xlu0 %v601, 28
        %v1347 = vpop.permute.xlu0 %1346
        %1348 = vrot.lane.b32.xlu0 %v604, 28
        %v1349 = vpop.permute.xlu0 %1348
        %1350 = vrot.lane.b32.xlu0 %v606, 28
        %v1351 = vpop.permute.xlu0 %1350
        %1352 = vrot.lane.b32.xlu0 %v609, 28
        %v1353 = vpop.permute.xlu0 %1352
        %1354 = vrot.lane.b32.xlu0 %v611, 28
        %v1355 = vpop.permute.xlu0 %1354
        %1356 = vrot.lane.b32.xlu0 %v614, 28
        %v1357 = vpop.permute.xlu0 %1356
        %1358 = vrot.lane.b32.xlu0 %v616, 28
        %v1359 = vpop.permute.xlu0 %1358
        %1360 = vrot.lane.b32.xlu0 %v619, 28
        %v1361 = vpop.permute.xlu0 %1360
        %1362 = vrot.lane.b32.xlu0 %v621, 28
        %v1363 = vpop.permute.xlu0 %1362
        %1364 = vrot.lane.b32.xlu0 %v624, 28
        %v1365 = vpop.permute.xlu0 %1364
        %1366 = vrot.lane.b32.xlu0 %v626, 28
        %v1367 = vpop.permute.xlu0 %1366
        %1368 = vrot.lane.b32.xlu0 %v629, 28
        %v1369 = vpop.permute.xlu0 %1368
        %1370 = vrot.lane.b32.xlu0 %v631, 28
        %v1371 = vpop.permute.xlu0 %1370
        %1372 = vrot.lane.b32.xlu0 %v634, 28
        %v1373 = vpop.permute.xlu0 %1372
        %1374 = vrot.lane.b32.xlu0 %v636, 28
        %v1375 = vpop.permute.xlu0 %1374
        %1376 = vrot.lane.b32.xlu0 %v639, 28
        %v1377 = vpop.permute.xlu0 %1376
        %1378 = vrot.lane.b32.xlu0 %v641, 28
        %v1379 = vpop.permute.xlu0 %1378
        %1380 = vrot.lane.b32.xlu0 %v644, 28
        %v1381 = vpop.permute.xlu0 %1380
        %1382 = vrot.lane.b32.xlu0 %v646, 28
        %v1383 = vpop.permute.xlu0 %1382
        %1384 = vrot.lane.b32.xlu0 %v649, 28
        %v1385 = vpop.permute.xlu0 %1384
        %1386 = vrot.lane.b32.xlu0 %v651, 28
        %v1387 = vpop.permute.xlu0 %1386
        %1388 = vrot.lane.b32.xlu0 %v654, 28
        %v1389 = vpop.permute.xlu0 %1388
        %1390 = vrot.lane.b32.xlu0 %v656, 28
        %v1391 = vpop.permute.xlu0 %1390
        %1392 = vrot.lane.b32.xlu0 %v659, 28
        %v1393 = vpop.permute.xlu0 %1392
        %1394 = vrot.lane.b32.xlu0 %v661, 28
        %v1395 = vpop.permute.xlu0 %1394
        %1396 = vrot.lane.b32.xlu0 %v1036, 28
        %v1397 = vpop.permute.xlu0 %1396
        %1398 = vrot.lane.b32.xlu0 %v1038, 28
        %v1399 = vpop.permute.xlu0 %1398
        %1400 = vrot.lane.b32.xlu0 %v1337, 28
        %v1401 = vpop.permute.xlu0 %1400
        %1402 = vrot.lane.b32.xlu0 %v1339, 28
        %v1403 = vpop.permute.xlu0 %1402
        %v1436 = vrot.slane %v236, 2
        %v1437 = vrot.slane %v237, 2
        %v1438 = vsel %vm758, %v1436, %v1437
        %v1439 = vrot.slane %v238, 2
        %v1440 = vsel %vm758, %v1437, %v1439
        %1441 = vrot.lane.b32.xlu0 %v771, 32
        %v1442 = vpop.permute.xlu0 %1441
        %1443 = vrot.lane.b32.xlu0 %v773, 32
        %v1444 = vpop.permute.xlu0 %1443
        %1445 = vrot.lane.b32.xlu0 %v776, 32
        %v1446 = vpop.permute.xlu0 %1445
        %1447 = vrot.lane.b32.xlu0 %v778, 32
        %v1448 = vpop.permute.xlu0 %1447
        %1449 = vrot.lane.b32.xlu0 %v781, 32
        %v1450 = vpop.permute.xlu0 %1449
        %1451 = vrot.lane.b32.xlu0 %v783, 32
        %v1452 = vpop.permute.xlu0 %1451
        %1453 = vrot.lane.b32.xlu0 %v786, 32
        %v1454 = vpop.permute.xlu0 %1453
        %1455 = vrot.lane.b32.xlu0 %v788, 32
        %v1456 = vpop.permute.xlu0 %1455
        %1457 = vrot.lane.b32.xlu0 %v791, 32
        %v1458 = vpop.permute.xlu0 %1457
        %1459 = vrot.lane.b32.xlu0 %v793, 32
        %v1460 = vpop.permute.xlu0 %1459
        %1461 = vrot.lane.b32.xlu0 %v796, 32
        %v1462 = vpop.permute.xlu0 %1461
        %1463 = vrot.lane.b32.xlu0 %v798, 32
        %v1464 = vpop.permute.xlu0 %1463
        %1465 = vrot.lane.b32.xlu0 %v801, 32
        %v1466 = vpop.permute.xlu0 %1465
        %1467 = vrot.lane.b32.xlu0 %v803, 32
        %v1468 = vpop.permute.xlu0 %1467
        %1469 = vrot.lane.b32.xlu0 %v806, 32
        %v1470 = vpop.permute.xlu0 %1469
        %1471 = vrot.lane.b32.xlu0 %v808, 32
        %v1472 = vpop.permute.xlu0 %1471
        %1473 = vrot.lane.b32.xlu0 %v811, 32
        %v1474 = vpop.permute.xlu0 %1473
        %1475 = vrot.lane.b32.xlu0 %v813, 32
        %v1476 = vpop.permute.xlu0 %1475
        %1477 = vrot.lane.b32.xlu0 %v816, 32
        %v1478 = vpop.permute.xlu0 %1477
        %1479 = vrot.lane.b32.xlu0 %v818, 32
        %v1480 = vpop.permute.xlu0 %1479
        %1481 = vrot.lane.b32.xlu0 %v821, 32
        %v1482 = vpop.permute.xlu0 %1481
        %1483 = vrot.lane.b32.xlu0 %v823, 32
        %v1484 = vpop.permute.xlu0 %1483
        %1485 = vrot.lane.b32.xlu0 %v826, 32
        %v1486 = vpop.permute.xlu0 %1485
        %1487 = vrot.lane.b32.xlu0 %v828, 32
        %v1488 = vpop.permute.xlu0 %1487
        %1489 = vrot.lane.b32.xlu0 %v831, 32
        %v1490 = vpop.permute.xlu0 %1489
        %1491 = vrot.lane.b32.xlu0 %v833, 32
        %v1492 = vpop.permute.xlu0 %1491
        %1493 = vrot.lane.b32.xlu0 %v836, 32
        %v1494 = vpop.permute.xlu0 %1493
        %1495 = vrot.lane.b32.xlu0 %v838, 32
        %v1496 = vpop.permute.xlu0 %1495
        %1497 = vrot.lane.b32.xlu0 %v1137, 32
        %v1498 = vpop.permute.xlu0 %1497
        %1499 = vrot.lane.b32.xlu0 %v1139, 32
        %v1500 = vpop.permute.xlu0 %1499
        %1501 = vrot.lane.b32.xlu0 %v1438, 32
        %v1502 = vpop.permute.xlu0 %1501
        %1503 = vrot.lane.b32.xlu0 %v1440, 32
        %v1504 = vpop.permute.xlu0 %1503
        %1569 = vrot.lane.b32.xlu0 %v302, 36
        %v1570 = vpop.permute.xlu0 %1569
        %1571 = vrot.lane.b32.xlu0 %v303, 36
        %v1572 = vpop.permute.xlu0 %1571
        %1573 = vrot.lane.b32.xlu0 %v305, 36
        %v1574 = vpop.permute.xlu0 %1573
        %1575 = vrot.lane.b32.xlu0 %v306, 36
        %v1576 = vpop.permute.xlu0 %1575
        %1577 = vrot.lane.b32.xlu0 %v308, 36
        %v1578 = vpop.permute.xlu0 %1577
        %1579 = vrot.lane.b32.xlu0 %v309, 36
        %v1580 = vpop.permute.xlu0 %1579
        %1581 = vrot.lane.b32.xlu0 %v311, 36
        %v1582 = vpop.permute.xlu0 %1581
        %1583 = vrot.lane.b32.xlu0 %v312, 36
        %v1584 = vpop.permute.xlu0 %1583
        %1585 = vrot.lane.b32.xlu0 %v314, 36
        %v1586 = vpop.permute.xlu0 %1585
        %1587 = vrot.lane.b32.xlu0 %v315, 36
        %v1588 = vpop.permute.xlu0 %1587
        %1589 = vrot.lane.b32.xlu0 %v317, 36
        %v1590 = vpop.permute.xlu0 %1589
        %1591 = vrot.lane.b32.xlu0 %v318, 36
        %v1592 = vpop.permute.xlu0 %1591
        %1593 = vrot.lane.b32.xlu0 %v320, 36
        %v1594 = vpop.permute.xlu0 %1593
        %1595 = vrot.lane.b32.xlu0 %v321, 36
        %v1596 = vpop.permute.xlu0 %1595
        %1597 = vrot.lane.b32.xlu0 %v323, 36
        %v1598 = vpop.permute.xlu0 %1597
        %1599 = vrot.lane.b32.xlu0 %v324, 36
        %v1600 = vpop.permute.xlu0 %1599
        %1601 = vrot.lane.b32.xlu0 %v326, 36
        %v1602 = vpop.permute.xlu0 %1601
        %1603 = vrot.lane.b32.xlu0 %v327, 36
        %v1604 = vpop.permute.xlu0 %1603
        %1605 = vrot.lane.b32.xlu0 %v329, 36
        %v1606 = vpop.permute.xlu0 %1605
        %1607 = vrot.lane.b32.xlu0 %v330, 36
        %v1608 = vpop.permute.xlu0 %1607
        %1609 = vrot.lane.b32.xlu0 %v332, 36
        %v1610 = vpop.permute.xlu0 %1609
        %1611 = vrot.lane.b32.xlu0 %v333, 36
        %v1612 = vpop.permute.xlu0 %1611
        %1613 = vrot.lane.b32.xlu0 %v335, 36
        %v1614 = vpop.permute.xlu0 %1613
        %1615 = vrot.lane.b32.xlu0 %v336, 36
        %v1616 = vpop.permute.xlu0 %1615
        %1617 = vrot.lane.b32.xlu0 %v338, 36
        %v1618 = vpop.permute.xlu0 %1617
        %1619 = vrot.lane.b32.xlu0 %v339, 36
        %v1620 = vpop.permute.xlu0 %1619
        %1621 = vrot.lane.b32.xlu0 %v341, 36
        %v1622 = vpop.permute.xlu0 %1621
        %1623 = vrot.lane.b32.xlu0 %v342, 36
        %v1624 = vpop.permute.xlu0 %1623
        %1625 = vrot.lane.b32.xlu0 %v344, 36
        %v1626 = vpop.permute.xlu0 %1625
        %1627 = vrot.lane.b32.xlu0 %v345, 36
        %v1628 = vpop.permute.xlu0 %1627
        %1629 = vrot.lane.b32.xlu0 %v347, 36
        %v1630 = vpop.permute.xlu0 %1629
        %1631 = vrot.lane.b32.xlu0 %v348, 36
        %v1632 = vpop.permute.xlu0 %1631
        %v1681 = vrot.slane %v302, 1
        %v1682 = vrot.slane %v303, 1
        %v1683 = vsel %vm581, %v1681, %v1682
        %v1684 = vrot.slane %v304, 1
        %v1685 = vsel %vm581, %v1682, %v1684
        %v1686 = vrot.slane %v305, 1
        %v1687 = vrot.slane %v306, 1
        %v1688 = vsel %vm581, %v1686, %v1687
        %v1689 = vrot.slane %v307, 1
        %v1690 = vsel %vm581, %v1687, %v1689
        %v1691 = vrot.slane %v308, 1
        %v1692 = vrot.slane %v309, 1
        %v1693 = vsel %vm581, %v1691, %v1692
        %v1694 = vrot.slane %v310, 1
        %v1695 = vsel %vm581, %v1692, %v1694
        %v1696 = vrot.slane %v311, 1
        %v1697 = vrot.slane %v312, 1
        %v1698 = vsel %vm581, %v1696, %v1697
        %v1699 = vrot.slane %v313, 1
        %v1700 = vsel %vm581, %v1697, %v1699
        %v1701 = vrot.slane %v314, 1
        %v1702 = vrot.slane %v315, 1
        %v1703 = vsel %vm581, %v1701, %v1702
        %v1704 = vrot.slane %v316, 1
        %v1705 = vsel %vm581, %v1702, %v1704
        %v1706 = vrot.slane %v317, 1
        %v1707 = vrot.slane %v318, 1
        %v1708 = vsel %vm581, %v1706, %v1707
        %v1709 = vrot.slane %v319, 1
        %v1710 = vsel %vm581, %v1707, %v1709
        %v1711 = vrot.slane %v320, 1
        %v1712 = vrot.slane %v321, 1
        %v1713 = vsel %vm581, %v1711, %v1712
        %v1714 = vrot.slane %v322, 1
        %v1715 = vsel %vm581, %v1712, %v1714
        %v1716 = vrot.slane %v323, 1
        %v1717 = vrot.slane %v324, 1
        %v1718 = vsel %vm581, %v1716, %v1717
        %v1719 = vrot.slane %v325, 1
        %v1720 = vsel %vm581, %v1717, %v1719
        %v1721 = vrot.slane %v326, 1
        %v1722 = vrot.slane %v327, 1
        %v1723 = vsel %vm581, %v1721, %v1722
        %v1724 = vrot.slane %v328, 1
        %v1725 = vsel %vm581, %v1722, %v1724
        %v1726 = vrot.slane %v329, 1
        %v1727 = vrot.slane %v330, 1
        %v1728 = vsel %vm581, %v1726, %v1727
        %v1729 = vrot.slane %v331, 1
        %v1730 = vsel %vm581, %v1727, %v1729
        %v1731 = vrot.slane %v332, 1
        %v1732 = vrot.slane %v333, 1
        %v1733 = vsel %vm581, %v1731, %v1732
        %v1734 = vrot.slane %v334, 1
        %v1735 = vsel %vm581, %v1732, %v1734
        %v1736 = vrot.slane %v335, 1
        %v1737 = vrot.slane %v336, 1
        %v1738 = vsel %vm581, %v1736, %v1737
        %v1739 = vrot.slane %v337, 1
        %v1740 = vsel %vm581, %v1737, %v1739
        %v1741 = vrot.slane %v338, 1
        %v1742 = vrot.slane %v339, 1
        %v1743 = vsel %vm581, %v1741, %v1742
        %v1744 = vrot.slane %v340, 1
        %v1745 = vsel %vm581, %v1742, %v1744
        %v1746 = vrot.slane %v341, 1
        %v1747 = vrot.slane %v342, 1
        %v1748 = vsel %vm581, %v1746, %v1747
        %v1749 = vrot.slane %v343, 1
        %v1750 = vsel %vm581, %v1747, %v1749
        %v1751 = vrot.slane %v344, 1
        %v1752 = vrot.slane %v345, 1
        %v1753 = vsel %vm581, %v1751, %v1752
        %v1754 = vrot.slane %v346, 1
        %v1755 = vsel %vm581, %v1752, %v1754
        %v1756 = vrot.slane %v347, 1
        %v1757 = vrot.slane %v348, 1
        %v1758 = vsel %vm581, %v1756, %v1757
        %v1759 = vrot.slane %v349, 1
        %v1760 = vsel %vm581, %v1757, %v1759
        %1761 = vrot.lane.b32.xlu0 %v1683, 40
        %v1762 = vpop.permute.xlu0 %1761
        %1763 = vrot.lane.b32.xlu0 %v1685, 40
        %v1764 = vpop.permute.xlu0 %1763
        %1765 = vrot.lane.b32.xlu0 %v1688, 40
        %v1766 = vpop.permute.xlu0 %1765
        %1767 = vrot.lane.b32.xlu0 %v1690, 40
        %v1768 = vpop.permute.xlu0 %1767
        %1769 = vrot.lane.b32.xlu0 %v1693, 40
        %v1770 = vpop.permute.xlu0 %1769
        %1771 = vrot.lane.b32.xlu0 %v1695, 40
        %v1772 = vpop.permute.xlu0 %1771
        %1773 = vrot.lane.b32.xlu0 %v1698, 40
        %v1774 = vpop.permute.xlu0 %1773
        %1775 = vrot.lane.b32.xlu0 %v1700, 40
        %v1776 = vpop.permute.xlu0 %1775
        %1777 = vrot.lane.b32.xlu0 %v1703, 40
        %v1778 = vpop.permute.xlu0 %1777
        %1779 = vrot.lane.b32.xlu0 %v1705, 40
        %v1780 = vpop.permute.xlu0 %1779
        %1781 = vrot.lane.b32.xlu0 %v1708, 40
        %v1782 = vpop.permute.xlu0 %1781
        %1783 = vrot.lane.b32.xlu0 %v1710, 40
        %v1784 = vpop.permute.xlu0 %1783
        %1785 = vrot.lane.b32.xlu0 %v1713, 40
        %v1786 = vpop.permute.xlu0 %1785
        %1787 = vrot.lane.b32.xlu0 %v1715, 40
        %v1788 = vpop.permute.xlu0 %1787
        %1789 = vrot.lane.b32.xlu0 %v1718, 40
        %v1790 = vpop.permute.xlu0 %1789
        %1791 = vrot.lane.b32.xlu0 %v1720, 40
        %v1792 = vpop.permute.xlu0 %1791
        %1793 = vrot.lane.b32.xlu0 %v1723, 40
        %v1794 = vpop.permute.xlu0 %1793
        %1795 = vrot.lane.b32.xlu0 %v1725, 40
        %v1796 = vpop.permute.xlu0 %1795
        %1797 = vrot.lane.b32.xlu0 %v1728, 40
        %v1798 = vpop.permute.xlu0 %1797
        %1799 = vrot.lane.b32.xlu0 %v1730, 40
        %v1800 = vpop.permute.xlu0 %1799
        %1801 = vrot.lane.b32.xlu0 %v1733, 40
        %v1802 = vpop.permute.xlu0 %1801
        %1803 = vrot.lane.b32.xlu0 %v1735, 40
        %v1804 = vpop.permute.xlu0 %1803
        %1805 = vrot.lane.b32.xlu0 %v1738, 40
        %v1806 = vpop.permute.xlu0 %1805
        %1807 = vrot.lane.b32.xlu0 %v1740, 40
        %v1808 = vpop.permute.xlu0 %1807
        %1809 = vrot.lane.b32.xlu0 %v1743, 40
        %v1810 = vpop.permute.xlu0 %1809
        %1811 = vrot.lane.b32.xlu0 %v1745, 40
        %v1812 = vpop.permute.xlu0 %1811
        %1813 = vrot.lane.b32.xlu0 %v1748, 40
        %v1814 = vpop.permute.xlu0 %1813
        %1815 = vrot.lane.b32.xlu0 %v1750, 40
        %v1816 = vpop.permute.xlu0 %1815
        %1817 = vrot.lane.b32.xlu0 %v1753, 40
        %v1818 = vpop.permute.xlu0 %1817
        %1819 = vrot.lane.b32.xlu0 %v1755, 40
        %v1820 = vpop.permute.xlu0 %1819
        %1821 = vrot.lane.b32.xlu0 %v1758, 40
        %v1822 = vpop.permute.xlu0 %1821
        %1823 = vrot.lane.b32.xlu0 %v1760, 40
        %v1824 = vpop.permute.xlu0 %1823
        %v1857 = vrot.slane %v302, 2
        %v1858 = vrot.slane %v303, 2
        %v1859 = vsel %vm758, %v1857, %v1858
        %v1860 = vrot.slane %v304, 2
        %v1861 = vsel %vm758, %v1858, %v1860
        %v1862 = vrot.slane %v305, 2
        %v1863 = vrot.slane %v306, 2
        %v1864 = vsel %vm758, %v1862, %v1863
        %v1865 = vrot.slane %v307, 2
        %v1866 = vsel %vm758, %v1863, %v1865
        %v1867 = vrot.slane %v308, 2
        %v1868 = vrot.slane %v309, 2
        %v1869 = vsel %vm758, %v1867, %v1868
        %v1870 = vrot.slane %v310, 2
        %v1871 = vsel %vm758, %v1868, %v1870
        %v1872 = vrot.slane %v311, 2
        %v1873 = vrot.slane %v312, 2
        %v1874 = vsel %vm758, %v1872, %v1873
        %v1875 = vrot.slane %v313, 2
        %v1876 = vsel %vm758, %v1873, %v1875
        %v1877 = vrot.slane %v314, 2
        %v1878 = vrot.slane %v315, 2
        %v1879 = vsel %vm758, %v1877, %v1878
        %v1880 = vrot.slane %v316, 2
        %v1881 = vsel %vm758, %v1878, %v1880
        %v1882 = vrot.slane %v317, 2
        %v1883 = vrot.slane %v318, 2
        %v1884 = vsel %vm758, %v1882, %v1883
        %v1885 = vrot.slane %v319, 2
        %v1886 = vsel %vm758, %v1883, %v1885
        %v1887 = vrot.slane %v320, 2
        %v1888 = vrot.slane %v321, 2
        %v1889 = vsel %vm758, %v1887, %v1888
        %v1890 = vrot.slane %v322, 2
        %v1891 = vsel %vm758, %v1888, %v1890
        %v1892 = vrot.slane %v323, 2
        %v1893 = vrot.slane %v324, 2
        %v1894 = vsel %vm758, %v1892, %v1893
        %v1895 = vrot.slane %v325, 2
        %v1896 = vsel %vm758, %v1893, %v1895
        %v1897 = vrot.slane %v326, 2
        %v1898 = vrot.slane %v327, 2
        %v1899 = vsel %vm758, %v1897, %v1898
        %v1900 = vrot.slane %v328, 2
        %v1901 = vsel %vm758, %v1898, %v1900
        %v1902 = vrot.slane %v329, 2
        %v1903 = vrot.slane %v330, 2
        %v1904 = vsel %vm758, %v1902, %v1903
        %v1905 = vrot.slane %v331, 2
        %v1906 = vsel %vm758, %v1903, %v1905
        %v1907 = vrot.slane %v332, 2
        %v1908 = vrot.slane %v333, 2
        %v1909 = vsel %vm758, %v1907, %v1908
        %v1910 = vrot.slane %v334, 2
        %v1911 = vsel %vm758, %v1908, %v1910
        %v1912 = vrot.slane %v335, 2
        %v1913 = vrot.slane %v336, 2
        %v1914 = vsel %vm758, %v1912, %v1913
        %v1915 = vrot.slane %v337, 2
        %v1916 = vsel %vm758, %v1913, %v1915
        %v1917 = vrot.slane %v338, 2
        %v1918 = vrot.slane %v339, 2
        %v1919 = vsel %vm758, %v1917, %v1918
        %v1920 = vrot.slane %v340, 2
        %v1921 = vsel %vm758, %v1918, %v1920
        %v1922 = vrot.slane %v341, 2
        %v1923 = vrot.slane %v342, 2
        %v1924 = vsel %vm758, %v1922, %v1923
        %v1925 = vrot.slane %v343, 2
        %v1926 = vsel %vm758, %v1923, %v1925
        %v1927 = vrot.slane %v344, 2
        %v1928 = vrot.slane %v345, 2
        %v1929 = vsel %vm758, %v1927, %v1928
        %v1930 = vrot.slane %v346, 2
        %v1931 = vsel %vm758, %v1928, %v1930
        %v1932 = vrot.slane %v347, 2
        %v1933 = vrot.slane %v348, 2
        %v1934 = vsel %vm758, %v1932, %v1933
        %v1935 = vrot.slane %v349, 2
        %v1936 = vsel %vm758, %v1933, %v1935
        %1937 = vrot.lane.b32.xlu0 %v1859, 44
        %v1938 = vpop.permute.xlu0 %1937
        %1939 = vrot.lane.b32.xlu0 %v1861, 44
        %v1940 = vpop.permute.xlu0 %1939
        %1941 = vrot.lane.b32.xlu0 %v1864, 44
        %v1942 = vpop.permute.xlu0 %1941
        %1943 = vrot.lane.b32.xlu0 %v1866, 44
        %v1944 = vpop.permute.xlu0 %1943
        %1945 = vrot.lane.b32.xlu0 %v1869, 44
        %v1946 = vpop.permute.xlu0 %1945
        %1947 = vrot.lane.b32.xlu0 %v1871, 44
        %v1948 = vpop.permute.xlu0 %1947
        %1949 = vrot.lane.b32.xlu0 %v1874, 44
        %v1950 = vpop.permute.xlu0 %1949
        %1951 = vrot.lane.b32.xlu0 %v1876, 44
        %v1952 = vpop.permute.xlu0 %1951
        %1953 = vrot.lane.b32.xlu0 %v1879, 44
        %v1954 = vpop.permute.xlu0 %1953
        %1955 = vrot.lane.b32.xlu0 %v1881, 44
        %v1956 = vpop.permute.xlu0 %1955
        %1957 = vrot.lane.b32.xlu0 %v1884, 44
        %v1958 = vpop.permute.xlu0 %1957
        %1959 = vrot.lane.b32.xlu0 %v1886, 44
        %v1960 = vpop.permute.xlu0 %1959
        %1961 = vrot.lane.b32.xlu0 %v1889, 44
        %v1962 = vpop.permute.xlu0 %1961
        %1963 = vrot.lane.b32.xlu0 %v1891, 44
        %v1964 = vpop.permute.xlu0 %1963
        %1965 = vrot.lane.b32.xlu0 %v1894, 44
        %v1966 = vpop.permute.xlu0 %1965
        %1967 = vrot.lane.b32.xlu0 %v1896, 44
        %v1968 = vpop.permute.xlu0 %1967
        %1969 = vrot.lane.b32.xlu0 %v1899, 44
        %v1970 = vpop.permute.xlu0 %1969
        %1971 = vrot.lane.b32.xlu0 %v1901, 44
        %v1972 = vpop.permute.xlu0 %1971
        %1973 = vrot.lane.b32.xlu0 %v1904, 44
        %v1974 = vpop.permute.xlu0 %1973
        %1975 = vrot.lane.b32.xlu0 %v1906, 44
        %v1976 = vpop.permute.xlu0 %1975
        %1977 = vrot.lane.b32.xlu0 %v1909, 44
        %v1978 = vpop.permute.xlu0 %1977
        %1979 = vrot.lane.b32.xlu0 %v1911, 44
        %v1980 = vpop.permute.xlu0 %1979
        %1981 = vrot.lane.b32.xlu0 %v1914, 44
        %v1982 = vpop.permute.xlu0 %1981
        %1983 = vrot.lane.b32.xlu0 %v1916, 44
        %v1984 = vpop.permute.xlu0 %1983
        %1985 = vrot.lane.b32.xlu0 %v1919, 44
        %v1986 = vpop.permute.xlu0 %1985
        %1987 = vrot.lane.b32.xlu0 %v1921, 44
        %v1988 = vpop.permute.xlu0 %1987
        %1989 = vrot.lane.b32.xlu0 %v1924, 44
        %v1990 = vpop.permute.xlu0 %1989
        %1991 = vrot.lane.b32.xlu0 %v1926, 44
        %v1992 = vpop.permute.xlu0 %1991
        %1993 = vrot.lane.b32.xlu0 %v1929, 44
        %v1994 = vpop.permute.xlu0 %1993
        %1995 = vrot.lane.b32.xlu0 %v1931, 44
        %v1996 = vpop.permute.xlu0 %1995
        %1997 = vrot.lane.b32.xlu0 %v1934, 44
        %v1998 = vpop.permute.xlu0 %1997
        %1999 = vrot.lane.b32.xlu0 %v1936, 44
        %v2000 = vpop.permute.xlu0 %1999
        %2035 = vrot.lane.b32.xlu0 %v305, 48
        %v2036 = vpop.permute.xlu0 %2035
        %2037 = vrot.lane.b32.xlu0 %v306, 48
        %v2038 = vpop.permute.xlu0 %2037
        %2039 = vrot.lane.b32.xlu0 %v308, 48
        %v2040 = vpop.permute.xlu0 %2039
        %2041 = vrot.lane.b32.xlu0 %v309, 48
        %v2042 = vpop.permute.xlu0 %2041
        %2043 = vrot.lane.b32.xlu0 %v311, 48
        %v2044 = vpop.permute.xlu0 %2043
        %2045 = vrot.lane.b32.xlu0 %v312, 48
        %v2046 = vpop.permute.xlu0 %2045
        %2047 = vrot.lane.b32.xlu0 %v314, 48
        %v2048 = vpop.permute.xlu0 %2047
        %2049 = vrot.lane.b32.xlu0 %v315, 48
        %v2050 = vpop.permute.xlu0 %2049
        %2051 = vrot.lane.b32.xlu0 %v317, 48
        %v2052 = vpop.permute.xlu0 %2051
        %2053 = vrot.lane.b32.xlu0 %v318, 48
        %v2054 = vpop.permute.xlu0 %2053
        %2055 = vrot.lane.b32.xlu0 %v320, 48
        %v2056 = vpop.permute.xlu0 %2055
        %2057 = vrot.lane.b32.xlu0 %v321, 48
        %v2058 = vpop.permute.xlu0 %2057
        %2059 = vrot.lane.b32.xlu0 %v323, 48
        %v2060 = vpop.permute.xlu0 %2059
        %2061 = vrot.lane.b32.xlu0 %v324, 48
        %v2062 = vpop.permute.xlu0 %2061
        %2063 = vrot.lane.b32.xlu0 %v326, 48
        %v2064 = vpop.permute.xlu0 %2063
        %2065 = vrot.lane.b32.xlu0 %v327, 48
        %v2066 = vpop.permute.xlu0 %2065
        %2067 = vrot.lane.b32.xlu0 %v329, 48
        %v2068 = vpop.permute.xlu0 %2067
        %2069 = vrot.lane.b32.xlu0 %v330, 48
        %v2070 = vpop.permute.xlu0 %2069
        %2071 = vrot.lane.b32.xlu0 %v332, 48
        %v2072 = vpop.permute.xlu0 %2071
        %2073 = vrot.lane.b32.xlu0 %v333, 48
        %v2074 = vpop.permute.xlu0 %2073
        %2075 = vrot.lane.b32.xlu0 %v335, 48
        %v2076 = vpop.permute.xlu0 %2075
        %2077 = vrot.lane.b32.xlu0 %v336, 48
        %v2078 = vpop.permute.xlu0 %2077
        %2079 = vrot.lane.b32.xlu0 %v338, 48
        %v2080 = vpop.permute.xlu0 %2079
        %2081 = vrot.lane.b32.xlu0 %v339, 48
        %v2082 = vpop.permute.xlu0 %2081
        %2083 = vrot.lane.b32.xlu0 %v341, 48
        %v2084 = vpop.permute.xlu0 %2083
        %2085 = vrot.lane.b32.xlu0 %v342, 48
        %v2086 = vpop.permute.xlu0 %2085
        %2087 = vrot.lane.b32.xlu0 %v344, 48
        %v2088 = vpop.permute.xlu0 %2087
        %2089 = vrot.lane.b32.xlu0 %v345, 48
        %v2090 = vpop.permute.xlu0 %2089
        %2091 = vrot.lane.b32.xlu0 %v347, 48
        %v2092 = vpop.permute.xlu0 %2091
        %2093 = vrot.lane.b32.xlu0 %v348, 48
        %v2094 = vpop.permute.xlu0 %2093
        %2095 = vrot.lane.b32.xlu0 %v350, 48
        %v2096 = vpop.permute.xlu0 %2095
        %2097 = vrot.lane.b32.xlu0 %v351, 48
        %v2098 = vpop.permute.xlu0 %2097
        %v2132 = vrot.slane %v350, 1
        %v2133 = vrot.slane %v351, 1
        %v2134 = vsel %vm581, %v2132, %v2133
        %v2135 = vrot.slane %v352, 1
        %v2136 = vsel %vm581, %v2133, %v2135
        %2137 = vrot.lane.b32.xlu0 %v1688, 52
        %v2138 = vpop.permute.xlu0 %2137
        %2139 = vrot.lane.b32.xlu0 %v1690, 52
        %v2140 = vpop.permute.xlu0 %2139
        %2141 = vrot.lane.b32.xlu0 %v1693, 52
        %v2142 = vpop.permute.xlu0 %2141
        %2143 = vrot.lane.b32.xlu0 %v1695, 52
        %v2144 = vpop.permute.xlu0 %2143
        %2145 = vrot.lane.b32.xlu0 %v1698, 52
        %v2146 = vpop.permute.xlu0 %2145
        %2147 = vrot.lane.b32.xlu0 %v1700, 52
        %v2148 = vpop.permute.xlu0 %2147
        %2149 = vrot.lane.b32.xlu0 %v1703, 52
        %v2150 = vpop.permute.xlu0 %2149
        %2151 = vrot.lane.b32.xlu0 %v1705, 52
        %v2152 = vpop.permute.xlu0 %2151
        %2153 = vrot.lane.b32.xlu0 %v1708, 52
        %v2154 = vpop.permute.xlu0 %2153
        %2155 = vrot.lane.b32.xlu0 %v1710, 52
        %v2156 = vpop.permute.xlu0 %2155
        %2157 = vrot.lane.b32.xlu0 %v1713, 52
        %v2158 = vpop.permute.xlu0 %2157
        %2159 = vrot.lane.b32.xlu0 %v1715, 52
        %v2160 = vpop.permute.xlu0 %2159
        %2161 = vrot.lane.b32.xlu0 %v1718, 52
        %v2162 = vpop.permute.xlu0 %2161
        %2163 = vrot.lane.b32.xlu0 %v1720, 52
        %v2164 = vpop.permute.xlu0 %2163
        %2165 = vrot.lane.b32.xlu0 %v1723, 52
        %v2166 = vpop.permute.xlu0 %2165
        %2167 = vrot.lane.b32.xlu0 %v1725, 52
        %v2168 = vpop.permute.xlu0 %2167
        %2169 = vrot.lane.b32.xlu0 %v1728, 52
        %v2170 = vpop.permute.xlu0 %2169
        %2171 = vrot.lane.b32.xlu0 %v1730, 52
        %v2172 = vpop.permute.xlu0 %2171
        %2173 = vrot.lane.b32.xlu0 %v1733, 52
        %v2174 = vpop.permute.xlu0 %2173
        %2175 = vrot.lane.b32.xlu0 %v1735, 52
        %v2176 = vpop.permute.xlu0 %2175
        %2177 = vrot.lane.b32.xlu0 %v1738, 52
        %v2178 = vpop.permute.xlu0 %2177
        %2179 = vrot.lane.b32.xlu0 %v1740, 52
        %v2180 = vpop.permute.xlu0 %2179
        %2181 = vrot.lane.b32.xlu0 %v1743, 52
        %v2182 = vpop.permute.xlu0 %2181
        %2183 = vrot.lane.b32.xlu0 %v1745, 52
        %v2184 = vpop.permute.xlu0 %2183
        %2185 = vrot.lane.b32.xlu0 %v1748, 52
        %v2186 = vpop.permute.xlu0 %2185
        %2187 = vrot.lane.b32.xlu0 %v1750, 52
        %v2188 = vpop.permute.xlu0 %2187
        %2189 = vrot.lane.b32.xlu0 %v1753, 52
        %v2190 = vpop.permute.xlu0 %2189
        %2191 = vrot.lane.b32.xlu0 %v1755, 52
        %v2192 = vpop.permute.xlu0 %2191
        %2193 = vrot.lane.b32.xlu0 %v1758, 52
        %v2194 = vpop.permute.xlu0 %2193
        %2195 = vrot.lane.b32.xlu0 %v1760, 52
        %v2196 = vpop.permute.xlu0 %2195
        %2197 = vrot.lane.b32.xlu0 %v2134, 52
        %v2198 = vpop.permute.xlu0 %2197
        %2199 = vrot.lane.b32.xlu0 %v2136, 52
        %v2200 = vpop.permute.xlu0 %2199
        %v2233 = vrot.slane %v350, 2
        %v2234 = vrot.slane %v351, 2
        %v2235 = vsel %vm758, %v2233, %v2234
        %v2236 = vrot.slane %v352, 2
        %v2237 = vsel %vm758, %v2234, %v2236
        %2238 = vrot.lane.b32.xlu0 %v1864, 56
        %v2239 = vpop.permute.xlu0 %2238
        %2240 = vrot.lane.b32.xlu0 %v1866, 56
        %v2241 = vpop.permute.xlu0 %2240
        %2242 = vrot.lane.b32.xlu0 %v1869, 56
        %v2243 = vpop.permute.xlu0 %2242
        %2244 = vrot.lane.b32.xlu0 %v1871, 56
        %v2245 = vpop.permute.xlu0 %2244
        %2246 = vrot.lane.b32.xlu0 %v1874, 56
        %v2247 = vpop.permute.xlu0 %2246
        %2248 = vrot.lane.b32.xlu0 %v1876, 56
        %v2249 = vpop.permute.xlu0 %2248
        %2250 = vrot.lane.b32.xlu0 %v1879, 56
        %v2251 = vpop.permute.xlu0 %2250
        %2252 = vrot.lane.b32.xlu0 %v1881, 56
        %v2253 = vpop.permute.xlu0 %2252
        %2254 = vrot.lane.b32.xlu0 %v1884, 56
        %v2255 = vpop.permute.xlu0 %2254
        %2256 = vrot.lane.b32.xlu0 %v1886, 56
        %v2257 = vpop.permute.xlu0 %2256
        %2258 = vrot.lane.b32.xlu0 %v1889, 56
        %v2259 = vpop.permute.xlu0 %2258
        %2260 = vrot.lane.b32.xlu0 %v1891, 56
        %v2261 = vpop.permute.xlu0 %2260
        %2262 = vrot.lane.b32.xlu0 %v1894, 56
        %v2263 = vpop.permute.xlu0 %2262
        %2264 = vrot.lane.b32.xlu0 %v1896, 56
        %v2265 = vpop.permute.xlu0 %2264
        %2266 = vrot.lane.b32.xlu0 %v1899, 56
        %v2267 = vpop.permute.xlu0 %2266
        %2268 = vrot.lane.b32.xlu0 %v1901, 56
        %v2269 = vpop.permute.xlu0 %2268
        %2270 = vrot.lane.b32.xlu0 %v1904, 56
        %v2271 = vpop.permute.xlu0 %2270
        %2272 = vrot.lane.b32.xlu0 %v1906, 56
        %v2273 = vpop.permute.xlu0 %2272
        %2274 = vrot.lane.b32.xlu0 %v1909, 56
        %v2275 = vpop.permute.xlu0 %2274
        %2276 = vrot.lane.b32.xlu0 %v1911, 56
        %v2277 = vpop.permute.xlu0 %2276
        %2278 = vrot.lane.b32.xlu0 %v1914, 56
        %v2279 = vpop.permute.xlu0 %2278
        %2280 = vrot.lane.b32.xlu0 %v1916, 56
        %v2281 = vpop.permute.xlu0 %2280
        %2282 = vrot.lane.b32.xlu0 %v1919, 56
        %v2283 = vpop.permute.xlu0 %2282
        %2284 = vrot.lane.b32.xlu0 %v1921, 56
        %v2285 = vpop.permute.xlu0 %2284
        %2286 = vrot.lane.b32.xlu0 %v1924, 56
        %v2287 = vpop.permute.xlu0 %2286
        %2288 = vrot.lane.b32.xlu0 %v1926, 56
        %v2289 = vpop.permute.xlu0 %2288
        %2290 = vrot.lane.b32.xlu0 %v1929, 56
        %v2291 = vpop.permute.xlu0 %2290
        %2292 = vrot.lane.b32.xlu0 %v1931, 56
        %v2293 = vpop.permute.xlu0 %2292
        %2294 = vrot.lane.b32.xlu0 %v1934, 56
        %v2295 = vpop.permute.xlu0 %2294
        %2296 = vrot.lane.b32.xlu0 %v1936, 56
        %v2297 = vpop.permute.xlu0 %2296
        %2298 = vrot.lane.b32.xlu0 %v2235, 56
        %v2299 = vpop.permute.xlu0 %2298
        %2300 = vrot.lane.b32.xlu0 %v2237, 56
        %v2301 = vpop.permute.xlu0 %2300
        %2336 = vrot.lane.b32.xlu0 %v308, 60
        %v2337 = vpop.permute.xlu0 %2336
        %2338 = vrot.lane.b32.xlu0 %v309, 60
        %v2339 = vpop.permute.xlu0 %2338
        %2340 = vrot.lane.b32.xlu0 %v311, 60
        %v2341 = vpop.permute.xlu0 %2340
        %2342 = vrot.lane.b32.xlu0 %v312, 60
        %v2343 = vpop.permute.xlu0 %2342
        %2344 = vrot.lane.b32.xlu0 %v314, 60
        %v2345 = vpop.permute.xlu0 %2344
        %2346 = vrot.lane.b32.xlu0 %v315, 60
        %v2347 = vpop.permute.xlu0 %2346
        %2348 = vrot.lane.b32.xlu0 %v317, 60
        %v2349 = vpop.permute.xlu0 %2348
        %2350 = vrot.lane.b32.xlu0 %v318, 60
        %v2351 = vpop.permute.xlu0 %2350
        %2352 = vrot.lane.b32.xlu0 %v320, 60
        %v2353 = vpop.permute.xlu0 %2352
        %2354 = vrot.lane.b32.xlu0 %v321, 60
        %v2355 = vpop.permute.xlu0 %2354
        %2356 = vrot.lane.b32.xlu0 %v323, 60
        %v2357 = vpop.permute.xlu0 %2356
        %2358 = vrot.lane.b32.xlu0 %v324, 60
        %v2359 = vpop.permute.xlu0 %2358
        %2360 = vrot.lane.b32.xlu0 %v326, 60
        %v2361 = vpop.permute.xlu0 %2360
        %2362 = vrot.lane.b32.xlu0 %v327, 60
        %v2363 = vpop.permute.xlu0 %2362
        %2364 = vrot.lane.b32.xlu0 %v329, 60
        %v2365 = vpop.permute.xlu0 %2364
        %2366 = vrot.lane.b32.xlu0 %v330, 60
        %v2367 = vpop.permute.xlu0 %2366
        %2368 = vrot.lane.b32.xlu0 %v332, 60
        %v2369 = vpop.permute.xlu0 %2368
        %2370 = vrot.lane.b32.xlu0 %v333, 60
        %v2371 = vpop.permute.xlu0 %2370
        %2372 = vrot.lane.b32.xlu0 %v335, 60
        %v2373 = vpop.permute.xlu0 %2372
        %2374 = vrot.lane.b32.xlu0 %v336, 60
        %v2375 = vpop.permute.xlu0 %2374
        %2376 = vrot.lane.b32.xlu0 %v338, 60
        %v2377 = vpop.permute.xlu0 %2376
        %2378 = vrot.lane.b32.xlu0 %v339, 60
        %v2379 = vpop.permute.xlu0 %2378
        %2380 = vrot.lane.b32.xlu0 %v341, 60
        %v2381 = vpop.permute.xlu0 %2380
        %2382 = vrot.lane.b32.xlu0 %v342, 60
        %v2383 = vpop.permute.xlu0 %2382
        %2384 = vrot.lane.b32.xlu0 %v344, 60
        %v2385 = vpop.permute.xlu0 %2384
        %2386 = vrot.lane.b32.xlu0 %v345, 60
        %v2387 = vpop.permute.xlu0 %2386
        %2388 = vrot.lane.b32.xlu0 %v347, 60
        %v2389 = vpop.permute.xlu0 %2388
        %2390 = vrot.lane.b32.xlu0 %v348, 60
        %v2391 = vpop.permute.xlu0 %2390
        %2392 = vrot.lane.b32.xlu0 %v350, 60
        %v2393 = vpop.permute.xlu0 %2392
        %2394 = vrot.lane.b32.xlu0 %v351, 60
        %v2395 = vpop.permute.xlu0 %2394
        %2396 = vrot.lane.b32.xlu0 %v353, 60
        %v2397 = vpop.permute.xlu0 %2396
        %2398 = vrot.lane.b32.xlu0 %v354, 60
        %v2399 = vpop.permute.xlu0 %2398
        %vm2432 = vcmask 31744
        %v2433 = vsel %vm2432, %v185, %v663
        %v2434 = vsel %vm2432, %v186, %v665
        %v2435 = vsel %vm2432, %v188, %v667
        %v2436 = vsel %vm2432, %v189, %v669
        %v2437 = vsel %vm2432, %v191, %v671
        %v2438 = vsel %vm2432, %v192, %v673
        %v2439 = vsel %vm2432, %v194, %v675
        %v2440 = vsel %vm2432, %v195, %v677
        %v2441 = vsel %vm2432, %v197, %v679
        %v2442 = vsel %vm2432, %v198, %v681
        %v2443 = vsel %vm2432, %v200, %v683
        %v2444 = vsel %vm2432, %v201, %v685
        %v2445 = vsel %vm2432, %v203, %v687
        %v2446 = vsel %vm2432, %v204, %v689
        %v2447 = vsel %vm2432, %v206, %v691
        %v2448 = vsel %vm2432, %v207, %v693
        %v2449 = vsel %vm2432, %v209, %v695
        %v2450 = vsel %vm2432, %v210, %v697
        %v2451 = vsel %vm2432, %v212, %v699
        %v2452 = vsel %vm2432, %v213, %v701
        %v2453 = vsel %vm2432, %v215, %v703
        %v2454 = vsel %vm2432, %v216, %v705
        %v2455 = vsel %vm2432, %v218, %v707
        %v2456 = vsel %vm2432, %v219, %v709
        %v2457 = vsel %vm2432, %v221, %v711
        %v2458 = vsel %vm2432, %v222, %v713
        %v2459 = vsel %vm2432, %v224, %v715
        %v2460 = vsel %vm2432, %v225, %v717
        %v2461 = vsel %vm2432, %v227, %v719
        %v2462 = vsel %vm2432, %v228, %v721
        %v2463 = vsel %vm2432, %v230, %v723
        %v2464 = vsel %vm2432, %v231, %v725
        %vm2465 = vcmask 64512
        %v2466 = vsel %vm2465, %v2433, %v840
        %v2467 = vsel %vm2465, %v2434, %v842
        %v2468 = vsel %vm2465, %v2435, %v844
        %v2469 = vsel %vm2465, %v2436, %v846
        %v2470 = vsel %vm2465, %v2437, %v848
        %v2471 = vsel %vm2465, %v2438, %v850
        %v2472 = vsel %vm2465, %v2439, %v852
        %v2473 = vsel %vm2465, %v2440, %v854
        %v2474 = vsel %vm2465, %v2441, %v856
        %v2475 = vsel %vm2465, %v2442, %v858
        %v2476 = vsel %vm2465, %v2443, %v860
        %v2477 = vsel %vm2465, %v2444, %v862
        %v2478 = vsel %vm2465, %v2445, %v864
        %v2479 = vsel %vm2465, %v2446, %v866
        %v2480 = vsel %vm2465, %v2447, %v868
        %v2481 = vsel %vm2465, %v2448, %v870
        %v2482 = vsel %vm2465, %v2449, %v872
        %v2483 = vsel %vm2465, %v2450, %v874
        %v2484 = vsel %vm2465, %v2451, %v876
        %v2485 = vsel %vm2465, %v2452, %v878
        %v2486 = vsel %vm2465, %v2453, %v880
        %v2487 = vsel %vm2465, %v2454, %v882
        %v2488 = vsel %vm2465, %v2455, %v884
        %v2489 = vsel %vm2465, %v2456, %v886
        %v2490 = vsel %vm2465, %v2457, %v888
        %v2491 = vsel %vm2465, %v2458, %v890
        %v2492 = vsel %vm2465, %v2459, %v892
        %v2493 = vsel %vm2465, %v2460, %v894
        %v2494 = vsel %vm2465, %v2461, %v896
        %v2495 = vsel %vm2465, %v2462, %v898
        %v2496 = vsel %vm2465, %v2463, %v900
        %v2497 = vsel %vm2465, %v2464, %v902
        %vm2498 = vcmask 97280
        %v2499 = vsel %vm2498, %v2466, %v938
        %v2500 = vsel %vm2498, %v2467, %v940
        %v2501 = vsel %vm2498, %v2468, %v942
        %v2502 = vsel %vm2498, %v2469, %v944
        %v2503 = vsel %vm2498, %v2470, %v946
        %v2504 = vsel %vm2498, %v2471, %v948
        %v2505 = vsel %vm2498, %v2472, %v950
        %v2506 = vsel %vm2498, %v2473, %v952
        %v2507 = vsel %vm2498, %v2474, %v954
        %v2508 = vsel %vm2498, %v2475, %v956
        %v2509 = vsel %vm2498, %v2476, %v958
        %v2510 = vsel %vm2498, %v2477, %v960
        %v2511 = vsel %vm2498, %v2478, %v962
        %v2512 = vsel %vm2498, %v2479, %v964
        %v2513 = vsel %vm2498, %v2480, %v966
        %v2514 = vsel %vm2498, %v2481, %v968
        %v2515 = vsel %vm2498, %v2482, %v970
        %v2516 = vsel %vm2498, %v2483, %v972
        %v2517 = vsel %vm2498, %v2484, %v974
        %v2518 = vsel %vm2498, %v2485, %v976
        %v2519 = vsel %vm2498, %v2486, %v978
        %v2520 = vsel %vm2498, %v2487, %v980
        %v2521 = vsel %vm2498, %v2488, %v982
        %v2522 = vsel %vm2498, %v2489, %v984
        %v2523 = vsel %vm2498, %v2490, %v986
        %v2524 = vsel %vm2498, %v2491, %v988
        %v2525 = vsel %vm2498, %v2492, %v990
        %v2526 = vsel %vm2498, %v2493, %v992
        %v2527 = vsel %vm2498, %v2494, %v994
        %v2528 = vsel %vm2498, %v2495, %v996
        %v2529 = vsel %vm2498, %v2496, %v998
        %v2530 = vsel %vm2498, %v2497, %v1000
        %vm2531 = vcmask 130048
        %v2532 = vsel %vm2531, %v2499, %v1040
        %v2533 = vsel %vm2531, %v2500, %v1042
        %v2534 = vsel %vm2531, %v2501, %v1044
        %v2535 = vsel %vm2531, %v2502, %v1046
        %v2536 = vsel %vm2531, %v2503, %v1048
        %v2537 = vsel %vm2531, %v2504, %v1050
        %v2538 = vsel %vm2531, %v2505, %v1052
        %v2539 = vsel %vm2531, %v2506, %v1054
        %v2540 = vsel %vm2531, %v2507, %v1056
        %v2541 = vsel %vm2531, %v2508, %v1058
        %v2542 = vsel %vm2531, %v2509, %v1060
        %v2543 = vsel %vm2531, %v2510, %v1062
        %v2544 = vsel %vm2531, %v2511, %v1064
        %v2545 = vsel %vm2531, %v2512, %v1066
        %v2546 = vsel %vm2531, %v2513, %v1068
        %v2547 = vsel %vm2531, %v2514, %v1070
        %v2548 = vsel %vm2531, %v2515, %v1072
        %v2549 = vsel %vm2531, %v2516, %v1074
        %v2550 = vsel %vm2531, %v2517, %v1076
        %v2551 = vsel %vm2531, %v2518, %v1078
        %v2552 = vsel %vm2531, %v2519, %v1080
        %v2553 = vsel %vm2531, %v2520, %v1082
        %v2554 = vsel %vm2531, %v2521, %v1084
        %v2555 = vsel %vm2531, %v2522, %v1086
        %v2556 = vsel %vm2531, %v2523, %v1088
        %v2557 = vsel %vm2531, %v2524, %v1090
        %v2558 = vsel %vm2531, %v2525, %v1092
        %v2559 = vsel %vm2531, %v2526, %v1094
        %v2560 = vsel %vm2531, %v2527, %v1096
        %v2561 = vsel %vm2531, %v2528, %v1098
        %v2562 = vsel %vm2531, %v2529, %v1100
        %v2563 = vsel %vm2531, %v2530, %v1102
        %vm2564 = vcmask 162816
        %v2565 = vsel %vm2564, %v2532, %v1141
        %v2566 = vsel %vm2564, %v2533, %v1143
        %v2567 = vsel %vm2564, %v2534, %v1145
        %v2568 = vsel %vm2564, %v2535, %v1147
        %v2569 = vsel %vm2564, %v2536, %v1149
        %v2570 = vsel %vm2564, %v2537, %v1151
        %v2571 = vsel %vm2564, %v2538, %v1153
        %v2572 = vsel %vm2564, %v2539, %v1155
        %v2573 = vsel %vm2564, %v2540, %v1157
        %v2574 = vsel %vm2564, %v2541, %v1159
        %v2575 = vsel %vm2564, %v2542, %v1161
        %v2576 = vsel %vm2564, %v2543, %v1163
        %v2577 = vsel %vm2564, %v2544, %v1165
        %v2578 = vsel %vm2564, %v2545, %v1167
        %v2579 = vsel %vm2564, %v2546, %v1169
        %v2580 = vsel %vm2564, %v2547, %v1171
        %v2581 = vsel %vm2564, %v2548, %v1173
        %v2582 = vsel %vm2564, %v2549, %v1175
        %v2583 = vsel %vm2564, %v2550, %v1177
        %v2584 = vsel %vm2564, %v2551, %v1179
        %v2585 = vsel %vm2564, %v2552, %v1181
        %v2586 = vsel %vm2564, %v2553, %v1183
        %v2587 = vsel %vm2564, %v2554, %v1185
        %v2588 = vsel %vm2564, %v2555, %v1187
        %v2589 = vsel %vm2564, %v2556, %v1189
        %v2590 = vsel %vm2564, %v2557, %v1191
        %v2591 = vsel %vm2564, %v2558, %v1193
        %v2592 = vsel %vm2564, %v2559, %v1195
        %v2593 = vsel %vm2564, %v2560, %v1197
        %v2594 = vsel %vm2564, %v2561, %v1199
        %v2595 = vsel %vm2564, %v2562, %v1201
        %v2596 = vsel %vm2564, %v2563, %v1203
        %vm2597 = vcmask 195584
        %v2598 = vsel %vm2597, %v2565, %v1239
        %v2599 = vsel %vm2597, %v2566, %v1241
        %v2600 = vsel %vm2597, %v2567, %v1243
        %v2601 = vsel %vm2597, %v2568, %v1245
        %v2602 = vsel %vm2597, %v2569, %v1247
        %v2603 = vsel %vm2597, %v2570, %v1249
        %v2604 = vsel %vm2597, %v2571, %v1251
        %v2605 = vsel %vm2597, %v2572, %v1253
        %v2606 = vsel %vm2597, %v2573, %v1255
        %v2607 = vsel %vm2597, %v2574, %v1257
        %v2608 = vsel %vm2597, %v2575, %v1259
        %v2609 = vsel %vm2597, %v2576, %v1261
        %v2610 = vsel %vm2597, %v2577, %v1263
        %v2611 = vsel %vm2597, %v2578, %v1265
        %v2612 = vsel %vm2597, %v2579, %v1267
        %v2613 = vsel %vm2597, %v2580, %v1269
        %v2614 = vsel %vm2597, %v2581, %v1271
        %v2615 = vsel %vm2597, %v2582, %v1273
        %v2616 = vsel %vm2597, %v2583, %v1275
        %v2617 = vsel %vm2597, %v2584, %v1277
        %v2618 = vsel %vm2597, %v2585, %v1279
        %v2619 = vsel %vm2597, %v2586, %v1281
        %v2620 = vsel %vm2597, %v2587, %v1283
        %v2621 = vsel %vm2597, %v2588, %v1285
        %v2622 = vsel %vm2597, %v2589, %v1287
        %v2623 = vsel %vm2597, %v2590, %v1289
        %v2624 = vsel %vm2597, %v2591, %v1291
        %v2625 = vsel %vm2597, %v2592, %v1293
        %v2626 = vsel %vm2597, %v2593, %v1295
        %v2627 = vsel %vm2597, %v2594, %v1297
        %v2628 = vsel %vm2597, %v2595, %v1299
        %v2629 = vsel %vm2597, %v2596, %v1301
        %vm2630 = vcmask 228352
        %v2631 = vsel %vm2630, %v2598, %v1341
        %v2632 = vsel %vm2630, %v2599, %v1343
        %v2633 = vsel %vm2630, %v2600, %v1345
        %v2634 = vsel %vm2630, %v2601, %v1347
        %v2635 = vsel %vm2630, %v2602, %v1349
        %v2636 = vsel %vm2630, %v2603, %v1351
        %v2637 = vsel %vm2630, %v2604, %v1353
        %v2638 = vsel %vm2630, %v2605, %v1355
        %v2639 = vsel %vm2630, %v2606, %v1357
        %v2640 = vsel %vm2630, %v2607, %v1359
        %v2641 = vsel %vm2630, %v2608, %v1361
        %v2642 = vsel %vm2630, %v2609, %v1363
        %v2643 = vsel %vm2630, %v2610, %v1365
        %v2644 = vsel %vm2630, %v2611, %v1367
        %v2645 = vsel %vm2630, %v2612, %v1369
        %v2646 = vsel %vm2630, %v2613, %v1371
        %v2647 = vsel %vm2630, %v2614, %v1373
        %v2648 = vsel %vm2630, %v2615, %v1375
        %v2649 = vsel %vm2630, %v2616, %v1377
        %v2650 = vsel %vm2630, %v2617, %v1379
        %v2651 = vsel %vm2630, %v2618, %v1381
        %v2652 = vsel %vm2630, %v2619, %v1383
        %v2653 = vsel %vm2630, %v2620, %v1385
        %v2654 = vsel %vm2630, %v2621, %v1387
        %v2655 = vsel %vm2630, %v2622, %v1389
        %v2656 = vsel %vm2630, %v2623, %v1391
        %v2657 = vsel %vm2630, %v2624, %v1393
        %v2658 = vsel %vm2630, %v2625, %v1395
        %v2659 = vsel %vm2630, %v2626, %v1397
        %v2660 = vsel %vm2630, %v2627, %v1399
        %v2661 = vsel %vm2630, %v2628, %v1401
        %v2662 = vsel %vm2630, %v2629, %v1403
        %vm2663 = vcmask 261120
        %v2664 = vsel %vm2663, %v2631, %v1442
        %v2665 = vsel %vm2663, %v2632, %v1444
        %v2666 = vsel %vm2663, %v2633, %v1446
        %v2667 = vsel %vm2663, %v2634, %v1448
        %v2668 = vsel %vm2663, %v2635, %v1450
        %v2669 = vsel %vm2663, %v2636, %v1452
        %v2670 = vsel %vm2663, %v2637, %v1454
        %v2671 = vsel %vm2663, %v2638, %v1456
        %v2672 = vsel %vm2663, %v2639, %v1458
        %v2673 = vsel %vm2663, %v2640, %v1460
        %v2674 = vsel %vm2663, %v2641, %v1462
        %v2675 = vsel %vm2663, %v2642, %v1464
        %v2676 = vsel %vm2663, %v2643, %v1466
        %v2677 = vsel %vm2663, %v2644, %v1468
        %v2678 = vsel %vm2663, %v2645, %v1470
        %v2679 = vsel %vm2663, %v2646, %v1472
        %v2680 = vsel %vm2663, %v2647, %v1474
        %v2681 = vsel %vm2663, %v2648, %v1476
        %v2682 = vsel %vm2663, %v2649, %v1478
        %v2683 = vsel %vm2663, %v2650, %v1480
        %v2684 = vsel %vm2663, %v2651, %v1482
        %v2685 = vsel %vm2663, %v2652, %v1484
        %v2686 = vsel %vm2663, %v2653, %v1486
        %v2687 = vsel %vm2663, %v2654, %v1488
        %v2688 = vsel %vm2663, %v2655, %v1490
        %v2689 = vsel %vm2663, %v2656, %v1492
        %v2690 = vsel %vm2663, %v2657, %v1494
        %v2691 = vsel %vm2663, %v2658, %v1496
        %v2692 = vsel %vm2663, %v2659, %v1498
        %v2693 = vsel %vm2663, %v2660, %v1500
        %v2694 = vsel %vm2663, %v2661, %v1502
        %v2695 = vsel %vm2663, %v2662, %v1504
        %vm2696 = vcmask 293888
        %v2697 = vsel %vm2696, %v2664, %v1570
        %v2698 = vsel %vm2696, %v2665, %v1572
        %v2699 = vsel %vm2696, %v2666, %v1574
        %v2700 = vsel %vm2696, %v2667, %v1576
        %v2701 = vsel %vm2696, %v2668, %v1578
        %v2702 = vsel %vm2696, %v2669, %v1580
        %v2703 = vsel %vm2696, %v2670, %v1582
        %v2704 = vsel %vm2696, %v2671, %v1584
        %v2705 = vsel %vm2696, %v2672, %v1586
        %v2706 = vsel %vm2696, %v2673, %v1588
        %v2707 = vsel %vm2696, %v2674, %v1590
        %v2708 = vsel %vm2696, %v2675, %v1592
        %v2709 = vsel %vm2696, %v2676, %v1594
        %v2710 = vsel %vm2696, %v2677, %v1596
        %v2711 = vsel %vm2696, %v2678, %v1598
        %v2712 = vsel %vm2696, %v2679, %v1600
        %v2713 = vsel %vm2696, %v2680, %v1602
        %v2714 = vsel %vm2696, %v2681, %v1604
        %v2715 = vsel %vm2696, %v2682, %v1606
        %v2716 = vsel %vm2696, %v2683, %v1608
        %v2717 = vsel %vm2696, %v2684, %v1610
        %v2718 = vsel %vm2696, %v2685, %v1612
        %v2719 = vsel %vm2696, %v2686, %v1614
        %v2720 = vsel %vm2696, %v2687, %v1616
        %v2721 = vsel %vm2696, %v2688, %v1618
        %v2722 = vsel %vm2696, %v2689, %v1620
        %v2723 = vsel %vm2696, %v2690, %v1622
        %v2724 = vsel %vm2696, %v2691, %v1624
        %v2725 = vsel %vm2696, %v2692, %v1626
        %v2726 = vsel %vm2696, %v2693, %v1628
        %v2727 = vsel %vm2696, %v2694, %v1630
        %v2728 = vsel %vm2696, %v2695, %v1632
        %vm2729 = vcmask 326656
        %v2730 = vsel %vm2729, %v2697, %v1762
        %v2731 = vsel %vm2729, %v2698, %v1764
        %v2732 = vsel %vm2729, %v2699, %v1766
        %v2733 = vsel %vm2729, %v2700, %v1768
        %v2734 = vsel %vm2729, %v2701, %v1770
        %v2735 = vsel %vm2729, %v2702, %v1772
        %v2736 = vsel %vm2729, %v2703, %v1774
        %v2737 = vsel %vm2729, %v2704, %v1776
        %v2738 = vsel %vm2729, %v2705, %v1778
        %v2739 = vsel %vm2729, %v2706, %v1780
        %v2740 = vsel %vm2729, %v2707, %v1782
        %v2741 = vsel %vm2729, %v2708, %v1784
        %v2742 = vsel %vm2729, %v2709, %v1786
        %v2743 = vsel %vm2729, %v2710, %v1788
        %v2744 = vsel %vm2729, %v2711, %v1790
        %v2745 = vsel %vm2729, %v2712, %v1792
        %v2746 = vsel %vm2729, %v2713, %v1794
        %v2747 = vsel %vm2729, %v2714, %v1796
        %v2748 = vsel %vm2729, %v2715, %v1798
        %v2749 = vsel %vm2729, %v2716, %v1800
        %v2750 = vsel %vm2729, %v2717, %v1802
        %v2751 = vsel %vm2729, %v2718, %v1804
        %v2752 = vsel %vm2729, %v2719, %v1806
        %v2753 = vsel %vm2729, %v2720, %v1808
        %v2754 = vsel %vm2729, %v2721, %v1810
        %v2755 = vsel %vm2729, %v2722, %v1812
        %v2756 = vsel %vm2729, %v2723, %v1814
        %v2757 = vsel %vm2729, %v2724, %v1816
        %v2758 = vsel %vm2729, %v2725, %v1818
        %v2759 = vsel %vm2729, %v2726, %v1820
        %v2760 = vsel %vm2729, %v2727, %v1822
        %v2761 = vsel %vm2729, %v2728, %v1824
        %vm2762 = vcmask 359424
        %v2763 = vsel %vm2762, %v2730, %v1938
        %v2764 = vsel %vm2762, %v2731, %v1940
        %v2765 = vsel %vm2762, %v2732, %v1942
        %v2766 = vsel %vm2762, %v2733, %v1944
        %v2767 = vsel %vm2762, %v2734, %v1946
        %v2768 = vsel %vm2762, %v2735, %v1948
        %v2769 = vsel %vm2762, %v2736, %v1950
        %v2770 = vsel %vm2762, %v2737, %v1952
        %v2771 = vsel %vm2762, %v2738, %v1954
        %v2772 = vsel %vm2762, %v2739, %v1956
        %v2773 = vsel %vm2762, %v2740, %v1958
        %v2774 = vsel %vm2762, %v2741, %v1960
        %v2775 = vsel %vm2762, %v2742, %v1962
        %v2776 = vsel %vm2762, %v2743, %v1964
        %v2777 = vsel %vm2762, %v2744, %v1966
        %v2778 = vsel %vm2762, %v2745, %v1968
        %v2779 = vsel %vm2762, %v2746, %v1970
        %v2780 = vsel %vm2762, %v2747, %v1972
        %v2781 = vsel %vm2762, %v2748, %v1974
        %v2782 = vsel %vm2762, %v2749, %v1976
        %v2783 = vsel %vm2762, %v2750, %v1978
        %v2784 = vsel %vm2762, %v2751, %v1980
        %v2785 = vsel %vm2762, %v2752, %v1982
        %v2786 = vsel %vm2762, %v2753, %v1984
        %v2787 = vsel %vm2762, %v2754, %v1986
        %v2788 = vsel %vm2762, %v2755, %v1988
        %v2789 = vsel %vm2762, %v2756, %v1990
        %v2790 = vsel %vm2762, %v2757, %v1992
        %v2791 = vsel %vm2762, %v2758, %v1994
        %v2792 = vsel %vm2762, %v2759, %v1996
        %v2793 = vsel %vm2762, %v2760, %v1998
        %v2794 = vsel %vm2762, %v2761, %v2000
        %vm2795 = vcmask 392192
        %v2796 = vsel %vm2795, %v2763, %v2036
        %v2797 = vsel %vm2795, %v2764, %v2038
        %v2798 = vsel %vm2795, %v2765, %v2040
        %v2799 = vsel %vm2795, %v2766, %v2042
        %v2800 = vsel %vm2795, %v2767, %v2044
        %v2801 = vsel %vm2795, %v2768, %v2046
        %v2802 = vsel %vm2795, %v2769, %v2048
        %v2803 = vsel %vm2795, %v2770, %v2050
        %v2804 = vsel %vm2795, %v2771, %v2052
        %v2805 = vsel %vm2795, %v2772, %v2054
        %v2806 = vsel %vm2795, %v2773, %v2056
        %v2807 = vsel %vm2795, %v2774, %v2058
        %v2808 = vsel %vm2795, %v2775, %v2060
        %v2809 = vsel %vm2795, %v2776, %v2062
        %v2810 = vsel %vm2795, %v2777, %v2064
        %v2811 = vsel %vm2795, %v2778, %v2066
        %v2812 = vsel %vm2795, %v2779, %v2068
        %v2813 = vsel %vm2795, %v2780, %v2070
        %v2814 = vsel %vm2795, %v2781, %v2072
        %v2815 = vsel %vm2795, %v2782, %v2074
        %v2816 = vsel %vm2795, %v2783, %v2076
        %v2817 = vsel %vm2795, %v2784, %v2078
        %v2818 = vsel %vm2795, %v2785, %v2080
        %v2819 = vsel %vm2795, %v2786, %v2082
        %v2820 = vsel %vm2795, %v2787, %v2084
        %v2821 = vsel %vm2795, %v2788, %v2086
        %v2822 = vsel %vm2795, %v2789, %v2088
        %v2823 = vsel %vm2795, %v2790, %v2090
        %v2824 = vsel %vm2795, %v2791, %v2092
        %v2825 = vsel %vm2795, %v2792, %v2094
        %v2826 = vsel %vm2795, %v2793, %v2096
        %v2827 = vsel %vm2795, %v2794, %v2098
        %vm2828 = vcmask 424960
        %v2829 = vsel %vm2828, %v2796, %v2138
        %v2830 = vsel %vm2828, %v2797, %v2140
        %v2831 = vsel %vm2828, %v2798, %v2142
        %v2832 = vsel %vm2828, %v2799, %v2144
        %v2833 = vsel %vm2828, %v2800, %v2146
        %v2834 = vsel %vm2828, %v2801, %v2148
        %v2835 = vsel %vm2828, %v2802, %v2150
        %v2836 = vsel %vm2828, %v2803, %v2152
        %v2837 = vsel %vm2828, %v2804, %v2154
        %v2838 = vsel %vm2828, %v2805, %v2156
        %v2839 = vsel %vm2828, %v2806, %v2158
        %v2840 = vsel %vm2828, %v2807, %v2160
        %v2841 = vsel %vm2828, %v2808, %v2162
        %v2842 = vsel %vm2828, %v2809, %v2164
        %v2843 = vsel %vm2828, %v2810, %v2166
        %v2844 = vsel %vm2828, %v2811, %v2168
        %v2845 = vsel %vm2828, %v2812, %v2170
        %v2846 = vsel %vm2828, %v2813, %v2172
        %v2847 = vsel %vm2828, %v2814, %v2174
        %v2848 = vsel %vm2828, %v2815, %v2176
        %v2849 = vsel %vm2828, %v2816, %v2178
        %v2850 = vsel %vm2828, %v2817, %v2180
        %v2851 = vsel %vm2828, %v2818, %v2182
        %v2852 = vsel %vm2828, %v2819, %v2184
        %v2853 = vsel %vm2828, %v2820, %v2186
        %v2854 = vsel %vm2828, %v2821, %v2188
        %v2855 = vsel %vm2828, %v2822, %v2190
        %v2856 = vsel %vm2828, %v2823, %v2192
        %v2857 = vsel %vm2828, %v2824, %v2194
        %v2858 = vsel %vm2828, %v2825, %v2196
        %v2859 = vsel %vm2828, %v2826, %v2198
        %v2860 = vsel %vm2828, %v2827, %v2200
        %vm2861 = vcmask 457728
        %v2862 = vsel %vm2861, %v2829, %v2239
        %v2863 = vsel %vm2861, %v2830, %v2241
        %v2864 = vsel %vm2861, %v2831, %v2243
        %v2865 = vsel %vm2861, %v2832, %v2245
        %v2866 = vsel %vm2861, %v2833, %v2247
        %v2867 = vsel %vm2861, %v2834, %v2249
        %v2868 = vsel %vm2861, %v2835, %v2251
        %v2869 = vsel %vm2861, %v2836, %v2253
        %v2870 = vsel %vm2861, %v2837, %v2255
        %v2871 = vsel %vm2861, %v2838, %v2257
        %v2872 = vsel %vm2861, %v2839, %v2259
        %v2873 = vsel %vm2861, %v2840, %v2261
        %v2874 = vsel %vm2861, %v2841, %v2263
        %v2875 = vsel %vm2861, %v2842, %v2265
        %v2876 = vsel %vm2861, %v2843, %v2267
        %v2877 = vsel %vm2861, %v2844, %v2269
        %v2878 = vsel %vm2861, %v2845, %v2271
        %v2879 = vsel %vm2861, %v2846, %v2273
        %v2880 = vsel %vm2861, %v2847, %v2275
        %v2881 = vsel %vm2861, %v2848, %v2277
        %v2882 = vsel %vm2861, %v2849, %v2279
        %v2883 = vsel %vm2861, %v2850, %v2281
        %v2884 = vsel %vm2861, %v2851, %v2283
        %v2885 = vsel %vm2861, %v2852, %v2285
        %v2886 = vsel %vm2861, %v2853, %v2287
        %v2887 = vsel %vm2861, %v2854, %v2289
        %v2888 = vsel %vm2861, %v2855, %v2291
        %v2889 = vsel %vm2861, %v2856, %v2293
        %v2890 = vsel %vm2861, %v2857, %v2295
        %v2891 = vsel %vm2861, %v2858, %v2297
        %v2892 = vsel %vm2861, %v2859, %v2299
        %v2893 = vsel %vm2861, %v2860, %v2301
        %vm2894 = vcmask 490496
        %v2895 = vsel %vm2894, %v2862, %v2337
        %v2896 = vsel %vm2894, %v2863, %v2339
        %v2897 = vsel %vm2894, %v2864, %v2341
        %v2898 = vsel %vm2894, %v2865, %v2343
        %v2899 = vsel %vm2894, %v2866, %v2345
        %v2900 = vsel %vm2894, %v2867, %v2347
        %v2901 = vsel %vm2894, %v2868, %v2349
        %v2902 = vsel %vm2894, %v2869, %v2351
        %v2903 = vsel %vm2894, %v2870, %v2353
        %v2904 = vsel %vm2894, %v2871, %v2355
        %v2905 = vsel %vm2894, %v2872, %v2357
        %v2906 = vsel %vm2894, %v2873, %v2359
        %v2907 = vsel %vm2894, %v2874, %v2361
        %v2908 = vsel %vm2894, %v2875, %v2363
        %v2909 = vsel %vm2894, %v2876, %v2365
        %v2910 = vsel %vm2894, %v2877, %v2367
        %v2911 = vsel %vm2894, %v2878, %v2369
        %v2912 = vsel %vm2894, %v2879, %v2371
        %v2913 = vsel %vm2894, %v2880, %v2373
        %v2914 = vsel %vm2894, %v2881, %v2375
        %v2915 = vsel %vm2894, %v2882, %v2377
        %v2916 = vsel %vm2894, %v2883, %v2379
        %v2917 = vsel %vm2894, %v2884, %v2381
        %v2918 = vsel %vm2894, %v2885, %v2383
        %v2919 = vsel %vm2894, %v2886, %v2385
        %v2920 = vsel %vm2894, %v2887, %v2387
        %v2921 = vsel %vm2894, %v2888, %v2389
        %v2922 = vsel %vm2894, %v2889, %v2391
        %v2923 = vsel %vm2894, %v2890, %v2393
        %v2924 = vsel %vm2894, %v2891, %v2395
        %v2925 = vsel %vm2894, %v2892, %v2397
        %v2926 = vsel %vm2894, %v2893, %v2399
        %v2928 = vrot.slane %v353, 1
        %v2929 = vrot.slane %v354, 1
        %v2930 = vsel %vm581, %v2928, %v2929
        %v2931 = vrot.slane %v355, 1
        %v2932 = vsel %vm581, %v2929, %v2931
        %2933 = vrot.lane.b32.xlu0 %v1693, 4
        %v2934 = vpop.permute.xlu0 %2933
        %2935 = vrot.lane.b32.xlu0 %v1695, 4
        %v2936 = vpop.permute.xlu0 %2935
        %2937 = vrot.lane.b32.xlu0 %v1694, 4
        %v2938 = vpop.permute.xlu0 %2937
        %2939 = vrot.lane.b32.xlu0 %v1698, 4
        %v2940 = vpop.permute.xlu0 %2939
        %2941 = vrot.lane.b32.xlu0 %v1700, 4
        %v2942 = vpop.permute.xlu0 %2941
        %2943 = vrot.lane.b32.xlu0 %v1699, 4
        %v2944 = vpop.permute.xlu0 %2943
        %2945 = vrot.lane.b32.xlu0 %v1703, 4
        %v2946 = vpop.permute.xlu0 %2945
        %2947 = vrot.lane.b32.xlu0 %v1705, 4
        %v2948 = vpop.permute.xlu0 %2947
        %2949 = vrot.lane.b32.xlu0 %v1704, 4
        %v2950 = vpop.permute.xlu0 %2949
        %2951 = vrot.lane.b32.xlu0 %v1708, 4
        %v2952 = vpop.permute.xlu0 %2951
        %2953 = vrot.lane.b32.xlu0 %v1710, 4
        %v2954 = vpop.permute.xlu0 %2953
        %2955 = vrot.lane.b32.xlu0 %v1709, 4
        %v2956 = vpop.permute.xlu0 %2955
        %2957 = vrot.lane.b32.xlu0 %v1713, 4
        %v2958 = vpop.permute.xlu0 %2957
        %2959 = vrot.lane.b32.xlu0 %v1715, 4
        %v2960 = vpop.permute.xlu0 %2959
        %2961 = vrot.lane.b32.xlu0 %v1714, 4
        %v2962 = vpop.permute.xlu0 %2961
        %2963 = vrot.lane.b32.xlu0 %v1718, 4
        %v2964 = vpop.permute.xlu0 %2963
        %2965 = vrot.lane.b32.xlu0 %v1720, 4
        %v2966 = vpop.permute.xlu0 %2965
        %2967 = vrot.lane.b32.xlu0 %v1719, 4
        %v2968 = vpop.permute.xlu0 %2967
        %2969 = vrot.lane.b32.xlu0 %v1723, 4
        %v2970 = vpop.permute.xlu0 %2969
        %2971 = vrot.lane.b32.xlu0 %v1725, 4
        %v2972 = vpop.permute.xlu0 %2971
        %2973 = vrot.lane.b32.xlu0 %v1724, 4
        %v2974 = vpop.permute.xlu0 %2973
        %2975 = vrot.lane.b32.xlu0 %v1728, 4
        %v2976 = vpop.permute.xlu0 %2975
        %2977 = vrot.lane.b32.xlu0 %v1730, 4
        %v2978 = vpop.permute.xlu0 %2977
        %2979 = vrot.lane.b32.xlu0 %v1729, 4
        %v2980 = vpop.permute.xlu0 %2979
        %2981 = vrot.lane.b32.xlu0 %v1733, 4
        %v2982 = vpop.permute.xlu0 %2981
        %2983 = vrot.lane.b32.xlu0 %v1735, 4
        %v2984 = vpop.permute.xlu0 %2983
        %2985 = vrot.lane.b32.xlu0 %v1734, 4
        %v2986 = vpop.permute.xlu0 %2985
        %2987 = vrot.lane.b32.xlu0 %v1738, 4
        %v2988 = vpop.permute.xlu0 %2987
        %2989 = vrot.lane.b32.xlu0 %v1740, 4
        %v2990 = vpop.permute.xlu0 %2989
        %2991 = vrot.lane.b32.xlu0 %v1739, 4
        %v2992 = vpop.permute.xlu0 %2991
        %2993 = vrot.lane.b32.xlu0 %v1743, 4
        %v2994 = vpop.permute.xlu0 %2993
        %2995 = vrot.lane.b32.xlu0 %v1745, 4
        %v2996 = vpop.permute.xlu0 %2995
        %2997 = vrot.lane.b32.xlu0 %v1744, 4
        %v2998 = vpop.permute.xlu0 %2997
        %2999 = vrot.lane.b32.xlu0 %v1748, 4
        %v3000 = vpop.permute.xlu0 %2999
        %3001 = vrot.lane.b32.xlu0 %v1750, 4
        %v3002 = vpop.permute.xlu0 %3001
        %3003 = vrot.lane.b32.xlu0 %v1749, 4
        %v3004 = vpop.permute.xlu0 %3003
        %3005 = vrot.lane.b32.xlu0 %v1753, 4
        %v3006 = vpop.permute.xlu0 %3005
        %3007 = vrot.lane.b32.xlu0 %v1755, 4
        %v3008 = vpop.permute.xlu0 %3007
        %3009 = vrot.lane.b32.xlu0 %v1754, 4
        %v3010 = vpop.permute.xlu0 %3009
        %3011 = vrot.lane.b32.xlu0 %v1758, 4
        %v3012 = vpop.permute.xlu0 %3011
        %3013 = vrot.lane.b32.xlu0 %v1760, 4
        %v3014 = vpop.permute.xlu0 %3013
        %3015 = vrot.lane.b32.xlu0 %v1759, 4
        %v3016 = vpop.permute.xlu0 %3015
        %3017 = vrot.lane.b32.xlu0 %v2134, 4
        %v3018 = vpop.permute.xlu0 %3017
        %3019 = vrot.lane.b32.xlu0 %v2136, 4
        %v3020 = vpop.permute.xlu0 %3019
        %3021 = vrot.lane.b32.xlu0 %v2135, 4
        %v3022 = vpop.permute.xlu0 %3021
        %3023 = vrot.lane.b32.xlu0 %v2930, 4
        %v3024 = vpop.permute.xlu0 %3023
        %3025 = vrot.lane.b32.xlu0 %v2932, 4
        %v3026 = vpop.permute.xlu0 %3025
        %3027 = vrot.lane.b32.xlu0 %v2931, 4
        %v3028 = vpop.permute.xlu0 %3027
        %vm3109 = vcmask 1040384
        %v3110 = vrot.slane %v419, 7
        %v3111 = vrot.slane %v420, 7
        %v3112 = vsel %vm3109, %v3110, %v3111
        %v3113 = vrot.slane %v422, 7
        %v3114 = vrot.slane %v423, 7
        %v3115 = vsel %vm3109, %v3113, %v3114
        %v3116 = vrot.slane %v425, 7
        %v3117 = vrot.slane %v426, 7
        %v3118 = vsel %vm3109, %v3116, %v3117
        %v3119 = vrot.slane %v428, 7
        %v3120 = vrot.slane %v429, 7
        %v3121 = vsel %vm3109, %v3119, %v3120
        %v3122 = vrot.slane %v431, 7
        %v3123 = vrot.slane %v432, 7
        %v3124 = vsel %vm3109, %v3122, %v3123
        %v3125 = vrot.slane %v434, 7
        %v3126 = vrot.slane %v435, 7
        %v3127 = vsel %vm3109, %v3125, %v3126
        %v3128 = vrot.slane %v437, 7
        %v3129 = vrot.slane %v438, 7
        %v3130 = vsel %vm3109, %v3128, %v3129
        %v3131 = vrot.slane %v440, 7
        %v3132 = vrot.slane %v441, 7
        %v3133 = vsel %vm3109, %v3131, %v3132
        %v3134 = vrot.slane %v443, 7
        %v3135 = vrot.slane %v444, 7
        %v3136 = vsel %vm3109, %v3134, %v3135
        %v3137 = vrot.slane %v446, 7
        %v3138 = vrot.slane %v447, 7
        %v3139 = vsel %vm3109, %v3137, %v3138
        %v3140 = vrot.slane %v449, 7
        %v3141 = vrot.slane %v450, 7
        %v3142 = vsel %vm3109, %v3140, %v3141
        %v3143 = vrot.slane %v452, 7
        %v3144 = vrot.slane %v453, 7
        %v3145 = vsel %vm3109, %v3143, %v3144
        %v3146 = vrot.slane %v455, 7
        %v3147 = vrot.slane %v456, 7
        %v3148 = vsel %vm3109, %v3146, %v3147
        %v3149 = vrot.slane %v458, 7
        %v3150 = vrot.slane %v459, 7
        %v3151 = vsel %vm3109, %v3149, %v3150
        %v3152 = vrot.slane %v461, 7
        %v3153 = vrot.slane %v462, 7
        %v3154 = vsel %vm3109, %v3152, %v3153
        %v3155 = vrot.slane %v464, 7
        %v3156 = vrot.slane %v465, 7
        %v3157 = vsel %vm3109, %v3155, %v3156
        %3158 = vrot.lane.b32.xlu0 %v3110, 8
        %v3159 = vpop.permute.xlu0 %3158
        %3160 = vrot.lane.b32.xlu0 %v3112, 8
        %v3161 = vpop.permute.xlu0 %3160
        %3162 = vrot.lane.b32.xlu0 %v3111, 8
        %v3163 = vpop.permute.xlu0 %3162
        %3164 = vrot.lane.b32.xlu0 %v3113, 8
        %v3165 = vpop.permute.xlu0 %3164
        %3166 = vrot.lane.b32.xlu0 %v3115, 8
        %v3167 = vpop.permute.xlu0 %3166
        %3168 = vrot.lane.b32.xlu0 %v3114, 8
        %v3169 = vpop.permute.xlu0 %3168
        %3170 = vrot.lane.b32.xlu0 %v3116, 8
        %v3171 = vpop.permute.xlu0 %3170
        %3172 = vrot.lane.b32.xlu0 %v3118, 8
        %v3173 = vpop.permute.xlu0 %3172
        %3174 = vrot.lane.b32.xlu0 %v3117, 8
        %v3175 = vpop.permute.xlu0 %3174
        %3176 = vrot.lane.b32.xlu0 %v3119, 8
        %v3177 = vpop.permute.xlu0 %3176
        %3178 = vrot.lane.b32.xlu0 %v3121, 8
        %v3179 = vpop.permute.xlu0 %3178
        %3180 = vrot.lane.b32.xlu0 %v3120, 8
        %v3181 = vpop.permute.xlu0 %3180
        %3182 = vrot.lane.b32.xlu0 %v3122, 8
        %v3183 = vpop.permute.xlu0 %3182
        %3184 = vrot.lane.b32.xlu0 %v3124, 8
        %v3185 = vpop.permute.xlu0 %3184
        %3186 = vrot.lane.b32.xlu0 %v3123, 8
        %v3187 = vpop.permute.xlu0 %3186
        %3188 = vrot.lane.b32.xlu0 %v3125, 8
        %v3189 = vpop.permute.xlu0 %3188
        %3190 = vrot.lane.b32.xlu0 %v3127, 8
        %v3191 = vpop.permute.xlu0 %3190
        %3192 = vrot.lane.b32.xlu0 %v3126, 8
        %v3193 = vpop.permute.xlu0 %3192
        %3194 = vrot.lane.b32.xlu0 %v3128, 8
        %v3195 = vpop.permute.xlu0 %3194
        %3196 = vrot.lane.b32.xlu0 %v3130, 8
        %v3197 = vpop.permute.xlu0 %3196
        %3198 = vrot.lane.b32.xlu0 %v3129, 8
        %v3199 = vpop.permute.xlu0 %3198
        %3200 = vrot.lane.b32.xlu0 %v3131, 8
        %v3201 = vpop.permute.xlu0 %3200
        %3202 = vrot.lane.b32.xlu0 %v3133, 8
        %v3203 = vpop.permute.xlu0 %3202
        %3204 = vrot.lane.b32.xlu0 %v3132, 8
        %v3205 = vpop.permute.xlu0 %3204
        %3206 = vrot.lane.b32.xlu0 %v3134, 8
        %v3207 = vpop.permute.xlu0 %3206
        %3208 = vrot.lane.b32.xlu0 %v3136, 8
        %v3209 = vpop.permute.xlu0 %3208
        %3210 = vrot.lane.b32.xlu0 %v3135, 8
        %v3211 = vpop.permute.xlu0 %3210
        %3212 = vrot.lane.b32.xlu0 %v3137, 8
        %v3213 = vpop.permute.xlu0 %3212
        %3214 = vrot.lane.b32.xlu0 %v3139, 8
        %v3215 = vpop.permute.xlu0 %3214
        %3216 = vrot.lane.b32.xlu0 %v3138, 8
        %v3217 = vpop.permute.xlu0 %3216
        %3218 = vrot.lane.b32.xlu0 %v3140, 8
        %v3219 = vpop.permute.xlu0 %3218
        %3220 = vrot.lane.b32.xlu0 %v3142, 8
        %v3221 = vpop.permute.xlu0 %3220
        %3222 = vrot.lane.b32.xlu0 %v3141, 8
        %v3223 = vpop.permute.xlu0 %3222
        %3224 = vrot.lane.b32.xlu0 %v3143, 8
        %v3225 = vpop.permute.xlu0 %3224
        %3226 = vrot.lane.b32.xlu0 %v3145, 8
        %v3227 = vpop.permute.xlu0 %3226
        %3228 = vrot.lane.b32.xlu0 %v3144, 8
        %v3229 = vpop.permute.xlu0 %3228
        %3230 = vrot.lane.b32.xlu0 %v3146, 8
        %v3231 = vpop.permute.xlu0 %3230
        %3232 = vrot.lane.b32.xlu0 %v3148, 8
        %v3233 = vpop.permute.xlu0 %3232
        %3234 = vrot.lane.b32.xlu0 %v3147, 8
        %v3235 = vpop.permute.xlu0 %3234
        %3236 = vrot.lane.b32.xlu0 %v3149, 8
        %v3237 = vpop.permute.xlu0 %3236
        %3238 = vrot.lane.b32.xlu0 %v3151, 8
        %v3239 = vpop.permute.xlu0 %3238
        %3240 = vrot.lane.b32.xlu0 %v3150, 8
        %v3241 = vpop.permute.xlu0 %3240
        %3242 = vrot.lane.b32.xlu0 %v3152, 8
        %v3243 = vpop.permute.xlu0 %3242
        %3244 = vrot.lane.b32.xlu0 %v3154, 8
        %v3245 = vpop.permute.xlu0 %3244
        %3246 = vrot.lane.b32.xlu0 %v3153, 8
        %v3247 = vpop.permute.xlu0 %3246
        %3248 = vrot.lane.b32.xlu0 %v3155, 8
        %v3249 = vpop.permute.xlu0 %3248
        %3250 = vrot.lane.b32.xlu0 %v3157, 8
        %v3251 = vpop.permute.xlu0 %3250
        %3252 = vrot.lane.b32.xlu0 %v3156, 8
        %v3253 = vpop.permute.xlu0 %3252
        %3318 = vrot.lane.b32.xlu0 %v419, 12
        %v3319 = vpop.permute.xlu0 %3318
        %3320 = vrot.lane.b32.xlu0 %v420, 12
        %v3321 = vpop.permute.xlu0 %3320
        %3322 = vrot.lane.b32.xlu0 %v421, 12
        %v3323 = vpop.permute.xlu0 %3322
        %3324 = vrot.lane.b32.xlu0 %v422, 12
        %v3325 = vpop.permute.xlu0 %3324
        %3326 = vrot.lane.b32.xlu0 %v423, 12
        %v3327 = vpop.permute.xlu0 %3326
        %3328 = vrot.lane.b32.xlu0 %v424, 12
        %v3329 = vpop.permute.xlu0 %3328
        %3330 = vrot.lane.b32.xlu0 %v425, 12
        %v3331 = vpop.permute.xlu0 %3330
        %3332 = vrot.lane.b32.xlu0 %v426, 12
        %v3333 = vpop.permute.xlu0 %3332
        %3334 = vrot.lane.b32.xlu0 %v427, 12
        %v3335 = vpop.permute.xlu0 %3334
        %3336 = vrot.lane.b32.xlu0 %v428, 12
        %v3337 = vpop.permute.xlu0 %3336
        %3338 = vrot.lane.b32.xlu0 %v429, 12
        %v3339 = vpop.permute.xlu0 %3338
        %3340 = vrot.lane.b32.xlu0 %v430, 12
        %v3341 = vpop.permute.xlu0 %3340
        %3342 = vrot.lane.b32.xlu0 %v431, 12
        %v3343 = vpop.permute.xlu0 %3342
        %3344 = vrot.lane.b32.xlu0 %v432, 12
        %v3345 = vpop.permute.xlu0 %3344
        %3346 = vrot.lane.b32.xlu0 %v433, 12
        %v3347 = vpop.permute.xlu0 %3346
        %3348 = vrot.lane.b32.xlu0 %v434, 12
        %v3349 = vpop.permute.xlu0 %3348
        %3350 = vrot.lane.b32.xlu0 %v435, 12
        %v3351 = vpop.permute.xlu0 %3350
        %3352 = vrot.lane.b32.xlu0 %v436, 12
        %v3353 = vpop.permute.xlu0 %3352
        %3354 = vrot.lane.b32.xlu0 %v437, 12
        %v3355 = vpop.permute.xlu0 %3354
        %3356 = vrot.lane.b32.xlu0 %v438, 12
        %v3357 = vpop.permute.xlu0 %3356
        %3358 = vrot.lane.b32.xlu0 %v439, 12
        %v3359 = vpop.permute.xlu0 %3358
        %3360 = vrot.lane.b32.xlu0 %v440, 12
        %v3361 = vpop.permute.xlu0 %3360
        %3362 = vrot.lane.b32.xlu0 %v441, 12
        %v3363 = vpop.permute.xlu0 %3362
        %3364 = vrot.lane.b32.xlu0 %v442, 12
        %v3365 = vpop.permute.xlu0 %3364
        %3366 = vrot.lane.b32.xlu0 %v443, 12
        %v3367 = vpop.permute.xlu0 %3366
        %3368 = vrot.lane.b32.xlu0 %v444, 12
        %v3369 = vpop.permute.xlu0 %3368
        %3370 = vrot.lane.b32.xlu0 %v445, 12
        %v3371 = vpop.permute.xlu0 %3370
        %3372 = vrot.lane.b32.xlu0 %v446, 12
        %v3373 = vpop.permute.xlu0 %3372
        %3374 = vrot.lane.b32.xlu0 %v447, 12
        %v3375 = vpop.permute.xlu0 %3374
        %3376 = vrot.lane.b32.xlu0 %v448, 12
        %v3377 = vpop.permute.xlu0 %3376
        %3378 = vrot.lane.b32.xlu0 %v449, 12
        %v3379 = vpop.permute.xlu0 %3378
        %3380 = vrot.lane.b32.xlu0 %v450, 12
        %v3381 = vpop.permute.xlu0 %3380
        %3382 = vrot.lane.b32.xlu0 %v451, 12
        %v3383 = vpop.permute.xlu0 %3382
        %3384 = vrot.lane.b32.xlu0 %v452, 12
        %v3385 = vpop.permute.xlu0 %3384
        %3386 = vrot.lane.b32.xlu0 %v453, 12
        %v3387 = vpop.permute.xlu0 %3386
        %3388 = vrot.lane.b32.xlu0 %v454, 12
        %v3389 = vpop.permute.xlu0 %3388
        %3390 = vrot.lane.b32.xlu0 %v455, 12
        %v3391 = vpop.permute.xlu0 %3390
        %3392 = vrot.lane.b32.xlu0 %v456, 12
        %v3393 = vpop.permute.xlu0 %3392
        %3394 = vrot.lane.b32.xlu0 %v457, 12
        %v3395 = vpop.permute.xlu0 %3394
        %3396 = vrot.lane.b32.xlu0 %v458, 12
        %v3397 = vpop.permute.xlu0 %3396
        %3398 = vrot.lane.b32.xlu0 %v459, 12
        %v3399 = vpop.permute.xlu0 %3398
        %3400 = vrot.lane.b32.xlu0 %v460, 12
        %v3401 = vpop.permute.xlu0 %3400
        %3402 = vrot.lane.b32.xlu0 %v461, 12
        %v3403 = vpop.permute.xlu0 %3402
        %3404 = vrot.lane.b32.xlu0 %v462, 12
        %v3405 = vpop.permute.xlu0 %3404
        %3406 = vrot.lane.b32.xlu0 %v463, 12
        %v3407 = vpop.permute.xlu0 %3406
        %3408 = vrot.lane.b32.xlu0 %v464, 12
        %v3409 = vpop.permute.xlu0 %3408
        %3410 = vrot.lane.b32.xlu0 %v465, 12
        %v3411 = vpop.permute.xlu0 %3410
        %3412 = vrot.lane.b32.xlu0 %v466, 12
        %v3413 = vpop.permute.xlu0 %3412
        %v3462 = vrot.slane %v419, 1
        %v3463 = vrot.slane %v420, 1
        %v3464 = vsel %vm581, %v3462, %v3463
        %v3465 = vrot.slane %v421, 1
        %v3466 = vsel %vm581, %v3463, %v3465
        %v3467 = vrot.slane %v422, 1
        %v3468 = vrot.slane %v423, 1
        %v3469 = vsel %vm581, %v3467, %v3468
        %v3470 = vrot.slane %v424, 1
        %v3471 = vsel %vm581, %v3468, %v3470
        %v3472 = vrot.slane %v425, 1
        %v3473 = vrot.slane %v426, 1
        %v3474 = vsel %vm581, %v3472, %v3473
        %v3475 = vrot.slane %v427, 1
        %v3476 = vsel %vm581, %v3473, %v3475
        %v3477 = vrot.slane %v428, 1
        %v3478 = vrot.slane %v429, 1
        %v3479 = vsel %vm581, %v3477, %v3478
        %v3480 = vrot.slane %v430, 1
        %v3481 = vsel %vm581, %v3478, %v3480
        %v3482 = vrot.slane %v431, 1
        %v3483 = vrot.slane %v432, 1
        %v3484 = vsel %vm581, %v3482, %v3483
        %v3485 = vrot.slane %v433, 1
        %v3486 = vsel %vm581, %v3483, %v3485
        %v3487 = vrot.slane %v434, 1
        %v3488 = vrot.slane %v435, 1
        %v3489 = vsel %vm581, %v3487, %v3488
        %v3490 = vrot.slane %v436, 1
        %v3491 = vsel %vm581, %v3488, %v3490
        %v3492 = vrot.slane %v437, 1
        %v3493 = vrot.slane %v438, 1
        %v3494 = vsel %vm581, %v3492, %v3493
        %v3495 = vrot.slane %v439, 1
        %v3496 = vsel %vm581, %v3493, %v3495
        %v3497 = vrot.slane %v440, 1
        %v3498 = vrot.slane %v441, 1
        %v3499 = vsel %vm581, %v3497, %v3498
        %v3500 = vrot.slane %v442, 1
        %v3501 = vsel %vm581, %v3498, %v3500
        %v3502 = vrot.slane %v443, 1
        %v3503 = vrot.slane %v444, 1
        %v3504 = vsel %vm581, %v3502, %v3503
        %v3505 = vrot.slane %v445, 1
        %v3506 = vsel %vm581, %v3503, %v3505
        %v3507 = vrot.slane %v446, 1
        %v3508 = vrot.slane %v447, 1
        %v3509 = vsel %vm581, %v3507, %v3508
        %v3510 = vrot.slane %v448, 1
        %v3511 = vsel %vm581, %v3508, %v3510
        %v3512 = vrot.slane %v449, 1
        %v3513 = vrot.slane %v450, 1
        %v3514 = vsel %vm581, %v3512, %v3513
        %v3515 = vrot.slane %v451, 1
        %v3516 = vsel %vm581, %v3513, %v3515
        %v3517 = vrot.slane %v452, 1
        %v3518 = vrot.slane %v453, 1
        %v3519 = vsel %vm581, %v3517, %v3518
        %v3520 = vrot.slane %v454, 1
        %v3521 = vsel %vm581, %v3518, %v3520
        %v3522 = vrot.slane %v455, 1
        %v3523 = vrot.slane %v456, 1
        %v3524 = vsel %vm581, %v3522, %v3523
        %v3525 = vrot.slane %v457, 1
        %v3526 = vsel %vm581, %v3523, %v3525
        %v3527 = vrot.slane %v458, 1
        %v3528 = vrot.slane %v459, 1
        %v3529 = vsel %vm581, %v3527, %v3528
        %v3530 = vrot.slane %v460, 1
        %v3531 = vsel %vm581, %v3528, %v3530
        %v3532 = vrot.slane %v461, 1
        %v3533 = vrot.slane %v462, 1
        %v3534 = vsel %vm581, %v3532, %v3533
        %v3535 = vrot.slane %v463, 1
        %v3536 = vsel %vm581, %v3533, %v3535
        %v3537 = vrot.slane %v464, 1
        %v3538 = vrot.slane %v465, 1
        %v3539 = vsel %vm581, %v3537, %v3538
        %v3540 = vrot.slane %v466, 1
        %v3541 = vsel %vm581, %v3538, %v3540
        %3542 = vrot.lane.b32.xlu0 %v3464, 16
        %v3543 = vpop.permute.xlu0 %3542
        %3544 = vrot.lane.b32.xlu0 %v3466, 16
        %v3545 = vpop.permute.xlu0 %3544
        %3546 = vrot.lane.b32.xlu0 %v3465, 16
        %v3547 = vpop.permute.xlu0 %3546
        %3548 = vrot.lane.b32.xlu0 %v3469, 16
        %v3549 = vpop.permute.xlu0 %3548
        %3550 = vrot.lane.b32.xlu0 %v3471, 16
        %v3551 = vpop.permute.xlu0 %3550
        %3552 = vrot.lane.b32.xlu0 %v3470, 16
        %v3553 = vpop.permute.xlu0 %3552
        %3554 = vrot.lane.b32.xlu0 %v3474, 16
        %v3555 = vpop.permute.xlu0 %3554
        %3556 = vrot.lane.b32.xlu0 %v3476, 16
        %v3557 = vpop.permute.xlu0 %3556
        %3558 = vrot.lane.b32.xlu0 %v3475, 16
        %v3559 = vpop.permute.xlu0 %3558
        %3560 = vrot.lane.b32.xlu0 %v3479, 16
        %v3561 = vpop.permute.xlu0 %3560
        %3562 = vrot.lane.b32.xlu0 %v3481, 16
        %v3563 = vpop.permute.xlu0 %3562
        %3564 = vrot.lane.b32.xlu0 %v3480, 16
        %v3565 = vpop.permute.xlu0 %3564
        %3566 = vrot.lane.b32.xlu0 %v3484, 16
        %v3567 = vpop.permute.xlu0 %3566
        %3568 = vrot.lane.b32.xlu0 %v3486, 16
        %v3569 = vpop.permute.xlu0 %3568
        %3570 = vrot.lane.b32.xlu0 %v3485, 16
        %v3571 = vpop.permute.xlu0 %3570
        %3572 = vrot.lane.b32.xlu0 %v3489, 16
        %v3573 = vpop.permute.xlu0 %3572
        %3574 = vrot.lane.b32.xlu0 %v3491, 16
        %v3575 = vpop.permute.xlu0 %3574
        %3576 = vrot.lane.b32.xlu0 %v3490, 16
        %v3577 = vpop.permute.xlu0 %3576
        %3578 = vrot.lane.b32.xlu0 %v3494, 16
        %v3579 = vpop.permute.xlu0 %3578
        %3580 = vrot.lane.b32.xlu0 %v3496, 16
        %v3581 = vpop.permute.xlu0 %3580
        %3582 = vrot.lane.b32.xlu0 %v3495, 16
        %v3583 = vpop.permute.xlu0 %3582
        %3584 = vrot.lane.b32.xlu0 %v3499, 16
        %v3585 = vpop.permute.xlu0 %3584
        %3586 = vrot.lane.b32.xlu0 %v3501, 16
        %v3587 = vpop.permute.xlu0 %3586
        %3588 = vrot.lane.b32.xlu0 %v3500, 16
        %v3589 = vpop.permute.xlu0 %3588
        %3590 = vrot.lane.b32.xlu0 %v3504, 16
        %v3591 = vpop.permute.xlu0 %3590
        %3592 = vrot.lane.b32.xlu0 %v3506, 16
        %v3593 = vpop.permute.xlu0 %3592
        %3594 = vrot.lane.b32.xlu0 %v3505, 16
        %v3595 = vpop.permute.xlu0 %3594
        %3596 = vrot.lane.b32.xlu0 %v3509, 16
        %v3597 = vpop.permute.xlu0 %3596
        %3598 = vrot.lane.b32.xlu0 %v3511, 16
        %v3599 = vpop.permute.xlu0 %3598
        %3600 = vrot.lane.b32.xlu0 %v3510, 16
        %v3601 = vpop.permute.xlu0 %3600
        %3602 = vrot.lane.b32.xlu0 %v3514, 16
        %v3603 = vpop.permute.xlu0 %3602
        %3604 = vrot.lane.b32.xlu0 %v3516, 16
        %v3605 = vpop.permute.xlu0 %3604
        %3606 = vrot.lane.b32.xlu0 %v3515, 16
        %v3607 = vpop.permute.xlu0 %3606
        %3608 = vrot.lane.b32.xlu0 %v3519, 16
        %v3609 = vpop.permute.xlu0 %3608
        %3610 = vrot.lane.b32.xlu0 %v3521, 16
        %v3611 = vpop.permute.xlu0 %3610
        %3612 = vrot.lane.b32.xlu0 %v3520, 16
        %v3613 = vpop.permute.xlu0 %3612
        %3614 = vrot.lane.b32.xlu0 %v3524, 16
        %v3615 = vpop.permute.xlu0 %3614
        %3616 = vrot.lane.b32.xlu0 %v3526, 16
        %v3617 = vpop.permute.xlu0 %3616
        %3618 = vrot.lane.b32.xlu0 %v3525, 16
        %v3619 = vpop.permute.xlu0 %3618
        %3620 = vrot.lane.b32.xlu0 %v3529, 16
        %v3621 = vpop.permute.xlu0 %3620
        %3622 = vrot.lane.b32.xlu0 %v3531, 16
        %v3623 = vpop.permute.xlu0 %3622
        %3624 = vrot.lane.b32.xlu0 %v3530, 16
        %v3625 = vpop.permute.xlu0 %3624
        %3626 = vrot.lane.b32.xlu0 %v3534, 16
        %v3627 = vpop.permute.xlu0 %3626
        %3628 = vrot.lane.b32.xlu0 %v3536, 16
        %v3629 = vpop.permute.xlu0 %3628
        %3630 = vrot.lane.b32.xlu0 %v3535, 16
        %v3631 = vpop.permute.xlu0 %3630
        %3632 = vrot.lane.b32.xlu0 %v3539, 16
        %v3633 = vpop.permute.xlu0 %3632
        %3634 = vrot.lane.b32.xlu0 %v3541, 16
        %v3635 = vpop.permute.xlu0 %3634
        %3636 = vrot.lane.b32.xlu0 %v3540, 16
        %v3637 = vpop.permute.xlu0 %3636
        %v3688 = vrot.slane %v467, 7
        %v3689 = vrot.slane %v468, 7
        %v3690 = vsel %vm3109, %v3688, %v3689
        %3691 = vrot.lane.b32.xlu0 %v3113, 20
        %v3692 = vpop.permute.xlu0 %3691
        %3693 = vrot.lane.b32.xlu0 %v3115, 20
        %v3694 = vpop.permute.xlu0 %3693
        %3695 = vrot.lane.b32.xlu0 %v3114, 20
        %v3696 = vpop.permute.xlu0 %3695
        %3697 = vrot.lane.b32.xlu0 %v3116, 20
        %v3698 = vpop.permute.xlu0 %3697
        %3699 = vrot.lane.b32.xlu0 %v3118, 20
        %v3700 = vpop.permute.xlu0 %3699
        %3701 = vrot.lane.b32.xlu0 %v3117, 20
        %v3702 = vpop.permute.xlu0 %3701
        %3703 = vrot.lane.b32.xlu0 %v3119, 20
        %v3704 = vpop.permute.xlu0 %3703
        %3705 = vrot.lane.b32.xlu0 %v3121, 20
        %v3706 = vpop.permute.xlu0 %3705
        %3707 = vrot.lane.b32.xlu0 %v3120, 20
        %v3708 = vpop.permute.xlu0 %3707
        %3709 = vrot.lane.b32.xlu0 %v3122, 20
        %v3710 = vpop.permute.xlu0 %3709
        %3711 = vrot.lane.b32.xlu0 %v3124, 20
        %v3712 = vpop.permute.xlu0 %3711
        %3713 = vrot.lane.b32.xlu0 %v3123, 20
        %v3714 = vpop.permute.xlu0 %3713
        %3715 = vrot.lane.b32.xlu0 %v3125, 20
        %v3716 = vpop.permute.xlu0 %3715
        %3717 = vrot.lane.b32.xlu0 %v3127, 20
        %v3718 = vpop.permute.xlu0 %3717
        %3719 = vrot.lane.b32.xlu0 %v3126, 20
        %v3720 = vpop.permute.xlu0 %3719
        %3721 = vrot.lane.b32.xlu0 %v3128, 20
        %v3722 = vpop.permute.xlu0 %3721
        %3723 = vrot.lane.b32.xlu0 %v3130, 20
        %v3724 = vpop.permute.xlu0 %3723
        %3725 = vrot.lane.b32.xlu0 %v3129, 20
        %v3726 = vpop.permute.xlu0 %3725
        %3727 = vrot.lane.b32.xlu0 %v3131, 20
        %v3728 = vpop.permute.xlu0 %3727
        %3729 = vrot.lane.b32.xlu0 %v3133, 20
        %v3730 = vpop.permute.xlu0 %3729
        %3731 = vrot.lane.b32.xlu0 %v3132, 20
        %v3732 = vpop.permute.xlu0 %3731
        %3733 = vrot.lane.b32.xlu0 %v3134, 20
        %v3734 = vpop.permute.xlu0 %3733
        %3735 = vrot.lane.b32.xlu0 %v3136, 20
        %v3736 = vpop.permute.xlu0 %3735
        %3737 = vrot.lane.b32.xlu0 %v3135, 20
        %v3738 = vpop.permute.xlu0 %3737
        %3739 = vrot.lane.b32.xlu0 %v3137, 20
        %v3740 = vpop.permute.xlu0 %3739
        %3741 = vrot.lane.b32.xlu0 %v3139, 20
        %v3742 = vpop.permute.xlu0 %3741
        %3743 = vrot.lane.b32.xlu0 %v3138, 20
        %v3744 = vpop.permute.xlu0 %3743
        %3745 = vrot.lane.b32.xlu0 %v3140, 20
        %v3746 = vpop.permute.xlu0 %3745
        %3747 = vrot.lane.b32.xlu0 %v3142, 20
        %v3748 = vpop.permute.xlu0 %3747
        %3749 = vrot.lane.b32.xlu0 %v3141, 20
        %v3750 = vpop.permute.xlu0 %3749
        %3751 = vrot.lane.b32.xlu0 %v3143, 20
        %v3752 = vpop.permute.xlu0 %3751
        %3753 = vrot.lane.b32.xlu0 %v3145, 20
        %v3754 = vpop.permute.xlu0 %3753
        %3755 = vrot.lane.b32.xlu0 %v3144, 20
        %v3756 = vpop.permute.xlu0 %3755
        %3757 = vrot.lane.b32.xlu0 %v3146, 20
        %v3758 = vpop.permute.xlu0 %3757
        %3759 = vrot.lane.b32.xlu0 %v3148, 20
        %v3760 = vpop.permute.xlu0 %3759
        %3761 = vrot.lane.b32.xlu0 %v3147, 20
        %v3762 = vpop.permute.xlu0 %3761
        %3763 = vrot.lane.b32.xlu0 %v3149, 20
        %v3764 = vpop.permute.xlu0 %3763
        %3765 = vrot.lane.b32.xlu0 %v3151, 20
        %v3766 = vpop.permute.xlu0 %3765
        %3767 = vrot.lane.b32.xlu0 %v3150, 20
        %v3768 = vpop.permute.xlu0 %3767
        %3769 = vrot.lane.b32.xlu0 %v3152, 20
        %v3770 = vpop.permute.xlu0 %3769
        %3771 = vrot.lane.b32.xlu0 %v3154, 20
        %v3772 = vpop.permute.xlu0 %3771
        %3773 = vrot.lane.b32.xlu0 %v3153, 20
        %v3774 = vpop.permute.xlu0 %3773
        %3775 = vrot.lane.b32.xlu0 %v3155, 20
        %v3776 = vpop.permute.xlu0 %3775
        %3777 = vrot.lane.b32.xlu0 %v3157, 20
        %v3778 = vpop.permute.xlu0 %3777
        %3779 = vrot.lane.b32.xlu0 %v3156, 20
        %v3780 = vpop.permute.xlu0 %3779
        %3781 = vrot.lane.b32.xlu0 %v3688, 20
        %v3782 = vpop.permute.xlu0 %3781
        %3783 = vrot.lane.b32.xlu0 %v3690, 20
        %v3784 = vpop.permute.xlu0 %3783
        %3785 = vrot.lane.b32.xlu0 %v3689, 20
        %v3786 = vpop.permute.xlu0 %3785
        %3836 = vrot.lane.b32.xlu0 %v422, 24
        %v3837 = vpop.permute.xlu0 %3836
        %3838 = vrot.lane.b32.xlu0 %v423, 24
        %v3839 = vpop.permute.xlu0 %3838
        %3840 = vrot.lane.b32.xlu0 %v424, 24
        %v3841 = vpop.permute.xlu0 %3840
        %3842 = vrot.lane.b32.xlu0 %v425, 24
        %v3843 = vpop.permute.xlu0 %3842
        %3844 = vrot.lane.b32.xlu0 %v426, 24
        %v3845 = vpop.permute.xlu0 %3844
        %3846 = vrot.lane.b32.xlu0 %v427, 24
        %v3847 = vpop.permute.xlu0 %3846
        %3848 = vrot.lane.b32.xlu0 %v428, 24
        %v3849 = vpop.permute.xlu0 %3848
        %3850 = vrot.lane.b32.xlu0 %v429, 24
        %v3851 = vpop.permute.xlu0 %3850
        %3852 = vrot.lane.b32.xlu0 %v430, 24
        %v3853 = vpop.permute.xlu0 %3852
        %3854 = vrot.lane.b32.xlu0 %v431, 24
        %v3855 = vpop.permute.xlu0 %3854
        %3856 = vrot.lane.b32.xlu0 %v432, 24
        %v3857 = vpop.permute.xlu0 %3856
        %3858 = vrot.lane.b32.xlu0 %v433, 24
        %v3859 = vpop.permute.xlu0 %3858
        %3860 = vrot.lane.b32.xlu0 %v434, 24
        %v3861 = vpop.permute.xlu0 %3860
        %3862 = vrot.lane.b32.xlu0 %v435, 24
        %v3863 = vpop.permute.xlu0 %3862
        %3864 = vrot.lane.b32.xlu0 %v436, 24
        %v3865 = vpop.permute.xlu0 %3864
        %3866 = vrot.lane.b32.xlu0 %v437, 24
        %v3867 = vpop.permute.xlu0 %3866
        %3868 = vrot.lane.b32.xlu0 %v438, 24
        %v3869 = vpop.permute.xlu0 %3868
        %3870 = vrot.lane.b32.xlu0 %v439, 24
        %v3871 = vpop.permute.xlu0 %3870
        %3872 = vrot.lane.b32.xlu0 %v440, 24
        %v3873 = vpop.permute.xlu0 %3872
        %3874 = vrot.lane.b32.xlu0 %v441, 24
        %v3875 = vpop.permute.xlu0 %3874
        %3876 = vrot.lane.b32.xlu0 %v442, 24
        %v3877 = vpop.permute.xlu0 %3876
        %3878 = vrot.lane.b32.xlu0 %v443, 24
        %v3879 = vpop.permute.xlu0 %3878
        %3880 = vrot.lane.b32.xlu0 %v444, 24
        %v3881 = vpop.permute.xlu0 %3880
        %3882 = vrot.lane.b32.xlu0 %v445, 24
        %v3883 = vpop.permute.xlu0 %3882
        %3884 = vrot.lane.b32.xlu0 %v446, 24
        %v3885 = vpop.permute.xlu0 %3884
        %3886 = vrot.lane.b32.xlu0 %v447, 24
        %v3887 = vpop.permute.xlu0 %3886
        %3888 = vrot.lane.b32.xlu0 %v448, 24
        %v3889 = vpop.permute.xlu0 %3888
        %3890 = vrot.lane.b32.xlu0 %v449, 24
        %v3891 = vpop.permute.xlu0 %3890
        %3892 = vrot.lane.b32.xlu0 %v450, 24
        %v3893 = vpop.permute.xlu0 %3892
        %3894 = vrot.lane.b32.xlu0 %v451, 24
        %v3895 = vpop.permute.xlu0 %3894
        %3896 = vrot.lane.b32.xlu0 %v452, 24
        %v3897 = vpop.permute.xlu0 %3896
        %3898 = vrot.lane.b32.xlu0 %v453, 24
        %v3899 = vpop.permute.xlu0 %3898
        %3900 = vrot.lane.b32.xlu0 %v454, 24
        %v3901 = vpop.permute.xlu0 %3900
        %3902 = vrot.lane.b32.xlu0 %v455, 24
        %v3903 = vpop.permute.xlu0 %3902
        %3904 = vrot.lane.b32.xlu0 %v456, 24
        %v3905 = vpop.permute.xlu0 %3904
        %3906 = vrot.lane.b32.xlu0 %v457, 24
        %v3907 = vpop.permute.xlu0 %3906
        %3908 = vrot.lane.b32.xlu0 %v458, 24
        %v3909 = vpop.permute.xlu0 %3908
        %3910 = vrot.lane.b32.xlu0 %v459, 24
        %v3911 = vpop.permute.xlu0 %3910
        %3912 = vrot.lane.b32.xlu0 %v460, 24
        %v3913 = vpop.permute.xlu0 %3912
        %3914 = vrot.lane.b32.xlu0 %v461, 24
        %v3915 = vpop.permute.xlu0 %3914
        %3916 = vrot.lane.b32.xlu0 %v462, 24
        %v3917 = vpop.permute.xlu0 %3916
        %3918 = vrot.lane.b32.xlu0 %v463, 24
        %v3919 = vpop.permute.xlu0 %3918
        %3920 = vrot.lane.b32.xlu0 %v464, 24
        %v3921 = vpop.permute.xlu0 %3920
        %3922 = vrot.lane.b32.xlu0 %v465, 24
        %v3923 = vpop.permute.xlu0 %3922
        %3924 = vrot.lane.b32.xlu0 %v466, 24
        %v3925 = vpop.permute.xlu0 %3924
        %3926 = vrot.lane.b32.xlu0 %v467, 24
        %v3927 = vpop.permute.xlu0 %3926
        %3928 = vrot.lane.b32.xlu0 %v468, 24
        %v3929 = vpop.permute.xlu0 %3928
        %3930 = vrot.lane.b32.xlu0 %v469, 24
        %v3931 = vpop.permute.xlu0 %3930
        %v3980 = vrot.slane %v467, 1
        %v3981 = vrot.slane %v468, 1
        %v3982 = vsel %vm581, %v3980, %v3981
        %v3983 = vrot.slane %v469, 1
        %v3984 = vsel %vm581, %v3981, %v3983
        %3985 = vrot.lane.b32.xlu0 %v3469, 28
        %v3986 = vpop.permute.xlu0 %3985
        %3987 = vrot.lane.b32.xlu0 %v3471, 28
        %v3988 = vpop.permute.xlu0 %3987
        %3989 = vrot.lane.b32.xlu0 %v3470, 28
        %v3990 = vpop.permute.xlu0 %3989
        %3991 = vrot.lane.b32.xlu0 %v3474, 28
        %v3992 = vpop.permute.xlu0 %3991
        %3993 = vrot.lane.b32.xlu0 %v3476, 28
        %v3994 = vpop.permute.xlu0 %3993
        %3995 = vrot.lane.b32.xlu0 %v3475, 28
        %v3996 = vpop.permute.xlu0 %3995
        %3997 = vrot.lane.b32.xlu0 %v3479, 28
        %v3998 = vpop.permute.xlu0 %3997
        %3999 = vrot.lane.b32.xlu0 %v3481, 28
        %v4000 = vpop.permute.xlu0 %3999
        %4001 = vrot.lane.b32.xlu0 %v3480, 28
        %v4002 = vpop.permute.xlu0 %4001
        %4003 = vrot.lane.b32.xlu0 %v3484, 28
        %v4004 = vpop.permute.xlu0 %4003
        %4005 = vrot.lane.b32.xlu0 %v3486, 28
        %v4006 = vpop.permute.xlu0 %4005
        %4007 = vrot.lane.b32.xlu0 %v3485, 28
        %v4008 = vpop.permute.xlu0 %4007
        %4009 = vrot.lane.b32.xlu0 %v3489, 28
        %v4010 = vpop.permute.xlu0 %4009
        %4011 = vrot.lane.b32.xlu0 %v3491, 28
        %v4012 = vpop.permute.xlu0 %4011
        %4013 = vrot.lane.b32.xlu0 %v3490, 28
        %v4014 = vpop.permute.xlu0 %4013
        %4015 = vrot.lane.b32.xlu0 %v3494, 28
        %v4016 = vpop.permute.xlu0 %4015
        %4017 = vrot.lane.b32.xlu0 %v3496, 28
        %v4018 = vpop.permute.xlu0 %4017
        %4019 = vrot.lane.b32.xlu0 %v3495, 28
        %v4020 = vpop.permute.xlu0 %4019
        %4021 = vrot.lane.b32.xlu0 %v3499, 28
        %v4022 = vpop.permute.xlu0 %4021
        %4023 = vrot.lane.b32.xlu0 %v3501, 28
        %v4024 = vpop.permute.xlu0 %4023
        %4025 = vrot.lane.b32.xlu0 %v3500, 28
        %v4026 = vpop.permute.xlu0 %4025
        %4027 = vrot.lane.b32.xlu0 %v3504, 28
        %v4028 = vpop.permute.xlu0 %4027
        %4029 = vrot.lane.b32.xlu0 %v3506, 28
        %v4030 = vpop.permute.xlu0 %4029
        %4031 = vrot.lane.b32.xlu0 %v3505, 28
        %v4032 = vpop.permute.xlu0 %4031
        %4033 = vrot.lane.b32.xlu0 %v3509, 28
        %v4034 = vpop.permute.xlu0 %4033
        %4035 = vrot.lane.b32.xlu0 %v3511, 28
        %v4036 = vpop.permute.xlu0 %4035
        %4037 = vrot.lane.b32.xlu0 %v3510, 28
        %v4038 = vpop.permute.xlu0 %4037
        %4039 = vrot.lane.b32.xlu0 %v3514, 28
        %v4040 = vpop.permute.xlu0 %4039
        %4041 = vrot.lane.b32.xlu0 %v3516, 28
        %v4042 = vpop.permute.xlu0 %4041
        %4043 = vrot.lane.b32.xlu0 %v3515, 28
        %v4044 = vpop.permute.xlu0 %4043
        %4045 = vrot.lane.b32.xlu0 %v3519, 28
        %v4046 = vpop.permute.xlu0 %4045
        %4047 = vrot.lane.b32.xlu0 %v3521, 28
        %v4048 = vpop.permute.xlu0 %4047
        %4049 = vrot.lane.b32.xlu0 %v3520, 28
        %v4050 = vpop.permute.xlu0 %4049
        %4051 = vrot.lane.b32.xlu0 %v3524, 28
        %v4052 = vpop.permute.xlu0 %4051
        %4053 = vrot.lane.b32.xlu0 %v3526, 28
        %v4054 = vpop.permute.xlu0 %4053
        %4055 = vrot.lane.b32.xlu0 %v3525, 28
        %v4056 = vpop.permute.xlu0 %4055
        %4057 = vrot.lane.b32.xlu0 %v3529, 28
        %v4058 = vpop.permute.xlu0 %4057
        %4059 = vrot.lane.b32.xlu0 %v3531, 28
        %v4060 = vpop.permute.xlu0 %4059
        %4061 = vrot.lane.b32.xlu0 %v3530, 28
        %v4062 = vpop.permute.xlu0 %4061
        %4063 = vrot.lane.b32.xlu0 %v3534, 28
        %v4064 = vpop.permute.xlu0 %4063
        %4065 = vrot.lane.b32.xlu0 %v3536, 28
        %v4066 = vpop.permute.xlu0 %4065
        %4067 = vrot.lane.b32.xlu0 %v3535, 28
        %v4068 = vpop.permute.xlu0 %4067
        %4069 = vrot.lane.b32.xlu0 %v3539, 28
        %v4070 = vpop.permute.xlu0 %4069
        %4071 = vrot.lane.b32.xlu0 %v3541, 28
        %v4072 = vpop.permute.xlu0 %4071
        %4073 = vrot.lane.b32.xlu0 %v3540, 28
        %v4074 = vpop.permute.xlu0 %4073
        %4075 = vrot.lane.b32.xlu0 %v3982, 28
        %v4076 = vpop.permute.xlu0 %4075
        %4077 = vrot.lane.b32.xlu0 %v3984, 28
        %v4078 = vpop.permute.xlu0 %4077
        %4079 = vrot.lane.b32.xlu0 %v3983, 28
        %v4080 = vpop.permute.xlu0 %4079
        %v4131 = vrot.slane %v470, 7
        %v4132 = vrot.slane %v471, 7
        %v4133 = vsel %vm3109, %v4131, %v4132
        %4134 = vrot.lane.b32.xlu0 %v3116, 32
        %v4135 = vpop.permute.xlu0 %4134
        %4136 = vrot.lane.b32.xlu0 %v3118, 32
        %v4137 = vpop.permute.xlu0 %4136
        %4138 = vrot.lane.b32.xlu0 %v3117, 32
        %v4139 = vpop.permute.xlu0 %4138
        %4140 = vrot.lane.b32.xlu0 %v3119, 32
        %v4141 = vpop.permute.xlu0 %4140
        %4142 = vrot.lane.b32.xlu0 %v3121, 32
        %v4143 = vpop.permute.xlu0 %4142
        %4144 = vrot.lane.b32.xlu0 %v3120, 32
        %v4145 = vpop.permute.xlu0 %4144
        %4146 = vrot.lane.b32.xlu0 %v3122, 32
        %v4147 = vpop.permute.xlu0 %4146
        %4148 = vrot.lane.b32.xlu0 %v3124, 32
        %v4149 = vpop.permute.xlu0 %4148
        %4150 = vrot.lane.b32.xlu0 %v3123, 32
        %v4151 = vpop.permute.xlu0 %4150
        %4152 = vrot.lane.b32.xlu0 %v3125, 32
        %v4153 = vpop.permute.xlu0 %4152
        %4154 = vrot.lane.b32.xlu0 %v3127, 32
        %v4155 = vpop.permute.xlu0 %4154
        %4156 = vrot.lane.b32.xlu0 %v3126, 32
        %v4157 = vpop.permute.xlu0 %4156
        %4158 = vrot.lane.b32.xlu0 %v3128, 32
        %v4159 = vpop.permute.xlu0 %4158
        %4160 = vrot.lane.b32.xlu0 %v3130, 32
        %v4161 = vpop.permute.xlu0 %4160
        %4162 = vrot.lane.b32.xlu0 %v3129, 32
        %v4163 = vpop.permute.xlu0 %4162
        %4164 = vrot.lane.b32.xlu0 %v3131, 32
        %v4165 = vpop.permute.xlu0 %4164
        %4166 = vrot.lane.b32.xlu0 %v3133, 32
        %v4167 = vpop.permute.xlu0 %4166
        %4168 = vrot.lane.b32.xlu0 %v3132, 32
        %v4169 = vpop.permute.xlu0 %4168
        %4170 = vrot.lane.b32.xlu0 %v3134, 32
        %v4171 = vpop.permute.xlu0 %4170
        %4172 = vrot.lane.b32.xlu0 %v3136, 32
        %v4173 = vpop.permute.xlu0 %4172
        %4174 = vrot.lane.b32.xlu0 %v3135, 32
        %v4175 = vpop.permute.xlu0 %4174
        %4176 = vrot.lane.b32.xlu0 %v3137, 32
        %v4177 = vpop.permute.xlu0 %4176
        %4178 = vrot.lane.b32.xlu0 %v3139, 32
        %v4179 = vpop.permute.xlu0 %4178
        %4180 = vrot.lane.b32.xlu0 %v3138, 32
        %v4181 = vpop.permute.xlu0 %4180
        %4182 = vrot.lane.b32.xlu0 %v3140, 32
        %v4183 = vpop.permute.xlu0 %4182
        %4184 = vrot.lane.b32.xlu0 %v3142, 32
        %v4185 = vpop.permute.xlu0 %4184
        %4186 = vrot.lane.b32.xlu0 %v3141, 32
        %v4187 = vpop.permute.xlu0 %4186
        %4188 = vrot.lane.b32.xlu0 %v3143, 32
        %v4189 = vpop.permute.xlu0 %4188
        %4190 = vrot.lane.b32.xlu0 %v3145, 32
        %v4191 = vpop.permute.xlu0 %4190
        %4192 = vrot.lane.b32.xlu0 %v3144, 32
        %v4193 = vpop.permute.xlu0 %4192
        %4194 = vrot.lane.b32.xlu0 %v3146, 32
        %v4195 = vpop.permute.xlu0 %4194
        %4196 = vrot.lane.b32.xlu0 %v3148, 32
        %v4197 = vpop.permute.xlu0 %4196
        %4198 = vrot.lane.b32.xlu0 %v3147, 32
        %v4199 = vpop.permute.xlu0 %4198
        %4200 = vrot.lane.b32.xlu0 %v3149, 32
        %v4201 = vpop.permute.xlu0 %4200
        %4202 = vrot.lane.b32.xlu0 %v3151, 32
        %v4203 = vpop.permute.xlu0 %4202
        %4204 = vrot.lane.b32.xlu0 %v3150, 32
        %v4205 = vpop.permute.xlu0 %4204
        %4206 = vrot.lane.b32.xlu0 %v3152, 32
        %v4207 = vpop.permute.xlu0 %4206
        %4208 = vrot.lane.b32.xlu0 %v3154, 32
        %v4209 = vpop.permute.xlu0 %4208
        %4210 = vrot.lane.b32.xlu0 %v3153, 32
        %v4211 = vpop.permute.xlu0 %4210
        %4212 = vrot.lane.b32.xlu0 %v3155, 32
        %v4213 = vpop.permute.xlu0 %4212
        %4214 = vrot.lane.b32.xlu0 %v3157, 32
        %v4215 = vpop.permute.xlu0 %4214
        %4216 = vrot.lane.b32.xlu0 %v3156, 32
        %v4217 = vpop.permute.xlu0 %4216
        %4218 = vrot.lane.b32.xlu0 %v3688, 32
        %v4219 = vpop.permute.xlu0 %4218
        %4220 = vrot.lane.b32.xlu0 %v3690, 32
        %v4221 = vpop.permute.xlu0 %4220
        %4222 = vrot.lane.b32.xlu0 %v3689, 32
        %v4223 = vpop.permute.xlu0 %4222
        %4224 = vrot.lane.b32.xlu0 %v4131, 32
        %v4225 = vpop.permute.xlu0 %4224
        %4226 = vrot.lane.b32.xlu0 %v4133, 32
        %v4227 = vpop.permute.xlu0 %4226
        %4228 = vrot.lane.b32.xlu0 %v4132, 32
        %v4229 = vpop.permute.xlu0 %4228
        %4279 = vrot.lane.b32.xlu0 %v425, 36
        %v4280 = vpop.permute.xlu0 %4279
        %4281 = vrot.lane.b32.xlu0 %v426, 36
        %v4282 = vpop.permute.xlu0 %4281
        %4283 = vrot.lane.b32.xlu0 %v427, 36
        %v4284 = vpop.permute.xlu0 %4283
        %4285 = vrot.lane.b32.xlu0 %v428, 36
        %v4286 = vpop.permute.xlu0 %4285
        %4287 = vrot.lane.b32.xlu0 %v429, 36
        %v4288 = vpop.permute.xlu0 %4287
        %4289 = vrot.lane.b32.xlu0 %v430, 36
        %v4290 = vpop.permute.xlu0 %4289
        %4291 = vrot.lane.b32.xlu0 %v431, 36
        %v4292 = vpop.permute.xlu0 %4291
        %4293 = vrot.lane.b32.xlu0 %v432, 36
        %v4294 = vpop.permute.xlu0 %4293
        %4295 = vrot.lane.b32.xlu0 %v433, 36
        %v4296 = vpop.permute.xlu0 %4295
        %4297 = vrot.lane.b32.xlu0 %v434, 36
        %v4298 = vpop.permute.xlu0 %4297
        %4299 = vrot.lane.b32.xlu0 %v435, 36
        %v4300 = vpop.permute.xlu0 %4299
        %4301 = vrot.lane.b32.xlu0 %v436, 36
        %v4302 = vpop.permute.xlu0 %4301
        %4303 = vrot.lane.b32.xlu0 %v437, 36
        %v4304 = vpop.permute.xlu0 %4303
        %4305 = vrot.lane.b32.xlu0 %v438, 36
        %v4306 = vpop.permute.xlu0 %4305
        %4307 = vrot.lane.b32.xlu0 %v439, 36
        %v4308 = vpop.permute.xlu0 %4307
        %4309 = vrot.lane.b32.xlu0 %v440, 36
        %v4310 = vpop.permute.xlu0 %4309
        %4311 = vrot.lane.b32.xlu0 %v441, 36
        %v4312 = vpop.permute.xlu0 %4311
        %4313 = vrot.lane.b32.xlu0 %v442, 36
        %v4314 = vpop.permute.xlu0 %4313
        %4315 = vrot.lane.b32.xlu0 %v443, 36
        %v4316 = vpop.permute.xlu0 %4315
        %4317 = vrot.lane.b32.xlu0 %v444, 36
        %v4318 = vpop.permute.xlu0 %4317
        %4319 = vrot.lane.b32.xlu0 %v445, 36
        %v4320 = vpop.permute.xlu0 %4319
        %4321 = vrot.lane.b32.xlu0 %v446, 36
        %v4322 = vpop.permute.xlu0 %4321
        %4323 = vrot.lane.b32.xlu0 %v447, 36
        %v4324 = vpop.permute.xlu0 %4323
        %4325 = vrot.lane.b32.xlu0 %v448, 36
        %v4326 = vpop.permute.xlu0 %4325
        %4327 = vrot.lane.b32.xlu0 %v449, 36
        %v4328 = vpop.permute.xlu0 %4327
        %4329 = vrot.lane.b32.xlu0 %v450, 36
        %v4330 = vpop.permute.xlu0 %4329
        %4331 = vrot.lane.b32.xlu0 %v451, 36
        %v4332 = vpop.permute.xlu0 %4331
        %4333 = vrot.lane.b32.xlu0 %v452, 36
        %v4334 = vpop.permute.xlu0 %4333
        %4335 = vrot.lane.b32.xlu0 %v453, 36
        %v4336 = vpop.permute.xlu0 %4335
        %4337 = vrot.lane.b32.xlu0 %v454, 36
        %v4338 = vpop.permute.xlu0 %4337
        %4339 = vrot.lane.b32.xlu0 %v455, 36
        %v4340 = vpop.permute.xlu0 %4339
        %4341 = vrot.lane.b32.xlu0 %v456, 36
        %v4342 = vpop.permute.xlu0 %4341
        %4343 = vrot.lane.b32.xlu0 %v457, 36
        %v4344 = vpop.permute.xlu0 %4343
        %4345 = vrot.lane.b32.xlu0 %v458, 36
        %v4346 = vpop.permute.xlu0 %4345
        %4347 = vrot.lane.b32.xlu0 %v459, 36
        %v4348 = vpop.permute.xlu0 %4347
        %4349 = vrot.lane.b32.xlu0 %v460, 36
        %v4350 = vpop.permute.xlu0 %4349
        %4351 = vrot.lane.b32.xlu0 %v461, 36
        %v4352 = vpop.permute.xlu0 %4351
        %4353 = vrot.lane.b32.xlu0 %v462, 36
        %v4354 = vpop.permute.xlu0 %4353
        %4355 = vrot.lane.b32.xlu0 %v463, 36
        %v4356 = vpop.permute.xlu0 %4355
        %4357 = vrot.lane.b32.xlu0 %v464, 36
        %v4358 = vpop.permute.xlu0 %4357
        %4359 = vrot.lane.b32.xlu0 %v465, 36
        %v4360 = vpop.permute.xlu0 %4359
        %4361 = vrot.lane.b32.xlu0 %v466, 36
        %v4362 = vpop.permute.xlu0 %4361
        %4363 = vrot.lane.b32.xlu0 %v467, 36
        %v4364 = vpop.permute.xlu0 %4363
        %4365 = vrot.lane.b32.xlu0 %v468, 36
        %v4366 = vpop.permute.xlu0 %4365
        %4367 = vrot.lane.b32.xlu0 %v469, 36
        %v4368 = vpop.permute.xlu0 %4367
        %4369 = vrot.lane.b32.xlu0 %v470, 36
        %v4370 = vpop.permute.xlu0 %4369
        %4371 = vrot.lane.b32.xlu0 %v471, 36
        %v4372 = vpop.permute.xlu0 %4371
        %4373 = vrot.lane.b32.xlu0 %v472, 36
        %v4374 = vpop.permute.xlu0 %4373
        %v4423 = vrot.slane %v470, 1
        %v4424 = vrot.slane %v471, 1
        %v4425 = vsel %vm581, %v4423, %v4424
        %v4426 = vrot.slane %v472, 1
        %v4427 = vsel %vm581, %v4424, %v4426
        %4428 = vrot.lane.b32.xlu0 %v3474, 40
        %v4429 = vpop.permute.xlu0 %4428
        %4430 = vrot.lane.b32.xlu0 %v3476, 40
        %v4431 = vpop.permute.xlu0 %4430
        %4432 = vrot.lane.b32.xlu0 %v3475, 40
        %v4433 = vpop.permute.xlu0 %4432
        %4434 = vrot.lane.b32.xlu0 %v3479, 40
        %v4435 = vpop.permute.xlu0 %4434
        %4436 = vrot.lane.b32.xlu0 %v3481, 40
        %v4437 = vpop.permute.xlu0 %4436
        %4438 = vrot.lane.b32.xlu0 %v3480, 40
        %v4439 = vpop.permute.xlu0 %4438
        %4440 = vrot.lane.b32.xlu0 %v3484, 40
        %v4441 = vpop.permute.xlu0 %4440
        %4442 = vrot.lane.b32.xlu0 %v3486, 40
        %v4443 = vpop.permute.xlu0 %4442
        %4444 = vrot.lane.b32.xlu0 %v3485, 40
        %v4445 = vpop.permute.xlu0 %4444
        %4446 = vrot.lane.b32.xlu0 %v3489, 40
        %v4447 = vpop.permute.xlu0 %4446
        %4448 = vrot.lane.b32.xlu0 %v3491, 40
        %v4449 = vpop.permute.xlu0 %4448
        %4450 = vrot.lane.b32.xlu0 %v3490, 40
        %v4451 = vpop.permute.xlu0 %4450
        %4452 = vrot.lane.b32.xlu0 %v3494, 40
        %v4453 = vpop.permute.xlu0 %4452
        %4454 = vrot.lane.b32.xlu0 %v3496, 40
        %v4455 = vpop.permute.xlu0 %4454
        %4456 = vrot.lane.b32.xlu0 %v3495, 40
        %v4457 = vpop.permute.xlu0 %4456
        %4458 = vrot.lane.b32.xlu0 %v3499, 40
        %v4459 = vpop.permute.xlu0 %4458
        %4460 = vrot.lane.b32.xlu0 %v3501, 40
        %v4461 = vpop.permute.xlu0 %4460
        %4462 = vrot.lane.b32.xlu0 %v3500, 40
        %v4463 = vpop.permute.xlu0 %4462
        %4464 = vrot.lane.b32.xlu0 %v3504, 40
        %v4465 = vpop.permute.xlu0 %4464
        %4466 = vrot.lane.b32.xlu0 %v3506, 40
        %v4467 = vpop.permute.xlu0 %4466
        %4468 = vrot.lane.b32.xlu0 %v3505, 40
        %v4469 = vpop.permute.xlu0 %4468
        %4470 = vrot.lane.b32.xlu0 %v3509, 40
        %v4471 = vpop.permute.xlu0 %4470
        %4472 = vrot.lane.b32.xlu0 %v3511, 40
        %v4473 = vpop.permute.xlu0 %4472
        %4474 = vrot.lane.b32.xlu0 %v3510, 40
        %v4475 = vpop.permute.xlu0 %4474
        %4476 = vrot.lane.b32.xlu0 %v3514, 40
        %v4477 = vpop.permute.xlu0 %4476
        %4478 = vrot.lane.b32.xlu0 %v3516, 40
        %v4479 = vpop.permute.xlu0 %4478
        %4480 = vrot.lane.b32.xlu0 %v3515, 40
        %v4481 = vpop.permute.xlu0 %4480
        %4482 = vrot.lane.b32.xlu0 %v3519, 40
        %v4483 = vpop.permute.xlu0 %4482
        %4484 = vrot.lane.b32.xlu0 %v3521, 40
        %v4485 = vpop.permute.xlu0 %4484
        %4486 = vrot.lane.b32.xlu0 %v3520, 40
        %v4487 = vpop.permute.xlu0 %4486
        %4488 = vrot.lane.b32.xlu0 %v3524, 40
        %v4489 = vpop.permute.xlu0 %4488
        %4490 = vrot.lane.b32.xlu0 %v3526, 40
        %v4491 = vpop.permute.xlu0 %4490
        %4492 = vrot.lane.b32.xlu0 %v3525, 40
        %v4493 = vpop.permute.xlu0 %4492
        %4494 = vrot.lane.b32.xlu0 %v3529, 40
        %v4495 = vpop.permute.xlu0 %4494
        %4496 = vrot.lane.b32.xlu0 %v3531, 40
        %v4497 = vpop.permute.xlu0 %4496
        %4498 = vrot.lane.b32.xlu0 %v3530, 40
        %v4499 = vpop.permute.xlu0 %4498
        %4500 = vrot.lane.b32.xlu0 %v3534, 40
        %v4501 = vpop.permute.xlu0 %4500
        %4502 = vrot.lane.b32.xlu0 %v3536, 40
        %v4503 = vpop.permute.xlu0 %4502
        %4504 = vrot.lane.b32.xlu0 %v3535, 40
        %v4505 = vpop.permute.xlu0 %4504
        %4506 = vrot.lane.b32.xlu0 %v3539, 40
        %v4507 = vpop.permute.xlu0 %4506
        %4508 = vrot.lane.b32.xlu0 %v3541, 40
        %v4509 = vpop.permute.xlu0 %4508
        %4510 = vrot.lane.b32.xlu0 %v3540, 40
        %v4511 = vpop.permute.xlu0 %4510
        %4512 = vrot.lane.b32.xlu0 %v3982, 40
        %v4513 = vpop.permute.xlu0 %4512
        %4514 = vrot.lane.b32.xlu0 %v3984, 40
        %v4515 = vpop.permute.xlu0 %4514
        %4516 = vrot.lane.b32.xlu0 %v3983, 40
        %v4517 = vpop.permute.xlu0 %4516
        %4518 = vrot.lane.b32.xlu0 %v4425, 40
        %v4519 = vpop.permute.xlu0 %4518
        %4520 = vrot.lane.b32.xlu0 %v4427, 40
        %v4521 = vpop.permute.xlu0 %4520
        %4522 = vrot.lane.b32.xlu0 %v4426, 40
        %v4523 = vpop.permute.xlu0 %4522
        %v4572 = vsel %vm2432, %v308, %v2934
        %v4573 = vsel %vm2432, %v309, %v2936
        %v4574 = vsel %vm2432, %v310, %v2938
        %v4575 = vsel %vm2432, %v311, %v2940
        %v4576 = vsel %vm2432, %v312, %v2942
        %v4577 = vsel %vm2432, %v313, %v2944
        %v4578 = vsel %vm2432, %v314, %v2946
        %v4579 = vsel %vm2432, %v315, %v2948
        %v4580 = vsel %vm2432, %v316, %v2950
        %v4581 = vsel %vm2432, %v317, %v2952
        %v4582 = vsel %vm2432, %v318, %v2954
        %v4583 = vsel %vm2432, %v319, %v2956
        %v4584 = vsel %vm2432, %v320, %v2958
        %v4585 = vsel %vm2432, %v321, %v2960
        %v4586 = vsel %vm2432, %v322, %v2962
        %v4587 = vsel %vm2432, %v323, %v2964
        %v4588 = vsel %vm2432, %v324, %v2966
        %v4589 = vsel %vm2432, %v325, %v2968
        %v4590 = vsel %vm2432, %v326, %v2970
        %v4591 = vsel %vm2432, %v327, %v2972
        %v4592 = vsel %vm2432, %v328, %v2974
        %v4593 = vsel %vm2432, %v329, %v2976
        %v4594 = vsel %vm2432, %v330, %v2978
        %v4595 = vsel %vm2432, %v331, %v2980
        %v4596 = vsel %vm2432, %v332, %v2982
        %v4597 = vsel %vm2432, %v333, %v2984
        %v4598 = vsel %vm2432, %v334, %v2986
        %v4599 = vsel %vm2432, %v335, %v2988
        %v4600 = vsel %vm2432, %v336, %v2990
        %v4601 = vsel %vm2432, %v337, %v2992
        %v4602 = vsel %vm2432, %v338, %v2994
        %v4603 = vsel %vm2432, %v339, %v2996
        %v4604 = vsel %vm2432, %v340, %v2998
        %v4605 = vsel %vm2432, %v341, %v3000
        %v4606 = vsel %vm2432, %v342, %v3002
        %v4607 = vsel %vm2432, %v343, %v3004
        %v4608 = vsel %vm2432, %v344, %v3006
        %v4609 = vsel %vm2432, %v345, %v3008
        %v4610 = vsel %vm2432, %v346, %v3010
        %v4611 = vsel %vm2432, %v347, %v3012
        %v4612 = vsel %vm2432, %v348, %v3014
        %v4613 = vsel %vm2432, %v349, %v3016
        %v4614 = vsel %vm2432, %v350, %v3018
        %v4615 = vsel %vm2432, %v351, %v3020
        %v4616 = vsel %vm2432, %v352, %v3022
        %v4617 = vsel %vm2432, %v353, %v3024
        %v4618 = vsel %vm2432, %v354, %v3026
        %v4619 = vsel %vm2432, %v355, %v3028
        %v4620 = vsel %vm2465, %v4572, %v3159
        %v4621 = vsel %vm2465, %v4573, %v3161
        %v4622 = vsel %vm2465, %v4574, %v3163
        %v4623 = vsel %vm2465, %v4575, %v3165
        %v4624 = vsel %vm2465, %v4576, %v3167
        %v4625 = vsel %vm2465, %v4577, %v3169
        %v4626 = vsel %vm2465, %v4578, %v3171
        %v4627 = vsel %vm2465, %v4579, %v3173
        %v4628 = vsel %vm2465, %v4580, %v3175
        %v4629 = vsel %vm2465, %v4581, %v3177
        %v4630 = vsel %vm2465, %v4582, %v3179
        %v4631 = vsel %vm2465, %v4583, %v3181
        %v4632 = vsel %vm2465, %v4584, %v3183
        %v4633 = vsel %vm2465, %v4585, %v3185
        %v4634 = vsel %vm2465, %v4586, %v3187
        %v4635 = vsel %vm2465, %v4587, %v3189
        %v4636 = vsel %vm2465, %v4588, %v3191
        %v4637 = vsel %vm2465, %v4589, %v3193
        %v4638 = vsel %vm2465, %v4590, %v3195
        %v4639 = vsel %vm2465, %v4591, %v3197
        %v4640 = vsel %vm2465, %v4592, %v3199
        %v4641 = vsel %vm2465, %v4593, %v3201
        %v4642 = vsel %vm2465, %v4594, %v3203
        %v4643 = vsel %vm2465, %v4595, %v3205
        %v4644 = vsel %vm2465, %v4596, %v3207
        %v4645 = vsel %vm2465, %v4597, %v3209
        %v4646 = vsel %vm2465, %v4598, %v3211
        %v4647 = vsel %vm2465, %v4599, %v3213
        %v4648 = vsel %vm2465, %v4600, %v3215
        %v4649 = vsel %vm2465, %v4601, %v3217
        %v4650 = vsel %vm2465, %v4602, %v3219
        %v4651 = vsel %vm2465, %v4603, %v3221
        %v4652 = vsel %vm2465, %v4604, %v3223
        %v4653 = vsel %vm2465, %v4605, %v3225
        %v4654 = vsel %vm2465, %v4606, %v3227
        %v4655 = vsel %vm2465, %v4607, %v3229
        %v4656 = vsel %vm2465, %v4608, %v3231
        %v4657 = vsel %vm2465, %v4609, %v3233
        %v4658 = vsel %vm2465, %v4610, %v3235
        %v4659 = vsel %vm2465, %v4611, %v3237
        %v4660 = vsel %vm2465, %v4612, %v3239
        %v4661 = vsel %vm2465, %v4613, %v3241
        %v4662 = vsel %vm2465, %v4614, %v3243
        %v4663 = vsel %vm2465, %v4615, %v3245
        %v4664 = vsel %vm2465, %v4616, %v3247
        %v4665 = vsel %vm2465, %v4617, %v3249
        %v4666 = vsel %vm2465, %v4618, %v3251
        %v4667 = vsel %vm2465, %v4619, %v3253
        %v4668 = vsel %vm2498, %v4620, %v3319
        %v4669 = vsel %vm2498, %v4621, %v3321
        %v4670 = vsel %vm2498, %v4622, %v3323
        %v4671 = vsel %vm2498, %v4623, %v3325
        %v4672 = vsel %vm2498, %v4624, %v3327
        %v4673 = vsel %vm2498, %v4625, %v3329
        %v4674 = vsel %vm2498, %v4626, %v3331
        %v4675 = vsel %vm2498, %v4627, %v3333
        %v4676 = vsel %vm2498, %v4628, %v3335
        %v4677 = vsel %vm2498, %v4629, %v3337
        %v4678 = vsel %vm2498, %v4630, %v3339
        %v4679 = vsel %vm2498, %v4631, %v3341
        %v4680 = vsel %vm2498, %v4632, %v3343
        %v4681 = vsel %vm2498, %v4633, %v3345
        %v4682 = vsel %vm2498, %v4634, %v3347
        %v4683 = vsel %vm2498, %v4635, %v3349
        %v4684 = vsel %vm2498, %v4636, %v3351
        %v4685 = vsel %vm2498, %v4637, %v3353
        %v4686 = vsel %vm2498, %v4638, %v3355
        %v4687 = vsel %vm2498, %v4639, %v3357
        %v4688 = vsel %vm2498, %v4640, %v3359
        %v4689 = vsel %vm2498, %v4641, %v3361
        %v4690 = vsel %vm2498, %v4642, %v3363
        %v4691 = vsel %vm2498, %v4643, %v3365
        %v4692 = vsel %vm2498, %v4644, %v3367
        %v4693 = vsel %vm2498, %v4645, %v3369
        %v4694 = vsel %vm2498, %v4646, %v3371
        %v4695 = vsel %vm2498, %v4647, %v3373
        %v4696 = vsel %vm2498, %v4648, %v3375
        %v4697 = vsel %vm2498, %v4649, %v3377
        %v4698 = vsel %vm2498, %v4650, %v3379
        %v4699 = vsel %vm2498, %v4651, %v3381
        %v4700 = vsel %vm2498, %v4652, %v3383
        %v4701 = vsel %vm2498, %v4653, %v3385
        %v4702 = vsel %vm2498, %v4654, %v3387
        %v4703 = vsel %vm2498, %v4655, %v3389
        %v4704 = vsel %vm2498, %v4656, %v3391
        %v4705 = vsel %vm2498, %v4657, %v3393
        %v4706 = vsel %vm2498, %v4658, %v3395
        %v4707 = vsel %vm2498, %v4659, %v3397
        %v4708 = vsel %vm2498, %v4660, %v3399
        %v4709 = vsel %vm2498, %v4661, %v3401
        %v4710 = vsel %vm2498, %v4662, %v3403
        %v4711 = vsel %vm2498, %v4663, %v3405
        %v4712 = vsel %vm2498, %v4664, %v3407
        %v4713 = vsel %vm2498, %v4665, %v3409
        %v4714 = vsel %vm2498, %v4666, %v3411
        %v4715 = vsel %vm2498, %v4667, %v3413
        %v4716 = vsel %vm2531, %v4668, %v3543
        %v4717 = vsel %vm2531, %v4669, %v3545
        %v4718 = vsel %vm2531, %v4670, %v3547
        %v4719 = vsel %vm2531, %v4671, %v3549
        %v4720 = vsel %vm2531, %v4672, %v3551
        %v4721 = vsel %vm2531, %v4673, %v3553
        %v4722 = vsel %vm2531, %v4674, %v3555
        %v4723 = vsel %vm2531, %v4675, %v3557
        %v4724 = vsel %vm2531, %v4676, %v3559
        %v4725 = vsel %vm2531, %v4677, %v3561
        %v4726 = vsel %vm2531, %v4678, %v3563
        %v4727 = vsel %vm2531, %v4679, %v3565
        %v4728 = vsel %vm2531, %v4680, %v3567
        %v4729 = vsel %vm2531, %v4681, %v3569
        %v4730 = vsel %vm2531, %v4682, %v3571
        %v4731 = vsel %vm2531, %v4683, %v3573
        %v4732 = vsel %vm2531, %v4684, %v3575
        %v4733 = vsel %vm2531, %v4685, %v3577
        %v4734 = vsel %vm2531, %v4686, %v3579
        %v4735 = vsel %vm2531, %v4687, %v3581
        %v4736 = vsel %vm2531, %v4688, %v3583
        %v4737 = vsel %vm2531, %v4689, %v3585
        %v4738 = vsel %vm2531, %v4690, %v3587
        %v4739 = vsel %vm2531, %v4691, %v3589
        %v4740 = vsel %vm2531, %v4692, %v3591
        %v4741 = vsel %vm2531, %v4693, %v3593
        %v4742 = vsel %vm2531, %v4694, %v3595
        %v4743 = vsel %vm2531, %v4695, %v3597
        %v4744 = vsel %vm2531, %v4696, %v3599
        %v4745 = vsel %vm2531, %v4697, %v3601
        %v4746 = vsel %vm2531, %v4698, %v3603
        %v4747 = vsel %vm2531, %v4699, %v3605
        %v4748 = vsel %vm2531, %v4700, %v3607
        %v4749 = vsel %vm2531, %v4701, %v3609
        %v4750 = vsel %vm2531, %v4702, %v3611
        %v4751 = vsel %vm2531, %v4703, %v3613
        %v4752 = vsel %vm2531, %v4704, %v3615
        %v4753 = vsel %vm2531, %v4705, %v3617
        %v4754 = vsel %vm2531, %v4706, %v3619
        %v4755 = vsel %vm2531, %v4707, %v3621
        %v4756 = vsel %vm2531, %v4708, %v3623
        %v4757 = vsel %vm2531, %v4709, %v3625
        %v4758 = vsel %vm2531, %v4710, %v3627
        %v4759 = vsel %vm2531, %v4711, %v3629
        %v4760 = vsel %vm2531, %v4712, %v3631
        %v4761 = vsel %vm2531, %v4713, %v3633
        %v4762 = vsel %vm2531, %v4714, %v3635
        %v4763 = vsel %vm2531, %v4715, %v3637
        %v4764 = vsel %vm2564, %v4716, %v3692
        %v4765 = vsel %vm2564, %v4717, %v3694
        %v4766 = vsel %vm2564, %v4718, %v3696
        %v4767 = vsel %vm2564, %v4719, %v3698
        %v4768 = vsel %vm2564, %v4720, %v3700
        %v4769 = vsel %vm2564, %v4721, %v3702
        %v4770 = vsel %vm2564, %v4722, %v3704
        %v4771 = vsel %vm2564, %v4723, %v3706
        %v4772 = vsel %vm2564, %v4724, %v3708
        %v4773 = vsel %vm2564, %v4725, %v3710
        %v4774 = vsel %vm2564, %v4726, %v3712
        %v4775 = vsel %vm2564, %v4727, %v3714
        %v4776 = vsel %vm2564, %v4728, %v3716
        %v4777 = vsel %vm2564, %v4729, %v3718
        %v4778 = vsel %vm2564, %v4730, %v3720
        %v4779 = vsel %vm2564, %v4731, %v3722
        %v4780 = vsel %vm2564, %v4732, %v3724
        %v4781 = vsel %vm2564, %v4733, %v3726
        %v4782 = vsel %vm2564, %v4734, %v3728
        %v4783 = vsel %vm2564, %v4735, %v3730
        %v4784 = vsel %vm2564, %v4736, %v3732
        %v4785 = vsel %vm2564, %v4737, %v3734
        %v4786 = vsel %vm2564, %v4738, %v3736
        %v4787 = vsel %vm2564, %v4739, %v3738
        %v4788 = vsel %vm2564, %v4740, %v3740
        %v4789 = vsel %vm2564, %v4741, %v3742
        %v4790 = vsel %vm2564, %v4742, %v3744
        %v4791 = vsel %vm2564, %v4743, %v3746
        %v4792 = vsel %vm2564, %v4744, %v3748
        %v4793 = vsel %vm2564, %v4745, %v3750
        %v4794 = vsel %vm2564, %v4746, %v3752
        %v4795 = vsel %vm2564, %v4747, %v3754
        %v4796 = vsel %vm2564, %v4748, %v3756
        %v4797 = vsel %vm2564, %v4749, %v3758
        %v4798 = vsel %vm2564, %v4750, %v3760
        %v4799 = vsel %vm2564, %v4751, %v3762
        %v4800 = vsel %vm2564, %v4752, %v3764
        %v4801 = vsel %vm2564, %v4753, %v3766
        %v4802 = vsel %vm2564, %v4754, %v3768
        %v4803 = vsel %vm2564, %v4755, %v3770
        %v4804 = vsel %vm2564, %v4756, %v3772
        %v4805 = vsel %vm2564, %v4757, %v3774
        %v4806 = vsel %vm2564, %v4758, %v3776
        %v4807 = vsel %vm2564, %v4759, %v3778
        %v4808 = vsel %vm2564, %v4760, %v3780
        %v4809 = vsel %vm2564, %v4761, %v3782
        %v4810 = vsel %vm2564, %v4762, %v3784
        %v4811 = vsel %vm2564, %v4763, %v3786
        %v4812 = vsel %vm2597, %v4764, %v3837
        %v4813 = vsel %vm2597, %v4765, %v3839
        %v4814 = vsel %vm2597, %v4766, %v3841
        %v4815 = vsel %vm2597, %v4767, %v3843
        %v4816 = vsel %vm2597, %v4768, %v3845
        %v4817 = vsel %vm2597, %v4769, %v3847
        %v4818 = vsel %vm2597, %v4770, %v3849
        %v4819 = vsel %vm2597, %v4771, %v3851
        %v4820 = vsel %vm2597, %v4772, %v3853
        %v4821 = vsel %vm2597, %v4773, %v3855
        %v4822 = vsel %vm2597, %v4774, %v3857
        %v4823 = vsel %vm2597, %v4775, %v3859
        %v4824 = vsel %vm2597, %v4776, %v3861
        %v4825 = vsel %vm2597, %v4777, %v3863
        %v4826 = vsel %vm2597, %v4778, %v3865
        %v4827 = vsel %vm2597, %v4779, %v3867
        %v4828 = vsel %vm2597, %v4780, %v3869
        %v4829 = vsel %vm2597, %v4781, %v3871
        %v4830 = vsel %vm2597, %v4782, %v3873
        %v4831 = vsel %vm2597, %v4783, %v3875
        %v4832 = vsel %vm2597, %v4784, %v3877
        %v4833 = vsel %vm2597, %v4785, %v3879
        %v4834 = vsel %vm2597, %v4786, %v3881
        %v4835 = vsel %vm2597, %v4787, %v3883
        %v4836 = vsel %vm2597, %v4788, %v3885
        %v4837 = vsel %vm2597, %v4789, %v3887
        %v4838 = vsel %vm2597, %v4790, %v3889
        %v4839 = vsel %vm2597, %v4791, %v3891
        %v4840 = vsel %vm2597, %v4792, %v3893
        %v4841 = vsel %vm2597, %v4793, %v3895
        %v4842 = vsel %vm2597, %v4794, %v3897
        %v4843 = vsel %vm2597, %v4795, %v3899
        %v4844 = vsel %vm2597, %v4796, %v3901
        %v4845 = vsel %vm2597, %v4797, %v3903
        %v4846 = vsel %vm2597, %v4798, %v3905
        %v4847 = vsel %vm2597, %v4799, %v3907
        %v4848 = vsel %vm2597, %v4800, %v3909
        %v4849 = vsel %vm2597, %v4801, %v3911
        %v4850 = vsel %vm2597, %v4802, %v3913
        %v4851 = vsel %vm2597, %v4803, %v3915
        %v4852 = vsel %vm2597, %v4804, %v3917
        %v4853 = vsel %vm2597, %v4805, %v3919
        %v4854 = vsel %vm2597, %v4806, %v3921
        %v4855 = vsel %vm2597, %v4807, %v3923
        %v4856 = vsel %vm2597, %v4808, %v3925
        %v4857 = vsel %vm2597, %v4809, %v3927
        %v4858 = vsel %vm2597, %v4810, %v3929
        %v4859 = vsel %vm2597, %v4811, %v3931
        %v4860 = vsel %vm2630, %v4812, %v3986
        %v4861 = vsel %vm2630, %v4813, %v3988
        %v4862 = vsel %vm2630, %v4814, %v3990
        %v4863 = vsel %vm2630, %v4815, %v3992
        %v4864 = vsel %vm2630, %v4816, %v3994
        %v4865 = vsel %vm2630, %v4817, %v3996
        %v4866 = vsel %vm2630, %v4818, %v3998
        %v4867 = vsel %vm2630, %v4819, %v4000
        %v4868 = vsel %vm2630, %v4820, %v4002
        %v4869 = vsel %vm2630, %v4821, %v4004
        %v4870 = vsel %vm2630, %v4822, %v4006
        %v4871 = vsel %vm2630, %v4823, %v4008
        %v4872 = vsel %vm2630, %v4824, %v4010
        %v4873 = vsel %vm2630, %v4825, %v4012
        %v4874 = vsel %vm2630, %v4826, %v4014
        %v4875 = vsel %vm2630, %v4827, %v4016
        %v4876 = vsel %vm2630, %v4828, %v4018
        %v4877 = vsel %vm2630, %v4829, %v4020
        %v4878 = vsel %vm2630, %v4830, %v4022
        %v4879 = vsel %vm2630, %v4831, %v4024
        %v4880 = vsel %vm2630, %v4832, %v4026
        %v4881 = vsel %vm2630, %v4833, %v4028
        %v4882 = vsel %vm2630, %v4834, %v4030
        %v4883 = vsel %vm2630, %v4835, %v4032
        %v4884 = vsel %vm2630, %v4836, %v4034
        %v4885 = vsel %vm2630, %v4837, %v4036
        %v4886 = vsel %vm2630, %v4838, %v4038
        %v4887 = vsel %vm2630, %v4839, %v4040
        %v4888 = vsel %vm2630, %v4840, %v4042
        %v4889 = vsel %vm2630, %v4841, %v4044
        %v4890 = vsel %vm2630, %v4842, %v4046
        %v4891 = vsel %vm2630, %v4843, %v4048
        %v4892 = vsel %vm2630, %v4844, %v4050
        %v4893 = vsel %vm2630, %v4845, %v4052
        %v4894 = vsel %vm2630, %v4846, %v4054
        %v4895 = vsel %vm2630, %v4847, %v4056
        %v4896 = vsel %vm2630, %v4848, %v4058
        %v4897 = vsel %vm2630, %v4849, %v4060
        %v4898 = vsel %vm2630, %v4850, %v4062
        %v4899 = vsel %vm2630, %v4851, %v4064
        %v4900 = vsel %vm2630, %v4852, %v4066
        %v4901 = vsel %vm2630, %v4853, %v4068
        %v4902 = vsel %vm2630, %v4854, %v4070
        %v4903 = vsel %vm2630, %v4855, %v4072
        %v4904 = vsel %vm2630, %v4856, %v4074
        %v4905 = vsel %vm2630, %v4857, %v4076
        %v4906 = vsel %vm2630, %v4858, %v4078
        %v4907 = vsel %vm2630, %v4859, %v4080
        %v4908 = vsel %vm2663, %v4860, %v4135
        %v4909 = vsel %vm2663, %v4861, %v4137
        %v4910 = vsel %vm2663, %v4862, %v4139
        %v4911 = vsel %vm2663, %v4863, %v4141
        %v4912 = vsel %vm2663, %v4864, %v4143
        %v4913 = vsel %vm2663, %v4865, %v4145
        %v4914 = vsel %vm2663, %v4866, %v4147
        %v4915 = vsel %vm2663, %v4867, %v4149
        %v4916 = vsel %vm2663, %v4868, %v4151
        %v4917 = vsel %vm2663, %v4869, %v4153
        %v4918 = vsel %vm2663, %v4870, %v4155
        %v4919 = vsel %vm2663, %v4871, %v4157
        %v4920 = vsel %vm2663, %v4872, %v4159
        %v4921 = vsel %vm2663, %v4873, %v4161
        %v4922 = vsel %vm2663, %v4874, %v4163
        %v4923 = vsel %vm2663, %v4875, %v4165
        %v4924 = vsel %vm2663, %v4876, %v4167
        %v4925 = vsel %vm2663, %v4877, %v4169
        %v4926 = vsel %vm2663, %v4878, %v4171
        %v4927 = vsel %vm2663, %v4879, %v4173
        %v4928 = vsel %vm2663, %v4880, %v4175
        %v4929 = vsel %vm2663, %v4881, %v4177
        %v4930 = vsel %vm2663, %v4882, %v4179
        %v4931 = vsel %vm2663, %v4883, %v4181
        %v4932 = vsel %vm2663, %v4884, %v4183
        %v4933 = vsel %vm2663, %v4885, %v4185
        %v4934 = vsel %vm2663, %v4886, %v4187
        %v4935 = vsel %vm2663, %v4887, %v4189
        %v4936 = vsel %vm2663, %v4888, %v4191
        %v4937 = vsel %vm2663, %v4889, %v4193
        %v4938 = vsel %vm2663, %v4890, %v4195
        %v4939 = vsel %vm2663, %v4891, %v4197
        %v4940 = vsel %vm2663, %v4892, %v4199
        %v4941 = vsel %vm2663, %v4893, %v4201
        %v4942 = vsel %vm2663, %v4894, %v4203
        %v4943 = vsel %vm2663, %v4895, %v4205
        %v4944 = vsel %vm2663, %v4896, %v4207
        %v4945 = vsel %vm2663, %v4897, %v4209
        %v4946 = vsel %vm2663, %v4898, %v4211
        %v4947 = vsel %vm2663, %v4899, %v4213
        %v4948 = vsel %vm2663, %v4900, %v4215
        %v4949 = vsel %vm2663, %v4901, %v4217
        %v4950 = vsel %vm2663, %v4902, %v4219
        %v4951 = vsel %vm2663, %v4903, %v4221
        %v4952 = vsel %vm2663, %v4904, %v4223
        %v4953 = vsel %vm2663, %v4905, %v4225
        %v4954 = vsel %vm2663, %v4906, %v4227
        %v4955 = vsel %vm2663, %v4907, %v4229
        %v4956 = vsel %vm2696, %v4908, %v4280
        %v4957 = vsel %vm2696, %v4909, %v4282
        %v4958 = vsel %vm2696, %v4910, %v4284
        %v4959 = vsel %vm2696, %v4911, %v4286
        %v4960 = vsel %vm2696, %v4912, %v4288
        %v4961 = vsel %vm2696, %v4913, %v4290
        %v4962 = vsel %vm2696, %v4914, %v4292
        %v4963 = vsel %vm2696, %v4915, %v4294
        %v4964 = vsel %vm2696, %v4916, %v4296
        %v4965 = vsel %vm2696, %v4917, %v4298
        %v4966 = vsel %vm2696, %v4918, %v4300
        %v4967 = vsel %vm2696, %v4919, %v4302
        %v4968 = vsel %vm2696, %v4920, %v4304
        %v4969 = vsel %vm2696, %v4921, %v4306
        %v4970 = vsel %vm2696, %v4922, %v4308
        %v4971 = vsel %vm2696, %v4923, %v4310
        %v4972 = vsel %vm2696, %v4924, %v4312
        %v4973 = vsel %vm2696, %v4925, %v4314
        %v4974 = vsel %vm2696, %v4926, %v4316
        %v4975 = vsel %vm2696, %v4927, %v4318
        %v4976 = vsel %vm2696, %v4928, %v4320
        %v4977 = vsel %vm2696, %v4929, %v4322
        %v4978 = vsel %vm2696, %v4930, %v4324
        %v4979 = vsel %vm2696, %v4931, %v4326
        %v4980 = vsel %vm2696, %v4932, %v4328
        %v4981 = vsel %vm2696, %v4933, %v4330
        %v4982 = vsel %vm2696, %v4934, %v4332
        %v4983 = vsel %vm2696, %v4935, %v4334
        %v4984 = vsel %vm2696, %v4936, %v4336
        %v4985 = vsel %vm2696, %v4937, %v4338
        %v4986 = vsel %vm2696, %v4938, %v4340
        %v4987 = vsel %vm2696, %v4939, %v4342
        %v4988 = vsel %vm2696, %v4940, %v4344
        %v4989 = vsel %vm2696, %v4941, %v4346
        %v4990 = vsel %vm2696, %v4942, %v4348
        %v4991 = vsel %vm2696, %v4943, %v4350
        %v4992 = vsel %vm2696, %v4944, %v4352
        %v4993 = vsel %vm2696, %v4945, %v4354
        %v4994 = vsel %vm2696, %v4946, %v4356
        %v4995 = vsel %vm2696, %v4947, %v4358
        %v4996 = vsel %vm2696, %v4948, %v4360
        %v4997 = vsel %vm2696, %v4949, %v4362
        %v4998 = vsel %vm2696, %v4950, %v4364
        %v4999 = vsel %vm2696, %v4951, %v4366
        %v5000 = vsel %vm2696, %v4952, %v4368
        %v5001 = vsel %vm2696, %v4953, %v4370
        %v5002 = vsel %vm2696, %v4954, %v4372
        %v5003 = vsel %vm2696, %v4955, %v4374
        %v5004 = vsel %vm2729, %v4956, %v4429
        %v5005 = vsel %vm2729, %v4957, %v4431
        %v5006 = vsel %vm2729, %v4958, %v4433
        %v5007 = vsel %vm2729, %v4959, %v4435
        %v5008 = vsel %vm2729, %v4960, %v4437
        %v5009 = vsel %vm2729, %v4961, %v4439
        %v5010 = vsel %vm2729, %v4962, %v4441
        %v5011 = vsel %vm2729, %v4963, %v4443
        %v5012 = vsel %vm2729, %v4964, %v4445
        %v5013 = vsel %vm2729, %v4965, %v4447
        %v5014 = vsel %vm2729, %v4966, %v4449
        %v5015 = vsel %vm2729, %v4967, %v4451
        %v5016 = vsel %vm2729, %v4968, %v4453
        %v5017 = vsel %vm2729, %v4969, %v4455
        %v5018 = vsel %vm2729, %v4970, %v4457
        %v5019 = vsel %vm2729, %v4971, %v4459
        %v5020 = vsel %vm2729, %v4972, %v4461
        %v5021 = vsel %vm2729, %v4973, %v4463
        %v5022 = vsel %vm2729, %v4974, %v4465
        %v5023 = vsel %vm2729, %v4975, %v4467
        %v5024 = vsel %vm2729, %v4976, %v4469
        %v5025 = vsel %vm2729, %v4977, %v4471
        %v5026 = vsel %vm2729, %v4978, %v4473
        %v5027 = vsel %vm2729, %v4979, %v4475
        %v5028 = vsel %vm2729, %v4980, %v4477
        %v5029 = vsel %vm2729, %v4981, %v4479
        %v5030 = vsel %vm2729, %v4982, %v4481
        %v5031 = vsel %vm2729, %v4983, %v4483
        %v5032 = vsel %vm2729, %v4984, %v4485
        %v5033 = vsel %vm2729, %v4985, %v4487
        %v5034 = vsel %vm2729, %v4986, %v4489
        %v5035 = vsel %vm2729, %v4987, %v4491
        %v5036 = vsel %vm2729, %v4988, %v4493
        %v5037 = vsel %vm2729, %v4989, %v4495
        %v5038 = vsel %vm2729, %v4990, %v4497
        %v5039 = vsel %vm2729, %v4991, %v4499
        %v5040 = vsel %vm2729, %v4992, %v4501
        %v5041 = vsel %vm2729, %v4993, %v4503
        %v5042 = vsel %vm2729, %v4994, %v4505
        %v5043 = vsel %vm2729, %v4995, %v4507
        %v5044 = vsel %vm2729, %v4996, %v4509
        %v5045 = vsel %vm2729, %v4997, %v4511
        %v5046 = vsel %vm2729, %v4998, %v4513
        %v5047 = vsel %vm2729, %v4999, %v4515
        %v5048 = vsel %vm2729, %v5000, %v4517
        %v5049 = vsel %vm2729, %v5001, %v4519
        %v5050 = vsel %vm2729, %v5002, %v4521
        %v5051 = vsel %vm2729, %v5003, %v4523
        %v5100 = vrot.slane %v5004, 1
        %v5101 = vrot.slane %v5005, 1
        %v5102 = vsel %vm581, %v5100, %v5101
        %v5103 = vrot.slane %v5006, 1
        %v5104 = vsel %vm581, %v5101, %v5103
        %v5105 = vrot.slane %v5007, 1
        %v5106 = vrot.slane %v5008, 1
        %v5107 = vsel %vm581, %v5105, %v5106
        %v5108 = vrot.slane %v5009, 1
        %v5109 = vsel %vm581, %v5106, %v5108
        %v5110 = vrot.slane %v5010, 1
        %v5111 = vrot.slane %v5011, 1
        %v5112 = vsel %vm581, %v5110, %v5111
        %v5113 = vrot.slane %v5012, 1
        %v5114 = vsel %vm581, %v5111, %v5113
        %v5115 = vrot.slane %v5013, 1
        %v5116 = vrot.slane %v5014, 1
        %v5117 = vsel %vm581, %v5115, %v5116
        %v5118 = vrot.slane %v5015, 1
        %v5119 = vsel %vm581, %v5116, %v5118
        %v5120 = vrot.slane %v5016, 1
        %v5121 = vrot.slane %v5017, 1
        %v5122 = vsel %vm581, %v5120, %v5121
        %v5123 = vrot.slane %v5018, 1
        %v5124 = vsel %vm581, %v5121, %v5123
        %v5125 = vrot.slane %v5019, 1
        %v5126 = vrot.slane %v5020, 1
        %v5127 = vsel %vm581, %v5125, %v5126
        %v5128 = vrot.slane %v5021, 1
        %v5129 = vsel %vm581, %v5126, %v5128
        %v5130 = vrot.slane %v5022, 1
        %v5131 = vrot.slane %v5023, 1
        %v5132 = vsel %vm581, %v5130, %v5131
        %v5133 = vrot.slane %v5024, 1
        %v5134 = vsel %vm581, %v5131, %v5133
        %v5135 = vrot.slane %v5025, 1
        %v5136 = vrot.slane %v5026, 1
        %v5137 = vsel %vm581, %v5135, %v5136
        %v5138 = vrot.slane %v5027, 1
        %v5139 = vsel %vm581, %v5136, %v5138
        %v5140 = vrot.slane %v5028, 1
        %v5141 = vrot.slane %v5029, 1
        %v5142 = vsel %vm581, %v5140, %v5141
        %v5143 = vrot.slane %v5030, 1
        %v5144 = vsel %vm581, %v5141, %v5143
        %v5145 = vrot.slane %v5031, 1
        %v5146 = vrot.slane %v5032, 1
        %v5147 = vsel %vm581, %v5145, %v5146
        %v5148 = vrot.slane %v5033, 1
        %v5149 = vsel %vm581, %v5146, %v5148
        %v5150 = vrot.slane %v5034, 1
        %v5151 = vrot.slane %v5035, 1
        %v5152 = vsel %vm581, %v5150, %v5151
        %v5153 = vrot.slane %v5036, 1
        %v5154 = vsel %vm581, %v5151, %v5153
        %v5155 = vrot.slane %v5037, 1
        %v5156 = vrot.slane %v5038, 1
        %v5157 = vsel %vm581, %v5155, %v5156
        %v5158 = vrot.slane %v5039, 1
        %v5159 = vsel %vm581, %v5156, %v5158
        %v5160 = vrot.slane %v5040, 1
        %v5161 = vrot.slane %v5041, 1
        %v5162 = vsel %vm581, %v5160, %v5161
        %v5163 = vrot.slane %v5042, 1
        %v5164 = vsel %vm581, %v5161, %v5163
        %v5165 = vrot.slane %v5043, 1
        %v5166 = vrot.slane %v5044, 1
        %v5167 = vsel %vm581, %v5165, %v5166
        %v5168 = vrot.slane %v5045, 1
        %v5169 = vsel %vm581, %v5166, %v5168
        %v5170 = vrot.slane %v5046, 1
        %v5171 = vrot.slane %v5047, 1
        %v5172 = vsel %vm581, %v5170, %v5171
        %v5173 = vrot.slane %v5048, 1
        %v5174 = vsel %vm581, %v5171, %v5173
        %v5175 = vrot.slane %v5049, 1
        %v5176 = vrot.slane %v5050, 1
        %v5177 = vsel %vm581, %v5175, %v5176
        %v5178 = vrot.slane %v5051, 1
        %v5179 = vsel %vm581, %v5176, %v5178
        %5180 = vrot.lane.b32.xlu0 %v5102, 64
        %v5181 = vpop.permute.xlu0 %5180
        %5182 = vrot.lane.b32.xlu0 %v5104, 64
        %v5183 = vpop.permute.xlu0 %5182
        %5184 = vrot.lane.b32.xlu0 %v5107, 64
        %v5185 = vpop.permute.xlu0 %5184
        %5186 = vrot.lane.b32.xlu0 %v5109, 64
        %v5187 = vpop.permute.xlu0 %5186
        %5188 = vrot.lane.b32.xlu0 %v5112, 64
        %v5189 = vpop.permute.xlu0 %5188
        %5190 = vrot.lane.b32.xlu0 %v5114, 64
        %v5191 = vpop.permute.xlu0 %5190
        %5192 = vrot.lane.b32.xlu0 %v5117, 64
        %v5193 = vpop.permute.xlu0 %5192
        %5194 = vrot.lane.b32.xlu0 %v5119, 64
        %v5195 = vpop.permute.xlu0 %5194
        %5196 = vrot.lane.b32.xlu0 %v5122, 64
        %v5197 = vpop.permute.xlu0 %5196
        %5198 = vrot.lane.b32.xlu0 %v5124, 64
        %v5199 = vpop.permute.xlu0 %5198
        %5200 = vrot.lane.b32.xlu0 %v5127, 64
        %v5201 = vpop.permute.xlu0 %5200
        %5202 = vrot.lane.b32.xlu0 %v5129, 64
        %v5203 = vpop.permute.xlu0 %5202
        %5204 = vrot.lane.b32.xlu0 %v5132, 64
        %v5205 = vpop.permute.xlu0 %5204
        %5206 = vrot.lane.b32.xlu0 %v5134, 64
        %v5207 = vpop.permute.xlu0 %5206
        %5208 = vrot.lane.b32.xlu0 %v5137, 64
        %v5209 = vpop.permute.xlu0 %5208
        %5210 = vrot.lane.b32.xlu0 %v5139, 64
        %v5211 = vpop.permute.xlu0 %5210
        %5212 = vrot.lane.b32.xlu0 %v5142, 64
        %v5213 = vpop.permute.xlu0 %5212
        %5214 = vrot.lane.b32.xlu0 %v5144, 64
        %v5215 = vpop.permute.xlu0 %5214
        %5216 = vrot.lane.b32.xlu0 %v5147, 64
        %v5217 = vpop.permute.xlu0 %5216
        %5218 = vrot.lane.b32.xlu0 %v5149, 64
        %v5219 = vpop.permute.xlu0 %5218
        %5220 = vrot.lane.b32.xlu0 %v5152, 64
        %v5221 = vpop.permute.xlu0 %5220
        %5222 = vrot.lane.b32.xlu0 %v5154, 64
        %v5223 = vpop.permute.xlu0 %5222
        %5224 = vrot.lane.b32.xlu0 %v5157, 64
        %v5225 = vpop.permute.xlu0 %5224
        %5226 = vrot.lane.b32.xlu0 %v5159, 64
        %v5227 = vpop.permute.xlu0 %5226
        %5228 = vrot.lane.b32.xlu0 %v5162, 64
        %v5229 = vpop.permute.xlu0 %5228
        %5230 = vrot.lane.b32.xlu0 %v5164, 64
        %v5231 = vpop.permute.xlu0 %5230
        %5232 = vrot.lane.b32.xlu0 %v5167, 64
        %v5233 = vpop.permute.xlu0 %5232
        %5234 = vrot.lane.b32.xlu0 %v5169, 64
        %v5235 = vpop.permute.xlu0 %5234
        %5236 = vrot.lane.b32.xlu0 %v5172, 64
        %v5237 = vpop.permute.xlu0 %5236
        %5238 = vrot.lane.b32.xlu0 %v5174, 64
        %v5239 = vpop.permute.xlu0 %5238
        %5240 = vrot.lane.b32.xlu0 %v5177, 64
        %v5241 = vpop.permute.xlu0 %5240
        %5242 = vrot.lane.b32.xlu0 %v5179, 64
        %v5243 = vpop.permute.xlu0 %5242
        %vm5276 = vcmask 523264
        %v5277 = vsel %vm5276, %v2895, %v5181
        %v5278 = vsel %vm5276, %v2896, %v5183
        %v5279 = vsel %vm5276, %v2897, %v5185
        %v5280 = vsel %vm5276, %v2898, %v5187
        %v5281 = vsel %vm5276, %v2899, %v5189
        %v5282 = vsel %vm5276, %v2900, %v5191
        %v5283 = vsel %vm5276, %v2901, %v5193
        %v5284 = vsel %vm5276, %v2902, %v5195
        %v5285 = vsel %vm5276, %v2903, %v5197
        %v5286 = vsel %vm5276, %v2904, %v5199
        %v5287 = vsel %vm5276, %v2905, %v5201
        %v5288 = vsel %vm5276, %v2906, %v5203
        %v5289 = vsel %vm5276, %v2907, %v5205
        %v5290 = vsel %vm5276, %v2908, %v5207
        %v5291 = vsel %vm5276, %v2909, %v5209
        %v5292 = vsel %vm5276, %v2910, %v5211
        %v5293 = vsel %vm5276, %v2911, %v5213
        %v5294 = vsel %vm5276, %v2912, %v5215
        %v5295 = vsel %vm5276, %v2913, %v5217
        %v5296 = vsel %vm5276, %v2914, %v5219
        %v5297 = vsel %vm5276, %v2915, %v5221
        %v5298 = vsel %vm5276, %v2916, %v5223
        %v5299 = vsel %vm5276, %v2917, %v5225
        %v5300 = vsel %vm5276, %v2918, %v5227
        %v5301 = vsel %vm5276, %v2919, %v5229
        %v5302 = vsel %vm5276, %v2920, %v5231
        %v5303 = vsel %vm5276, %v2921, %v5233
        %v5304 = vsel %vm5276, %v2922, %v5235
        %v5305 = vsel %vm5276, %v2923, %v5237
        %v5306 = vsel %vm5276, %v2924, %v5239
        %v5307 = vsel %vm5276, %v2925, %v5241
        %v5308 = vsel %vm5276, %v2926, %v5243
        %v5309 = vld [vmem:[%s1] sm:$0xff]
        %v5310 = vld [vmem:[%s1 + $0x8] sm:$0xff]
        %v5311 = vld [vmem:[%s1 + $0x10] sm:$0xff]
        %v5312 = vld [vmem:[%s1 + $0x18] sm:$0xff]
        %v5313 = vld [vmem:[%s1 + $0x20] sm:$0xff]
        %v5314 = vld [vmem:[%s1 + $0x28] sm:$0xff]
        %v5315 = vld [vmem:[%s1 + $0x30] sm:$0xff]
        %v5316 = vld [vmem:[%s1 + $0x38] sm:$0xff]
        %v5317 = vld [vmem:[%s1 + $0x40] sm:$0xff]
        %v5318 = vld [vmem:[%s1 + $0x48] sm:$0xff]
        %v5319 = vld [vmem:[%s1 + $0x50] sm:$0xff]
        %v5320 = vld [vmem:[%s1 + $0x58] sm:$0xff]
        %v5321 = vld [vmem:[%s1 + $0x60] sm:$0xff]
        %v5322 = vld [vmem:[%s1 + $0x68] sm:$0xf]
        %vm5323 = vcmask 883712
        %v5325 = vsel %vm5323, %v5277, 0
        %v5328 = vsel %vm5323, %v5278, 0
        %v5331 = vsel %vm5323, %v5279, 0
        %v5334 = vsel %vm5323, %v5280, 0
        %v5337 = vsel %vm5323, %v5281, 0
        %v5340 = vsel %vm5323, %v5282, 0
        %v5343 = vsel %vm5323, %v5283, 0
        %v5346 = vsel %vm5323, %v5284, 0
        %v5349 = vsel %vm5323, %v5285, 0
        %v5352 = vsel %vm5323, %v5286, 0
        %v5355 = vsel %vm5323, %v5287, 0
        %v5358 = vsel %vm5323, %v5288, 0
        %v5361 = vsel %vm5323, %v5289, 0
        %v5364 = vsel %vm5323, %v5290, 0
        %v5367 = vsel %vm5323, %v5291, 0
        %v5370 = vsel %vm5323, %v5292, 0
        %v5373 = vsel %vm5323, %v5293, 0
        %v5376 = vsel %vm5323, %v5294, 0
        %v5379 = vsel %vm5323, %v5295, 0
        %v5382 = vsel %vm5323, %v5296, 0
        %v5385 = vsel %vm5323, %v5297, 0
        %v5388 = vsel %vm5323, %v5298, 0
        %v5391 = vsel %vm5323, %v5299, 0
        %v5394 = vsel %vm5323, %v5300, 0
        %v5397 = vsel %vm5323, %v5301, 0
        %v5400 = vsel %vm5323, %v5302, 0
        %v5403 = vsel %vm5323, %v5303, 0
        %v5406 = vsel %vm5323, %v5304, 0
        %v5409 = vsel %vm5323, %v5305, 0
        %v5412 = vsel %vm5323, %v5306, 0
        %v5415 = vsel %vm5323, %v5307, 0
        %v5418 = vsel %vm5323, %v5308, 0
        %vm5420 = vcmask 1043456
        %v5422 = vsel %vm5420, %v5322, 0
        %5424 = vmatprep.subr.mxu0 0.0
        %5425 = vmatpush1.msra.mxu0 %v5309
        %5426 = vmatprep.subr.mxu0 0.0
        %5427 = vmatpush1.msra.mxu0 %v5310
        %5428 = vmatprep.subr.mxu0 0.0
        %5429 = vmatpush1.msra.mxu0 %v5311
        %5430 = vmatprep.subr.mxu0 0.0
        %5431 = vmatpush1.msra.mxu0 %v5312
        %5432 = vmatprep.subr.mxu0 0.0
        %5433 = vmatpush1.msra.mxu0 %v5313
        %5434 = vmatprep.subr.mxu0 0.0
        %5435 = vmatpush1.msra.mxu0 %v5314
        %5436 = vmatprep.subr.mxu0 0.0
        %5437 = vmatpush1.msra.mxu0 %v5315
        %5438 = vmatprep.subr.mxu0 0.0
        %5439 = vmatpush1.msra.mxu0 %v5316
        %5440 = vmatprep.subr.mxu0 0.0
        %5441 = vmatpush1.msra.mxu0 %v5317
        %5442 = vmatprep.subr.mxu0 0.0
        %5443 = vmatpush1.msra.mxu0 %v5318
        %5444 = vmatprep.subr.mxu0 0.0
        %5445 = vmatpush1.msra.mxu0 %v5319
        %5446 = vmatprep.subr.mxu0 0.0
        %5447 = vmatpush1.msra.mxu0 %v5320
        %5448 = vmatprep.subr.mxu0 0.0
        %5449 = vmatpush1.msra.mxu0 %v5321
        %5450 = vmatprep.subr.mxu0 0.0
        %5451 = vmatpush1.msra.mxu0 %v5422
        %5452 = vmatprep.subr.mxu0 0.0
        %5453 = vmatpush1.msra.mxu0 0.0
        %5454 = vmatprep.subr.mxu0 0.0
        %5455 = vmatpush1.msra.mxu0 0.0
        %5456 = vmatprep.subr.mxu0 0.0
        %5457 = vmatpush1.msra.mxu0 0.0
        %5458 = vmatprep.subr.mxu0 0.0
        %5459 = vmatpush1.msra.mxu0 0.0
        %5460 = vmatprep.subr.mxu0 0.0
        %5461 = vmatpush1.msra.mxu0 0.0
        %5462 = vmatprep.subr.mxu0 0.0
        %5463 = vmatpush1.msra.mxu0 0.0
        %5464 = vmatprep.subr.mxu0 0.0
        %5465 = vmatpush1.msra.mxu0 0.0
        %5466 = vmatprep.subr.mxu0 0.0
        %5467 = vmatpush1.msra.mxu0 0.0
        %5468 = vmatprep.subr.mxu0 0.0
        %5469 = vmatpush1.msra.mxu0 0.0
        %5470 = vmatprep.subr.mxu0 0.0
        %5471 = vmatpush1.msra.mxu0 0.0
        %5472 = vmatprep.subr.mxu0 0.0
        %5473 = vmatpush1.msra.mxu0 0.0
        %5474 = vmatprep.subr.mxu0 0.0
        %5475 = vmatpush1.msra.mxu0 0.0
        %5476 = vmatprep.subr.mxu0 0.0
        %5477 = vmatpush1.msra.mxu0 0.0
        %5478 = vmatprep.subr.mxu0 0.0
        %5479 = vmatpush1.msra.mxu0 0.0
        %5480 = vmatprep.subr.mxu0 0.0
        %5481 = vmatpush1.msra.mxu0 0.0
        %5482 = vmatprep.subr.mxu0 0.0
        %5483 = vmatpush1.msra.mxu0 0.0
        %5484 = vmatprep.subr.mxu0 0.0
        %5485 = vmatpush1.msra.mxu0 0.0
        %5486 = vmatprep.subr.mxu0 0.0
        %5487 = vmatpush1.msra.mxu0 0.0
        %5488 = vmatprep.mubr.f32.mxu0 0.0
        %5489 = vmatmul.mubr.f32.gmra.mrb[0].mxu0 %v5325
        %v5490 = vpop.f32.mrb[0].mxu0
        %v5491 = vadd.f32 0.0, %v5490
        %v5492 = vpop.f32.mrb[0].mxu0
        %5493 = vmatprep.mubr.f32.mxu0 0.0
        %5494 = vmatmul.mubr.f32.gmra.mrb[0].mxu0 %v5328
        %v5495 = vpop.f32.mrb[0].mxu0
        %v5496 = vadd.f32 0.0, %v5495
        %v5497 = vpop.f32.mrb[0].mxu0
        %5498 = vmatprep.mubr.f32.mxu0 0.0
        %5499 = vmatmul.mubr.f32.gmra.mrb[0].mxu0 %v5331
        %v5500 = vpop.f32.mrb[0].mxu0
        %v5501 = vadd.f32 0.0, %v5500
        %v5502 = vpop.f32.mrb[0].mxu0
        %5503 = vmatprep.mubr.f32.mxu0 0.0
        %5504 = vmatmul.mubr.f32.gmra.mrb[0].mxu0 %v5334
        %v5505 = vpop.f32.mrb[0].mxu0
        %v5506 = vadd.f32 0.0, %v5505
        %v5507 = vpop.f32.mrb[0].mxu0
        %5508 = vmatprep.mubr.f32.mxu0 0.0
        %5509 = vmatmul.mubr.f32.gmra.mrb[0].mxu0 %v5337
        %v5510 = vpop.f32.mrb[0].mxu0
        %v5511 = vadd.f32 0.0, %v5510
        %v5512 = vpop.f32.mrb[0].mxu0
        %5513 = vmatprep.mubr.f32.mxu0 0.0
        %5514 = vmatmul.mubr.f32.gmra.mrb[0].mxu0 %v5340
        %v5515 = vpop.f32.mrb[0].mxu0
        %v5516 = vadd.f32 0.0, %v5515
        %v5517 = vpop.f32.mrb[0].mxu0
        %5518 = vmatprep.mubr.f32.mxu0 0.0
        %5519 = vmatmul.mubr.f32.gmra.mrb[0].mxu0 %v5343
        %v5520 = vpop.f32.mrb[0].mxu0
        %v5521 = vadd.f32 0.0, %v5520
        %v5522 = vpop.f32.mrb[0].mxu0
        %5523 = vmatprep.mubr.f32.mxu0 0.0
        %5524 = vmatmul.mubr.f32.gmra.mrb[0].mxu0 %v5346
        %v5525 = vpop.f32.mrb[0].mxu0
        %v5526 = vadd.f32 0.0, %v5525
        %v5527 = vpop.f32.mrb[0].mxu0
        %5528 = vmatprep.mubr.f32.mxu0 0.0
        %5529 = vmatmul.mubr.f32.gmra.mrb[0].mxu0 %v5349
        %v5530 = vpop.f32.mrb[0].mxu0
        %v5531 = vadd.f32 0.0, %v5530
        %v5532 = vpop.f32.mrb[0].mxu0
        %5533 = vmatprep.mubr.f32.mxu0 0.0
        %5534 = vmatmul.mubr.f32.gmra.mrb[0].mxu0 %v5352
        %v5535 = vpop.f32.mrb[0].mxu0
        %v5536 = vadd.f32 0.0, %v5535
        %v5537 = vpop.f32.mrb[0].mxu0
        %5538 = vmatprep.mubr.f32.mxu0 0.0
        %5539 = vmatmul.mubr.f32.gmra.mrb[0].mxu0 %v5355
        %v5540 = vpop.f32.mrb[0].mxu0
        %v5541 = vadd.f32 0.0, %v5540
        %v5542 = vpop.f32.mrb[0].mxu0
        %5543 = vmatprep.mubr.f32.mxu0 0.0
        %5544 = vmatmul.mubr.f32.gmra.mrb[0].mxu0 %v5358
        %v5545 = vpop.f32.mrb[0].mxu0
        %v5546 = vadd.f32 0.0, %v5545
        %v5547 = vpop.f32.mrb[0].mxu0
        %5548 = vmatprep.mubr.f32.mxu0 0.0
        %5549 = vmatmul.mubr.f32.gmra.mrb[0].mxu0 %v5361
        %v5550 = vpop.f32.mrb[0].mxu0
        %v5551 = vadd.f32 0.0, %v5550
        %v5552 = vpop.f32.mrb[0].mxu0
        %5553 = vmatprep.mubr.f32.mxu0 0.0
        %5554 = vmatmul.mubr.f32.gmra.mrb[0].mxu0 %v5364
        %v5555 = vpop.f32.mrb[0].mxu0
        %v5556 = vadd.f32 0.0, %v5555
        %v5557 = vpop.f32.mrb[0].mxu0
        %5558 = vmatprep.mubr.f32.mxu0 0.0
        %5559 = vmatmul.mubr.f32.gmra.mrb[0].mxu0 %v5367
        %v5560 = vpop.f32.mrb[0].mxu0
        %v5561 = vadd.f32 0.0, %v5560
        %v5562 = vpop.f32.mrb[0].mxu0
        %5563 = vmatprep.mubr.f32.mxu0 0.0
        %5564 = vmatmul.mubr.f32.gmra.mrb[0].mxu0 %v5370
        %v5565 = vpop.f32.mrb[0].mxu0
        %v5566 = vadd.f32 0.0, %v5565
        %v5567 = vpop.f32.mrb[0].mxu0
        %5568 = vmatprep.mubr.f32.mxu0 0.0
        %5569 = vmatmul.mubr.f32.gmra.mrb[0].mxu0 %v5373
        %v5570 = vpop.f32.mrb[0].mxu0
        %v5571 = vadd.f32 0.0, %v5570
        %v5572 = vpop.f32.mrb[0].mxu0
        %5573 = vmatprep.mubr.f32.mxu0 0.0
        %5574 = vmatmul.mubr.f32.gmra.mrb[0].mxu0 %v5376
        %v5575 = vpop.f32.mrb[0].mxu0
        %v5576 = vadd.f32 0.0, %v5575
        %v5577 = vpop.f32.mrb[0].mxu0
        %5578 = vmatprep.mubr.f32.mxu0 0.0
        %5579 = vmatmul.mubr.f32.gmra.mrb[0].mxu0 %v5379
        %v5580 = vpop.f32.mrb[0].mxu0
        %v5581 = vadd.f32 0.0, %v5580
        %v5582 = vpop.f32.mrb[0].mxu0
        %5583 = vmatprep.mubr.f32.mxu0 0.0
        %5584 = vmatmul.mubr.f32.gmra.mrb[0].mxu0 %v5382
        %v5585 = vpop.f32.mrb[0].mxu0
        %v5586 = vadd.f32 0.0, %v5585
        %v5587 = vpop.f32.mrb[0].mxu0
        %5588 = vmatprep.mubr.f32.mxu0 0.0
        %5589 = vmatmul.mubr.f32.gmra.mrb[0].mxu0 %v5385
        %v5590 = vpop.f32.mrb[0].mxu0
        %v5591 = vadd.f32 0.0, %v5590
        %v5592 = vpop.f32.mrb[0].mxu0
        %5593 = vmatprep.mubr.f32.mxu0 0.0
        %5594 = vmatmul.mubr.f32.gmra.mrb[0].mxu0 %v5388
        %v5595 = vpop.f32.mrb[0].mxu0
        %v5596 = vadd.f32 0.0, %v5595
        %v5597 = vpop.f32.mrb[0].mxu0
        %5598 = vmatprep.mubr.f32.mxu0 0.0
        %5599 = vmatmul.mubr.f32.gmra.mrb[0].mxu0 %v5391
        %v5600 = vpop.f32.mrb[0].mxu0
        %v5601 = vadd.f32 0.0, %v5600
        %v5602 = vpop.f32.mrb[0].mxu0
        %5603 = vmatprep.mubr.f32.mxu0 0.0
        %5604 = vmatmul.mubr.f32.gmra.mrb[0].mxu0 %v5394
        %v5605 = vpop.f32.mrb[0].mxu0
        %v5606 = vadd.f32 0.0, %v5605
        %v5607 = vpop.f32.mrb[0].mxu0
        %5608 = vmatprep.mubr.f32.mxu0 0.0
        %5609 = vmatmul.mubr.f32.gmra.mrb[0].mxu0 %v5397
        %v5610 = vpop.f32.mrb[0].mxu0
        %v5611 = vadd.f32 0.0, %v5610
        %v5612 = vpop.f32.mrb[0].mxu0
        %5613 = vmatprep.mubr.f32.mxu0 0.0
        %5614 = vmatmul.mubr.f32.gmra.mrb[0].mxu0 %v5400
        %v5615 = vpop.f32.mrb[0].mxu0
        %v5616 = vadd.f32 0.0, %v5615
        %v5617 = vpop.f32.mrb[0].mxu0
        %5618 = vmatprep.mubr.f32.mxu0 0.0
        %5619 = vmatmul.mubr.f32.gmra.mrb[0].mxu0 %v5403
        %v5620 = vpop.f32.mrb[0].mxu0
        %v5621 = vadd.f32 0.0, %v5620
        %v5622 = vpop.f32.mrb[0].mxu0
        %5623 = vmatprep.mubr.f32.mxu0 0.0
        %5624 = vmatmul.mubr.f32.gmra.mrb[0].mxu0 %v5406
        %v5625 = vpop.f32.mrb[0].mxu0
        %v5626 = vadd.f32 0.0, %v5625
        %v5627 = vpop.f32.mrb[0].mxu0
        %5628 = vmatprep.mubr.f32.mxu0 0.0
        %5629 = vmatmul.mubr.f32.gmra.mrb[0].mxu0 %v5409
        %v5630 = vpop.f32.mrb[0].mxu0
        %v5631 = vadd.f32 0.0, %v5630
        %v5632 = vpop.f32.mrb[0].mxu0
        %5633 = vmatprep.mubr.f32.mxu0 0.0
        %5634 = vmatmul.mubr.f32.gmra.mrb[0].mxu0 %v5412
        %v5635 = vpop.f32.mrb[0].mxu0
        %v5636 = vadd.f32 0.0, %v5635
        %v5637 = vpop.f32.mrb[0].mxu0
        %5638 = vmatprep.mubr.f32.mxu0 0.0
        %5639 = vmatmul.mubr.f32.gmra.mrb[0].mxu0 %v5415
        %v5640 = vpop.f32.mrb[0].mxu0
        %v5641 = vadd.f32 0.0, %v5640
        %v5642 = vpop.f32.mrb[0].mxu0
        %5643 = vmatprep.mubr.f32.mxu0 0.0
        %5644 = vmatmul.mubr.f32.gmra.mrb[0].mxu0 %v5418
        %v5645 = vpop.f32.mrb[0].mxu0
        %v5646 = vadd.f32 0.0, %v5645
        %v5647 = vpop.f32.mrb[0].mxu0
        %5648 = vdwg.mxu0
        %v5697 = vrot.slane %v239, 1
        %v5698 = vrot.slane %v240, 1
        %v5699 = vsel %vm581, %v5697, %v5698
        %v5700 = vrot.slane %v271, 1
        %v5701 = vsel %vm581, %v5698, %v5700
        %v5702 = vrot.slane %v241, 1
        %v5703 = vrot.slane %v242, 1
        %v5704 = vsel %vm581, %v5702, %v5703
        %v5705 = vrot.slane %v272, 1
        %v5706 = vsel %vm581, %v5703, %v5705
        %v5707 = vrot.slane %v243, 1
        %v5708 = vrot.slane %v244, 1
        %v5709 = vsel %vm581, %v5707, %v5708
        %v5710 = vrot.slane %v273, 1
        %v5711 = vsel %vm581, %v5708, %v5710
        %v5712 = vrot.slane %v245, 1
        %v5713 = vrot.slane %v246, 1
        %v5714 = vsel %vm581, %v5712, %v5713
        %v5715 = vrot.slane %v274, 1
        %v5716 = vsel %vm581, %v5713, %v5715
        %v5717 = vrot.slane %v247, 1
        %v5718 = vrot.slane %v248, 1
        %v5719 = vsel %vm581, %v5717, %v5718
        %v5720 = vrot.slane %v275, 1
        %v5721 = vsel %vm581, %v5718, %v5720
        %v5722 = vrot.slane %v249, 1
        %v5723 = vrot.slane %v250, 1
        %v5724 = vsel %vm581, %v5722, %v5723
        %v5725 = vrot.slane %v276, 1
        %v5726 = vsel %vm581, %v5723, %v5725
        %v5727 = vrot.slane %v251, 1
        %v5728 = vrot.slane %v252, 1
        %v5729 = vsel %vm581, %v5727, %v5728
        %v5730 = vrot.slane %v277, 1
        %v5731 = vsel %vm581, %v5728, %v5730
        %v5732 = vrot.slane %v253, 1
        %v5733 = vrot.slane %v254, 1
        %v5734 = vsel %vm581, %v5732, %v5733
        %v5735 = vrot.slane %v278, 1
        %v5736 = vsel %vm581, %v5733, %v5735
        %v5737 = vrot.slane %v255, 1
        %v5738 = vrot.slane %v256, 1
        %v5739 = vsel %vm581, %v5737, %v5738
        %v5740 = vrot.slane %v279, 1
        %v5741 = vsel %vm581, %v5738, %v5740
        %v5742 = vrot.slane %v257, 1
        %v5743 = vrot.slane %v258, 1
        %v5744 = vsel %vm581, %v5742, %v5743
        %v5745 = vrot.slane %v280, 1
        %v5746 = vsel %vm581, %v5743, %v5745
        %v5747 = vrot.slane %v259, 1
        %v5748 = vrot.slane %v260, 1
        %v5749 = vsel %vm581, %v5747, %v5748
        %v5750 = vrot.slane %v281, 1
        %v5751 = vsel %vm581, %v5748, %v5750
        %v5752 = vrot.slane %v261, 1
        %v5753 = vrot.slane %v262, 1
        %v5754 = vsel %vm581, %v5752, %v5753
        %v5755 = vrot.slane %v282, 1
        %v5756 = vsel %vm581, %v5753, %v5755
        %v5757 = vrot.slane %v263, 1
        %v5758 = vrot.slane %v264, 1
        %v5759 = vsel %vm581, %v5757, %v5758
        %v5760 = vrot.slane %v283, 1
        %v5761 = vsel %vm581, %v5758, %v5760
        %v5762 = vrot.slane %v265, 1
        %v5763 = vrot.slane %v266, 1
        %v5764 = vsel %vm581, %v5762, %v5763
        %v5765 = vrot.slane %v284, 1
        %v5766 = vsel %vm581, %v5763, %v5765
        %v5767 = vrot.slane %v267, 1
        %v5768 = vrot.slane %v268, 1
        %v5769 = vsel %vm581, %v5767, %v5768
        %v5770 = vrot.slane %v285, 1
        %v5771 = vsel %vm581, %v5768, %v5770
        %v5772 = vrot.slane %v269, 1
        %v5773 = vrot.slane %v270, 1
        %v5774 = vsel %vm581, %v5772, %v5773
        %v5775 = vrot.slane %v286, 1
        %v5776 = vsel %vm581, %v5773, %v5775
        %5777 = vrot.lane.b32.xlu0 %v5699, 4
        %v5778 = vpop.permute.xlu0 %5777
        %5779 = vrot.lane.b32.xlu0 %v5701, 4
        %v5780 = vpop.permute.xlu0 %5779
        %5781 = vrot.lane.b32.xlu0 %v5704, 4
        %v5782 = vpop.permute.xlu0 %5781
        %5783 = vrot.lane.b32.xlu0 %v5706, 4
        %v5784 = vpop.permute.xlu0 %5783
        %5785 = vrot.lane.b32.xlu0 %v5709, 4
        %v5786 = vpop.permute.xlu0 %5785
        %5787 = vrot.lane.b32.xlu0 %v5711, 4
        %v5788 = vpop.permute.xlu0 %5787
        %5789 = vrot.lane.b32.xlu0 %v5714, 4
        %v5790 = vpop.permute.xlu0 %5789
        %5791 = vrot.lane.b32.xlu0 %v5716, 4
        %v5792 = vpop.permute.xlu0 %5791
        %5793 = vrot.lane.b32.xlu0 %v5719, 4
        %v5794 = vpop.permute.xlu0 %5793
        %5795 = vrot.lane.b32.xlu0 %v5721, 4
        %v5796 = vpop.permute.xlu0 %5795
        %5797 = vrot.lane.b32.xlu0 %v5724, 4
        %v5798 = vpop.permute.xlu0 %5797
        %5799 = vrot.lane.b32.xlu0 %v5726, 4
        %v5800 = vpop.permute.xlu0 %5799
        %5801 = vrot.lane.b32.xlu0 %v5729, 4
        %v5802 = vpop.permute.xlu0 %5801
        %5803 = vrot.lane.b32.xlu0 %v5731, 4
        %v5804 = vpop.permute.xlu0 %5803
        %5805 = vrot.lane.b32.xlu0 %v5734, 4
        %v5806 = vpop.permute.xlu0 %5805
        %5807 = vrot.lane.b32.xlu0 %v5736, 4
        %v5808 = vpop.permute.xlu0 %5807
        %5809 = vrot.lane.b32.xlu0 %v5739, 4
        %v5810 = vpop.permute.xlu0 %5809
        %5811 = vrot.lane.b32.xlu0 %v5741, 4
        %v5812 = vpop.permute.xlu0 %5811
        %5813 = vrot.lane.b32.xlu0 %v5744, 4
        %v5814 = vpop.permute.xlu0 %5813
        %5815 = vrot.lane.b32.xlu0 %v5746, 4
        %v5816 = vpop.permute.xlu0 %5815
        %5817 = vrot.lane.b32.xlu0 %v5749, 4
        %v5818 = vpop.permute.xlu0 %5817
        %5819 = vrot.lane.b32.xlu0 %v5751, 4
        %v5820 = vpop.permute.xlu0 %5819
        %5821 = vrot.lane.b32.xlu0 %v5754, 4
        %v5822 = vpop.permute.xlu0 %5821
        %5823 = vrot.lane.b32.xlu0 %v5756, 4
        %v5824 = vpop.permute.xlu0 %5823
        %5825 = vrot.lane.b32.xlu0 %v5759, 4
        %v5826 = vpop.permute.xlu0 %5825
        %5827 = vrot.lane.b32.xlu0 %v5761, 4
        %v5828 = vpop.permute.xlu0 %5827
        %5829 = vrot.lane.b32.xlu0 %v5764, 4
        %v5830 = vpop.permute.xlu0 %5829
        %5831 = vrot.lane.b32.xlu0 %v5766, 4
        %v5832 = vpop.permute.xlu0 %5831
        %5833 = vrot.lane.b32.xlu0 %v5769, 4
        %v5834 = vpop.permute.xlu0 %5833
        %5835 = vrot.lane.b32.xlu0 %v5771, 4
        %v5836 = vpop.permute.xlu0 %5835
        %5837 = vrot.lane.b32.xlu0 %v5774, 4
        %v5838 = vpop.permute.xlu0 %5837
        %5839 = vrot.lane.b32.xlu0 %v5776, 4
        %v5840 = vpop.permute.xlu0 %5839
        %v5873 = vrot.slane %v239, 2
        %v5874 = vrot.slane %v240, 2
        %v5875 = vsel %vm758, %v5873, %v5874
        %v5876 = vrot.slane %v271, 2
        %v5877 = vsel %vm758, %v5874, %v5876
        %v5878 = vrot.slane %v241, 2
        %v5879 = vrot.slane %v242, 2
        %v5880 = vsel %vm758, %v5878, %v5879
        %v5881 = vrot.slane %v272, 2
        %v5882 = vsel %vm758, %v5879, %v5881
        %v5883 = vrot.slane %v243, 2
        %v5884 = vrot.slane %v244, 2
        %v5885 = vsel %vm758, %v5883, %v5884
        %v5886 = vrot.slane %v273, 2
        %v5887 = vsel %vm758, %v5884, %v5886
        %v5888 = vrot.slane %v245, 2
        %v5889 = vrot.slane %v246, 2
        %v5890 = vsel %vm758, %v5888, %v5889
        %v5891 = vrot.slane %v274, 2
        %v5892 = vsel %vm758, %v5889, %v5891
        %v5893 = vrot.slane %v247, 2
        %v5894 = vrot.slane %v248, 2
        %v5895 = vsel %vm758, %v5893, %v5894
        %v5896 = vrot.slane %v275, 2
        %v5897 = vsel %vm758, %v5894, %v5896
        %v5898 = vrot.slane %v249, 2
        %v5899 = vrot.slane %v250, 2
        %v5900 = vsel %vm758, %v5898, %v5899
        %v5901 = vrot.slane %v276, 2
        %v5902 = vsel %vm758, %v5899, %v5901
        %v5903 = vrot.slane %v251, 2
        %v5904 = vrot.slane %v252, 2
        %v5905 = vsel %vm758, %v5903, %v5904
        %v5906 = vrot.slane %v277, 2
        %v5907 = vsel %vm758, %v5904, %v5906
        %v5908 = vrot.slane %v253, 2
        %v5909 = vrot.slane %v254, 2
        %v5910 = vsel %vm758, %v5908, %v5909
        %v5911 = vrot.slane %v278, 2
        %v5912 = vsel %vm758, %v5909, %v5911
        %v5913 = vrot.slane %v255, 2
        %v5914 = vrot.slane %v256, 2
        %v5915 = vsel %vm758, %v5913, %v5914
        %v5916 = vrot.slane %v279, 2
        %v5917 = vsel %vm758, %v5914, %v5916
        %v5918 = vrot.slane %v257, 2
        %v5919 = vrot.slane %v258, 2
        %v5920 = vsel %vm758, %v5918, %v5919
        %v5921 = vrot.slane %v280, 2
        %v5922 = vsel %vm758, %v5919, %v5921
        %v5923 = vrot.slane %v259, 2
        %v5924 = vrot.slane %v260, 2
        %v5925 = vsel %vm758, %v5923, %v5924
        %v5926 = vrot.slane %v281, 2
        %v5927 = vsel %vm758, %v5924, %v5926
        %v5928 = vrot.slane %v261, 2
        %v5929 = vrot.slane %v262, 2
        %v5930 = vsel %vm758, %v5928, %v5929
        %v5931 = vrot.slane %v282, 2
        %v5932 = vsel %vm758, %v5929, %v5931
        %v5933 = vrot.slane %v263, 2
        %v5934 = vrot.slane %v264, 2
        %v5935 = vsel %vm758, %v5933, %v5934
        %v5936 = vrot.slane %v283, 2
        %v5937 = vsel %vm758, %v5934, %v5936
        %v5938 = vrot.slane %v265, 2
        %v5939 = vrot.slane %v266, 2
        %v5940 = vsel %vm758, %v5938, %v5939
        %v5941 = vrot.slane %v284, 2
        %v5942 = vsel %vm758, %v5939, %v5941
        %v5943 = vrot.slane %v267, 2
        %v5944 = vrot.slane %v268, 2
        %v5945 = vsel %vm758, %v5943, %v5944
        %v5946 = vrot.slane %v285, 2
        %v5947 = vsel %vm758, %v5944, %v5946
        %v5948 = vrot.slane %v269, 2
        %v5949 = vrot.slane %v270, 2
        %v5950 = vsel %vm758, %v5948, %v5949
        %v5951 = vrot.slane %v286, 2
        %v5952 = vsel %vm758, %v5949, %v5951
        %5953 = vrot.lane.b32.xlu0 %v5875, 8
        %v5954 = vpop.permute.xlu0 %5953
        %5955 = vrot.lane.b32.xlu0 %v5877, 8
        %v5956 = vpop.permute.xlu0 %5955
        %5957 = vrot.lane.b32.xlu0 %v5880, 8
        %v5958 = vpop.permute.xlu0 %5957
        %5959 = vrot.lane.b32.xlu0 %v5882, 8
        %v5960 = vpop.permute.xlu0 %5959
        %5961 = vrot.lane.b32.xlu0 %v5885, 8
        %v5962 = vpop.permute.xlu0 %5961
        %5963 = vrot.lane.b32.xlu0 %v5887, 8
        %v5964 = vpop.permute.xlu0 %5963
        %5965 = vrot.lane.b32.xlu0 %v5890, 8
        %v5966 = vpop.permute.xlu0 %5965
        %5967 = vrot.lane.b32.xlu0 %v5892, 8
        %v5968 = vpop.permute.xlu0 %5967
        %5969 = vrot.lane.b32.xlu0 %v5895, 8
        %v5970 = vpop.permute.xlu0 %5969
        %5971 = vrot.lane.b32.xlu0 %v5897, 8
        %v5972 = vpop.permute.xlu0 %5971
        %5973 = vrot.lane.b32.xlu0 %v5900, 8
        %v5974 = vpop.permute.xlu0 %5973
        %5975 = vrot.lane.b32.xlu0 %v5902, 8
        %v5976 = vpop.permute.xlu0 %5975
        %5977 = vrot.lane.b32.xlu0 %v5905, 8
        %v5978 = vpop.permute.xlu0 %5977
        %5979 = vrot.lane.b32.xlu0 %v5907, 8
        %v5980 = vpop.permute.xlu0 %5979
        %5981 = vrot.lane.b32.xlu0 %v5910, 8
        %v5982 = vpop.permute.xlu0 %5981
        %5983 = vrot.lane.b32.xlu0 %v5912, 8
        %v5984 = vpop.permute.xlu0 %5983
        %5985 = vrot.lane.b32.xlu0 %v5915, 8
        %v5986 = vpop.permute.xlu0 %5985
        %5987 = vrot.lane.b32.xlu0 %v5917, 8
        %v5988 = vpop.permute.xlu0 %5987
        %5989 = vrot.lane.b32.xlu0 %v5920, 8
        %v5990 = vpop.permute.xlu0 %5989
        %5991 = vrot.lane.b32.xlu0 %v5922, 8
        %v5992 = vpop.permute.xlu0 %5991
        %5993 = vrot.lane.b32.xlu0 %v5925, 8
        %v5994 = vpop.permute.xlu0 %5993
        %5995 = vrot.lane.b32.xlu0 %v5927, 8
        %v5996 = vpop.permute.xlu0 %5995
        %5997 = vrot.lane.b32.xlu0 %v5930, 8
        %v5998 = vpop.permute.xlu0 %5997
        %5999 = vrot.lane.b32.xlu0 %v5932, 8
        %v6000 = vpop.permute.xlu0 %5999
        %6001 = vrot.lane.b32.xlu0 %v5935, 8
        %v6002 = vpop.permute.xlu0 %6001
        %6003 = vrot.lane.b32.xlu0 %v5937, 8
        %v6004 = vpop.permute.xlu0 %6003
        %6005 = vrot.lane.b32.xlu0 %v5940, 8
        %v6006 = vpop.permute.xlu0 %6005
        %6007 = vrot.lane.b32.xlu0 %v5942, 8
        %v6008 = vpop.permute.xlu0 %6007
        %6009 = vrot.lane.b32.xlu0 %v5945, 8
        %v6010 = vpop.permute.xlu0 %6009
        %6011 = vrot.lane.b32.xlu0 %v5947, 8
        %v6012 = vpop.permute.xlu0 %6011
        %6013 = vrot.lane.b32.xlu0 %v5950, 8
        %v6014 = vpop.permute.xlu0 %6013
        %6015 = vrot.lane.b32.xlu0 %v5952, 8
        %v6016 = vpop.permute.xlu0 %6015
        %6057 = vrot.lane.b32.xlu0 %v243, 24
        %v6058 = vpop.permute.xlu0 %6057
        %6059 = vrot.lane.b32.xlu0 %v244, 24
        %v6060 = vpop.permute.xlu0 %6059
        %6061 = vrot.lane.b32.xlu0 %v245, 24
        %v6062 = vpop.permute.xlu0 %6061
        %6063 = vrot.lane.b32.xlu0 %v246, 24
        %v6064 = vpop.permute.xlu0 %6063
        %6065 = vrot.lane.b32.xlu0 %v247, 24
        %v6066 = vpop.permute.xlu0 %6065
        %6067 = vrot.lane.b32.xlu0 %v248, 24
        %v6068 = vpop.permute.xlu0 %6067
        %6069 = vrot.lane.b32.xlu0 %v249, 24
        %v6070 = vpop.permute.xlu0 %6069
        %6071 = vrot.lane.b32.xlu0 %v250, 24
        %v6072 = vpop.permute.xlu0 %6071
        %6073 = vrot.lane.b32.xlu0 %v251, 24
        %v6074 = vpop.permute.xlu0 %6073
        %6075 = vrot.lane.b32.xlu0 %v252, 24
        %v6076 = vpop.permute.xlu0 %6075
        %6077 = vrot.lane.b32.xlu0 %v253, 24
        %v6078 = vpop.permute.xlu0 %6077
        %6079 = vrot.lane.b32.xlu0 %v254, 24
        %v6080 = vpop.permute.xlu0 %6079
        %6081 = vrot.lane.b32.xlu0 %v287, 24
        %v6082 = vpop.permute.xlu0 %6081
        %6083 = vrot.lane.b32.xlu0 %v288, 24
        %v6084 = vpop.permute.xlu0 %6083
        %6085 = vrot.lane.b32.xlu0 %v289, 24
        %v6086 = vpop.permute.xlu0 %6085
        %6087 = vrot.lane.b32.xlu0 %v290, 24
        %v6088 = vpop.permute.xlu0 %6087
        %6089 = vrot.lane.b32.xlu0 %v259, 24
        %v6090 = vpop.permute.xlu0 %6089
        %6091 = vrot.lane.b32.xlu0 %v260, 24
        %v6092 = vpop.permute.xlu0 %6091
        %6093 = vrot.lane.b32.xlu0 %v261, 24
        %v6094 = vpop.permute.xlu0 %6093
        %6095 = vrot.lane.b32.xlu0 %v262, 24
        %v6096 = vpop.permute.xlu0 %6095
        %6097 = vrot.lane.b32.xlu0 %v263, 24
        %v6098 = vpop.permute.xlu0 %6097
        %6099 = vrot.lane.b32.xlu0 %v264, 24
        %v6100 = vpop.permute.xlu0 %6099
        %6101 = vrot.lane.b32.xlu0 %v265, 24
        %v6102 = vpop.permute.xlu0 %6101
        %6103 = vrot.lane.b32.xlu0 %v266, 24
        %v6104 = vpop.permute.xlu0 %6103
        %6105 = vrot.lane.b32.xlu0 %v267, 24
        %v6106 = vpop.permute.xlu0 %6105
        %6107 = vrot.lane.b32.xlu0 %v268, 24
        %v6108 = vpop.permute.xlu0 %6107
        %6109 = vrot.lane.b32.xlu0 %v269, 24
        %v6110 = vpop.permute.xlu0 %6109
        %6111 = vrot.lane.b32.xlu0 %v270, 24
        %v6112 = vpop.permute.xlu0 %6111
        %6113 = vrot.lane.b32.xlu0 %v291, 24
        %v6114 = vpop.permute.xlu0 %6113
        %6115 = vrot.lane.b32.xlu0 %v292, 24
        %v6116 = vpop.permute.xlu0 %6115
        %6117 = vrot.lane.b32.xlu0 %v293, 24
        %v6118 = vpop.permute.xlu0 %6117
        %6119 = vrot.lane.b32.xlu0 %v294, 24
        %v6120 = vpop.permute.xlu0 %6119
        %v6157 = vrot.slane %v287, 1
        %v6158 = vrot.slane %v288, 1
        %v6159 = vsel %vm581, %v6157, %v6158
        %v6160 = vrot.slane %v295, 1
        %v6161 = vsel %vm581, %v6158, %v6160
        %v6162 = vrot.slane %v289, 1
        %v6163 = vrot.slane %v290, 1
        %v6164 = vsel %vm581, %v6162, %v6163
        %v6165 = vrot.slane %v296, 1
        %v6166 = vsel %vm581, %v6163, %v6165
        %v6167 = vrot.slane %v291, 1
        %v6168 = vrot.slane %v292, 1
        %v6169 = vsel %vm581, %v6167, %v6168
        %v6170 = vrot.slane %v297, 1
        %v6171 = vsel %vm581, %v6168, %v6170
        %v6172 = vrot.slane %v293, 1
        %v6173 = vrot.slane %v294, 1
        %v6174 = vsel %vm581, %v6172, %v6173
        %v6175 = vrot.slane %v298, 1
        %v6176 = vsel %vm581, %v6173, %v6175
        %6177 = vrot.lane.b32.xlu0 %v5709, 28
        %v6178 = vpop.permute.xlu0 %6177
        %6179 = vrot.lane.b32.xlu0 %v5711, 28
        %v6180 = vpop.permute.xlu0 %6179
        %6181 = vrot.lane.b32.xlu0 %v5714, 28
        %v6182 = vpop.permute.xlu0 %6181
        %6183 = vrot.lane.b32.xlu0 %v5716, 28
        %v6184 = vpop.permute.xlu0 %6183
        %6185 = vrot.lane.b32.xlu0 %v5719, 28
        %v6186 = vpop.permute.xlu0 %6185
        %6187 = vrot.lane.b32.xlu0 %v5721, 28
        %v6188 = vpop.permute.xlu0 %6187
        %6189 = vrot.lane.b32.xlu0 %v5724, 28
        %v6190 = vpop.permute.xlu0 %6189
        %6191 = vrot.lane.b32.xlu0 %v5726, 28
        %v6192 = vpop.permute.xlu0 %6191
        %6193 = vrot.lane.b32.xlu0 %v5729, 28
        %v6194 = vpop.permute.xlu0 %6193
        %6195 = vrot.lane.b32.xlu0 %v5731, 28
        %v6196 = vpop.permute.xlu0 %6195
        %6197 = vrot.lane.b32.xlu0 %v5734, 28
        %v6198 = vpop.permute.xlu0 %6197
        %6199 = vrot.lane.b32.xlu0 %v5736, 28
        %v6200 = vpop.permute.xlu0 %6199
        %6201 = vrot.lane.b32.xlu0 %v6159, 28
        %v6202 = vpop.permute.xlu0 %6201
        %6203 = vrot.lane.b32.xlu0 %v6161, 28
        %v6204 = vpop.permute.xlu0 %6203
        %6205 = vrot.lane.b32.xlu0 %v6164, 28
        %v6206 = vpop.permute.xlu0 %6205
        %6207 = vrot.lane.b32.xlu0 %v6166, 28
        %v6208 = vpop.permute.xlu0 %6207
        %6209 = vrot.lane.b32.xlu0 %v5749, 28
        %v6210 = vpop.permute.xlu0 %6209
        %6211 = vrot.lane.b32.xlu0 %v5751, 28
        %v6212 = vpop.permute.xlu0 %6211
        %6213 = vrot.lane.b32.xlu0 %v5754, 28
        %v6214 = vpop.permute.xlu0 %6213
        %6215 = vrot.lane.b32.xlu0 %v5756, 28
        %v6216 = vpop.permute.xlu0 %6215
        %6217 = vrot.lane.b32.xlu0 %v5759, 28
        %v6218 = vpop.permute.xlu0 %6217
        %6219 = vrot.lane.b32.xlu0 %v5761, 28
        %v6220 = vpop.permute.xlu0 %6219
        %6221 = vrot.lane.b32.xlu0 %v5764, 28
        %v6222 = vpop.permute.xlu0 %6221
        %6223 = vrot.lane.b32.xlu0 %v5766, 28
        %v6224 = vpop.permute.xlu0 %6223
        %6225 = vrot.lane.b32.xlu0 %v5769, 28
        %v6226 = vpop.permute.xlu0 %6225
        %6227 = vrot.lane.b32.xlu0 %v5771, 28
        %v6228 = vpop.permute.xlu0 %6227
        %6229 = vrot.lane.b32.xlu0 %v5774, 28
        %v6230 = vpop.permute.xlu0 %6229
        %6231 = vrot.lane.b32.xlu0 %v5776, 28
        %v6232 = vpop.permute.xlu0 %6231
        %6233 = vrot.lane.b32.xlu0 %v6169, 28
        %v6234 = vpop.permute.xlu0 %6233
        %6235 = vrot.lane.b32.xlu0 %v6171, 28
        %v6236 = vpop.permute.xlu0 %6235
        %6237 = vrot.lane.b32.xlu0 %v6174, 28
        %v6238 = vpop.permute.xlu0 %6237
        %6239 = vrot.lane.b32.xlu0 %v6176, 28
        %v6240 = vpop.permute.xlu0 %6239
        %v6273 = vrot.slane %v287, 2
        %v6274 = vrot.slane %v288, 2
        %v6275 = vsel %vm758, %v6273, %v6274
        %v6276 = vrot.slane %v295, 2
        %v6277 = vsel %vm758, %v6274, %v6276
        %v6278 = vrot.slane %v289, 2
        %v6279 = vrot.slane %v290, 2
        %v6280 = vsel %vm758, %v6278, %v6279
        %v6281 = vrot.slane %v296, 2
        %v6282 = vsel %vm758, %v6279, %v6281
        %v6283 = vrot.slane %v291, 2
        %v6284 = vrot.slane %v292, 2
        %v6285 = vsel %vm758, %v6283, %v6284
        %v6286 = vrot.slane %v297, 2
        %v6287 = vsel %vm758, %v6284, %v6286
        %v6288 = vrot.slane %v293, 2
        %v6289 = vrot.slane %v294, 2
        %v6290 = vsel %vm758, %v6288, %v6289
        %v6291 = vrot.slane %v298, 2
        %v6292 = vsel %vm758, %v6289, %v6291
        %6293 = vrot.lane.b32.xlu0 %v5885, 32
        %v6294 = vpop.permute.xlu0 %6293
        %6295 = vrot.lane.b32.xlu0 %v5887, 32
        %v6296 = vpop.permute.xlu0 %6295
        %6297 = vrot.lane.b32.xlu0 %v5890, 32
        %v6298 = vpop.permute.xlu0 %6297
        %6299 = vrot.lane.b32.xlu0 %v5892, 32
        %v6300 = vpop.permute.xlu0 %6299
        %6301 = vrot.lane.b32.xlu0 %v5895, 32
        %v6302 = vpop.permute.xlu0 %6301
        %6303 = vrot.lane.b32.xlu0 %v5897, 32
        %v6304 = vpop.permute.xlu0 %6303
        %6305 = vrot.lane.b32.xlu0 %v5900, 32
        %v6306 = vpop.permute.xlu0 %6305
        %6307 = vrot.lane.b32.xlu0 %v5902, 32
        %v6308 = vpop.permute.xlu0 %6307
        %6309 = vrot.lane.b32.xlu0 %v5905, 32
        %v6310 = vpop.permute.xlu0 %6309
        %6311 = vrot.lane.b32.xlu0 %v5907, 32
        %v6312 = vpop.permute.xlu0 %6311
        %6313 = vrot.lane.b32.xlu0 %v5910, 32
        %v6314 = vpop.permute.xlu0 %6313
        %6315 = vrot.lane.b32.xlu0 %v5912, 32
        %v6316 = vpop.permute.xlu0 %6315
        %6317 = vrot.lane.b32.xlu0 %v6275, 32
        %v6318 = vpop.permute.xlu0 %6317
        %6319 = vrot.lane.b32.xlu0 %v6277, 32
        %v6320 = vpop.permute.xlu0 %6319
        %6321 = vrot.lane.b32.xlu0 %v6280, 32
        %v6322 = vpop.permute.xlu0 %6321
        %6323 = vrot.lane.b32.xlu0 %v6282, 32
        %v6324 = vpop.permute.xlu0 %6323
        %6325 = vrot.lane.b32.xlu0 %v5925, 32
        %v6326 = vpop.permute.xlu0 %6325
        %6327 = vrot.lane.b32.xlu0 %v5927, 32
        %v6328 = vpop.permute.xlu0 %6327
        %6329 = vrot.lane.b32.xlu0 %v5930, 32
        %v6330 = vpop.permute.xlu0 %6329
        %6331 = vrot.lane.b32.xlu0 %v5932, 32
        %v6332 = vpop.permute.xlu0 %6331
        %6333 = vrot.lane.b32.xlu0 %v5935, 32
        %v6334 = vpop.permute.xlu0 %6333
        %6335 = vrot.lane.b32.xlu0 %v5937, 32
        %v6336 = vpop.permute.xlu0 %6335
        %6337 = vrot.lane.b32.xlu0 %v5940, 32
        %v6338 = vpop.permute.xlu0 %6337
        %6339 = vrot.lane.b32.xlu0 %v5942, 32
        %v6340 = vpop.permute.xlu0 %6339
        %6341 = vrot.lane.b32.xlu0 %v5945, 32
        %v6342 = vpop.permute.xlu0 %6341
        %6343 = vrot.lane.b32.xlu0 %v5947, 32
        %v6344 = vpop.permute.xlu0 %6343
        %6345 = vrot.lane.b32.xlu0 %v5950, 32
        %v6346 = vpop.permute.xlu0 %6345
        %6347 = vrot.lane.b32.xlu0 %v5952, 32
        %v6348 = vpop.permute.xlu0 %6347
        %6349 = vrot.lane.b32.xlu0 %v6285, 32
        %v6350 = vpop.permute.xlu0 %6349
        %6351 = vrot.lane.b32.xlu0 %v6287, 32
        %v6352 = vpop.permute.xlu0 %6351
        %6353 = vrot.lane.b32.xlu0 %v6290, 32
        %v6354 = vpop.permute.xlu0 %6353
        %6355 = vrot.lane.b32.xlu0 %v6292, 32
        %v6356 = vpop.permute.xlu0 %6355
        %6421 = vrot.lane.b32.xlu0 %v356, 36
        %v6422 = vpop.permute.xlu0 %6421
        %6423 = vrot.lane.b32.xlu0 %v357, 36
        %v6424 = vpop.permute.xlu0 %6423
        %6425 = vrot.lane.b32.xlu0 %v358, 36
        %v6426 = vpop.permute.xlu0 %6425
        %6427 = vrot.lane.b32.xlu0 %v359, 36
        %v6428 = vpop.permute.xlu0 %6427
        %6429 = vrot.lane.b32.xlu0 %v360, 36
        %v6430 = vpop.permute.xlu0 %6429
        %6431 = vrot.lane.b32.xlu0 %v361, 36
        %v6432 = vpop.permute.xlu0 %6431
        %6433 = vrot.lane.b32.xlu0 %v362, 36
        %v6434 = vpop.permute.xlu0 %6433
        %6435 = vrot.lane.b32.xlu0 %v363, 36
        %v6436 = vpop.permute.xlu0 %6435
        %6437 = vrot.lane.b32.xlu0 %v364, 36
        %v6438 = vpop.permute.xlu0 %6437
        %6439 = vrot.lane.b32.xlu0 %v365, 36
        %v6440 = vpop.permute.xlu0 %6439
        %6441 = vrot.lane.b32.xlu0 %v366, 36
        %v6442 = vpop.permute.xlu0 %6441
        %6443 = vrot.lane.b32.xlu0 %v367, 36
        %v6444 = vpop.permute.xlu0 %6443
        %6445 = vrot.lane.b32.xlu0 %v368, 36
        %v6446 = vpop.permute.xlu0 %6445
        %6447 = vrot.lane.b32.xlu0 %v369, 36
        %v6448 = vpop.permute.xlu0 %6447
        %6449 = vrot.lane.b32.xlu0 %v370, 36
        %v6450 = vpop.permute.xlu0 %6449
        %6451 = vrot.lane.b32.xlu0 %v371, 36
        %v6452 = vpop.permute.xlu0 %6451
        %6453 = vrot.lane.b32.xlu0 %v372, 36
        %v6454 = vpop.permute.xlu0 %6453
        %6455 = vrot.lane.b32.xlu0 %v373, 36
        %v6456 = vpop.permute.xlu0 %6455
        %6457 = vrot.lane.b32.xlu0 %v374, 36
        %v6458 = vpop.permute.xlu0 %6457
        %6459 = vrot.lane.b32.xlu0 %v375, 36
        %v6460 = vpop.permute.xlu0 %6459
        %6461 = vrot.lane.b32.xlu0 %v376, 36
        %v6462 = vpop.permute.xlu0 %6461
        %6463 = vrot.lane.b32.xlu0 %v377, 36
        %v6464 = vpop.permute.xlu0 %6463
        %6465 = vrot.lane.b32.xlu0 %v378, 36
        %v6466 = vpop.permute.xlu0 %6465
        %6467 = vrot.lane.b32.xlu0 %v379, 36
        %v6468 = vpop.permute.xlu0 %6467
        %6469 = vrot.lane.b32.xlu0 %v380, 36
        %v6470 = vpop.permute.xlu0 %6469
        %6471 = vrot.lane.b32.xlu0 %v381, 36
        %v6472 = vpop.permute.xlu0 %6471
        %6473 = vrot.lane.b32.xlu0 %v382, 36
        %v6474 = vpop.permute.xlu0 %6473
        %6475 = vrot.lane.b32.xlu0 %v383, 36
        %v6476 = vpop.permute.xlu0 %6475
        %6477 = vrot.lane.b32.xlu0 %v384, 36
        %v6478 = vpop.permute.xlu0 %6477
        %6479 = vrot.lane.b32.xlu0 %v385, 36
        %v6480 = vpop.permute.xlu0 %6479
        %6481 = vrot.lane.b32.xlu0 %v386, 36
        %v6482 = vpop.permute.xlu0 %6481
        %6483 = vrot.lane.b32.xlu0 %v387, 36
        %v6484 = vpop.permute.xlu0 %6483
        %v6533 = vrot.slane %v356, 1
        %v6534 = vrot.slane %v357, 1
        %v6535 = vsel %vm581, %v6533, %v6534
        %v6536 = vrot.slane %v388, 1
        %v6537 = vsel %vm581, %v6534, %v6536
        %v6538 = vrot.slane %v358, 1
        %v6539 = vrot.slane %v359, 1
        %v6540 = vsel %vm581, %v6538, %v6539
        %v6541 = vrot.slane %v389, 1
        %v6542 = vsel %vm581, %v6539, %v6541
        %v6543 = vrot.slane %v360, 1
        %v6544 = vrot.slane %v361, 1
        %v6545 = vsel %vm581, %v6543, %v6544
        %v6546 = vrot.slane %v390, 1
        %v6547 = vsel %vm581, %v6544, %v6546
        %v6548 = vrot.slane %v362, 1
        %v6549 = vrot.slane %v363, 1
        %v6550 = vsel %vm581, %v6548, %v6549
        %v6551 = vrot.slane %v391, 1
        %v6552 = vsel %vm581, %v6549, %v6551
        %v6553 = vrot.slane %v364, 1
        %v6554 = vrot.slane %v365, 1
        %v6555 = vsel %vm581, %v6553, %v6554
        %v6556 = vrot.slane %v392, 1
        %v6557 = vsel %vm581, %v6554, %v6556
        %v6558 = vrot.slane %v366, 1
        %v6559 = vrot.slane %v367, 1
        %v6560 = vsel %vm581, %v6558, %v6559
        %v6561 = vrot.slane %v393, 1
        %v6562 = vsel %vm581, %v6559, %v6561
        %v6563 = vrot.slane %v368, 1
        %v6564 = vrot.slane %v369, 1
        %v6565 = vsel %vm581, %v6563, %v6564
        %v6566 = vrot.slane %v394, 1
        %v6567 = vsel %vm581, %v6564, %v6566
        %v6568 = vrot.slane %v370, 1
        %v6569 = vrot.slane %v371, 1
        %v6570 = vsel %vm581, %v6568, %v6569
        %v6571 = vrot.slane %v395, 1
        %v6572 = vsel %vm581, %v6569, %v6571
        %v6573 = vrot.slane %v372, 1
        %v6574 = vrot.slane %v373, 1
        %v6575 = vsel %vm581, %v6573, %v6574
        %v6576 = vrot.slane %v396, 1
        %v6577 = vsel %vm581, %v6574, %v6576
        %v6578 = vrot.slane %v374, 1
        %v6579 = vrot.slane %v375, 1
        %v6580 = vsel %vm581, %v6578, %v6579
        %v6581 = vrot.slane %v397, 1
        %v6582 = vsel %vm581, %v6579, %v6581
        %v6583 = vrot.slane %v376, 1
        %v6584 = vrot.slane %v377, 1
        %v6585 = vsel %vm581, %v6583, %v6584
        %v6586 = vrot.slane %v398, 1
        %v6587 = vsel %vm581, %v6584, %v6586
        %v6588 = vrot.slane %v378, 1
        %v6589 = vrot.slane %v379, 1
        %v6590 = vsel %vm581, %v6588, %v6589
        %v6591 = vrot.slane %v399, 1
        %v6592 = vsel %vm581, %v6589, %v6591
        %v6593 = vrot.slane %v380, 1
        %v6594 = vrot.slane %v381, 1
        %v6595 = vsel %vm581, %v6593, %v6594
        %v6596 = vrot.slane %v400, 1
        %v6597 = vsel %vm581, %v6594, %v6596
        %v6598 = vrot.slane %v382, 1
        %v6599 = vrot.slane %v383, 1
        %v6600 = vsel %vm581, %v6598, %v6599
        %v6601 = vrot.slane %v401, 1
        %v6602 = vsel %vm581, %v6599, %v6601
        %v6603 = vrot.slane %v384, 1
        %v6604 = vrot.slane %v385, 1
        %v6605 = vsel %vm581, %v6603, %v6604
        %v6606 = vrot.slane %v402, 1
        %v6607 = vsel %vm581, %v6604, %v6606
        %v6608 = vrot.slane %v386, 1
        %v6609 = vrot.slane %v387, 1
        %v6610 = vsel %vm581, %v6608, %v6609
        %v6611 = vrot.slane %v403, 1
        %v6612 = vsel %vm581, %v6609, %v6611
        %6613 = vrot.lane.b32.xlu0 %v6535, 40
        %v6614 = vpop.permute.xlu0 %6613
        %6615 = vrot.lane.b32.xlu0 %v6537, 40
        %v6616 = vpop.permute.xlu0 %6615
        %6617 = vrot.lane.b32.xlu0 %v6540, 40
        %v6618 = vpop.permute.xlu0 %6617
        %6619 = vrot.lane.b32.xlu0 %v6542, 40
        %v6620 = vpop.permute.xlu0 %6619
        %6621 = vrot.lane.b32.xlu0 %v6545, 40
        %v6622 = vpop.permute.xlu0 %6621
        %6623 = vrot.lane.b32.xlu0 %v6547, 40
        %v6624 = vpop.permute.xlu0 %6623
        %6625 = vrot.lane.b32.xlu0 %v6550, 40
        %v6626 = vpop.permute.xlu0 %6625
        %6627 = vrot.lane.b32.xlu0 %v6552, 40
        %v6628 = vpop.permute.xlu0 %6627
        %6629 = vrot.lane.b32.xlu0 %v6555, 40
        %v6630 = vpop.permute.xlu0 %6629
        %6631 = vrot.lane.b32.xlu0 %v6557, 40
        %v6632 = vpop.permute.xlu0 %6631
        %6633 = vrot.lane.b32.xlu0 %v6560, 40
        %v6634 = vpop.permute.xlu0 %6633
        %6635 = vrot.lane.b32.xlu0 %v6562, 40
        %v6636 = vpop.permute.xlu0 %6635
        %6637 = vrot.lane.b32.xlu0 %v6565, 40
        %v6638 = vpop.permute.xlu0 %6637
        %6639 = vrot.lane.b32.xlu0 %v6567, 40
        %v6640 = vpop.permute.xlu0 %6639
        %6641 = vrot.lane.b32.xlu0 %v6570, 40
        %v6642 = vpop.permute.xlu0 %6641
        %6643 = vrot.lane.b32.xlu0 %v6572, 40
        %v6644 = vpop.permute.xlu0 %6643
        %6645 = vrot.lane.b32.xlu0 %v6575, 40
        %v6646 = vpop.permute.xlu0 %6645
        %6647 = vrot.lane.b32.xlu0 %v6577, 40
        %v6648 = vpop.permute.xlu0 %6647
        %6649 = vrot.lane.b32.xlu0 %v6580, 40
        %v6650 = vpop.permute.xlu0 %6649
        %6651 = vrot.lane.b32.xlu0 %v6582, 40
        %v6652 = vpop.permute.xlu0 %6651
        %6653 = vrot.lane.b32.xlu0 %v6585, 40
        %v6654 = vpop.permute.xlu0 %6653
        %6655 = vrot.lane.b32.xlu0 %v6587, 40
        %v6656 = vpop.permute.xlu0 %6655
        %6657 = vrot.lane.b32.xlu0 %v6590, 40
        %v6658 = vpop.permute.xlu0 %6657
        %6659 = vrot.lane.b32.xlu0 %v6592, 40
        %v6660 = vpop.permute.xlu0 %6659
        %6661 = vrot.lane.b32.xlu0 %v6595, 40
        %v6662 = vpop.permute.xlu0 %6661
        %6663 = vrot.lane.b32.xlu0 %v6597, 40
        %v6664 = vpop.permute.xlu0 %6663
        %6665 = vrot.lane.b32.xlu0 %v6600, 40
        %v6666 = vpop.permute.xlu0 %6665
        %6667 = vrot.lane.b32.xlu0 %v6602, 40
        %v6668 = vpop.permute.xlu0 %6667
        %6669 = vrot.lane.b32.xlu0 %v6605, 40
        %v6670 = vpop.permute.xlu0 %6669
        %6671 = vrot.lane.b32.xlu0 %v6607, 40
        %v6672 = vpop.permute.xlu0 %6671
        %6673 = vrot.lane.b32.xlu0 %v6610, 40
        %v6674 = vpop.permute.xlu0 %6673
        %6675 = vrot.lane.b32.xlu0 %v6612, 40
        %v6676 = vpop.permute.xlu0 %6675
        %v6709 = vrot.slane %v356, 2
        %v6710 = vrot.slane %v357, 2
        %v6711 = vsel %vm758, %v6709, %v6710
        %v6712 = vrot.slane %v388, 2
        %v6713 = vsel %vm758, %v6710, %v6712
        %v6714 = vrot.slane %v358, 2
        %v6715 = vrot.slane %v359, 2
        %v6716 = vsel %vm758, %v6714, %v6715
        %v6717 = vrot.slane %v389, 2
        %v6718 = vsel %vm758, %v6715, %v6717
        %v6719 = vrot.slane %v360, 2
        %v6720 = vrot.slane %v361, 2
        %v6721 = vsel %vm758, %v6719, %v6720
        %v6722 = vrot.slane %v390, 2
        %v6723 = vsel %vm758, %v6720, %v6722
        %v6724 = vrot.slane %v362, 2
        %v6725 = vrot.slane %v363, 2
        %v6726 = vsel %vm758, %v6724, %v6725
        %v6727 = vrot.slane %v391, 2
        %v6728 = vsel %vm758, %v6725, %v6727
        %v6729 = vrot.slane %v364, 2
        %v6730 = vrot.slane %v365, 2
        %v6731 = vsel %vm758, %v6729, %v6730
        %v6732 = vrot.slane %v392, 2
        %v6733 = vsel %vm758, %v6730, %v6732
        %v6734 = vrot.slane %v366, 2
        %v6735 = vrot.slane %v367, 2
        %v6736 = vsel %vm758, %v6734, %v6735
        %v6737 = vrot.slane %v393, 2
        %v6738 = vsel %vm758, %v6735, %v6737
        %v6739 = vrot.slane %v368, 2
        %v6740 = vrot.slane %v369, 2
        %v6741 = vsel %vm758, %v6739, %v6740
        %v6742 = vrot.slane %v394, 2
        %v6743 = vsel %vm758, %v6740, %v6742
        %v6744 = vrot.slane %v370, 2
        %v6745 = vrot.slane %v371, 2
        %v6746 = vsel %vm758, %v6744, %v6745
        %v6747 = vrot.slane %v395, 2
        %v6748 = vsel %vm758, %v6745, %v6747
        %v6749 = vrot.slane %v372, 2
        %v6750 = vrot.slane %v373, 2
        %v6751 = vsel %vm758, %v6749, %v6750
        %v6752 = vrot.slane %v396, 2
        %v6753 = vsel %vm758, %v6750, %v6752
        %v6754 = vrot.slane %v374, 2
        %v6755 = vrot.slane %v375, 2
        %v6756 = vsel %vm758, %v6754, %v6755
        %v6757 = vrot.slane %v397, 2
        %v6758 = vsel %vm758, %v6755, %v6757
        %v6759 = vrot.slane %v376, 2
        %v6760 = vrot.slane %v377, 2
        %v6761 = vsel %vm758, %v6759, %v6760
        %v6762 = vrot.slane %v398, 2
        %v6763 = vsel %vm758, %v6760, %v6762
        %v6764 = vrot.slane %v378, 2
        %v6765 = vrot.slane %v379, 2
        %v6766 = vsel %vm758, %v6764, %v6765
        %v6767 = vrot.slane %v399, 2
        %v6768 = vsel %vm758, %v6765, %v6767
        %v6769 = vrot.slane %v380, 2
        %v6770 = vrot.slane %v381, 2
        %v6771 = vsel %vm758, %v6769, %v6770
        %v6772 = vrot.slane %v400, 2
        %v6773 = vsel %vm758, %v6770, %v6772
        %v6774 = vrot.slane %v382, 2
        %v6775 = vrot.slane %v383, 2
        %v6776 = vsel %vm758, %v6774, %v6775
        %v6777 = vrot.slane %v401, 2
        %v6778 = vsel %vm758, %v6775, %v6777
        %v6779 = vrot.slane %v384, 2
        %v6780 = vrot.slane %v385, 2
        %v6781 = vsel %vm758, %v6779, %v6780
        %v6782 = vrot.slane %v402, 2
        %v6783 = vsel %vm758, %v6780, %v6782
        %v6784 = vrot.slane %v386, 2
        %v6785 = vrot.slane %v387, 2
        %v6786 = vsel %vm758, %v6784, %v6785
        %v6787 = vrot.slane %v403, 2
        %v6788 = vsel %vm758, %v6785, %v6787
        %6789 = vrot.lane.b32.xlu0 %v6711, 44
        %v6790 = vpop.permute.xlu0 %6789
        %6791 = vrot.lane.b32.xlu0 %v6713, 44
        %v6792 = vpop.permute.xlu0 %6791
        %6793 = vrot.lane.b32.xlu0 %v6716, 44
        %v6794 = vpop.permute.xlu0 %6793
        %6795 = vrot.lane.b32.xlu0 %v6718, 44
        %v6796 = vpop.permute.xlu0 %6795
        %6797 = vrot.lane.b32.xlu0 %v6721, 44
        %v6798 = vpop.permute.xlu0 %6797
        %6799 = vrot.lane.b32.xlu0 %v6723, 44
        %v6800 = vpop.permute.xlu0 %6799
        %6801 = vrot.lane.b32.xlu0 %v6726, 44
        %v6802 = vpop.permute.xlu0 %6801
        %6803 = vrot.lane.b32.xlu0 %v6728, 44
        %v6804 = vpop.permute.xlu0 %6803
        %6805 = vrot.lane.b32.xlu0 %v6731, 44
        %v6806 = vpop.permute.xlu0 %6805
        %6807 = vrot.lane.b32.xlu0 %v6733, 44
        %v6808 = vpop.permute.xlu0 %6807
        %6809 = vrot.lane.b32.xlu0 %v6736, 44
        %v6810 = vpop.permute.xlu0 %6809
        %6811 = vrot.lane.b32.xlu0 %v6738, 44
        %v6812 = vpop.permute.xlu0 %6811
        %6813 = vrot.lane.b32.xlu0 %v6741, 44
        %v6814 = vpop.permute.xlu0 %6813
        %6815 = vrot.lane.b32.xlu0 %v6743, 44
        %v6816 = vpop.permute.xlu0 %6815
        %6817 = vrot.lane.b32.xlu0 %v6746, 44
        %v6818 = vpop.permute.xlu0 %6817
        %6819 = vrot.lane.b32.xlu0 %v6748, 44
        %v6820 = vpop.permute.xlu0 %6819
        %6821 = vrot.lane.b32.xlu0 %v6751, 44
        %v6822 = vpop.permute.xlu0 %6821
        %6823 = vrot.lane.b32.xlu0 %v6753, 44
        %v6824 = vpop.permute.xlu0 %6823
        %6825 = vrot.lane.b32.xlu0 %v6756, 44
        %v6826 = vpop.permute.xlu0 %6825
        %6827 = vrot.lane.b32.xlu0 %v6758, 44
        %v6828 = vpop.permute.xlu0 %6827
        %6829 = vrot.lane.b32.xlu0 %v6761, 44
        %v6830 = vpop.permute.xlu0 %6829
        %6831 = vrot.lane.b32.xlu0 %v6763, 44
        %v6832 = vpop.permute.xlu0 %6831
        %6833 = vrot.lane.b32.xlu0 %v6766, 44
        %v6834 = vpop.permute.xlu0 %6833
        %6835 = vrot.lane.b32.xlu0 %v6768, 44
        %v6836 = vpop.permute.xlu0 %6835
        %6837 = vrot.lane.b32.xlu0 %v6771, 44
        %v6838 = vpop.permute.xlu0 %6837
        %6839 = vrot.lane.b32.xlu0 %v6773, 44
        %v6840 = vpop.permute.xlu0 %6839
        %6841 = vrot.lane.b32.xlu0 %v6776, 44
        %v6842 = vpop.permute.xlu0 %6841
        %6843 = vrot.lane.b32.xlu0 %v6778, 44
        %v6844 = vpop.permute.xlu0 %6843
        %6845 = vrot.lane.b32.xlu0 %v6781, 44
        %v6846 = vpop.permute.xlu0 %6845
        %6847 = vrot.lane.b32.xlu0 %v6783, 44
        %v6848 = vpop.permute.xlu0 %6847
        %6849 = vrot.lane.b32.xlu0 %v6786, 44
        %v6850 = vpop.permute.xlu0 %6849
        %6851 = vrot.lane.b32.xlu0 %v6788, 44
        %v6852 = vpop.permute.xlu0 %6851
        %6893 = vrot.lane.b32.xlu0 %v360, 60
        %v6894 = vpop.permute.xlu0 %6893
        %6895 = vrot.lane.b32.xlu0 %v361, 60
        %v6896 = vpop.permute.xlu0 %6895
        %6897 = vrot.lane.b32.xlu0 %v362, 60
        %v6898 = vpop.permute.xlu0 %6897
        %6899 = vrot.lane.b32.xlu0 %v363, 60
        %v6900 = vpop.permute.xlu0 %6899
        %6901 = vrot.lane.b32.xlu0 %v364, 60
        %v6902 = vpop.permute.xlu0 %6901
        %6903 = vrot.lane.b32.xlu0 %v365, 60
        %v6904 = vpop.permute.xlu0 %6903
        %6905 = vrot.lane.b32.xlu0 %v366, 60
        %v6906 = vpop.permute.xlu0 %6905
        %6907 = vrot.lane.b32.xlu0 %v367, 60
        %v6908 = vpop.permute.xlu0 %6907
        %6909 = vrot.lane.b32.xlu0 %v368, 60
        %v6910 = vpop.permute.xlu0 %6909
        %6911 = vrot.lane.b32.xlu0 %v369, 60
        %v6912 = vpop.permute.xlu0 %6911
        %6913 = vrot.lane.b32.xlu0 %v370, 60
        %v6914 = vpop.permute.xlu0 %6913
        %6915 = vrot.lane.b32.xlu0 %v371, 60
        %v6916 = vpop.permute.xlu0 %6915
        %6917 = vrot.lane.b32.xlu0 %v404, 60
        %v6918 = vpop.permute.xlu0 %6917
        %6919 = vrot.lane.b32.xlu0 %v405, 60
        %v6920 = vpop.permute.xlu0 %6919
        %6921 = vrot.lane.b32.xlu0 %v406, 60
        %v6922 = vpop.permute.xlu0 %6921
        %6923 = vrot.lane.b32.xlu0 %v407, 60
        %v6924 = vpop.permute.xlu0 %6923
        %6925 = vrot.lane.b32.xlu0 %v376, 60
        %v6926 = vpop.permute.xlu0 %6925
        %6927 = vrot.lane.b32.xlu0 %v377, 60
        %v6928 = vpop.permute.xlu0 %6927
        %6929 = vrot.lane.b32.xlu0 %v378, 60
        %v6930 = vpop.permute.xlu0 %6929
        %6931 = vrot.lane.b32.xlu0 %v379, 60
        %v6932 = vpop.permute.xlu0 %6931
        %6933 = vrot.lane.b32.xlu0 %v380, 60
        %v6934 = vpop.permute.xlu0 %6933
        %6935 = vrot.lane.b32.xlu0 %v381, 60
        %v6936 = vpop.permute.xlu0 %6935
        %6937 = vrot.lane.b32.xlu0 %v382, 60
        %v6938 = vpop.permute.xlu0 %6937
        %6939 = vrot.lane.b32.xlu0 %v383, 60
        %v6940 = vpop.permute.xlu0 %6939
        %6941 = vrot.lane.b32.xlu0 %v384, 60
        %v6942 = vpop.permute.xlu0 %6941
        %6943 = vrot.lane.b32.xlu0 %v385, 60
        %v6944 = vpop.permute.xlu0 %6943
        %6945 = vrot.lane.b32.xlu0 %v386, 60
        %v6946 = vpop.permute.xlu0 %6945
        %6947 = vrot.lane.b32.xlu0 %v387, 60
        %v6948 = vpop.permute.xlu0 %6947
        %6949 = vrot.lane.b32.xlu0 %v408, 60
        %v6950 = vpop.permute.xlu0 %6949
        %6951 = vrot.lane.b32.xlu0 %v409, 60
        %v6952 = vpop.permute.xlu0 %6951
        %6953 = vrot.lane.b32.xlu0 %v410, 60
        %v6954 = vpop.permute.xlu0 %6953
        %6955 = vrot.lane.b32.xlu0 %v411, 60
        %v6956 = vpop.permute.xlu0 %6955
        %v6989 = vsel %vm2432, %v239, %v5778
        %v6990 = vsel %vm2432, %v240, %v5780
        %v6991 = vsel %vm2432, %v241, %v5782
        %v6992 = vsel %vm2432, %v242, %v5784
        %v6993 = vsel %vm2432, %v243, %v5786
        %v6994 = vsel %vm2432, %v244, %v5788
        %v6995 = vsel %vm2432, %v245, %v5790
        %v6996 = vsel %vm2432, %v246, %v5792
        %v6997 = vsel %vm2432, %v247, %v5794
        %v6998 = vsel %vm2432, %v248, %v5796
        %v6999 = vsel %vm2432, %v249, %v5798
        %v7000 = vsel %vm2432, %v250, %v5800
        %v7001 = vsel %vm2432, %v251, %v5802
        %v7002 = vsel %vm2432, %v252, %v5804
        %v7003 = vsel %vm2432, %v253, %v5806
        %v7004 = vsel %vm2432, %v254, %v5808
        %v7005 = vsel %vm2432, %v255, %v5810
        %v7006 = vsel %vm2432, %v256, %v5812
        %v7007 = vsel %vm2432, %v257, %v5814
        %v7008 = vsel %vm2432, %v258, %v5816
        %v7009 = vsel %vm2432, %v259, %v5818
        %v7010 = vsel %vm2432, %v260, %v5820
        %v7011 = vsel %vm2432, %v261, %v5822
        %v7012 = vsel %vm2432, %v262, %v5824
        %v7013 = vsel %vm2432, %v263, %v5826
        %v7014 = vsel %vm2432, %v264, %v5828
        %v7015 = vsel %vm2432, %v265, %v5830
        %v7016 = vsel %vm2432, %v266, %v5832
        %v7017 = vsel %vm2432, %v267, %v5834
        %v7018 = vsel %vm2432, %v268, %v5836
        %v7019 = vsel %vm2432, %v269, %v5838
        %v7020 = vsel %vm2432, %v270, %v5840
        %v7021 = vsel %vm2465, %v6989, %v5954
        %v7022 = vsel %vm2465, %v6990, %v5956
        %v7023 = vsel %vm2465, %v6991, %v5958
        %v7024 = vsel %vm2465, %v6992, %v5960
        %v7025 = vsel %vm2465, %v6993, %v5962
        %v7026 = vsel %vm2465, %v6994, %v5964
        %v7027 = vsel %vm2465, %v6995, %v5966
        %v7028 = vsel %vm2465, %v6996, %v5968
        %v7029 = vsel %vm2465, %v6997, %v5970
        %v7030 = vsel %vm2465, %v6998, %v5972
        %v7031 = vsel %vm2465, %v6999, %v5974
        %v7032 = vsel %vm2465, %v7000, %v5976
        %v7033 = vsel %vm2465, %v7001, %v5978
        %v7034 = vsel %vm2465, %v7002, %v5980
        %v7035 = vsel %vm2465, %v7003, %v5982
        %v7036 = vsel %vm2465, %v7004, %v5984
        %v7037 = vsel %vm2465, %v7005, %v5986
        %v7038 = vsel %vm2465, %v7006, %v5988
        %v7039 = vsel %vm2465, %v7007, %v5990
        %v7040 = vsel %vm2465, %v7008, %v5992
        %v7041 = vsel %vm2465, %v7009, %v5994
        %v7042 = vsel %vm2465, %v7010, %v5996
        %v7043 = vsel %vm2465, %v7011, %v5998
        %v7044 = vsel %vm2465, %v7012, %v6000
        %v7045 = vsel %vm2465, %v7013, %v6002
        %v7046 = vsel %vm2465, %v7014, %v6004
        %v7047 = vsel %vm2465, %v7015, %v6006
        %v7048 = vsel %vm2465, %v7016, %v6008
        %v7049 = vsel %vm2465, %v7017, %v6010
        %v7050 = vsel %vm2465, %v7018, %v6012
        %v7051 = vsel %vm2465, %v7019, %v6014
        %v7052 = vsel %vm2465, %v7020, %v6016
        %v7053 = vsel %vm2498, %v7021, %v938
        %v7054 = vsel %vm2498, %v7022, %v940
        %v7055 = vsel %vm2498, %v7023, %v942
        %v7056 = vsel %vm2498, %v7024, %v944
        %v7057 = vsel %vm2498, %v7025, %v946
        %v7058 = vsel %vm2498, %v7026, %v948
        %v7059 = vsel %vm2498, %v7027, %v950
        %v7060 = vsel %vm2498, %v7028, %v952
        %v7061 = vsel %vm2498, %v7029, %v954
        %v7062 = vsel %vm2498, %v7030, %v956
        %v7063 = vsel %vm2498, %v7031, %v958
        %v7064 = vsel %vm2498, %v7032, %v960
        %v7065 = vsel %vm2498, %v7033, %v962
        %v7066 = vsel %vm2498, %v7034, %v964
        %v7067 = vsel %vm2498, %v7035, %v966
        %v7068 = vsel %vm2498, %v7036, %v968
        %v7069 = vsel %vm2498, %v7037, %v970
        %v7070 = vsel %vm2498, %v7038, %v972
        %v7071 = vsel %vm2498, %v7039, %v974
        %v7072 = vsel %vm2498, %v7040, %v976
        %v7073 = vsel %vm2498, %v7041, %v978
        %v7074 = vsel %vm2498, %v7042, %v980
        %v7075 = vsel %vm2498, %v7043, %v982
        %v7076 = vsel %vm2498, %v7044, %v984
        %v7077 = vsel %vm2498, %v7045, %v986
        %v7078 = vsel %vm2498, %v7046, %v988
        %v7079 = vsel %vm2498, %v7047, %v990
        %v7080 = vsel %vm2498, %v7048, %v992
        %v7081 = vsel %vm2498, %v7049, %v994
        %v7082 = vsel %vm2498, %v7050, %v996
        %v7083 = vsel %vm2498, %v7051, %v998
        %v7084 = vsel %vm2498, %v7052, %v1000
        %v7085 = vsel %vm2531, %v7053, %v1040
        %v7086 = vsel %vm2531, %v7054, %v1042
        %v7087 = vsel %vm2531, %v7055, %v1044
        %v7088 = vsel %vm2531, %v7056, %v1046
        %v7089 = vsel %vm2531, %v7057, %v1048
        %v7090 = vsel %vm2531, %v7058, %v1050
        %v7091 = vsel %vm2531, %v7059, %v1052
        %v7092 = vsel %vm2531, %v7060, %v1054
        %v7093 = vsel %vm2531, %v7061, %v1056
        %v7094 = vsel %vm2531, %v7062, %v1058
        %v7095 = vsel %vm2531, %v7063, %v1060
        %v7096 = vsel %vm2531, %v7064, %v1062
        %v7097 = vsel %vm2531, %v7065, %v1064
        %v7098 = vsel %vm2531, %v7066, %v1066
        %v7099 = vsel %vm2531, %v7067, %v1068
        %v7100 = vsel %vm2531, %v7068, %v1070
        %v7101 = vsel %vm2531, %v7069, %v1072
        %v7102 = vsel %vm2531, %v7070, %v1074
        %v7103 = vsel %vm2531, %v7071, %v1076
        %v7104 = vsel %vm2531, %v7072, %v1078
        %v7105 = vsel %vm2531, %v7073, %v1080
        %v7106 = vsel %vm2531, %v7074, %v1082
        %v7107 = vsel %vm2531, %v7075, %v1084
        %v7108 = vsel %vm2531, %v7076, %v1086
        %v7109 = vsel %vm2531, %v7077, %v1088
        %v7110 = vsel %vm2531, %v7078, %v1090
        %v7111 = vsel %vm2531, %v7079, %v1092
        %v7112 = vsel %vm2531, %v7080, %v1094
        %v7113 = vsel %vm2531, %v7081, %v1096
        %v7114 = vsel %vm2531, %v7082, %v1098
        %v7115 = vsel %vm2531, %v7083, %v1100
        %v7116 = vsel %vm2531, %v7084, %v1102
        %v7117 = vsel %vm2564, %v7085, %v1141
        %v7118 = vsel %vm2564, %v7086, %v1143
        %v7119 = vsel %vm2564, %v7087, %v1145
        %v7120 = vsel %vm2564, %v7088, %v1147
        %v7121 = vsel %vm2564, %v7089, %v1149
        %v7122 = vsel %vm2564, %v7090, %v1151
        %v7123 = vsel %vm2564, %v7091, %v1153
        %v7124 = vsel %vm2564, %v7092, %v1155
        %v7125 = vsel %vm2564, %v7093, %v1157
        %v7126 = vsel %vm2564, %v7094, %v1159
        %v7127 = vsel %vm2564, %v7095, %v1161
        %v7128 = vsel %vm2564, %v7096, %v1163
        %v7129 = vsel %vm2564, %v7097, %v1165
        %v7130 = vsel %vm2564, %v7098, %v1167
        %v7131 = vsel %vm2564, %v7099, %v1169
        %v7132 = vsel %vm2564, %v7100, %v1171
        %v7133 = vsel %vm2564, %v7101, %v1173
        %v7134 = vsel %vm2564, %v7102, %v1175
        %v7135 = vsel %vm2564, %v7103, %v1177
        %v7136 = vsel %vm2564, %v7104, %v1179
        %v7137 = vsel %vm2564, %v7105, %v1181
        %v7138 = vsel %vm2564, %v7106, %v1183
        %v7139 = vsel %vm2564, %v7107, %v1185
        %v7140 = vsel %vm2564, %v7108, %v1187
        %v7141 = vsel %vm2564, %v7109, %v1189
        %v7142 = vsel %vm2564, %v7110, %v1191
        %v7143 = vsel %vm2564, %v7111, %v1193
        %v7144 = vsel %vm2564, %v7112, %v1195
        %v7145 = vsel %vm2564, %v7113, %v1197
        %v7146 = vsel %vm2564, %v7114, %v1199
        %v7147 = vsel %vm2564, %v7115, %v1201
        %v7148 = vsel %vm2564, %v7116, %v1203
        %v7149 = vsel %vm2597, %v7117, %v6058
        %v7150 = vsel %vm2597, %v7118, %v6060
        %v7151 = vsel %vm2597, %v7119, %v6062
        %v7152 = vsel %vm2597, %v7120, %v6064
        %v7153 = vsel %vm2597, %v7121, %v6066
        %v7154 = vsel %vm2597, %v7122, %v6068
        %v7155 = vsel %vm2597, %v7123, %v6070
        %v7156 = vsel %vm2597, %v7124, %v6072
        %v7157 = vsel %vm2597, %v7125, %v6074
        %v7158 = vsel %vm2597, %v7126, %v6076
        %v7159 = vsel %vm2597, %v7127, %v6078
        %v7160 = vsel %vm2597, %v7128, %v6080
        %v7161 = vsel %vm2597, %v7129, %v6082
        %v7162 = vsel %vm2597, %v7130, %v6084
        %v7163 = vsel %vm2597, %v7131, %v6086
        %v7164 = vsel %vm2597, %v7132, %v6088
        %v7165 = vsel %vm2597, %v7133, %v6090
        %v7166 = vsel %vm2597, %v7134, %v6092
        %v7167 = vsel %vm2597, %v7135, %v6094
        %v7168 = vsel %vm2597, %v7136, %v6096
        %v7169 = vsel %vm2597, %v7137, %v6098
        %v7170 = vsel %vm2597, %v7138, %v6100
        %v7171 = vsel %vm2597, %v7139, %v6102
        %v7172 = vsel %vm2597, %v7140, %v6104
        %v7173 = vsel %vm2597, %v7141, %v6106
        %v7174 = vsel %vm2597, %v7142, %v6108
        %v7175 = vsel %vm2597, %v7143, %v6110
        %v7176 = vsel %vm2597, %v7144, %v6112
        %v7177 = vsel %vm2597, %v7145, %v6114
        %v7178 = vsel %vm2597, %v7146, %v6116
        %v7179 = vsel %vm2597, %v7147, %v6118
        %v7180 = vsel %vm2597, %v7148, %v6120
        %v7181 = vsel %vm2630, %v7149, %v6178
        %v7182 = vsel %vm2630, %v7150, %v6180
        %v7183 = vsel %vm2630, %v7151, %v6182
        %v7184 = vsel %vm2630, %v7152, %v6184
        %v7185 = vsel %vm2630, %v7153, %v6186
        %v7186 = vsel %vm2630, %v7154, %v6188
        %v7187 = vsel %vm2630, %v7155, %v6190
        %v7188 = vsel %vm2630, %v7156, %v6192
        %v7189 = vsel %vm2630, %v7157, %v6194
        %v7190 = vsel %vm2630, %v7158, %v6196
        %v7191 = vsel %vm2630, %v7159, %v6198
        %v7192 = vsel %vm2630, %v7160, %v6200
        %v7193 = vsel %vm2630, %v7161, %v6202
        %v7194 = vsel %vm2630, %v7162, %v6204
        %v7195 = vsel %vm2630, %v7163, %v6206
        %v7196 = vsel %vm2630, %v7164, %v6208
        %v7197 = vsel %vm2630, %v7165, %v6210
        %v7198 = vsel %vm2630, %v7166, %v6212
        %v7199 = vsel %vm2630, %v7167, %v6214
        %v7200 = vsel %vm2630, %v7168, %v6216
        %v7201 = vsel %vm2630, %v7169, %v6218
        %v7202 = vsel %vm2630, %v7170, %v6220
        %v7203 = vsel %vm2630, %v7171, %v6222
        %v7204 = vsel %vm2630, %v7172, %v6224
        %v7205 = vsel %vm2630, %v7173, %v6226
        %v7206 = vsel %vm2630, %v7174, %v6228
        %v7207 = vsel %vm2630, %v7175, %v6230
        %v7208 = vsel %vm2630, %v7176, %v6232
        %v7209 = vsel %vm2630, %v7177, %v6234
        %v7210 = vsel %vm2630, %v7178, %v6236
        %v7211 = vsel %vm2630, %v7179, %v6238
        %v7212 = vsel %vm2630, %v7180, %v6240
        %v7213 = vsel %vm2663, %v7181, %v6294
        %v7214 = vsel %vm2663, %v7182, %v6296
        %v7215 = vsel %vm2663, %v7183, %v6298
        %v7216 = vsel %vm2663, %v7184, %v6300
        %v7217 = vsel %vm2663, %v7185, %v6302
        %v7218 = vsel %vm2663, %v7186, %v6304
        %v7219 = vsel %vm2663, %v7187, %v6306
        %v7220 = vsel %vm2663, %v7188, %v6308
        %v7221 = vsel %vm2663, %v7189, %v6310
        %v7222 = vsel %vm2663, %v7190, %v6312
        %v7223 = vsel %vm2663, %v7191, %v6314
        %v7224 = vsel %vm2663, %v7192, %v6316
        %v7225 = vsel %vm2663, %v7193, %v6318
        %v7226 = vsel %vm2663, %v7194, %v6320
        %v7227 = vsel %vm2663, %v7195, %v6322
        %v7228 = vsel %vm2663, %v7196, %v6324
        %v7229 = vsel %vm2663, %v7197, %v6326
        %v7230 = vsel %vm2663, %v7198, %v6328
        %v7231 = vsel %vm2663, %v7199, %v6330
        %v7232 = vsel %vm2663, %v7200, %v6332
        %v7233 = vsel %vm2663, %v7201, %v6334
        %v7234 = vsel %vm2663, %v7202, %v6336
        %v7235 = vsel %vm2663, %v7203, %v6338
        %v7236 = vsel %vm2663, %v7204, %v6340
        %v7237 = vsel %vm2663, %v7205, %v6342
        %v7238 = vsel %vm2663, %v7206, %v6344
        %v7239 = vsel %vm2663, %v7207, %v6346
        %v7240 = vsel %vm2663, %v7208, %v6348
        %v7241 = vsel %vm2663, %v7209, %v6350
        %v7242 = vsel %vm2663, %v7210, %v6352
        %v7243 = vsel %vm2663, %v7211, %v6354
        %v7244 = vsel %vm2663, %v7212, %v6356
        %v7245 = vsel %vm2696, %v7213, %v6422
        %v7246 = vsel %vm2696, %v7214, %v6424
        %v7247 = vsel %vm2696, %v7215, %v6426
        %v7248 = vsel %vm2696, %v7216, %v6428
        %v7249 = vsel %vm2696, %v7217, %v6430
        %v7250 = vsel %vm2696, %v7218, %v6432
        %v7251 = vsel %vm2696, %v7219, %v6434
        %v7252 = vsel %vm2696, %v7220, %v6436
        %v7253 = vsel %vm2696, %v7221, %v6438
        %v7254 = vsel %vm2696, %v7222, %v6440
        %v7255 = vsel %vm2696, %v7223, %v6442
        %v7256 = vsel %vm2696, %v7224, %v6444
        %v7257 = vsel %vm2696, %v7225, %v6446
        %v7258 = vsel %vm2696, %v7226, %v6448
        %v7259 = vsel %vm2696, %v7227, %v6450
        %v7260 = vsel %vm2696, %v7228, %v6452
        %v7261 = vsel %vm2696, %v7229, %v6454
        %v7262 = vsel %vm2696, %v7230, %v6456
        %v7263 = vsel %vm2696, %v7231, %v6458
        %v7264 = vsel %vm2696, %v7232, %v6460
        %v7265 = vsel %vm2696, %v7233, %v6462
        %v7266 = vsel %vm2696, %v7234, %v6464
        %v7267 = vsel %vm2696, %v7235, %v6466
        %v7268 = vsel %vm2696, %v7236, %v6468
        %v7269 = vsel %vm2696, %v7237, %v6470
        %v7270 = vsel %vm2696, %v7238, %v6472
        %v7271 = vsel %vm2696, %v7239, %v6474
        %v7272 = vsel %vm2696, %v7240, %v6476
        %v7273 = vsel %vm2696, %v7241, %v6478
        %v7274 = vsel %vm2696, %v7242, %v6480
        %v7275 = vsel %vm2696, %v7243, %v6482
        %v7276 = vsel %vm2696, %v7244, %v6484
        %v7277 = vsel %vm2729, %v7245, %v6614
        %v7278 = vsel %vm2729, %v7246, %v6616
        %v7279 = vsel %vm2729, %v7247, %v6618
        %v7280 = vsel %vm2729, %v7248, %v6620
        %v7281 = vsel %vm2729, %v7249, %v6622
        %v7282 = vsel %vm2729, %v7250, %v6624
        %v7283 = vsel %vm2729, %v7251, %v6626
        %v7284 = vsel %vm2729, %v7252, %v6628
        %v7285 = vsel %vm2729, %v7253, %v6630
        %v7286 = vsel %vm2729, %v7254, %v6632
        %v7287 = vsel %vm2729, %v7255, %v6634
        %v7288 = vsel %vm2729, %v7256, %v6636
        %v7289 = vsel %vm2729, %v7257, %v6638
        %v7290 = vsel %vm2729, %v7258, %v6640
        %v7291 = vsel %vm2729, %v7259, %v6642
        %v7292 = vsel %vm2729, %v7260, %v6644
        %v7293 = vsel %vm2729, %v7261, %v6646
        %v7294 = vsel %vm2729, %v7262, %v6648
        %v7295 = vsel %vm2729, %v7263, %v6650
        %v7296 = vsel %vm2729, %v7264, %v6652
        %v7297 = vsel %vm2729, %v7265, %v6654
        %v7298 = vsel %vm2729, %v7266, %v6656
        %v7299 = vsel %vm2729, %v7267, %v6658
        %v7300 = vsel %vm2729, %v7268, %v6660
        %v7301 = vsel %vm2729, %v7269, %v6662
        %v7302 = vsel %vm2729, %v7270, %v6664
        %v7303 = vsel %vm2729, %v7271, %v6666
        %v7304 = vsel %vm2729, %v7272, %v6668
        %v7305 = vsel %vm2729, %v7273, %v6670
        %v7306 = vsel %vm2729, %v7274, %v6672
        %v7307 = vsel %vm2729, %v7275, %v6674
        %v7308 = vsel %vm2729, %v7276, %v6676
        %v7309 = vsel %vm2762, %v7277, %v6790
        %v7310 = vsel %vm2762, %v7278, %v6792
        %v7311 = vsel %vm2762, %v7279, %v6794
        %v7312 = vsel %vm2762, %v7280, %v6796
        %v7313 = vsel %vm2762, %v7281, %v6798
        %v7314 = vsel %vm2762, %v7282, %v6800
        %v7315 = vsel %vm2762, %v7283, %v6802
        %v7316 = vsel %vm2762, %v7284, %v6804
        %v7317 = vsel %vm2762, %v7285, %v6806
        %v7318 = vsel %vm2762, %v7286, %v6808
        %v7319 = vsel %vm2762, %v7287, %v6810
        %v7320 = vsel %vm2762, %v7288, %v6812
        %v7321 = vsel %vm2762, %v7289, %v6814
        %v7322 = vsel %vm2762, %v7290, %v6816
        %v7323 = vsel %vm2762, %v7291, %v6818
        %v7324 = vsel %vm2762, %v7292, %v6820
        %v7325 = vsel %vm2762, %v7293, %v6822
        %v7326 = vsel %vm2762, %v7294, %v6824
        %v7327 = vsel %vm2762, %v7295, %v6826
        %v7328 = vsel %vm2762, %v7296, %v6828
        %v7329 = vsel %vm2762, %v7297, %v6830
        %v7330 = vsel %vm2762, %v7298, %v6832
        %v7331 = vsel %vm2762, %v7299, %v6834
        %v7332 = vsel %vm2762, %v7300, %v6836
        %v7333 = vsel %vm2762, %v7301, %v6838
        %v7334 = vsel %vm2762, %v7302, %v6840
        %v7335 = vsel %vm2762, %v7303, %v6842
        %v7336 = vsel %vm2762, %v7304, %v6844
        %v7337 = vsel %vm2762, %v7305, %v6846
        %v7338 = vsel %vm2762, %v7306, %v6848
        %v7339 = vsel %vm2762, %v7307, %v6850
        %v7340 = vsel %vm2762, %v7308, %v6852
        %v7341 = vsel %vm2795, %v7309, %v2036
        %v7342 = vsel %vm2795, %v7310, %v2038
        %v7343 = vsel %vm2795, %v7311, %v2040
        %v7344 = vsel %vm2795, %v7312, %v2042
        %v7345 = vsel %vm2795, %v7313, %v2044
        %v7346 = vsel %vm2795, %v7314, %v2046
        %v7347 = vsel %vm2795, %v7315, %v2048
        %v7348 = vsel %vm2795, %v7316, %v2050
        %v7349 = vsel %vm2795, %v7317, %v2052
        %v7350 = vsel %vm2795, %v7318, %v2054
        %v7351 = vsel %vm2795, %v7319, %v2056
        %v7352 = vsel %vm2795, %v7320, %v2058
        %v7353 = vsel %vm2795, %v7321, %v2060
        %v7354 = vsel %vm2795, %v7322, %v2062
        %v7355 = vsel %vm2795, %v7323, %v2064
        %v7356 = vsel %vm2795, %v7324, %v2066
        %v7357 = vsel %vm2795, %v7325, %v2068
        %v7358 = vsel %vm2795, %v7326, %v2070
        %v7359 = vsel %vm2795, %v7327, %v2072
        %v7360 = vsel %vm2795, %v7328, %v2074
        %v7361 = vsel %vm2795, %v7329, %v2076
        %v7362 = vsel %vm2795, %v7330, %v2078
        %v7363 = vsel %vm2795, %v7331, %v2080
        %v7364 = vsel %vm2795, %v7332, %v2082
        %v7365 = vsel %vm2795, %v7333, %v2084
        %v7366 = vsel %vm2795, %v7334, %v2086
        %v7367 = vsel %vm2795, %v7335, %v2088
        %v7368 = vsel %vm2795, %v7336, %v2090
        %v7369 = vsel %vm2795, %v7337, %v2092
        %v7370 = vsel %vm2795, %v7338, %v2094
        %v7371 = vsel %vm2795, %v7339, %v2096
        %v7372 = vsel %vm2795, %v7340, %v2098
        %v7373 = vsel %vm2828, %v7341, %v2138
        %v7374 = vsel %vm2828, %v7342, %v2140
        %v7375 = vsel %vm2828, %v7343, %v2142
        %v7376 = vsel %vm2828, %v7344, %v2144
        %v7377 = vsel %vm2828, %v7345, %v2146
        %v7378 = vsel %vm2828, %v7346, %v2148
        %v7379 = vsel %vm2828, %v7347, %v2150
        %v7380 = vsel %vm2828, %v7348, %v2152
        %v7381 = vsel %vm2828, %v7349, %v2154
        %v7382 = vsel %vm2828, %v7350, %v2156
        %v7383 = vsel %vm2828, %v7351, %v2158
        %v7384 = vsel %vm2828, %v7352, %v2160
        %v7385 = vsel %vm2828, %v7353, %v2162
        %v7386 = vsel %vm2828, %v7354, %v2164
        %v7387 = vsel %vm2828, %v7355, %v2166
        %v7388 = vsel %vm2828, %v7356, %v2168
        %v7389 = vsel %vm2828, %v7357, %v2170
        %v7390 = vsel %vm2828, %v7358, %v2172
        %v7391 = vsel %vm2828, %v7359, %v2174
        %v7392 = vsel %vm2828, %v7360, %v2176
        %v7393 = vsel %vm2828, %v7361, %v2178
        %v7394 = vsel %vm2828, %v7362, %v2180
        %v7395 = vsel %vm2828, %v7363, %v2182
        %v7396 = vsel %vm2828, %v7364, %v2184
        %v7397 = vsel %vm2828, %v7365, %v2186
        %v7398 = vsel %vm2828, %v7366, %v2188
        %v7399 = vsel %vm2828, %v7367, %v2190
        %v7400 = vsel %vm2828, %v7368, %v2192
        %v7401 = vsel %vm2828, %v7369, %v2194
        %v7402 = vsel %vm2828, %v7370, %v2196
        %v7403 = vsel %vm2828, %v7371, %v2198
        %v7404 = vsel %vm2828, %v7372, %v2200
        %v7405 = vsel %vm2861, %v7373, %v2239
        %v7406 = vsel %vm2861, %v7374, %v2241
        %v7407 = vsel %vm2861, %v7375, %v2243
        %v7408 = vsel %vm2861, %v7376, %v2245
        %v7409 = vsel %vm2861, %v7377, %v2247
        %v7410 = vsel %vm2861, %v7378, %v2249
        %v7411 = vsel %vm2861, %v7379, %v2251
        %v7412 = vsel %vm2861, %v7380, %v2253
        %v7413 = vsel %vm2861, %v7381, %v2255
        %v7414 = vsel %vm2861, %v7382, %v2257
        %v7415 = vsel %vm2861, %v7383, %v2259
        %v7416 = vsel %vm2861, %v7384, %v2261
        %v7417 = vsel %vm2861, %v7385, %v2263
        %v7418 = vsel %vm2861, %v7386, %v2265
        %v7419 = vsel %vm2861, %v7387, %v2267
        %v7420 = vsel %vm2861, %v7388, %v2269
        %v7421 = vsel %vm2861, %v7389, %v2271
        %v7422 = vsel %vm2861, %v7390, %v2273
        %v7423 = vsel %vm2861, %v7391, %v2275
        %v7424 = vsel %vm2861, %v7392, %v2277
        %v7425 = vsel %vm2861, %v7393, %v2279
        %v7426 = vsel %vm2861, %v7394, %v2281
        %v7427 = vsel %vm2861, %v7395, %v2283
        %v7428 = vsel %vm2861, %v7396, %v2285
        %v7429 = vsel %vm2861, %v7397, %v2287
        %v7430 = vsel %vm2861, %v7398, %v2289
        %v7431 = vsel %vm2861, %v7399, %v2291
        %v7432 = vsel %vm2861, %v7400, %v2293
        %v7433 = vsel %vm2861, %v7401, %v2295
        %v7434 = vsel %vm2861, %v7402, %v2297
        %v7435 = vsel %vm2861, %v7403, %v2299
        %v7436 = vsel %vm2861, %v7404, %v2301
        %v7437 = vsel %vm2894, %v7405, %v6894
        %v7438 = vsel %vm2894, %v7406, %v6896
        %v7439 = vsel %vm2894, %v7407, %v6898
        %v7440 = vsel %vm2894, %v7408, %v6900
        %v7441 = vsel %vm2894, %v7409, %v6902
        %v7442 = vsel %vm2894, %v7410, %v6904
        %v7443 = vsel %vm2894, %v7411, %v6906
        %v7444 = vsel %vm2894, %v7412, %v6908
        %v7445 = vsel %vm2894, %v7413, %v6910
        %v7446 = vsel %vm2894, %v7414, %v6912
        %v7447 = vsel %vm2894, %v7415, %v6914
        %v7448 = vsel %vm2894, %v7416, %v6916
        %v7449 = vsel %vm2894, %v7417, %v6918
        %v7450 = vsel %vm2894, %v7418, %v6920
        %v7451 = vsel %vm2894, %v7419, %v6922
        %v7452 = vsel %vm2894, %v7420, %v6924
        %v7453 = vsel %vm2894, %v7421, %v6926
        %v7454 = vsel %vm2894, %v7422, %v6928
        %v7455 = vsel %vm2894, %v7423, %v6930
        %v7456 = vsel %vm2894, %v7424, %v6932
        %v7457 = vsel %vm2894, %v7425, %v6934
        %v7458 = vsel %vm2894, %v7426, %v6936
        %v7459 = vsel %vm2894, %v7427, %v6938
        %v7460 = vsel %vm2894, %v7428, %v6940
        %v7461 = vsel %vm2894, %v7429, %v6942
        %v7462 = vsel %vm2894, %v7430, %v6944
        %v7463 = vsel %vm2894, %v7431, %v6946
        %v7464 = vsel %vm2894, %v7432, %v6948
        %v7465 = vsel %vm2894, %v7433, %v6950
        %v7466 = vsel %vm2894, %v7434, %v6952
        %v7467 = vsel %vm2894, %v7435, %v6954
        %v7468 = vsel %vm2894, %v7436, %v6956
        %v7473 = vrot.slane %v404, 1
        %v7474 = vrot.slane %v405, 1
        %v7475 = vsel %vm581, %v7473, %v7474
        %v7476 = vrot.slane %v412, 1
        %v7477 = vsel %vm581, %v7474, %v7476
        %v7478 = vrot.slane %v406, 1
        %v7479 = vrot.slane %v407, 1
        %v7480 = vsel %vm581, %v7478, %v7479
        %v7481 = vrot.slane %v413, 1
        %v7482 = vsel %vm581, %v7479, %v7481
        %v7483 = vrot.slane %v408, 1
        %v7484 = vrot.slane %v409, 1
        %v7485 = vsel %vm581, %v7483, %v7484
        %v7486 = vrot.slane %v414, 1
        %v7487 = vsel %vm581, %v7484, %v7486
        %v7488 = vrot.slane %v410, 1
        %v7489 = vrot.slane %v411, 1
        %v7490 = vsel %vm581, %v7488, %v7489
        %v7491 = vrot.slane %v415, 1
        %v7492 = vsel %vm581, %v7489, %v7491
        %7493 = vrot.lane.b32.xlu0 %v6545, 4
        %v7494 = vpop.permute.xlu0 %7493
        %7495 = vrot.lane.b32.xlu0 %v6547, 4
        %v7496 = vpop.permute.xlu0 %7495
        %7497 = vrot.lane.b32.xlu0 %v6546, 4
        %v7498 = vpop.permute.xlu0 %7497
        %7499 = vrot.lane.b32.xlu0 %v6550, 4
        %v7500 = vpop.permute.xlu0 %7499
        %7501 = vrot.lane.b32.xlu0 %v6552, 4
        %v7502 = vpop.permute.xlu0 %7501
        %7503 = vrot.lane.b32.xlu0 %v6551, 4
        %v7504 = vpop.permute.xlu0 %7503
        %7505 = vrot.lane.b32.xlu0 %v6555, 4
        %v7506 = vpop.permute.xlu0 %7505
        %7507 = vrot.lane.b32.xlu0 %v6557, 4
        %v7508 = vpop.permute.xlu0 %7507
        %7509 = vrot.lane.b32.xlu0 %v6556, 4
        %v7510 = vpop.permute.xlu0 %7509
        %7511 = vrot.lane.b32.xlu0 %v6560, 4
        %v7512 = vpop.permute.xlu0 %7511
        %7513 = vrot.lane.b32.xlu0 %v6562, 4
        %v7514 = vpop.permute.xlu0 %7513
        %7515 = vrot.lane.b32.xlu0 %v6561, 4
        %v7516 = vpop.permute.xlu0 %7515
        %7517 = vrot.lane.b32.xlu0 %v6565, 4
        %v7518 = vpop.permute.xlu0 %7517
        %7519 = vrot.lane.b32.xlu0 %v6567, 4
        %v7520 = vpop.permute.xlu0 %7519
        %7521 = vrot.lane.b32.xlu0 %v6566, 4
        %v7522 = vpop.permute.xlu0 %7521
        %7523 = vrot.lane.b32.xlu0 %v6570, 4
        %v7524 = vpop.permute.xlu0 %7523
        %7525 = vrot.lane.b32.xlu0 %v6572, 4
        %v7526 = vpop.permute.xlu0 %7525
        %7527 = vrot.lane.b32.xlu0 %v6571, 4
        %v7528 = vpop.permute.xlu0 %7527
        %7529 = vrot.lane.b32.xlu0 %v7475, 4
        %v7530 = vpop.permute.xlu0 %7529
        %7531 = vrot.lane.b32.xlu0 %v7477, 4
        %v7532 = vpop.permute.xlu0 %7531
        %7533 = vrot.lane.b32.xlu0 %v7476, 4
        %v7534 = vpop.permute.xlu0 %7533
        %7535 = vrot.lane.b32.xlu0 %v7480, 4
        %v7536 = vpop.permute.xlu0 %7535
        %7537 = vrot.lane.b32.xlu0 %v7482, 4
        %v7538 = vpop.permute.xlu0 %7537
        %7539 = vrot.lane.b32.xlu0 %v7481, 4
        %v7540 = vpop.permute.xlu0 %7539
        %7541 = vrot.lane.b32.xlu0 %v6585, 4
        %v7542 = vpop.permute.xlu0 %7541
        %7543 = vrot.lane.b32.xlu0 %v6587, 4
        %v7544 = vpop.permute.xlu0 %7543
        %7545 = vrot.lane.b32.xlu0 %v6586, 4
        %v7546 = vpop.permute.xlu0 %7545
        %7547 = vrot.lane.b32.xlu0 %v6590, 4
        %v7548 = vpop.permute.xlu0 %7547
        %7549 = vrot.lane.b32.xlu0 %v6592, 4
        %v7550 = vpop.permute.xlu0 %7549
        %7551 = vrot.lane.b32.xlu0 %v6591, 4
        %v7552 = vpop.permute.xlu0 %7551
        %7553 = vrot.lane.b32.xlu0 %v6595, 4
        %v7554 = vpop.permute.xlu0 %7553
        %7555 = vrot.lane.b32.xlu0 %v6597, 4
        %v7556 = vpop.permute.xlu0 %7555
        %7557 = vrot.lane.b32.xlu0 %v6596, 4
        %v7558 = vpop.permute.xlu0 %7557
        %7559 = vrot.lane.b32.xlu0 %v6600, 4
        %v7560 = vpop.permute.xlu0 %7559
        %7561 = vrot.lane.b32.xlu0 %v6602, 4
        %v7562 = vpop.permute.xlu0 %7561
        %7563 = vrot.lane.b32.xlu0 %v6601, 4
        %v7564 = vpop.permute.xlu0 %7563
        %7565 = vrot.lane.b32.xlu0 %v6605, 4
        %v7566 = vpop.permute.xlu0 %7565
        %7567 = vrot.lane.b32.xlu0 %v6607, 4
        %v7568 = vpop.permute.xlu0 %7567
        %7569 = vrot.lane.b32.xlu0 %v6606, 4
        %v7570 = vpop.permute.xlu0 %7569
        %7571 = vrot.lane.b32.xlu0 %v6610, 4
        %v7572 = vpop.permute.xlu0 %7571
        %7573 = vrot.lane.b32.xlu0 %v6612, 4
        %v7574 = vpop.permute.xlu0 %7573
        %7575 = vrot.lane.b32.xlu0 %v6611, 4
        %v7576 = vpop.permute.xlu0 %7575
        %7577 = vrot.lane.b32.xlu0 %v7485, 4
        %v7578 = vpop.permute.xlu0 %7577
        %7579 = vrot.lane.b32.xlu0 %v7487, 4
        %v7580 = vpop.permute.xlu0 %7579
        %7581 = vrot.lane.b32.xlu0 %v7486, 4
        %v7582 = vpop.permute.xlu0 %7581
        %7583 = vrot.lane.b32.xlu0 %v7490, 4
        %v7584 = vpop.permute.xlu0 %7583
        %7585 = vrot.lane.b32.xlu0 %v7492, 4
        %v7586 = vpop.permute.xlu0 %7585
        %7587 = vrot.lane.b32.xlu0 %v7491, 4
        %v7588 = vpop.permute.xlu0 %7587
        %v7669 = vrot.slane %v473, 7
        %v7670 = vrot.slane %v474, 7
        %v7671 = vsel %vm3109, %v7669, %v7670
        %v7672 = vrot.slane %v475, 7
        %v7673 = vrot.slane %v476, 7
        %v7674 = vsel %vm3109, %v7672, %v7673
        %v7675 = vrot.slane %v477, 7
        %v7676 = vrot.slane %v478, 7
        %v7677 = vsel %vm3109, %v7675, %v7676
        %v7678 = vrot.slane %v479, 7
        %v7679 = vrot.slane %v480, 7
        %v7680 = vsel %vm3109, %v7678, %v7679
        %v7681 = vrot.slane %v481, 7
        %v7682 = vrot.slane %v482, 7
        %v7683 = vsel %vm3109, %v7681, %v7682
        %v7684 = vrot.slane %v483, 7
        %v7685 = vrot.slane %v484, 7
        %v7686 = vsel %vm3109, %v7684, %v7685
        %v7687 = vrot.slane %v485, 7
        %v7688 = vrot.slane %v486, 7
        %v7689 = vsel %vm3109, %v7687, %v7688
        %v7690 = vrot.slane %v487, 7
        %v7691 = vrot.slane %v488, 7
        %v7692 = vsel %vm3109, %v7690, %v7691
        %v7693 = vrot.slane %v489, 7
        %v7694 = vrot.slane %v490, 7
        %v7695 = vsel %vm3109, %v7693, %v7694
        %v7696 = vrot.slane %v491, 7
        %v7697 = vrot.slane %v492, 7
        %v7698 = vsel %vm3109, %v7696, %v7697
        %v7699 = vrot.slane %v493, 7
        %v7700 = vrot.slane %v494, 7
        %v7701 = vsel %vm3109, %v7699, %v7700
        %v7702 = vrot.slane %v495, 7
        %v7703 = vrot.slane %v496, 7
        %v7704 = vsel %vm3109, %v7702, %v7703
        %v7705 = vrot.slane %v497, 7
        %v7706 = vrot.slane %v498, 7
        %v7707 = vsel %vm3109, %v7705, %v7706
        %v7708 = vrot.slane %v499, 7
        %v7709 = vrot.slane %v500, 7
        %v7710 = vsel %vm3109, %v7708, %v7709
        %v7711 = vrot.slane %v501, 7
        %v7712 = vrot.slane %v502, 7
        %v7713 = vsel %vm3109, %v7711, %v7712
        %v7714 = vrot.slane %v503, 7
        %v7715 = vrot.slane %v504, 7
        %v7716 = vsel %vm3109, %v7714, %v7715
        %7717 = vrot.lane.b32.xlu0 %v7669, 8
        %v7718 = vpop.permute.xlu0 %7717
        %7719 = vrot.lane.b32.xlu0 %v7671, 8
        %v7720 = vpop.permute.xlu0 %7719
        %7721 = vrot.lane.b32.xlu0 %v7670, 8
        %v7722 = vpop.permute.xlu0 %7721
        %7723 = vrot.lane.b32.xlu0 %v7672, 8
        %v7724 = vpop.permute.xlu0 %7723
        %7725 = vrot.lane.b32.xlu0 %v7674, 8
        %v7726 = vpop.permute.xlu0 %7725
        %7727 = vrot.lane.b32.xlu0 %v7673, 8
        %v7728 = vpop.permute.xlu0 %7727
        %7729 = vrot.lane.b32.xlu0 %v7675, 8
        %v7730 = vpop.permute.xlu0 %7729
        %7731 = vrot.lane.b32.xlu0 %v7677, 8
        %v7732 = vpop.permute.xlu0 %7731
        %7733 = vrot.lane.b32.xlu0 %v7676, 8
        %v7734 = vpop.permute.xlu0 %7733
        %7735 = vrot.lane.b32.xlu0 %v7678, 8
        %v7736 = vpop.permute.xlu0 %7735
        %7737 = vrot.lane.b32.xlu0 %v7680, 8
        %v7738 = vpop.permute.xlu0 %7737
        %7739 = vrot.lane.b32.xlu0 %v7679, 8
        %v7740 = vpop.permute.xlu0 %7739
        %7741 = vrot.lane.b32.xlu0 %v7681, 8
        %v7742 = vpop.permute.xlu0 %7741
        %7743 = vrot.lane.b32.xlu0 %v7683, 8
        %v7744 = vpop.permute.xlu0 %7743
        %7745 = vrot.lane.b32.xlu0 %v7682, 8
        %v7746 = vpop.permute.xlu0 %7745
        %7747 = vrot.lane.b32.xlu0 %v7684, 8
        %v7748 = vpop.permute.xlu0 %7747
        %7749 = vrot.lane.b32.xlu0 %v7686, 8
        %v7750 = vpop.permute.xlu0 %7749
        %7751 = vrot.lane.b32.xlu0 %v7685, 8
        %v7752 = vpop.permute.xlu0 %7751
        %7753 = vrot.lane.b32.xlu0 %v7687, 8
        %v7754 = vpop.permute.xlu0 %7753
        %7755 = vrot.lane.b32.xlu0 %v7689, 8
        %v7756 = vpop.permute.xlu0 %7755
        %7757 = vrot.lane.b32.xlu0 %v7688, 8
        %v7758 = vpop.permute.xlu0 %7757
        %7759 = vrot.lane.b32.xlu0 %v7690, 8
        %v7760 = vpop.permute.xlu0 %7759
        %7761 = vrot.lane.b32.xlu0 %v7692, 8
        %v7762 = vpop.permute.xlu0 %7761
        %7763 = vrot.lane.b32.xlu0 %v7691, 8
        %v7764 = vpop.permute.xlu0 %7763
        %7765 = vrot.lane.b32.xlu0 %v7693, 8
        %v7766 = vpop.permute.xlu0 %7765
        %7767 = vrot.lane.b32.xlu0 %v7695, 8
        %v7768 = vpop.permute.xlu0 %7767
        %7769 = vrot.lane.b32.xlu0 %v7694, 8
        %v7770 = vpop.permute.xlu0 %7769
        %7771 = vrot.lane.b32.xlu0 %v7696, 8
        %v7772 = vpop.permute.xlu0 %7771
        %7773 = vrot.lane.b32.xlu0 %v7698, 8
        %v7774 = vpop.permute.xlu0 %7773
        %7775 = vrot.lane.b32.xlu0 %v7697, 8
        %v7776 = vpop.permute.xlu0 %7775
        %7777 = vrot.lane.b32.xlu0 %v7699, 8
        %v7778 = vpop.permute.xlu0 %7777
        %7779 = vrot.lane.b32.xlu0 %v7701, 8
        %v7780 = vpop.permute.xlu0 %7779
        %7781 = vrot.lane.b32.xlu0 %v7700, 8
        %v7782 = vpop.permute.xlu0 %7781
        %7783 = vrot.lane.b32.xlu0 %v7702, 8
        %v7784 = vpop.permute.xlu0 %7783
        %7785 = vrot.lane.b32.xlu0 %v7704, 8
        %v7786 = vpop.permute.xlu0 %7785
        %7787 = vrot.lane.b32.xlu0 %v7703, 8
        %v7788 = vpop.permute.xlu0 %7787
        %7789 = vrot.lane.b32.xlu0 %v7705, 8
        %v7790 = vpop.permute.xlu0 %7789
        %7791 = vrot.lane.b32.xlu0 %v7707, 8
        %v7792 = vpop.permute.xlu0 %7791
        %7793 = vrot.lane.b32.xlu0 %v7706, 8
        %v7794 = vpop.permute.xlu0 %7793
        %7795 = vrot.lane.b32.xlu0 %v7708, 8
        %v7796 = vpop.permute.xlu0 %7795
        %7797 = vrot.lane.b32.xlu0 %v7710, 8
        %v7798 = vpop.permute.xlu0 %7797
        %7799 = vrot.lane.b32.xlu0 %v7709, 8
        %v7800 = vpop.permute.xlu0 %7799
        %7801 = vrot.lane.b32.xlu0 %v7711, 8
        %v7802 = vpop.permute.xlu0 %7801
        %7803 = vrot.lane.b32.xlu0 %v7713, 8
        %v7804 = vpop.permute.xlu0 %7803
        %7805 = vrot.lane.b32.xlu0 %v7712, 8
        %v7806 = vpop.permute.xlu0 %7805
        %7807 = vrot.lane.b32.xlu0 %v7714, 8
        %v7808 = vpop.permute.xlu0 %7807
        %7809 = vrot.lane.b32.xlu0 %v7716, 8
        %v7810 = vpop.permute.xlu0 %7809
        %7811 = vrot.lane.b32.xlu0 %v7715, 8
        %v7812 = vpop.permute.xlu0 %7811
        %7877 = vrot.lane.b32.xlu0 %v473, 12
        %v7878 = vpop.permute.xlu0 %7877
        %7879 = vrot.lane.b32.xlu0 %v474, 12
        %v7880 = vpop.permute.xlu0 %7879
        %7881 = vrot.lane.b32.xlu0 %v505, 12
        %v7882 = vpop.permute.xlu0 %7881
        %7883 = vrot.lane.b32.xlu0 %v475, 12
        %v7884 = vpop.permute.xlu0 %7883
        %7885 = vrot.lane.b32.xlu0 %v476, 12
        %v7886 = vpop.permute.xlu0 %7885
        %7887 = vrot.lane.b32.xlu0 %v506, 12
        %v7888 = vpop.permute.xlu0 %7887
        %7889 = vrot.lane.b32.xlu0 %v477, 12
        %v7890 = vpop.permute.xlu0 %7889
        %7891 = vrot.lane.b32.xlu0 %v478, 12
        %v7892 = vpop.permute.xlu0 %7891
        %7893 = vrot.lane.b32.xlu0 %v507, 12
        %v7894 = vpop.permute.xlu0 %7893
        %7895 = vrot.lane.b32.xlu0 %v479, 12
        %v7896 = vpop.permute.xlu0 %7895
        %7897 = vrot.lane.b32.xlu0 %v480, 12
        %v7898 = vpop.permute.xlu0 %7897
        %7899 = vrot.lane.b32.xlu0 %v508, 12
        %v7900 = vpop.permute.xlu0 %7899
        %7901 = vrot.lane.b32.xlu0 %v481, 12
        %v7902 = vpop.permute.xlu0 %7901
        %7903 = vrot.lane.b32.xlu0 %v482, 12
        %v7904 = vpop.permute.xlu0 %7903
        %7905 = vrot.lane.b32.xlu0 %v509, 12
        %v7906 = vpop.permute.xlu0 %7905
        %7907 = vrot.lane.b32.xlu0 %v483, 12
        %v7908 = vpop.permute.xlu0 %7907
        %7909 = vrot.lane.b32.xlu0 %v484, 12
        %v7910 = vpop.permute.xlu0 %7909
        %7911 = vrot.lane.b32.xlu0 %v510, 12
        %v7912 = vpop.permute.xlu0 %7911
        %7913 = vrot.lane.b32.xlu0 %v485, 12
        %v7914 = vpop.permute.xlu0 %7913
        %7915 = vrot.lane.b32.xlu0 %v486, 12
        %v7916 = vpop.permute.xlu0 %7915
        %7917 = vrot.lane.b32.xlu0 %v511, 12
        %v7918 = vpop.permute.xlu0 %7917
        %7919 = vrot.lane.b32.xlu0 %v487, 12
        %v7920 = vpop.permute.xlu0 %7919
        %7921 = vrot.lane.b32.xlu0 %v488, 12
        %v7922 = vpop.permute.xlu0 %7921
        %7923 = vrot.lane.b32.xlu0 %v512, 12
        %v7924 = vpop.permute.xlu0 %7923
        %7925 = vrot.lane.b32.xlu0 %v489, 12
        %v7926 = vpop.permute.xlu0 %7925
        %7927 = vrot.lane.b32.xlu0 %v490, 12
        %v7928 = vpop.permute.xlu0 %7927
        %7929 = vrot.lane.b32.xlu0 %v513, 12
        %v7930 = vpop.permute.xlu0 %7929
        %7931 = vrot.lane.b32.xlu0 %v491, 12
        %v7932 = vpop.permute.xlu0 %7931
        %7933 = vrot.lane.b32.xlu0 %v492, 12
        %v7934 = vpop.permute.xlu0 %7933
        %7935 = vrot.lane.b32.xlu0 %v514, 12
        %v7936 = vpop.permute.xlu0 %7935
        %7937 = vrot.lane.b32.xlu0 %v493, 12
        %v7938 = vpop.permute.xlu0 %7937
        %7939 = vrot.lane.b32.xlu0 %v494, 12
        %v7940 = vpop.permute.xlu0 %7939
        %7941 = vrot.lane.b32.xlu0 %v515, 12
        %v7942 = vpop.permute.xlu0 %7941
        %7943 = vrot.lane.b32.xlu0 %v495, 12
        %v7944 = vpop.permute.xlu0 %7943
        %7945 = vrot.lane.b32.xlu0 %v496, 12
        %v7946 = vpop.permute.xlu0 %7945
        %7947 = vrot.lane.b32.xlu0 %v516, 12
        %v7948 = vpop.permute.xlu0 %7947
        %7949 = vrot.lane.b32.xlu0 %v497, 12
        %v7950 = vpop.permute.xlu0 %7949
        %7951 = vrot.lane.b32.xlu0 %v498, 12
        %v7952 = vpop.permute.xlu0 %7951
        %7953 = vrot.lane.b32.xlu0 %v517, 12
        %v7954 = vpop.permute.xlu0 %7953
        %7955 = vrot.lane.b32.xlu0 %v499, 12
        %v7956 = vpop.permute.xlu0 %7955
        %7957 = vrot.lane.b32.xlu0 %v500, 12
        %v7958 = vpop.permute.xlu0 %7957
        %7959 = vrot.lane.b32.xlu0 %v518, 12
        %v7960 = vpop.permute.xlu0 %7959
        %7961 = vrot.lane.b32.xlu0 %v501, 12
        %v7962 = vpop.permute.xlu0 %7961
        %7963 = vrot.lane.b32.xlu0 %v502, 12
        %v7964 = vpop.permute.xlu0 %7963
        %7965 = vrot.lane.b32.xlu0 %v519, 12
        %v7966 = vpop.permute.xlu0 %7965
        %7967 = vrot.lane.b32.xlu0 %v503, 12
        %v7968 = vpop.permute.xlu0 %7967
        %7969 = vrot.lane.b32.xlu0 %v504, 12
        %v7970 = vpop.permute.xlu0 %7969
        %7971 = vrot.lane.b32.xlu0 %v520, 12
        %v7972 = vpop.permute.xlu0 %7971
        %v8021 = vrot.slane %v473, 1
        %v8022 = vrot.slane %v474, 1
        %v8023 = vsel %vm581, %v8021, %v8022
        %v8024 = vrot.slane %v505, 1
        %v8025 = vsel %vm581, %v8022, %v8024
        %v8026 = vrot.slane %v475, 1
        %v8027 = vrot.slane %v476, 1
        %v8028 = vsel %vm581, %v8026, %v8027
        %v8029 = vrot.slane %v506, 1
        %v8030 = vsel %vm581, %v8027, %v8029
        %v8031 = vrot.slane %v477, 1
        %v8032 = vrot.slane %v478, 1
        %v8033 = vsel %vm581, %v8031, %v8032
        %v8034 = vrot.slane %v507, 1
        %v8035 = vsel %vm581, %v8032, %v8034
        %v8036 = vrot.slane %v479, 1
        %v8037 = vrot.slane %v480, 1
        %v8038 = vsel %vm581, %v8036, %v8037
        %v8039 = vrot.slane %v508, 1
        %v8040 = vsel %vm581, %v8037, %v8039
        %v8041 = vrot.slane %v481, 1
        %v8042 = vrot.slane %v482, 1
        %v8043 = vsel %vm581, %v8041, %v8042
        %v8044 = vrot.slane %v509, 1
        %v8045 = vsel %vm581, %v8042, %v8044
        %v8046 = vrot.slane %v483, 1
        %v8047 = vrot.slane %v484, 1
        %v8048 = vsel %vm581, %v8046, %v8047
        %v8049 = vrot.slane %v510, 1
        %v8050 = vsel %vm581, %v8047, %v8049
        %v8051 = vrot.slane %v485, 1
        %v8052 = vrot.slane %v486, 1
        %v8053 = vsel %vm581, %v8051, %v8052
        %v8054 = vrot.slane %v511, 1
        %v8055 = vsel %vm581, %v8052, %v8054
        %v8056 = vrot.slane %v487, 1
        %v8057 = vrot.slane %v488, 1
        %v8058 = vsel %vm581, %v8056, %v8057
        %v8059 = vrot.slane %v512, 1
        %v8060 = vsel %vm581, %v8057, %v8059
        %v8061 = vrot.slane %v489, 1
        %v8062 = vrot.slane %v490, 1
        %v8063 = vsel %vm581, %v8061, %v8062
        %v8064 = vrot.slane %v513, 1
        %v8065 = vsel %vm581, %v8062, %v8064
        %v8066 = vrot.slane %v491, 1
        %v8067 = vrot.slane %v492, 1
        %v8068 = vsel %vm581, %v8066, %v8067
        %v8069 = vrot.slane %v514, 1
        %v8070 = vsel %vm581, %v8067, %v8069
        %v8071 = vrot.slane %v493, 1
        %v8072 = vrot.slane %v494, 1
        %v8073 = vsel %vm581, %v8071, %v8072
        %v8074 = vrot.slane %v515, 1
        %v8075 = vsel %vm581, %v8072, %v8074
        %v8076 = vrot.slane %v495, 1
        %v8077 = vrot.slane %v496, 1
        %v8078 = vsel %vm581, %v8076, %v8077
        %v8079 = vrot.slane %v516, 1
        %v8080 = vsel %vm581, %v8077, %v8079
        %v8081 = vrot.slane %v497, 1
        %v8082 = vrot.slane %v498, 1
        %v8083 = vsel %vm581, %v8081, %v8082
        %v8084 = vrot.slane %v517, 1
        %v8085 = vsel %vm581, %v8082, %v8084
        %v8086 = vrot.slane %v499, 1
        %v8087 = vrot.slane %v500, 1
        %v8088 = vsel %vm581, %v8086, %v8087
        %v8089 = vrot.slane %v518, 1
        %v8090 = vsel %vm581, %v8087, %v8089
        %v8091 = vrot.slane %v501, 1
        %v8092 = vrot.slane %v502, 1
        %v8093 = vsel %vm581, %v8091, %v8092
        %v8094 = vrot.slane %v519, 1
        %v8095 = vsel %vm581, %v8092, %v8094
        %v8096 = vrot.slane %v503, 1
        %v8097 = vrot.slane %v504, 1
        %v8098 = vsel %vm581, %v8096, %v8097
        %v8099 = vrot.slane %v520, 1
        %v8100 = vsel %vm581, %v8097, %v8099
        %8101 = vrot.lane.b32.xlu0 %v8023, 16
        %v8102 = vpop.permute.xlu0 %8101
        %8103 = vrot.lane.b32.xlu0 %v8025, 16
        %v8104 = vpop.permute.xlu0 %8103
        %8105 = vrot.lane.b32.xlu0 %v8024, 16
        %v8106 = vpop.permute.xlu0 %8105
        %8107 = vrot.lane.b32.xlu0 %v8028, 16
        %v8108 = vpop.permute.xlu0 %8107
        %8109 = vrot.lane.b32.xlu0 %v8030, 16
        %v8110 = vpop.permute.xlu0 %8109
        %8111 = vrot.lane.b32.xlu0 %v8029, 16
        %v8112 = vpop.permute.xlu0 %8111
        %8113 = vrot.lane.b32.xlu0 %v8033, 16
        %v8114 = vpop.permute.xlu0 %8113
        %8115 = vrot.lane.b32.xlu0 %v8035, 16
        %v8116 = vpop.permute.xlu0 %8115
        %8117 = vrot.lane.b32.xlu0 %v8034, 16
        %v8118 = vpop.permute.xlu0 %8117
        %8119 = vrot.lane.b32.xlu0 %v8038, 16
        %v8120 = vpop.permute.xlu0 %8119
        %8121 = vrot.lane.b32.xlu0 %v8040, 16
        %v8122 = vpop.permute.xlu0 %8121
        %8123 = vrot.lane.b32.xlu0 %v8039, 16
        %v8124 = vpop.permute.xlu0 %8123
        %8125 = vrot.lane.b32.xlu0 %v8043, 16
        %v8126 = vpop.permute.xlu0 %8125
        %8127 = vrot.lane.b32.xlu0 %v8045, 16
        %v8128 = vpop.permute.xlu0 %8127
        %8129 = vrot.lane.b32.xlu0 %v8044, 16
        %v8130 = vpop.permute.xlu0 %8129
        %8131 = vrot.lane.b32.xlu0 %v8048, 16
        %v8132 = vpop.permute.xlu0 %8131
        %8133 = vrot.lane.b32.xlu0 %v8050, 16
        %v8134 = vpop.permute.xlu0 %8133
        %8135 = vrot.lane.b32.xlu0 %v8049, 16
        %v8136 = vpop.permute.xlu0 %8135
        %8137 = vrot.lane.b32.xlu0 %v8053, 16
        %v8138 = vpop.permute.xlu0 %8137
        %8139 = vrot.lane.b32.xlu0 %v8055, 16
        %v8140 = vpop.permute.xlu0 %8139
        %8141 = vrot.lane.b32.xlu0 %v8054, 16
        %v8142 = vpop.permute.xlu0 %8141
        %8143 = vrot.lane.b32.xlu0 %v8058, 16
        %v8144 = vpop.permute.xlu0 %8143
        %8145 = vrot.lane.b32.xlu0 %v8060, 16
        %v8146 = vpop.permute.xlu0 %8145
        %8147 = vrot.lane.b32.xlu0 %v8059, 16
        %v8148 = vpop.permute.xlu0 %8147
        %8149 = vrot.lane.b32.xlu0 %v8063, 16
        %v8150 = vpop.permute.xlu0 %8149
        %8151 = vrot.lane.b32.xlu0 %v8065, 16
        %v8152 = vpop.permute.xlu0 %8151
        %8153 = vrot.lane.b32.xlu0 %v8064, 16
        %v8154 = vpop.permute.xlu0 %8153
        %8155 = vrot.lane.b32.xlu0 %v8068, 16
        %v8156 = vpop.permute.xlu0 %8155
        %8157 = vrot.lane.b32.xlu0 %v8070, 16
        %v8158 = vpop.permute.xlu0 %8157
        %8159 = vrot.lane.b32.xlu0 %v8069, 16
        %v8160 = vpop.permute.xlu0 %8159
        %8161 = vrot.lane.b32.xlu0 %v8073, 16
        %v8162 = vpop.permute.xlu0 %8161
        %8163 = vrot.lane.b32.xlu0 %v8075, 16
        %v8164 = vpop.permute.xlu0 %8163
        %8165 = vrot.lane.b32.xlu0 %v8074, 16
        %v8166 = vpop.permute.xlu0 %8165
        %8167 = vrot.lane.b32.xlu0 %v8078, 16
        %v8168 = vpop.permute.xlu0 %8167
        %8169 = vrot.lane.b32.xlu0 %v8080, 16
        %v8170 = vpop.permute.xlu0 %8169
        %8171 = vrot.lane.b32.xlu0 %v8079, 16
        %v8172 = vpop.permute.xlu0 %8171
        %8173 = vrot.lane.b32.xlu0 %v8083, 16
        %v8174 = vpop.permute.xlu0 %8173
        %8175 = vrot.lane.b32.xlu0 %v8085, 16
        %v8176 = vpop.permute.xlu0 %8175
        %8177 = vrot.lane.b32.xlu0 %v8084, 16
        %v8178 = vpop.permute.xlu0 %8177
        %8179 = vrot.lane.b32.xlu0 %v8088, 16
        %v8180 = vpop.permute.xlu0 %8179
        %8181 = vrot.lane.b32.xlu0 %v8090, 16
        %v8182 = vpop.permute.xlu0 %8181
        %8183 = vrot.lane.b32.xlu0 %v8089, 16
        %v8184 = vpop.permute.xlu0 %8183
        %8185 = vrot.lane.b32.xlu0 %v8093, 16
        %v8186 = vpop.permute.xlu0 %8185
        %8187 = vrot.lane.b32.xlu0 %v8095, 16
        %v8188 = vpop.permute.xlu0 %8187
        %8189 = vrot.lane.b32.xlu0 %v8094, 16
        %v8190 = vpop.permute.xlu0 %8189
        %8191 = vrot.lane.b32.xlu0 %v8098, 16
        %v8192 = vpop.permute.xlu0 %8191
        %8193 = vrot.lane.b32.xlu0 %v8100, 16
        %v8194 = vpop.permute.xlu0 %8193
        %8195 = vrot.lane.b32.xlu0 %v8099, 16
        %v8196 = vpop.permute.xlu0 %8195
        %v8253 = vrot.slane %v521, 7
        %v8254 = vrot.slane %v522, 7
        %v8255 = vsel %vm3109, %v8253, %v8254
        %v8256 = vrot.slane %v523, 7
        %v8257 = vrot.slane %v524, 7
        %v8258 = vsel %vm3109, %v8256, %v8257
        %v8259 = vrot.slane %v525, 7
        %v8260 = vrot.slane %v526, 7
        %v8261 = vsel %vm3109, %v8259, %v8260
        %v8262 = vrot.slane %v527, 7
        %v8263 = vrot.slane %v528, 7
        %v8264 = vsel %vm3109, %v8262, %v8263
        %8265 = vrot.lane.b32.xlu0 %v7675, 32
        %v8266 = vpop.permute.xlu0 %8265
        %8267 = vrot.lane.b32.xlu0 %v7677, 32
        %v8268 = vpop.permute.xlu0 %8267
        %8269 = vrot.lane.b32.xlu0 %v7676, 32
        %v8270 = vpop.permute.xlu0 %8269
        %8271 = vrot.lane.b32.xlu0 %v7678, 32
        %v8272 = vpop.permute.xlu0 %8271
        %8273 = vrot.lane.b32.xlu0 %v7680, 32
        %v8274 = vpop.permute.xlu0 %8273
        %8275 = vrot.lane.b32.xlu0 %v7679, 32
        %v8276 = vpop.permute.xlu0 %8275
        %8277 = vrot.lane.b32.xlu0 %v7681, 32
        %v8278 = vpop.permute.xlu0 %8277
        %8279 = vrot.lane.b32.xlu0 %v7683, 32
        %v8280 = vpop.permute.xlu0 %8279
        %8281 = vrot.lane.b32.xlu0 %v7682, 32
        %v8282 = vpop.permute.xlu0 %8281
        %8283 = vrot.lane.b32.xlu0 %v7684, 32
        %v8284 = vpop.permute.xlu0 %8283
        %8285 = vrot.lane.b32.xlu0 %v7686, 32
        %v8286 = vpop.permute.xlu0 %8285
        %8287 = vrot.lane.b32.xlu0 %v7685, 32
        %v8288 = vpop.permute.xlu0 %8287
        %8289 = vrot.lane.b32.xlu0 %v7687, 32
        %v8290 = vpop.permute.xlu0 %8289
        %8291 = vrot.lane.b32.xlu0 %v7689, 32
        %v8292 = vpop.permute.xlu0 %8291
        %8293 = vrot.lane.b32.xlu0 %v7688, 32
        %v8294 = vpop.permute.xlu0 %8293
        %8295 = vrot.lane.b32.xlu0 %v7690, 32
        %v8296 = vpop.permute.xlu0 %8295
        %8297 = vrot.lane.b32.xlu0 %v7692, 32
        %v8298 = vpop.permute.xlu0 %8297
        %8299 = vrot.lane.b32.xlu0 %v7691, 32
        %v8300 = vpop.permute.xlu0 %8299
        %8301 = vrot.lane.b32.xlu0 %v8253, 32
        %v8302 = vpop.permute.xlu0 %8301
        %8303 = vrot.lane.b32.xlu0 %v8255, 32
        %v8304 = vpop.permute.xlu0 %8303
        %8305 = vrot.lane.b32.xlu0 %v8254, 32
        %v8306 = vpop.permute.xlu0 %8305
        %8307 = vrot.lane.b32.xlu0 %v8256, 32
        %v8308 = vpop.permute.xlu0 %8307
        %8309 = vrot.lane.b32.xlu0 %v8258, 32
        %v8310 = vpop.permute.xlu0 %8309
        %8311 = vrot.lane.b32.xlu0 %v8257, 32
        %v8312 = vpop.permute.xlu0 %8311
        %8313 = vrot.lane.b32.xlu0 %v7699, 32
        %v8314 = vpop.permute.xlu0 %8313
        %8315 = vrot.lane.b32.xlu0 %v7701, 32
        %v8316 = vpop.permute.xlu0 %8315
        %8317 = vrot.lane.b32.xlu0 %v7700, 32
        %v8318 = vpop.permute.xlu0 %8317
        %8319 = vrot.lane.b32.xlu0 %v7702, 32
        %v8320 = vpop.permute.xlu0 %8319
        %8321 = vrot.lane.b32.xlu0 %v7704, 32
        %v8322 = vpop.permute.xlu0 %8321
        %8323 = vrot.lane.b32.xlu0 %v7703, 32
        %v8324 = vpop.permute.xlu0 %8323
        %8325 = vrot.lane.b32.xlu0 %v7705, 32
        %v8326 = vpop.permute.xlu0 %8325
        %8327 = vrot.lane.b32.xlu0 %v7707, 32
        %v8328 = vpop.permute.xlu0 %8327
        %8329 = vrot.lane.b32.xlu0 %v7706, 32
        %v8330 = vpop.permute.xlu0 %8329
        %8331 = vrot.lane.b32.xlu0 %v7708, 32
        %v8332 = vpop.permute.xlu0 %8331
        %8333 = vrot.lane.b32.xlu0 %v7710, 32
        %v8334 = vpop.permute.xlu0 %8333
        %8335 = vrot.lane.b32.xlu0 %v7709, 32
        %v8336 = vpop.permute.xlu0 %8335
        %8337 = vrot.lane.b32.xlu0 %v7711, 32
        %v8338 = vpop.permute.xlu0 %8337
        %8339 = vrot.lane.b32.xlu0 %v7713, 32
        %v8340 = vpop.permute.xlu0 %8339
        %8341 = vrot.lane.b32.xlu0 %v7712, 32
        %v8342 = vpop.permute.xlu0 %8341
        %8343 = vrot.lane.b32.xlu0 %v7714, 32
        %v8344 = vpop.permute.xlu0 %8343
        %8345 = vrot.lane.b32.xlu0 %v7716, 32
        %v8346 = vpop.permute.xlu0 %8345
        %8347 = vrot.lane.b32.xlu0 %v7715, 32
        %v8348 = vpop.permute.xlu0 %8347
        %8349 = vrot.lane.b32.xlu0 %v8259, 32
        %v8350 = vpop.permute.xlu0 %8349
        %8351 = vrot.lane.b32.xlu0 %v8261, 32
        %v8352 = vpop.permute.xlu0 %8351
        %8353 = vrot.lane.b32.xlu0 %v8260, 32
        %v8354 = vpop.permute.xlu0 %8353
        %8355 = vrot.lane.b32.xlu0 %v8262, 32
        %v8356 = vpop.permute.xlu0 %8355
        %8357 = vrot.lane.b32.xlu0 %v8264, 32
        %v8358 = vpop.permute.xlu0 %8357
        %8359 = vrot.lane.b32.xlu0 %v8263, 32
        %v8360 = vpop.permute.xlu0 %8359
        %8413 = vrot.lane.b32.xlu0 %v477, 36
        %v8414 = vpop.permute.xlu0 %8413
        %8415 = vrot.lane.b32.xlu0 %v478, 36
        %v8416 = vpop.permute.xlu0 %8415
        %8417 = vrot.lane.b32.xlu0 %v507, 36
        %v8418 = vpop.permute.xlu0 %8417
        %8419 = vrot.lane.b32.xlu0 %v479, 36
        %v8420 = vpop.permute.xlu0 %8419
        %8421 = vrot.lane.b32.xlu0 %v480, 36
        %v8422 = vpop.permute.xlu0 %8421
        %8423 = vrot.lane.b32.xlu0 %v508, 36
        %v8424 = vpop.permute.xlu0 %8423
        %8425 = vrot.lane.b32.xlu0 %v481, 36
        %v8426 = vpop.permute.xlu0 %8425
        %8427 = vrot.lane.b32.xlu0 %v482, 36
        %v8428 = vpop.permute.xlu0 %8427
        %8429 = vrot.lane.b32.xlu0 %v509, 36
        %v8430 = vpop.permute.xlu0 %8429
        %8431 = vrot.lane.b32.xlu0 %v483, 36
        %v8432 = vpop.permute.xlu0 %8431
        %8433 = vrot.lane.b32.xlu0 %v484, 36
        %v8434 = vpop.permute.xlu0 %8433
        %8435 = vrot.lane.b32.xlu0 %v510, 36
        %v8436 = vpop.permute.xlu0 %8435
        %8437 = vrot.lane.b32.xlu0 %v485, 36
        %v8438 = vpop.permute.xlu0 %8437
        %8439 = vrot.lane.b32.xlu0 %v486, 36
        %v8440 = vpop.permute.xlu0 %8439
        %8441 = vrot.lane.b32.xlu0 %v511, 36
        %v8442 = vpop.permute.xlu0 %8441
        %8443 = vrot.lane.b32.xlu0 %v487, 36
        %v8444 = vpop.permute.xlu0 %8443
        %8445 = vrot.lane.b32.xlu0 %v488, 36
        %v8446 = vpop.permute.xlu0 %8445
        %8447 = vrot.lane.b32.xlu0 %v512, 36
        %v8448 = vpop.permute.xlu0 %8447
        %8449 = vrot.lane.b32.xlu0 %v521, 36
        %v8450 = vpop.permute.xlu0 %8449
        %8451 = vrot.lane.b32.xlu0 %v522, 36
        %v8452 = vpop.permute.xlu0 %8451
        %8453 = vrot.lane.b32.xlu0 %v529, 36
        %v8454 = vpop.permute.xlu0 %8453
        %8455 = vrot.lane.b32.xlu0 %v523, 36
        %v8456 = vpop.permute.xlu0 %8455
        %8457 = vrot.lane.b32.xlu0 %v524, 36
        %v8458 = vpop.permute.xlu0 %8457
        %8459 = vrot.lane.b32.xlu0 %v530, 36
        %v8460 = vpop.permute.xlu0 %8459
        %8461 = vrot.lane.b32.xlu0 %v493, 36
        %v8462 = vpop.permute.xlu0 %8461
        %8463 = vrot.lane.b32.xlu0 %v494, 36
        %v8464 = vpop.permute.xlu0 %8463
        %8465 = vrot.lane.b32.xlu0 %v515, 36
        %v8466 = vpop.permute.xlu0 %8465
        %8467 = vrot.lane.b32.xlu0 %v495, 36
        %v8468 = vpop.permute.xlu0 %8467
        %8469 = vrot.lane.b32.xlu0 %v496, 36
        %v8470 = vpop.permute.xlu0 %8469
        %8471 = vrot.lane.b32.xlu0 %v516, 36
        %v8472 = vpop.permute.xlu0 %8471
        %8473 = vrot.lane.b32.xlu0 %v497, 36
        %v8474 = vpop.permute.xlu0 %8473
        %8475 = vrot.lane.b32.xlu0 %v498, 36
        %v8476 = vpop.permute.xlu0 %8475
        %8477 = vrot.lane.b32.xlu0 %v517, 36
        %v8478 = vpop.permute.xlu0 %8477
        %8479 = vrot.lane.b32.xlu0 %v499, 36
        %v8480 = vpop.permute.xlu0 %8479
        %8481 = vrot.lane.b32.xlu0 %v500, 36
        %v8482 = vpop.permute.xlu0 %8481
        %8483 = vrot.lane.b32.xlu0 %v518, 36
        %v8484 = vpop.permute.xlu0 %8483
        %8485 = vrot.lane.b32.xlu0 %v501, 36
        %v8486 = vpop.permute.xlu0 %8485
        %8487 = vrot.lane.b32.xlu0 %v502, 36
        %v8488 = vpop.permute.xlu0 %8487
        %8489 = vrot.lane.b32.xlu0 %v519, 36
        %v8490 = vpop.permute.xlu0 %8489
        %8491 = vrot.lane.b32.xlu0 %v503, 36
        %v8492 = vpop.permute.xlu0 %8491
        %8493 = vrot.lane.b32.xlu0 %v504, 36
        %v8494 = vpop.permute.xlu0 %8493
        %8495 = vrot.lane.b32.xlu0 %v520, 36
        %v8496 = vpop.permute.xlu0 %8495
        %8497 = vrot.lane.b32.xlu0 %v525, 36
        %v8498 = vpop.permute.xlu0 %8497
        %8499 = vrot.lane.b32.xlu0 %v526, 36
        %v8500 = vpop.permute.xlu0 %8499
        %8501 = vrot.lane.b32.xlu0 %v531, 36
        %v8502 = vpop.permute.xlu0 %8501
        %8503 = vrot.lane.b32.xlu0 %v527, 36
        %v8504 = vpop.permute.xlu0 %8503
        %8505 = vrot.lane.b32.xlu0 %v528, 36
        %v8506 = vpop.permute.xlu0 %8505
        %8507 = vrot.lane.b32.xlu0 %v532, 36
        %v8508 = vpop.permute.xlu0 %8507
        %v8557 = vrot.slane %v521, 1
        %v8558 = vrot.slane %v522, 1
        %v8559 = vsel %vm581, %v8557, %v8558
        %v8560 = vrot.slane %v529, 1
        %v8561 = vsel %vm581, %v8558, %v8560
        %v8562 = vrot.slane %v523, 1
        %v8563 = vrot.slane %v524, 1
        %v8564 = vsel %vm581, %v8562, %v8563
        %v8565 = vrot.slane %v530, 1
        %v8566 = vsel %vm581, %v8563, %v8565
        %v8567 = vrot.slane %v525, 1
        %v8568 = vrot.slane %v526, 1
        %v8569 = vsel %vm581, %v8567, %v8568
        %v8570 = vrot.slane %v531, 1
        %v8571 = vsel %vm581, %v8568, %v8570
        %v8572 = vrot.slane %v527, 1
        %v8573 = vrot.slane %v528, 1
        %v8574 = vsel %vm581, %v8572, %v8573
        %v8575 = vrot.slane %v532, 1
        %v8576 = vsel %vm581, %v8573, %v8575
        %8577 = vrot.lane.b32.xlu0 %v8033, 40
        %v8578 = vpop.permute.xlu0 %8577
        %8579 = vrot.lane.b32.xlu0 %v8035, 40
        %v8580 = vpop.permute.xlu0 %8579
        %8581 = vrot.lane.b32.xlu0 %v8034, 40
        %v8582 = vpop.permute.xlu0 %8581
        %8583 = vrot.lane.b32.xlu0 %v8038, 40
        %v8584 = vpop.permute.xlu0 %8583
        %8585 = vrot.lane.b32.xlu0 %v8040, 40
        %v8586 = vpop.permute.xlu0 %8585
        %8587 = vrot.lane.b32.xlu0 %v8039, 40
        %v8588 = vpop.permute.xlu0 %8587
        %8589 = vrot.lane.b32.xlu0 %v8043, 40
        %v8590 = vpop.permute.xlu0 %8589
        %8591 = vrot.lane.b32.xlu0 %v8045, 40
        %v8592 = vpop.permute.xlu0 %8591
        %8593 = vrot.lane.b32.xlu0 %v8044, 40
        %v8594 = vpop.permute.xlu0 %8593
        %8595 = vrot.lane.b32.xlu0 %v8048, 40
        %v8596 = vpop.permute.xlu0 %8595
        %8597 = vrot.lane.b32.xlu0 %v8050, 40
        %v8598 = vpop.permute.xlu0 %8597
        %8599 = vrot.lane.b32.xlu0 %v8049, 40
        %v8600 = vpop.permute.xlu0 %8599
        %8601 = vrot.lane.b32.xlu0 %v8053, 40
        %v8602 = vpop.permute.xlu0 %8601
        %8603 = vrot.lane.b32.xlu0 %v8055, 40
        %v8604 = vpop.permute.xlu0 %8603
        %8605 = vrot.lane.b32.xlu0 %v8054, 40
        %v8606 = vpop.permute.xlu0 %8605
        %8607 = vrot.lane.b32.xlu0 %v8058, 40
        %v8608 = vpop.permute.xlu0 %8607
        %8609 = vrot.lane.b32.xlu0 %v8060, 40
        %v8610 = vpop.permute.xlu0 %8609
        %8611 = vrot.lane.b32.xlu0 %v8059, 40
        %v8612 = vpop.permute.xlu0 %8611
        %8613 = vrot.lane.b32.xlu0 %v8559, 40
        %v8614 = vpop.permute.xlu0 %8613
        %8615 = vrot.lane.b32.xlu0 %v8561, 40
        %v8616 = vpop.permute.xlu0 %8615
        %8617 = vrot.lane.b32.xlu0 %v8560, 40
        %v8618 = vpop.permute.xlu0 %8617
        %8619 = vrot.lane.b32.xlu0 %v8564, 40
        %v8620 = vpop.permute.xlu0 %8619
        %8621 = vrot.lane.b32.xlu0 %v8566, 40
        %v8622 = vpop.permute.xlu0 %8621
        %8623 = vrot.lane.b32.xlu0 %v8565, 40
        %v8624 = vpop.permute.xlu0 %8623
        %8625 = vrot.lane.b32.xlu0 %v8073, 40
        %v8626 = vpop.permute.xlu0 %8625
        %8627 = vrot.lane.b32.xlu0 %v8075, 40
        %v8628 = vpop.permute.xlu0 %8627
        %8629 = vrot.lane.b32.xlu0 %v8074, 40
        %v8630 = vpop.permute.xlu0 %8629
        %8631 = vrot.lane.b32.xlu0 %v8078, 40
        %v8632 = vpop.permute.xlu0 %8631
        %8633 = vrot.lane.b32.xlu0 %v8080, 40
        %v8634 = vpop.permute.xlu0 %8633
        %8635 = vrot.lane.b32.xlu0 %v8079, 40
        %v8636 = vpop.permute.xlu0 %8635
        %8637 = vrot.lane.b32.xlu0 %v8083, 40
        %v8638 = vpop.permute.xlu0 %8637
        %8639 = vrot.lane.b32.xlu0 %v8085, 40
        %v8640 = vpop.permute.xlu0 %8639
        %8641 = vrot.lane.b32.xlu0 %v8084, 40
        %v8642 = vpop.permute.xlu0 %8641
        %8643 = vrot.lane.b32.xlu0 %v8088, 40
        %v8644 = vpop.permute.xlu0 %8643
        %8645 = vrot.lane.b32.xlu0 %v8090, 40
        %v8646 = vpop.permute.xlu0 %8645
        %8647 = vrot.lane.b32.xlu0 %v8089, 40
        %v8648 = vpop.permute.xlu0 %8647
        %8649 = vrot.lane.b32.xlu0 %v8093, 40
        %v8650 = vpop.permute.xlu0 %8649
        %8651 = vrot.lane.b32.xlu0 %v8095, 40
        %v8652 = vpop.permute.xlu0 %8651
        %8653 = vrot.lane.b32.xlu0 %v8094, 40
        %v8654 = vpop.permute.xlu0 %8653
        %8655 = vrot.lane.b32.xlu0 %v8098, 40
        %v8656 = vpop.permute.xlu0 %8655
        %8657 = vrot.lane.b32.xlu0 %v8100, 40
        %v8658 = vpop.permute.xlu0 %8657
        %8659 = vrot.lane.b32.xlu0 %v8099, 40
        %v8660 = vpop.permute.xlu0 %8659
        %8661 = vrot.lane.b32.xlu0 %v8569, 40
        %v8662 = vpop.permute.xlu0 %8661
        %8663 = vrot.lane.b32.xlu0 %v8571, 40
        %v8664 = vpop.permute.xlu0 %8663
        %8665 = vrot.lane.b32.xlu0 %v8570, 40
        %v8666 = vpop.permute.xlu0 %8665
        %8667 = vrot.lane.b32.xlu0 %v8574, 40
        %v8668 = vpop.permute.xlu0 %8667
        %8669 = vrot.lane.b32.xlu0 %v8576, 40
        %v8670 = vpop.permute.xlu0 %8669
        %8671 = vrot.lane.b32.xlu0 %v8575, 40
        %v8672 = vpop.permute.xlu0 %8671
        %v8721 = vsel %vm2432, %v360, %v7494
        %v8722 = vsel %vm2432, %v361, %v7496
        %v8723 = vsel %vm2432, %v390, %v7498
        %v8724 = vsel %vm2432, %v362, %v7500
        %v8725 = vsel %vm2432, %v363, %v7502
        %v8726 = vsel %vm2432, %v391, %v7504
        %v8727 = vsel %vm2432, %v364, %v7506
        %v8728 = vsel %vm2432, %v365, %v7508
        %v8729 = vsel %vm2432, %v392, %v7510
        %v8730 = vsel %vm2432, %v366, %v7512
        %v8731 = vsel %vm2432, %v367, %v7514
        %v8732 = vsel %vm2432, %v393, %v7516
        %v8733 = vsel %vm2432, %v368, %v7518
        %v8734 = vsel %vm2432, %v369, %v7520
        %v8735 = vsel %vm2432, %v394, %v7522
        %v8736 = vsel %vm2432, %v370, %v7524
        %v8737 = vsel %vm2432, %v371, %v7526
        %v8738 = vsel %vm2432, %v395, %v7528
        %v8739 = vsel %vm2432, %v404, %v7530
        %v8740 = vsel %vm2432, %v405, %v7532
        %v8741 = vsel %vm2432, %v412, %v7534
        %v8742 = vsel %vm2432, %v406, %v7536
        %v8743 = vsel %vm2432, %v407, %v7538
        %v8744 = vsel %vm2432, %v413, %v7540
        %v8745 = vsel %vm2432, %v376, %v7542
        %v8746 = vsel %vm2432, %v377, %v7544
        %v8747 = vsel %vm2432, %v398, %v7546
        %v8748 = vsel %vm2432, %v378, %v7548
        %v8749 = vsel %vm2432, %v379, %v7550
        %v8750 = vsel %vm2432, %v399, %v7552
        %v8751 = vsel %vm2432, %v380, %v7554
        %v8752 = vsel %vm2432, %v381, %v7556
        %v8753 = vsel %vm2432, %v400, %v7558
        %v8754 = vsel %vm2432, %v382, %v7560
        %v8755 = vsel %vm2432, %v383, %v7562
        %v8756 = vsel %vm2432, %v401, %v7564
        %v8757 = vsel %vm2432, %v384, %v7566
        %v8758 = vsel %vm2432, %v385, %v7568
        %v8759 = vsel %vm2432, %v402, %v7570
        %v8760 = vsel %vm2432, %v386, %v7572
        %v8761 = vsel %vm2432, %v387, %v7574
        %v8762 = vsel %vm2432, %v403, %v7576
        %v8763 = vsel %vm2432, %v408, %v7578
        %v8764 = vsel %vm2432, %v409, %v7580
        %v8765 = vsel %vm2432, %v414, %v7582
        %v8766 = vsel %vm2432, %v410, %v7584
        %v8767 = vsel %vm2432, %v411, %v7586
        %v8768 = vsel %vm2432, %v415, %v7588
        %v8769 = vsel %vm2465, %v8721, %v7718
        %v8770 = vsel %vm2465, %v8722, %v7720
        %v8771 = vsel %vm2465, %v8723, %v7722
        %v8772 = vsel %vm2465, %v8724, %v7724
        %v8773 = vsel %vm2465, %v8725, %v7726
        %v8774 = vsel %vm2465, %v8726, %v7728
        %v8775 = vsel %vm2465, %v8727, %v7730
        %v8776 = vsel %vm2465, %v8728, %v7732
        %v8777 = vsel %vm2465, %v8729, %v7734
        %v8778 = vsel %vm2465, %v8730, %v7736
        %v8779 = vsel %vm2465, %v8731, %v7738
        %v8780 = vsel %vm2465, %v8732, %v7740
        %v8781 = vsel %vm2465, %v8733, %v7742
        %v8782 = vsel %vm2465, %v8734, %v7744
        %v8783 = vsel %vm2465, %v8735, %v7746
        %v8784 = vsel %vm2465, %v8736, %v7748
        %v8785 = vsel %vm2465, %v8737, %v7750
        %v8786 = vsel %vm2465, %v8738, %v7752
        %v8787 = vsel %vm2465, %v8739, %v7754
        %v8788 = vsel %vm2465, %v8740, %v7756
        %v8789 = vsel %vm2465, %v8741, %v7758
        %v8790 = vsel %vm2465, %v8742, %v7760
        %v8791 = vsel %vm2465, %v8743, %v7762
        %v8792 = vsel %vm2465, %v8744, %v7764
        %v8793 = vsel %vm2465, %v8745, %v7766
        %v8794 = vsel %vm2465, %v8746, %v7768
        %v8795 = vsel %vm2465, %v8747, %v7770
        %v8796 = vsel %vm2465, %v8748, %v7772
        %v8797 = vsel %vm2465, %v8749, %v7774
        %v8798 = vsel %vm2465, %v8750, %v7776
        %v8799 = vsel %vm2465, %v8751, %v7778
        %v8800 = vsel %vm2465, %v8752, %v7780
        %v8801 = vsel %vm2465, %v8753, %v7782
        %v8802 = vsel %vm2465, %v8754, %v7784
        %v8803 = vsel %vm2465, %v8755, %v7786
        %v8804 = vsel %vm2465, %v8756, %v7788
        %v8805 = vsel %vm2465, %v8757, %v7790
        %v8806 = vsel %vm2465, %v8758, %v7792
        %v8807 = vsel %vm2465, %v8759, %v7794
        %v8808 = vsel %vm2465, %v8760, %v7796
        %v8809 = vsel %vm2465, %v8761, %v7798
        %v8810 = vsel %vm2465, %v8762, %v7800
        %v8811 = vsel %vm2465, %v8763, %v7802
        %v8812 = vsel %vm2465, %v8764, %v7804
        %v8813 = vsel %vm2465, %v8765, %v7806
        %v8814 = vsel %vm2465, %v8766, %v7808
        %v8815 = vsel %vm2465, %v8767, %v7810
        %v8816 = vsel %vm2465, %v8768, %v7812
        %v8817 = vsel %vm2498, %v8769, %v7878
        %v8818 = vsel %vm2498, %v8770, %v7880
        %v8819 = vsel %vm2498, %v8771, %v7882
        %v8820 = vsel %vm2498, %v8772, %v7884
        %v8821 = vsel %vm2498, %v8773, %v7886
        %v8822 = vsel %vm2498, %v8774, %v7888
        %v8823 = vsel %vm2498, %v8775, %v7890
        %v8824 = vsel %vm2498, %v8776, %v7892
        %v8825 = vsel %vm2498, %v8777, %v7894
        %v8826 = vsel %vm2498, %v8778, %v7896
        %v8827 = vsel %vm2498, %v8779, %v7898
        %v8828 = vsel %vm2498, %v8780, %v7900
        %v8829 = vsel %vm2498, %v8781, %v7902
        %v8830 = vsel %vm2498, %v8782, %v7904
        %v8831 = vsel %vm2498, %v8783, %v7906
        %v8832 = vsel %vm2498, %v8784, %v7908
        %v8833 = vsel %vm2498, %v8785, %v7910
        %v8834 = vsel %vm2498, %v8786, %v7912
        %v8835 = vsel %vm2498, %v8787, %v7914
        %v8836 = vsel %vm2498, %v8788, %v7916
        %v8837 = vsel %vm2498, %v8789, %v7918
        %v8838 = vsel %vm2498, %v8790, %v7920
        %v8839 = vsel %vm2498, %v8791, %v7922
        %v8840 = vsel %vm2498, %v8792, %v7924
        %v8841 = vsel %vm2498, %v8793, %v7926
        %v8842 = vsel %vm2498, %v8794, %v7928
        %v8843 = vsel %vm2498, %v8795, %v7930
        %v8844 = vsel %vm2498, %v8796, %v7932
        %v8845 = vsel %vm2498, %v8797, %v7934
        %v8846 = vsel %vm2498, %v8798, %v7936
        %v8847 = vsel %vm2498, %v8799, %v7938
        %v8848 = vsel %vm2498, %v8800, %v7940
        %v8849 = vsel %vm2498, %v8801, %v7942
        %v8850 = vsel %vm2498, %v8802, %v7944
        %v8851 = vsel %vm2498, %v8803, %v7946
        %v8852 = vsel %vm2498, %v8804, %v7948
        %v8853 = vsel %vm2498, %v8805, %v7950
        %v8854 = vsel %vm2498, %v8806, %v7952
        %v8855 = vsel %vm2498, %v8807, %v7954
        %v8856 = vsel %vm2498, %v8808, %v7956
        %v8857 = vsel %vm2498, %v8809, %v7958
        %v8858 = vsel %vm2498, %v8810, %v7960
        %v8859 = vsel %vm2498, %v8811, %v7962
        %v8860 = vsel %vm2498, %v8812, %v7964
        %v8861 = vsel %vm2498, %v8813, %v7966
        %v8862 = vsel %vm2498, %v8814, %v7968
        %v8863 = vsel %vm2498, %v8815, %v7970
        %v8864 = vsel %vm2498, %v8816, %v7972
        %v8865 = vsel %vm2531, %v8817, %v8102
        %v8866 = vsel %vm2531, %v8818, %v8104
        %v8867 = vsel %vm2531, %v8819, %v8106
        %v8868 = vsel %vm2531, %v8820, %v8108
        %v8869 = vsel %vm2531, %v8821, %v8110
        %v8870 = vsel %vm2531, %v8822, %v8112
        %v8871 = vsel %vm2531, %v8823, %v8114
        %v8872 = vsel %vm2531, %v8824, %v8116
        %v8873 = vsel %vm2531, %v8825, %v8118
        %v8874 = vsel %vm2531, %v8826, %v8120
        %v8875 = vsel %vm2531, %v8827, %v8122
        %v8876 = vsel %vm2531, %v8828, %v8124
        %v8877 = vsel %vm2531, %v8829, %v8126
        %v8878 = vsel %vm2531, %v8830, %v8128
        %v8879 = vsel %vm2531, %v8831, %v8130
        %v8880 = vsel %vm2531, %v8832, %v8132
        %v8881 = vsel %vm2531, %v8833, %v8134
        %v8882 = vsel %vm2531, %v8834, %v8136
        %v8883 = vsel %vm2531, %v8835, %v8138
        %v8884 = vsel %vm2531, %v8836, %v8140
        %v8885 = vsel %vm2531, %v8837, %v8142
        %v8886 = vsel %vm2531, %v8838, %v8144
        %v8887 = vsel %vm2531, %v8839, %v8146
        %v8888 = vsel %vm2531, %v8840, %v8148
        %v8889 = vsel %vm2531, %v8841, %v8150
        %v8890 = vsel %vm2531, %v8842, %v8152
        %v8891 = vsel %vm2531, %v8843, %v8154
        %v8892 = vsel %vm2531, %v8844, %v8156
        %v8893 = vsel %vm2531, %v8845, %v8158
        %v8894 = vsel %vm2531, %v8846, %v8160
        %v8895 = vsel %vm2531, %v8847, %v8162
        %v8896 = vsel %vm2531, %v8848, %v8164
        %v8897 = vsel %vm2531, %v8849, %v8166
        %v8898 = vsel %vm2531, %v8850, %v8168
        %v8899 = vsel %vm2531, %v8851, %v8170
        %v8900 = vsel %vm2531, %v8852, %v8172
        %v8901 = vsel %vm2531, %v8853, %v8174
        %v8902 = vsel %vm2531, %v8854, %v8176
        %v8903 = vsel %vm2531, %v8855, %v8178
        %v8904 = vsel %vm2531, %v8856, %v8180
        %v8905 = vsel %vm2531, %v8857, %v8182
        %v8906 = vsel %vm2531, %v8858, %v8184
        %v8907 = vsel %vm2531, %v8859, %v8186
        %v8908 = vsel %vm2531, %v8860, %v8188
        %v8909 = vsel %vm2531, %v8861, %v8190
        %v8910 = vsel %vm2531, %v8862, %v8192
        %v8911 = vsel %vm2531, %v8863, %v8194
        %v8912 = vsel %vm2531, %v8864, %v8196
        %v8913 = vsel %vm2564, %v8865, %v3692
        %v8914 = vsel %vm2564, %v8866, %v3694
        %v8915 = vsel %vm2564, %v8867, %v3696
        %v8916 = vsel %vm2564, %v8868, %v3698
        %v8917 = vsel %vm2564, %v8869, %v3700
        %v8918 = vsel %vm2564, %v8870, %v3702
        %v8919 = vsel %vm2564, %v8871, %v3704
        %v8920 = vsel %vm2564, %v8872, %v3706
        %v8921 = vsel %vm2564, %v8873, %v3708
        %v8922 = vsel %vm2564, %v8874, %v3710
        %v8923 = vsel %vm2564, %v8875, %v3712
        %v8924 = vsel %vm2564, %v8876, %v3714
        %v8925 = vsel %vm2564, %v8877, %v3716
        %v8926 = vsel %vm2564, %v8878, %v3718
        %v8927 = vsel %vm2564, %v8879, %v3720
        %v8928 = vsel %vm2564, %v8880, %v3722
        %v8929 = vsel %vm2564, %v8881, %v3724
        %v8930 = vsel %vm2564, %v8882, %v3726
        %v8931 = vsel %vm2564, %v8883, %v3728
        %v8932 = vsel %vm2564, %v8884, %v3730
        %v8933 = vsel %vm2564, %v8885, %v3732
        %v8934 = vsel %vm2564, %v8886, %v3734
        %v8935 = vsel %vm2564, %v8887, %v3736
        %v8936 = vsel %vm2564, %v8888, %v3738
        %v8937 = vsel %vm2564, %v8889, %v3740
        %v8938 = vsel %vm2564, %v8890, %v3742
        %v8939 = vsel %vm2564, %v8891, %v3744
        %v8940 = vsel %vm2564, %v8892, %v3746
        %v8941 = vsel %vm2564, %v8893, %v3748
        %v8942 = vsel %vm2564, %v8894, %v3750
        %v8943 = vsel %vm2564, %v8895, %v3752
        %v8944 = vsel %vm2564, %v8896, %v3754
        %v8945 = vsel %vm2564, %v8897, %v3756
        %v8946 = vsel %vm2564, %v8898, %v3758
        %v8947 = vsel %vm2564, %v8899, %v3760
        %v8948 = vsel %vm2564, %v8900, %v3762
        %v8949 = vsel %vm2564, %v8901, %v3764
        %v8950 = vsel %vm2564, %v8902, %v3766
        %v8951 = vsel %vm2564, %v8903, %v3768
        %v8952 = vsel %vm2564, %v8904, %v3770
        %v8953 = vsel %vm2564, %v8905, %v3772
        %v8954 = vsel %vm2564, %v8906, %v3774
        %v8955 = vsel %vm2564, %v8907, %v3776
        %v8956 = vsel %vm2564, %v8908, %v3778
        %v8957 = vsel %vm2564, %v8909, %v3780
        %v8958 = vsel %vm2564, %v8910, %v3782
        %v8959 = vsel %vm2564, %v8911, %v3784
        %v8960 = vsel %vm2564, %v8912, %v3786
        %v8961 = vsel %vm2597, %v8913, %v3837
        %v8962 = vsel %vm2597, %v8914, %v3839
        %v8963 = vsel %vm2597, %v8915, %v3841
        %v8964 = vsel %vm2597, %v8916, %v3843
        %v8965 = vsel %vm2597, %v8917, %v3845
        %v8966 = vsel %vm2597, %v8918, %v3847
        %v8967 = vsel %vm2597, %v8919, %v3849
        %v8968 = vsel %vm2597, %v8920, %v3851
        %v8969 = vsel %vm2597, %v8921, %v3853
        %v8970 = vsel %vm2597, %v8922, %v3855
        %v8971 = vsel %vm2597, %v8923, %v3857
        %v8972 = vsel %vm2597, %v8924, %v3859
        %v8973 = vsel %vm2597, %v8925, %v3861
        %v8974 = vsel %vm2597, %v8926, %v3863
        %v8975 = vsel %vm2597, %v8927, %v3865
        %v8976 = vsel %vm2597, %v8928, %v3867
        %v8977 = vsel %vm2597, %v8929, %v3869
        %v8978 = vsel %vm2597, %v8930, %v3871
        %v8979 = vsel %vm2597, %v8931, %v3873
        %v8980 = vsel %vm2597, %v8932, %v3875
        %v8981 = vsel %vm2597, %v8933, %v3877
        %v8982 = vsel %vm2597, %v8934, %v3879
        %v8983 = vsel %vm2597, %v8935, %v3881
        %v8984 = vsel %vm2597, %v8936, %v3883
        %v8985 = vsel %vm2597, %v8937, %v3885
        %v8986 = vsel %vm2597, %v8938, %v3887
        %v8987 = vsel %vm2597, %v8939, %v3889
        %v8988 = vsel %vm2597, %v8940, %v3891
        %v8989 = vsel %vm2597, %v8941, %v3893
        %v8990 = vsel %vm2597, %v8942, %v3895
        %v8991 = vsel %vm2597, %v8943, %v3897
        %v8992 = vsel %vm2597, %v8944, %v3899
        %v8993 = vsel %vm2597, %v8945, %v3901
        %v8994 = vsel %vm2597, %v8946, %v3903
        %v8995 = vsel %vm2597, %v8947, %v3905
        %v8996 = vsel %vm2597, %v8948, %v3907
        %v8997 = vsel %vm2597, %v8949, %v3909
        %v8998 = vsel %vm2597, %v8950, %v3911
        %v8999 = vsel %vm2597, %v8951, %v3913
        %v9000 = vsel %vm2597, %v8952, %v3915
        %v9001 = vsel %vm2597, %v8953, %v3917
        %v9002 = vsel %vm2597, %v8954, %v3919
        %v9003 = vsel %vm2597, %v8955, %v3921
        %v9004 = vsel %vm2597, %v8956, %v3923
        %v9005 = vsel %vm2597, %v8957, %v3925
        %v9006 = vsel %vm2597, %v8958, %v3927
        %v9007 = vsel %vm2597, %v8959, %v3929
        %v9008 = vsel %vm2597, %v8960, %v3931
        %v9009 = vsel %vm2630, %v8961, %v3986
        %v9010 = vsel %vm2630, %v8962, %v3988
        %v9011 = vsel %vm2630, %v8963, %v3990
        %v9012 = vsel %vm2630, %v8964, %v3992
        %v9013 = vsel %vm2630, %v8965, %v3994
        %v9014 = vsel %vm2630, %v8966, %v3996
        %v9015 = vsel %vm2630, %v8967, %v3998
        %v9016 = vsel %vm2630, %v8968, %v4000
        %v9017 = vsel %vm2630, %v8969, %v4002
        %v9018 = vsel %vm2630, %v8970, %v4004
        %v9019 = vsel %vm2630, %v8971, %v4006
        %v9020 = vsel %vm2630, %v8972, %v4008
        %v9021 = vsel %vm2630, %v8973, %v4010
        %v9022 = vsel %vm2630, %v8974, %v4012
        %v9023 = vsel %vm2630, %v8975, %v4014
        %v9024 = vsel %vm2630, %v8976, %v4016
        %v9025 = vsel %vm2630, %v8977, %v4018
        %v9026 = vsel %vm2630, %v8978, %v4020
        %v9027 = vsel %vm2630, %v8979, %v4022
        %v9028 = vsel %vm2630, %v8980, %v4024
        %v9029 = vsel %vm2630, %v8981, %v4026
        %v9030 = vsel %vm2630, %v8982, %v4028
        %v9031 = vsel %vm2630, %v8983, %v4030
        %v9032 = vsel %vm2630, %v8984, %v4032
        %v9033 = vsel %vm2630, %v8985, %v4034
        %v9034 = vsel %vm2630, %v8986, %v4036
        %v9035 = vsel %vm2630, %v8987, %v4038
        %v9036 = vsel %vm2630, %v8988, %v4040
        %v9037 = vsel %vm2630, %v8989, %v4042
        %v9038 = vsel %vm2630, %v8990, %v4044
        %v9039 = vsel %vm2630, %v8991, %v4046
        %v9040 = vsel %vm2630, %v8992, %v4048
        %v9041 = vsel %vm2630, %v8993, %v4050
        %v9042 = vsel %vm2630, %v8994, %v4052
        %v9043 = vsel %vm2630, %v8995, %v4054
        %v9044 = vsel %vm2630, %v8996, %v4056
        %v9045 = vsel %vm2630, %v8997, %v4058
        %v9046 = vsel %vm2630, %v8998, %v4060
        %v9047 = vsel %vm2630, %v8999, %v4062
        %v9048 = vsel %vm2630, %v9000, %v4064
        %v9049 = vsel %vm2630, %v9001, %v4066
        %v9050 = vsel %vm2630, %v9002, %v4068
        %v9051 = vsel %vm2630, %v9003, %v4070
        %v9052 = vsel %vm2630, %v9004, %v4072
        %v9053 = vsel %vm2630, %v9005, %v4074
        %v9054 = vsel %vm2630, %v9006, %v4076
        %v9055 = vsel %vm2630, %v9007, %v4078
        %v9056 = vsel %vm2630, %v9008, %v4080
        %v9057 = vsel %vm2663, %v9009, %v8266
        %v9058 = vsel %vm2663, %v9010, %v8268
        %v9059 = vsel %vm2663, %v9011, %v8270
        %v9060 = vsel %vm2663, %v9012, %v8272
        %v9061 = vsel %vm2663, %v9013, %v8274
        %v9062 = vsel %vm2663, %v9014, %v8276
        %v9063 = vsel %vm2663, %v9015, %v8278
        %v9064 = vsel %vm2663, %v9016, %v8280
        %v9065 = vsel %vm2663, %v9017, %v8282
        %v9066 = vsel %vm2663, %v9018, %v8284
        %v9067 = vsel %vm2663, %v9019, %v8286
        %v9068 = vsel %vm2663, %v9020, %v8288
        %v9069 = vsel %vm2663, %v9021, %v8290
        %v9070 = vsel %vm2663, %v9022, %v8292
        %v9071 = vsel %vm2663, %v9023, %v8294
        %v9072 = vsel %vm2663, %v9024, %v8296
        %v9073 = vsel %vm2663, %v9025, %v8298
        %v9074 = vsel %vm2663, %v9026, %v8300
        %v9075 = vsel %vm2663, %v9027, %v8302
        %v9076 = vsel %vm2663, %v9028, %v8304
        %v9077 = vsel %vm2663, %v9029, %v8306
        %v9078 = vsel %vm2663, %v9030, %v8308
        %v9079 = vsel %vm2663, %v9031, %v8310
        %v9080 = vsel %vm2663, %v9032, %v8312
        %v9081 = vsel %vm2663, %v9033, %v8314
        %v9082 = vsel %vm2663, %v9034, %v8316
        %v9083 = vsel %vm2663, %v9035, %v8318
        %v9084 = vsel %vm2663, %v9036, %v8320
        %v9085 = vsel %vm2663, %v9037, %v8322
        %v9086 = vsel %vm2663, %v9038, %v8324
        %v9087 = vsel %vm2663, %v9039, %v8326
        %v9088 = vsel %vm2663, %v9040, %v8328
        %v9089 = vsel %vm2663, %v9041, %v8330
        %v9090 = vsel %vm2663, %v9042, %v8332
        %v9091 = vsel %vm2663, %v9043, %v8334
        %v9092 = vsel %vm2663, %v9044, %v8336
        %v9093 = vsel %vm2663, %v9045, %v8338
        %v9094 = vsel %vm2663, %v9046, %v8340
        %v9095 = vsel %vm2663, %v9047, %v8342
        %v9096 = vsel %vm2663, %v9048, %v8344
        %v9097 = vsel %vm2663, %v9049, %v8346
        %v9098 = vsel %vm2663, %v9050, %v8348
        %v9099 = vsel %vm2663, %v9051, %v8350
        %v9100 = vsel %vm2663, %v9052, %v8352
        %v9101 = vsel %vm2663, %v9053, %v8354
        %v9102 = vsel %vm2663, %v9054, %v8356
        %v9103 = vsel %vm2663, %v9055, %v8358
        %v9104 = vsel %vm2663, %v9056, %v8360
        %v9105 = vsel %vm2696, %v9057, %v8414
        %v9106 = vsel %vm2696, %v9058, %v8416
        %v9107 = vsel %vm2696, %v9059, %v8418
        %v9108 = vsel %vm2696, %v9060, %v8420
        %v9109 = vsel %vm2696, %v9061, %v8422
        %v9110 = vsel %vm2696, %v9062, %v8424
        %v9111 = vsel %vm2696, %v9063, %v8426
        %v9112 = vsel %vm2696, %v9064, %v8428
        %v9113 = vsel %vm2696, %v9065, %v8430
        %v9114 = vsel %vm2696, %v9066, %v8432
        %v9115 = vsel %vm2696, %v9067, %v8434
        %v9116 = vsel %vm2696, %v9068, %v8436
        %v9117 = vsel %vm2696, %v9069, %v8438
        %v9118 = vsel %vm2696, %v9070, %v8440
        %v9119 = vsel %vm2696, %v9071, %v8442
        %v9120 = vsel %vm2696, %v9072, %v8444
        %v9121 = vsel %vm2696, %v9073, %v8446
        %v9122 = vsel %vm2696, %v9074, %v8448
        %v9123 = vsel %vm2696, %v9075, %v8450
        %v9124 = vsel %vm2696, %v9076, %v8452
        %v9125 = vsel %vm2696, %v9077, %v8454
        %v9126 = vsel %vm2696, %v9078, %v8456
        %v9127 = vsel %vm2696, %v9079, %v8458
        %v9128 = vsel %vm2696, %v9080, %v8460
        %v9129 = vsel %vm2696, %v9081, %v8462
        %v9130 = vsel %vm2696, %v9082, %v8464
        %v9131 = vsel %vm2696, %v9083, %v8466
        %v9132 = vsel %vm2696, %v9084, %v8468
        %v9133 = vsel %vm2696, %v9085, %v8470
        %v9134 = vsel %vm2696, %v9086, %v8472
        %v9135 = vsel %vm2696, %v9087, %v8474
        %v9136 = vsel %vm2696, %v9088, %v8476
        %v9137 = vsel %vm2696, %v9089, %v8478
        %v9138 = vsel %vm2696, %v9090, %v8480
        %v9139 = vsel %vm2696, %v9091, %v8482
        %v9140 = vsel %vm2696, %v9092, %v8484
        %v9141 = vsel %vm2696, %v9093, %v8486
        %v9142 = vsel %vm2696, %v9094, %v8488
        %v9143 = vsel %vm2696, %v9095, %v8490
        %v9144 = vsel %vm2696, %v9096, %v8492
        %v9145 = vsel %vm2696, %v9097, %v8494
        %v9146 = vsel %vm2696, %v9098, %v8496
        %v9147 = vsel %vm2696, %v9099, %v8498
        %v9148 = vsel %vm2696, %v9100, %v8500
        %v9149 = vsel %vm2696, %v9101, %v8502
        %v9150 = vsel %vm2696, %v9102, %v8504
        %v9151 = vsel %vm2696, %v9103, %v8506
        %v9152 = vsel %vm2696, %v9104, %v8508
        %v9153 = vsel %vm2729, %v9105, %v8578
        %v9154 = vsel %vm2729, %v9106, %v8580
        %v9155 = vsel %vm2729, %v9107, %v8582
        %v9156 = vsel %vm2729, %v9108, %v8584
        %v9157 = vsel %vm2729, %v9109, %v8586
        %v9158 = vsel %vm2729, %v9110, %v8588
        %v9159 = vsel %vm2729, %v9111, %v8590
        %v9160 = vsel %vm2729, %v9112, %v8592
        %v9161 = vsel %vm2729, %v9113, %v8594
        %v9162 = vsel %vm2729, %v9114, %v8596
        %v9163 = vsel %vm2729, %v9115, %v8598
        %v9164 = vsel %vm2729, %v9116, %v8600
        %v9165 = vsel %vm2729, %v9117, %v8602
        %v9166 = vsel %vm2729, %v9118, %v8604
        %v9167 = vsel %vm2729, %v9119, %v8606
        %v9168 = vsel %vm2729, %v9120, %v8608
        %v9169 = vsel %vm2729, %v9121, %v8610
        %v9170 = vsel %vm2729, %v9122, %v8612
        %v9171 = vsel %vm2729, %v9123, %v8614
        %v9172 = vsel %vm2729, %v9124, %v8616
        %v9173 = vsel %vm2729, %v9125, %v8618
        %v9174 = vsel %vm2729, %v9126, %v8620
        %v9175 = vsel %vm2729, %v9127, %v8622
        %v9176 = vsel %vm2729, %v9128, %v8624
        %v9177 = vsel %vm2729, %v9129, %v8626
        %v9178 = vsel %vm2729, %v9130, %v8628
        %v9179 = vsel %vm2729, %v9131, %v8630
        %v9180 = vsel %vm2729, %v9132, %v8632
        %v9181 = vsel %vm2729, %v9133, %v8634
        %v9182 = vsel %vm2729, %v9134, %v8636
        %v9183 = vsel %vm2729, %v9135, %v8638
        %v9184 = vsel %vm2729, %v9136, %v8640
        %v9185 = vsel %vm2729, %v9137, %v8642
        %v9186 = vsel %vm2729, %v9138, %v8644
        %v9187 = vsel %vm2729, %v9139, %v8646
        %v9188 = vsel %vm2729, %v9140, %v8648
        %v9189 = vsel %vm2729, %v9141, %v8650
        %v9190 = vsel %vm2729, %v9142, %v8652
        %v9191 = vsel %vm2729, %v9143, %v8654
        %v9192 = vsel %vm2729, %v9144, %v8656
        %v9193 = vsel %vm2729, %v9145, %v8658
        %v9194 = vsel %vm2729, %v9146, %v8660
        %v9195 = vsel %vm2729, %v9147, %v8662
        %v9196 = vsel %vm2729, %v9148, %v8664
        %v9197 = vsel %vm2729, %v9149, %v8666
        %v9198 = vsel %vm2729, %v9150, %v8668
        %v9199 = vsel %vm2729, %v9151, %v8670
        %v9200 = vsel %vm2729, %v9152, %v8672
        %v9249 = vrot.slane %v9153, 1
        %v9250 = vrot.slane %v9154, 1
        %v9251 = vsel %vm581, %v9249, %v9250
        %v9252 = vrot.slane %v9155, 1
        %v9253 = vsel %vm581, %v9250, %v9252
        %v9254 = vrot.slane %v9156, 1
        %v9255 = vrot.slane %v9157, 1
        %v9256 = vsel %vm581, %v9254, %v9255
        %v9257 = vrot.slane %v9158, 1
        %v9258 = vsel %vm581, %v9255, %v9257
        %v9259 = vrot.slane %v9159, 1
        %v9260 = vrot.slane %v9160, 1
        %v9261 = vsel %vm581, %v9259, %v9260
        %v9262 = vrot.slane %v9161, 1
        %v9263 = vsel %vm581, %v9260, %v9262
        %v9264 = vrot.slane %v9162, 1
        %v9265 = vrot.slane %v9163, 1
        %v9266 = vsel %vm581, %v9264, %v9265
        %v9267 = vrot.slane %v9164, 1
        %v9268 = vsel %vm581, %v9265, %v9267
        %v9269 = vrot.slane %v9165, 1
        %v9270 = vrot.slane %v9166, 1
        %v9271 = vsel %vm581, %v9269, %v9270
        %v9272 = vrot.slane %v9167, 1
        %v9273 = vsel %vm581, %v9270, %v9272
        %v9274 = vrot.slane %v9168, 1
        %v9275 = vrot.slane %v9169, 1
        %v9276 = vsel %vm581, %v9274, %v9275
        %v9277 = vrot.slane %v9170, 1
        %v9278 = vsel %vm581, %v9275, %v9277
        %v9279 = vrot.slane %v9171, 1
        %v9280 = vrot.slane %v9172, 1
        %v9281 = vsel %vm581, %v9279, %v9280
        %v9282 = vrot.slane %v9173, 1
        %v9283 = vsel %vm581, %v9280, %v9282
        %v9284 = vrot.slane %v9174, 1
        %v9285 = vrot.slane %v9175, 1
        %v9286 = vsel %vm581, %v9284, %v9285
        %v9287 = vrot.slane %v9176, 1
        %v9288 = vsel %vm581, %v9285, %v9287
        %v9289 = vrot.slane %v9177, 1
        %v9290 = vrot.slane %v9178, 1
        %v9291 = vsel %vm581, %v9289, %v9290
        %v9292 = vrot.slane %v9179, 1
        %v9293 = vsel %vm581, %v9290, %v9292
        %v9294 = vrot.slane %v9180, 1
        %v9295 = vrot.slane %v9181, 1
        %v9296 = vsel %vm581, %v9294, %v9295
        %v9297 = vrot.slane %v9182, 1
        %v9298 = vsel %vm581, %v9295, %v9297
        %v9299 = vrot.slane %v9183, 1
        %v9300 = vrot.slane %v9184, 1
        %v9301 = vsel %vm581, %v9299, %v9300
        %v9302 = vrot.slane %v9185, 1
        %v9303 = vsel %vm581, %v9300, %v9302
        %v9304 = vrot.slane %v9186, 1
        %v9305 = vrot.slane %v9187, 1
        %v9306 = vsel %vm581, %v9304, %v9305
        %v9307 = vrot.slane %v9188, 1
        %v9308 = vsel %vm581, %v9305, %v9307
        %v9309 = vrot.slane %v9189, 1
        %v9310 = vrot.slane %v9190, 1
        %v9311 = vsel %vm581, %v9309, %v9310
        %v9312 = vrot.slane %v9191, 1
        %v9313 = vsel %vm581, %v9310, %v9312
        %v9314 = vrot.slane %v9192, 1
        %v9315 = vrot.slane %v9193, 1
        %v9316 = vsel %vm581, %v9314, %v9315
        %v9317 = vrot.slane %v9194, 1
        %v9318 = vsel %vm581, %v9315, %v9317
        %v9319 = vrot.slane %v9195, 1
        %v9320 = vrot.slane %v9196, 1
        %v9321 = vsel %vm581, %v9319, %v9320
        %v9322 = vrot.slane %v9197, 1
        %v9323 = vsel %vm581, %v9320, %v9322
        %v9324 = vrot.slane %v9198, 1
        %v9325 = vrot.slane %v9199, 1
        %v9326 = vsel %vm581, %v9324, %v9325
        %v9327 = vrot.slane %v9200, 1
        %v9328 = vsel %vm581, %v9325, %v9327
        %9329 = vrot.lane.b32.xlu0 %v9251, 64
        %v9330 = vpop.permute.xlu0 %9329
        %9331 = vrot.lane.b32.xlu0 %v9253, 64
        %v9332 = vpop.permute.xlu0 %9331
        %9333 = vrot.lane.b32.xlu0 %v9256, 64
        %v9334 = vpop.permute.xlu0 %9333
        %9335 = vrot.lane.b32.xlu0 %v9258, 64
        %v9336 = vpop.permute.xlu0 %9335
        %9337 = vrot.lane.b32.xlu0 %v9261, 64
        %v9338 = vpop.permute.xlu0 %9337
        %9339 = vrot.lane.b32.xlu0 %v9263, 64
        %v9340 = vpop.permute.xlu0 %9339
        %9341 = vrot.lane.b32.xlu0 %v9266, 64
        %v9342 = vpop.permute.xlu0 %9341
        %9343 = vrot.lane.b32.xlu0 %v9268, 64
        %v9344 = vpop.permute.xlu0 %9343
        %9345 = vrot.lane.b32.xlu0 %v9271, 64
        %v9346 = vpop.permute.xlu0 %9345
        %9347 = vrot.lane.b32.xlu0 %v9273, 64
        %v9348 = vpop.permute.xlu0 %9347
        %9349 = vrot.lane.b32.xlu0 %v9276, 64
        %v9350 = vpop.permute.xlu0 %9349
        %9351 = vrot.lane.b32.xlu0 %v9278, 64
        %v9352 = vpop.permute.xlu0 %9351
        %9353 = vrot.lane.b32.xlu0 %v9281, 64
        %v9354 = vpop.permute.xlu0 %9353
        %9355 = vrot.lane.b32.xlu0 %v9283, 64
        %v9356 = vpop.permute.xlu0 %9355
        %9357 = vrot.lane.b32.xlu0 %v9286, 64
        %v9358 = vpop.permute.xlu0 %9357
        %9359 = vrot.lane.b32.xlu0 %v9288, 64
        %v9360 = vpop.permute.xlu0 %9359
        %9361 = vrot.lane.b32.xlu0 %v9291, 64
        %v9362 = vpop.permute.xlu0 %9361
        %9363 = vrot.lane.b32.xlu0 %v9293, 64
        %v9364 = vpop.permute.xlu0 %9363
        %9365 = vrot.lane.b32.xlu0 %v9296, 64
        %v9366 = vpop.permute.xlu0 %9365
        %9367 = vrot.lane.b32.xlu0 %v9298, 64
        %v9368 = vpop.permute.xlu0 %9367
        %9369 = vrot.lane.b32.xlu0 %v9301, 64
        %v9370 = vpop.permute.xlu0 %9369
        %9371 = vrot.lane.b32.xlu0 %v9303, 64
        %v9372 = vpop.permute.xlu0 %9371
        %9373 = vrot.lane.b32.xlu0 %v9306, 64
        %v9374 = vpop.permute.xlu0 %9373
        %9375 = vrot.lane.b32.xlu0 %v9308, 64
        %v9376 = vpop.permute.xlu0 %9375
        %9377 = vrot.lane.b32.xlu0 %v9311, 64
        %v9378 = vpop.permute.xlu0 %9377
        %9379 = vrot.lane.b32.xlu0 %v9313, 64
        %v9380 = vpop.permute.xlu0 %9379
        %9381 = vrot.lane.b32.xlu0 %v9316, 64
        %v9382 = vpop.permute.xlu0 %9381
        %9383 = vrot.lane.b32.xlu0 %v9318, 64
        %v9384 = vpop.permute.xlu0 %9383
        %9385 = vrot.lane.b32.xlu0 %v9321, 64
        %v9386 = vpop.permute.xlu0 %9385
        %9387 = vrot.lane.b32.xlu0 %v9323, 64
        %v9388 = vpop.permute.xlu0 %9387
        %9389 = vrot.lane.b32.xlu0 %v9326, 64
        %v9390 = vpop.permute.xlu0 %9389
        %9391 = vrot.lane.b32.xlu0 %v9328, 64
        %v9392 = vpop.permute.xlu0 %9391
        %v9425 = vsel %vm5276, %v7437, %v9330
        %v9426 = vsel %vm5276, %v7438, %v9332
        %v9427 = vsel %vm5276, %v7439, %v9334
        %v9428 = vsel %vm5276, %v7440, %v9336
        %v9429 = vsel %vm5276, %v7441, %v9338
        %v9430 = vsel %vm5276, %v7442, %v9340
        %v9431 = vsel %vm5276, %v7443, %v9342
        %v9432 = vsel %vm5276, %v7444, %v9344
        %v9433 = vsel %vm5276, %v7445, %v9346
        %v9434 = vsel %vm5276, %v7446, %v9348
        %v9435 = vsel %vm5276, %v7447, %v9350
        %v9436 = vsel %vm5276, %v7448, %v9352
        %v9437 = vsel %vm5276, %v7449, %v9354
        %v9438 = vsel %vm5276, %v7450, %v9356
        %v9439 = vsel %vm5276, %v7451, %v9358
        %v9440 = vsel %vm5276, %v7452, %v9360
        %v9441 = vsel %vm5276, %v7453, %v9362
        %v9442 = vsel %vm5276, %v7454, %v9364
        %v9443 = vsel %vm5276, %v7455, %v9366
        %v9444 = vsel %vm5276, %v7456, %v9368
        %v9445 = vsel %vm5276, %v7457, %v9370
        %v9446 = vsel %vm5276, %v7458, %v9372
        %v9447 = vsel %vm5276, %v7459, %v9374
        %v9448 = vsel %vm5276, %v7460, %v9376
        %v9449 = vsel %vm5276, %v7461, %v9378
        %v9450 = vsel %vm5276, %v7462, %v9380
        %v9451 = vsel %vm5276, %v7463, %v9382
        %v9452 = vsel %vm5276, %v7464, %v9384
        %v9453 = vsel %vm5276, %v7465, %v9386
        %v9454 = vsel %vm5276, %v7466, %v9388
        %v9455 = vsel %vm5276, %v7467, %v9390
        %v9456 = vsel %vm5276, %v7468, %v9392
        %v9457 = vld [vmem:[%s2] sm:$0xff]
        %v9458 = vld [vmem:[%s2 + $0x8] sm:$0xff]
        %v9459 = vld [vmem:[%s2 + $0x10] sm:$0xff]
        %v9460 = vld [vmem:[%s2 + $0x18] sm:$0xff]
        %v9461 = vld [vmem:[%s2 + $0x20] sm:$0xff]
        %v9462 = vld [vmem:[%s2 + $0x28] sm:$0xff]
        %v9463 = vld [vmem:[%s2 + $0x30] sm:$0xff]
        %v9464 = vld [vmem:[%s2 + $0x38] sm:$0xff]
        %v9465 = vld [vmem:[%s2 + $0x40] sm:$0xff]
        %v9466 = vld [vmem:[%s2 + $0x48] sm:$0xff]
        %v9467 = vld [vmem:[%s2 + $0x50] sm:$0xff]
        %v9468 = vld [vmem:[%s2 + $0x58] sm:$0xff]
        %v9469 = vld [vmem:[%s2 + $0x60] sm:$0xff]
        %v9470 = vld [vmem:[%s2 + $0x68] sm:$0xf]
        %v9472 = vsel %vm5323, %v9425, 0
        %v9475 = vsel %vm5323, %v9426, 0
        %v9478 = vsel %vm5323, %v9427, 0
        %v9481 = vsel %vm5323, %v9428, 0
        %v9484 = vsel %vm5323, %v9429, 0
        %v9487 = vsel %vm5323, %v9430, 0
        %v9490 = vsel %vm5323, %v9431, 0
        %v9493 = vsel %vm5323, %v9432, 0
        %v9496 = vsel %vm5323, %v9433, 0
        %v9499 = vsel %vm5323, %v9434, 0
        %v9502 = vsel %vm5323, %v9435, 0
        %v9505 = vsel %vm5323, %v9436, 0
        %v9508 = vsel %vm5323, %v9437, 0
        %v9511 = vsel %vm5323, %v9438, 0
        %v9514 = vsel %vm5323, %v9439, 0
        %v9517 = vsel %vm5323, %v9440, 0
        %v9520 = vsel %vm5323, %v9441, 0
        %v9523 = vsel %vm5323, %v9442, 0
        %v9526 = vsel %vm5323, %v9443, 0
        %v9529 = vsel %vm5323, %v9444, 0
        %v9532 = vsel %vm5323, %v9445, 0
        %v9535 = vsel %vm5323, %v9446, 0
        %v9538 = vsel %vm5323, %v9447, 0
        %v9541 = vsel %vm5323, %v9448, 0
        %v9544 = vsel %vm5323, %v9449, 0
        %v9547 = vsel %vm5323, %v9450, 0
        %v9550 = vsel %vm5323, %v9451, 0
        %v9553 = vsel %vm5323, %v9452, 0
        %v9556 = vsel %vm5323, %v9453, 0
        %v9559 = vsel %vm5323, %v9454, 0
        %v9562 = vsel %vm5323, %v9455, 0
        %v9565 = vsel %vm5323, %v9456, 0
        %v9568 = vsel %vm5420, %v9470, 0
        %9570 = vmatprep.subr.mxu0 0.0
        %9571 = vmatpush1.msra.mxu0 %v9457
        %9572 = vmatprep.subr.mxu0 0.0
        %9573 = vmatpush1.msra.mxu0 %v9458
        %9574 = vmatprep.subr.mxu0 0.0
        %9575 = vmatpush1.msra.mxu0 %v9459
        %9576 = vmatprep.subr.mxu0 0.0
        %9577 = vmatpush1.msra.mxu0 %v9460
        %9578 = vmatprep.subr.mxu0 0.0
        %9579 = vmatpush1.msra.mxu0 %v9461
        %9580 = vmatprep.subr.mxu0 0.0
        %9581 = vmatpush1.msra.mxu0 %v9462
        %9582 = vmatprep.subr.mxu0 0.0
        %9583 = vmatpush1.msra.mxu0 %v9463
        %9584 = vmatprep.subr.mxu0 0.0
        %9585 = vmatpush1.msra.mxu0 %v9464
        %9586 = vmatprep.subr.mxu0 0.0
        %9587 = vmatpush1.msra.mxu0 %v9465
        %9588 = vmatprep.subr.mxu0 0.0
        %9589 = vmatpush1.msra.mxu0 %v9466
        %9590 = vmatprep.subr.mxu0 0.0
        %9591 = vmatpush1.msra.mxu0 %v9467
        %9592 = vmatprep.subr.mxu0 0.0
        %9593 = vmatpush1.msra.mxu0 %v9468
        %9594 = vmatprep.subr.mxu0 0.0
        %9595 = vmatpush1.msra.mxu0 %v9469
        %9596 = vmatprep.subr.mxu0 0.0
        %9597 = vmatpush1.msra.mxu0 %v9568
        %9598 = vmatprep.subr.mxu0 0.0
        %9599 = vmatpush1.msra.mxu0 0.0
        %9600 = vmatprep.subr.mxu0 0.0
        %9601 = vmatpush1.msra.mxu0 0.0
        %9602 = vmatprep.subr.mxu0 0.0
        %9603 = vmatpush1.msra.mxu0 0.0
        %9604 = vmatprep.subr.mxu0 0.0
        %9605 = vmatpush1.msra.mxu0 0.0
        %9606 = vmatprep.subr.mxu0 0.0
        %9607 = vmatpush1.msra.mxu0 0.0
        %9608 = vmatprep.subr.mxu0 0.0
        %9609 = vmatpush1.msra.mxu0 0.0
        %9610 = vmatprep.subr.mxu0 0.0
        %9611 = vmatpush1.msra.mxu0 0.0
        %9612 = vmatprep.subr.mxu0 0.0
        %9613 = vmatpush1.msra.mxu0 0.0
        %9614 = vmatprep.subr.mxu0 0.0
        %9615 = vmatpush1.msra.mxu0 0.0
        %9616 = vmatprep.subr.mxu0 0.0
        %9617 = vmatpush1.msra.mxu0 0.0
        %9618 = vmatprep.subr.mxu0 0.0
        %9619 = vmatpush1.msra.mxu0 0.0
        %9620 = vmatprep.subr.mxu0 0.0
        %9621 = vmatpush1.msra.mxu0 0.0
        %9622 = vmatprep.subr.mxu0 0.0
        %9623 = vmatpush1.msra.mxu0 0.0
        %9624 = vmatprep.subr.mxu0 0.0
        %9625 = vmatpush1.msra.mxu0 0.0
        %9626 = vmatprep.subr.mxu0 0.0
        %9627 = vmatpush1.msra.mxu0 0.0
        %9628 = vmatprep.subr.mxu0 0.0
        %9629 = vmatpush1.msra.mxu0 0.0
        %9630 = vmatprep.subr.mxu0 0.0
        %9631 = vmatpush1.msra.mxu0 0.0
        %9632 = vmatprep.subr.mxu0 0.0
        %9633 = vmatpush1.msra.mxu0 0.0
        %9634 = vmatprep.mubr.f32.mxu0 0.0
        %9635 = vmatmul.mubr.f32.gmra.mrb[0].mxu0 %v9472
        %v9636 = vpop.f32.mrb[0].mxu0
        %v9637 = vadd.f32 0.0, %v9636
        %v9638 = vpop.f32.mrb[0].mxu0
        %9639 = vmatprep.mubr.f32.mxu0 0.0
        %9640 = vmatmul.mubr.f32.gmra.mrb[0].mxu0 %v9475
        %v9641 = vpop.f32.mrb[0].mxu0
        %v9642 = vadd.f32 0.0, %v9641
        %v9643 = vpop.f32.mrb[0].mxu0
        %9644 = vmatprep.mubr.f32.mxu0 0.0
        %9645 = vmatmul.mubr.f32.gmra.mrb[0].mxu0 %v9478
        %v9646 = vpop.f32.mrb[0].mxu0
        %v9647 = vadd.f32 0.0, %v9646
        %v9648 = vpop.f32.mrb[0].mxu0
        %9649 = vmatprep.mubr.f32.mxu0 0.0
        %9650 = vmatmul.mubr.f32.gmra.mrb[0].mxu0 %v9481
        %v9651 = vpop.f32.mrb[0].mxu0
        %v9652 = vadd.f32 0.0, %v9651
        %v9653 = vpop.f32.mrb[0].mxu0
        %9654 = vmatprep.mubr.f32.mxu0 0.0
        %9655 = vmatmul.mubr.f32.gmra.mrb[0].mxu0 %v9484
        %v9656 = vpop.f32.mrb[0].mxu0
        %v9657 = vadd.f32 0.0, %v9656
        %v9658 = vpop.f32.mrb[0].mxu0
        %9659 = vmatprep.mubr.f32.mxu0 0.0
        %9660 = vmatmul.mubr.f32.gmra.mrb[0].mxu0 %v9487
        %v9661 = vpop.f32.mrb[0].mxu0
        %v9662 = vadd.f32 0.0, %v9661
        %v9663 = vpop.f32.mrb[0].mxu0
        %9664 = vmatprep.mubr.f32.mxu0 0.0
        %9665 = vmatmul.mubr.f32.gmra.mrb[0].mxu0 %v9490
        %v9666 = vpop.f32.mrb[0].mxu0
        %v9667 = vadd.f32 0.0, %v9666
        %v9668 = vpop.f32.mrb[0].mxu0
        %9669 = vmatprep.mubr.f32.mxu0 0.0
        %9670 = vmatmul.mubr.f32.gmra.mrb[0].mxu0 %v9493
        %v9671 = vpop.f32.mrb[0].mxu0
        %v9672 = vadd.f32 0.0, %v9671
        %v9673 = vpop.f32.mrb[0].mxu0
        %9674 = vmatprep.mubr.f32.mxu0 0.0
        %9675 = vmatmul.mubr.f32.gmra.mrb[0].mxu0 %v9496
        %v9676 = vpop.f32.mrb[0].mxu0
        %v9677 = vadd.f32 0.0, %v9676
        %v9678 = vpop.f32.mrb[0].mxu0
        %9679 = vmatprep.mubr.f32.mxu0 0.0
        %9680 = vmatmul.mubr.f32.gmra.mrb[0].mxu0 %v9499
        %v9681 = vpop.f32.mrb[0].mxu0
        %v9682 = vadd.f32 0.0, %v9681
        %v9683 = vpop.f32.mrb[0].mxu0
        %9684 = vmatprep.mubr.f32.mxu0 0.0
        %9685 = vmatmul.mubr.f32.gmra.mrb[0].mxu0 %v9502
        %v9686 = vpop.f32.mrb[0].mxu0
        %v9687 = vadd.f32 0.0, %v9686
        %v9688 = vpop.f32.mrb[0].mxu0
        %9689 = vmatprep.mubr.f32.mxu0 0.0
        %9690 = vmatmul.mubr.f32.gmra.mrb[0].mxu0 %v9505
        %v9691 = vpop.f32.mrb[0].mxu0
        %v9692 = vadd.f32 0.0, %v9691
        %v9693 = vpop.f32.mrb[0].mxu0
        %9694 = vmatprep.mubr.f32.mxu0 0.0
        %9695 = vmatmul.mubr.f32.gmra.mrb[0].mxu0 %v9508
        %v9696 = vpop.f32.mrb[0].mxu0
        %v9697 = vadd.f32 0.0, %v9696
        %v9698 = vpop.f32.mrb[0].mxu0
        %9699 = vmatprep.mubr.f32.mxu0 0.0
        %9700 = vmatmul.mubr.f32.gmra.mrb[0].mxu0 %v9511
        %v9701 = vpop.f32.mrb[0].mxu0
        %v9702 = vadd.f32 0.0, %v9701
        %v9703 = vpop.f32.mrb[0].mxu0
        %9704 = vmatprep.mubr.f32.mxu0 0.0
        %9705 = vmatmul.mubr.f32.gmra.mrb[0].mxu0 %v9514
        %v9706 = vpop.f32.mrb[0].mxu0
        %v9707 = vadd.f32 0.0, %v9706
        %v9708 = vpop.f32.mrb[0].mxu0
        %9709 = vmatprep.mubr.f32.mxu0 0.0
        %9710 = vmatmul.mubr.f32.gmra.mrb[0].mxu0 %v9517
        %v9711 = vpop.f32.mrb[0].mxu0
        %v9712 = vadd.f32 0.0, %v9711
        %v9713 = vpop.f32.mrb[0].mxu0
        %9714 = vmatprep.mubr.f32.mxu0 0.0
        %9715 = vmatmul.mubr.f32.gmra.mrb[0].mxu0 %v9520
        %v9716 = vpop.f32.mrb[0].mxu0
        %v9717 = vadd.f32 0.0, %v9716
        %v9718 = vpop.f32.mrb[0].mxu0
        %9719 = vmatprep.mubr.f32.mxu0 0.0
        %9720 = vmatmul.mubr.f32.gmra.mrb[0].mxu0 %v9523
        %v9721 = vpop.f32.mrb[0].mxu0
        %v9722 = vadd.f32 0.0, %v9721
        %v9723 = vpop.f32.mrb[0].mxu0
        %9724 = vmatprep.mubr.f32.mxu0 0.0
        %9725 = vmatmul.mubr.f32.gmra.mrb[0].mxu0 %v9526
        %v9726 = vpop.f32.mrb[0].mxu0
        %v9727 = vadd.f32 0.0, %v9726
        %v9728 = vpop.f32.mrb[0].mxu0
        %9729 = vmatprep.mubr.f32.mxu0 0.0
        %9730 = vmatmul.mubr.f32.gmra.mrb[0].mxu0 %v9529
        %v9731 = vpop.f32.mrb[0].mxu0
        %v9732 = vadd.f32 0.0, %v9731
        %v9733 = vpop.f32.mrb[0].mxu0
        %9734 = vmatprep.mubr.f32.mxu0 0.0
        %9735 = vmatmul.mubr.f32.gmra.mrb[0].mxu0 %v9532
        %v9736 = vpop.f32.mrb[0].mxu0
        %v9737 = vadd.f32 0.0, %v9736
        %v9738 = vpop.f32.mrb[0].mxu0
        %9739 = vmatprep.mubr.f32.mxu0 0.0
        %9740 = vmatmul.mubr.f32.gmra.mrb[0].mxu0 %v9535
        %v9741 = vpop.f32.mrb[0].mxu0
        %v9742 = vadd.f32 0.0, %v9741
        %v9743 = vpop.f32.mrb[0].mxu0
        %9744 = vmatprep.mubr.f32.mxu0 0.0
        %9745 = vmatmul.mubr.f32.gmra.mrb[0].mxu0 %v9538
        %v9746 = vpop.f32.mrb[0].mxu0
        %v9747 = vadd.f32 0.0, %v9746
        %v9748 = vpop.f32.mrb[0].mxu0
        %9749 = vmatprep.mubr.f32.mxu0 0.0
        %9750 = vmatmul.mubr.f32.gmra.mrb[0].mxu0 %v9541
        %v9751 = vpop.f32.mrb[0].mxu0
        %v9752 = vadd.f32 0.0, %v9751
        %v9753 = vpop.f32.mrb[0].mxu0
        %9754 = vmatprep.mubr.f32.mxu0 0.0
        %9755 = vmatmul.mubr.f32.gmra.mrb[0].mxu0 %v9544
        %v9756 = vpop.f32.mrb[0].mxu0
        %v9757 = vadd.f32 0.0, %v9756
        %v9758 = vpop.f32.mrb[0].mxu0
        %9759 = vmatprep.mubr.f32.mxu0 0.0
        %9760 = vmatmul.mubr.f32.gmra.mrb[0].mxu0 %v9547
        %v9761 = vpop.f32.mrb[0].mxu0
        %v9762 = vadd.f32 0.0, %v9761
        %v9763 = vpop.f32.mrb[0].mxu0
        %9764 = vmatprep.mubr.f32.mxu0 0.0
        %9765 = vmatmul.mubr.f32.gmra.mrb[0].mxu0 %v9550
        %v9766 = vpop.f32.mrb[0].mxu0
        %v9767 = vadd.f32 0.0, %v9766
        %v9768 = vpop.f32.mrb[0].mxu0
        %9769 = vmatprep.mubr.f32.mxu0 0.0
        %9770 = vmatmul.mubr.f32.gmra.mrb[0].mxu0 %v9553
        %v9771 = vpop.f32.mrb[0].mxu0
        %v9772 = vadd.f32 0.0, %v9771
        %v9773 = vpop.f32.mrb[0].mxu0
        %9774 = vmatprep.mubr.f32.mxu0 0.0
        %9775 = vmatmul.mubr.f32.gmra.mrb[0].mxu0 %v9556
        %v9776 = vpop.f32.mrb[0].mxu0
        %v9777 = vadd.f32 0.0, %v9776
        %v9778 = vpop.f32.mrb[0].mxu0
        %9779 = vmatprep.mubr.f32.mxu0 0.0
        %9780 = vmatmul.mubr.f32.gmra.mrb[0].mxu0 %v9559
        %v9781 = vpop.f32.mrb[0].mxu0
        %v9782 = vadd.f32 0.0, %v9781
        %v9783 = vpop.f32.mrb[0].mxu0
        %9784 = vmatprep.mubr.f32.mxu0 0.0
        %9785 = vmatmul.mubr.f32.gmra.mrb[0].mxu0 %v9562
        %v9786 = vpop.f32.mrb[0].mxu0
        %v9787 = vadd.f32 0.0, %v9786
        %v9788 = vpop.f32.mrb[0].mxu0
        %9789 = vmatprep.mubr.f32.mxu0 0.0
        %9790 = vmatmul.mubr.f32.gmra.mrb[0].mxu0 %v9565
        %v9791 = vpop.f32.mrb[0].mxu0
        %v9792 = vadd.f32 0.0, %v9791
        %v9793 = vpop.f32.mrb[0].mxu0
        %9794 = vdwg.mxu0
        %vm9795 = vcmp.ge.f32.partialorder %v5491, 0.0
        %vm9796 = vcmp.ge.f32.partialorder %v5496, 0.0
        %vm9797 = vcmp.ge.f32.partialorder %v5501, 0.0
        %vm9798 = vcmp.ge.f32.partialorder %v5506, 0.0
        %vm9799 = vcmp.ge.f32.partialorder %v5511, 0.0
        %vm9800 = vcmp.ge.f32.partialorder %v5516, 0.0
        %vm9801 = vcmp.ge.f32.partialorder %v5521, 0.0
        %vm9802 = vcmp.ge.f32.partialorder %v5526, 0.0
        %vm9803 = vcmp.ge.f32.partialorder %v5531, 0.0
        %vm9804 = vcmp.ge.f32.partialorder %v5536, 0.0
        %vm9805 = vcmp.ge.f32.partialorder %v5541, 0.0
        %vm9806 = vcmp.ge.f32.partialorder %v5546, 0.0
        %vm9807 = vcmp.ge.f32.partialorder %v5551, 0.0
        %vm9808 = vcmp.ge.f32.partialorder %v5556, 0.0
        %vm9809 = vcmp.ge.f32.partialorder %v5561, 0.0
        %vm9810 = vcmp.ge.f32.partialorder %v5566, 0.0
        %vm9811 = vcmp.ge.f32.partialorder %v5571, 0.0
        %vm9812 = vcmp.ge.f32.partialorder %v5576, 0.0
        %vm9813 = vcmp.ge.f32.partialorder %v5581, 0.0
        %vm9814 = vcmp.ge.f32.partialorder %v5586, 0.0
        %vm9815 = vcmp.ge.f32.partialorder %v5591, 0.0
        %vm9816 = vcmp.ge.f32.partialorder %v5596, 0.0
        %vm9817 = vcmp.ge.f32.partialorder %v5601, 0.0
        %vm9818 = vcmp.ge.f32.partialorder %v5606, 0.0
        %vm9819 = vcmp.ge.f32.partialorder %v5611, 0.0
        %vm9820 = vcmp.ge.f32.partialorder %v5616, 0.0
        %vm9821 = vcmp.ge.f32.partialorder %v5621, 0.0
        %vm9822 = vcmp.ge.f32.partialorder %v5626, 0.0
        %vm9823 = vcmp.ge.f32.partialorder %v5631, 0.0
        %vm9824 = vcmp.ge.f32.partialorder %v5636, 0.0
        %vm9825 = vcmp.ge.f32.partialorder %v5641, 0.0
        %vm9826 = vcmp.ge.f32.partialorder %v5646, 0.0
        %v9827 = vmul.f32 %v5491, 0.01
        %v9828 = vmul.f32 %v5496, 0.01
        %v9829 = vmul.f32 %v5501, 0.01
        %v9830 = vmul.f32 %v5506, 0.01
        %v9831 = vmul.f32 %v5511, 0.01
        %v9832 = vmul.f32 %v5516, 0.01
        %v9833 = vmul.f32 %v5521, 0.01
        %v9834 = vmul.f32 %v5526, 0.01
        %v9835 = vmul.f32 %v5531, 0.01
        %v9836 = vmul.f32 %v5536, 0.01
        %v9837 = vmul.f32 %v5541, 0.01
        %v9838 = vmul.f32 %v5546, 0.01
        %v9839 = vmul.f32 %v5551, 0.01
        %v9840 = vmul.f32 %v5556, 0.01
        %v9841 = vmul.f32 %v5561, 0.01
        %v9842 = vmul.f32 %v5566, 0.01
        %v9843 = vmul.f32 %v5571, 0.01
        %v9844 = vmul.f32 %v5576, 0.01
        %v9845 = vmul.f32 %v5581, 0.01
        %v9846 = vmul.f32 %v5586, 0.01
        %v9847 = vmul.f32 %v5591, 0.01
        %v9848 = vmul.f32 %v5596, 0.01
        %v9849 = vmul.f32 %v5601, 0.01
        %v9850 = vmul.f32 %v5606, 0.01
        %v9851 = vmul.f32 %v5611, 0.01
        %v9852 = vmul.f32 %v5616, 0.01
        %v9853 = vmul.f32 %v5621, 0.01
        %v9854 = vmul.f32 %v5626, 0.01
        %v9855 = vmul.f32 %v5631, 0.01
        %v9856 = vmul.f32 %v5636, 0.01
        %v9857 = vmul.f32 %v5641, 0.01
        %v9858 = vmul.f32 %v5646, 0.01
        %v9859 = vsel %vm9795, %v5491, %v9827
        %v9860 = vsel %vm9796, %v5496, %v9828
        %v9861 = vsel %vm9797, %v5501, %v9829
        %v9862 = vsel %vm9798, %v5506, %v9830
        %v9863 = vsel %vm9799, %v5511, %v9831
        %v9864 = vsel %vm9800, %v5516, %v9832
        %v9865 = vsel %vm9801, %v5521, %v9833
        %v9866 = vsel %vm9802, %v5526, %v9834
        %v9867 = vsel %vm9803, %v5531, %v9835
        %v9868 = vsel %vm9804, %v5536, %v9836
        %v9869 = vsel %vm9805, %v5541, %v9837
        %v9870 = vsel %vm9806, %v5546, %v9838
        %v9871 = vsel %vm9807, %v5551, %v9839
        %v9872 = vsel %vm9808, %v5556, %v9840
        %v9873 = vsel %vm9809, %v5561, %v9841
        %v9874 = vsel %vm9810, %v5566, %v9842
        %v9875 = vsel %vm9811, %v5571, %v9843
        %v9876 = vsel %vm9812, %v5576, %v9844
        %v9877 = vsel %vm9813, %v5581, %v9845
        %v9878 = vsel %vm9814, %v5586, %v9846
        %v9879 = vsel %vm9815, %v5591, %v9847
        %v9880 = vsel %vm9816, %v5596, %v9848
        %v9881 = vsel %vm9817, %v5601, %v9849
        %v9882 = vsel %vm9818, %v5606, %v9850
        %v9883 = vsel %vm9819, %v5611, %v9851
        %v9884 = vsel %vm9820, %v5616, %v9852
        %v9885 = vsel %vm9821, %v5621, %v9853
        %v9886 = vsel %vm9822, %v5626, %v9854
        %v9887 = vsel %vm9823, %v5631, %v9855
        %v9888 = vsel %vm9824, %v5636, %v9856
        %v9889 = vsel %vm9825, %v5641, %v9857
        %v9890 = vsel %vm9826, %v5646, %v9858
        %vm9891 = vcmp.ge.f32.partialorder %v9637, 0.0
        %vm9892 = vcmp.ge.f32.partialorder %v9642, 0.0
        %vm9893 = vcmp.ge.f32.partialorder %v9647, 0.0
        %vm9894 = vcmp.ge.f32.partialorder %v9652, 0.0
        %vm9895 = vcmp.ge.f32.partialorder %v9657, 0.0
        %vm9896 = vcmp.ge.f32.partialorder %v9662, 0.0
        %vm9897 = vcmp.ge.f32.partialorder %v9667, 0.0
        %vm9898 = vcmp.ge.f32.partialorder %v9672, 0.0
        %vm9899 = vcmp.ge.f32.partialorder %v9677, 0.0
        %vm9900 = vcmp.ge.f32.partialorder %v9682, 0.0
        %vm9901 = vcmp.ge.f32.partialorder %v9687, 0.0
        %vm9902 = vcmp.ge.f32.partialorder %v9692, 0.0
        %vm9903 = vcmp.ge.f32.partialorder %v9697, 0.0
        %vm9904 = vcmp.ge.f32.partialorder %v9702, 0.0
        %vm9905 = vcmp.ge.f32.partialorder %v9707, 0.0
        %vm9906 = vcmp.ge.f32.partialorder %v9712, 0.0
        %vm9907 = vcmp.ge.f32.partialorder %v9717, 0.0
        %vm9908 = vcmp.ge.f32.partialorder %v9722, 0.0
        %vm9909 = vcmp.ge.f32.partialorder %v9727, 0.0
        %vm9910 = vcmp.ge.f32.partialorder %v9732, 0.0
        %vm9911 = vcmp.ge.f32.partialorder %v9737, 0.0
        %vm9912 = vcmp.ge.f32.partialorder %v9742, 0.0
        %vm9913 = vcmp.ge.f32.partialorder %v9747, 0.0
        %vm9914 = vcmp.ge.f32.partialorder %v9752, 0.0
        %vm9915 = vcmp.ge.f32.partialorder %v9757, 0.0
        %vm9916 = vcmp.ge.f32.partialorder %v9762, 0.0
        %vm9917 = vcmp.ge.f32.partialorder %v9767, 0.0
        %vm9918 = vcmp.ge.f32.partialorder %v9772, 0.0
        %vm9919 = vcmp.ge.f32.partialorder %v9777, 0.0
        %vm9920 = vcmp.ge.f32.partialorder %v9782, 0.0
        %vm9921 = vcmp.ge.f32.partialorder %v9787, 0.0
        %vm9922 = vcmp.ge.f32.partialorder %v9792, 0.0
        %v9923 = vmul.f32 %v9637, 0.01
        %v9924 = vmul.f32 %v9642, 0.01
        %v9925 = vmul.f32 %v9647, 0.01
        %v9926 = vmul.f32 %v9652, 0.01
        %v9927 = vmul.f32 %v9657, 0.01
        %v9928 = vmul.f32 %v9662, 0.01
        %v9929 = vmul.f32 %v9667, 0.01
        %v9930 = vmul.f32 %v9672, 0.01
        %v9931 = vmul.f32 %v9677, 0.01
        %v9932 = vmul.f32 %v9682, 0.01
        %v9933 = vmul.f32 %v9687, 0.01
        %v9934 = vmul.f32 %v9692, 0.01
        %v9935 = vmul.f32 %v9697, 0.01
        %v9936 = vmul.f32 %v9702, 0.01
        %v9937 = vmul.f32 %v9707, 0.01
        %v9938 = vmul.f32 %v9712, 0.01
        %v9939 = vmul.f32 %v9717, 0.01
        %v9940 = vmul.f32 %v9722, 0.01
        %v9941 = vmul.f32 %v9727, 0.01
        %v9942 = vmul.f32 %v9732, 0.01
        %v9943 = vmul.f32 %v9737, 0.01
        %v9944 = vmul.f32 %v9742, 0.01
        %v9945 = vmul.f32 %v9747, 0.01
        %v9946 = vmul.f32 %v9752, 0.01
        %v9947 = vmul.f32 %v9757, 0.01
        %v9948 = vmul.f32 %v9762, 0.01
        %v9949 = vmul.f32 %v9767, 0.01
        %v9950 = vmul.f32 %v9772, 0.01
        %v9951 = vmul.f32 %v9777, 0.01
        %v9952 = vmul.f32 %v9782, 0.01
        %v9953 = vmul.f32 %v9787, 0.01
        %v9954 = vmul.f32 %v9792, 0.01
        %v9955 = vsel %vm9891, %v9637, %v9923
        %v9956 = vsel %vm9892, %v9642, %v9924
        %v9957 = vsel %vm9893, %v9647, %v9925
        %v9958 = vsel %vm9894, %v9652, %v9926
        %v9959 = vsel %vm9895, %v9657, %v9927
        %v9960 = vsel %vm9896, %v9662, %v9928
        %v9961 = vsel %vm9897, %v9667, %v9929
        %v9962 = vsel %vm9898, %v9672, %v9930
        %v9963 = vsel %vm9899, %v9677, %v9931
        %v9964 = vsel %vm9900, %v9682, %v9932
        %v9965 = vsel %vm9901, %v9687, %v9933
        %v9966 = vsel %vm9902, %v9692, %v9934
        %v9967 = vsel %vm9903, %v9697, %v9935
        %v9968 = vsel %vm9904, %v9702, %v9936
        %v9969 = vsel %vm9905, %v9707, %v9937
        %v9970 = vsel %vm9906, %v9712, %v9938
        %v9971 = vsel %vm9907, %v9717, %v9939
        %v9972 = vsel %vm9908, %v9722, %v9940
        %v9973 = vsel %vm9909, %v9727, %v9941
        %v9974 = vsel %vm9910, %v9732, %v9942
        %v9975 = vsel %vm9911, %v9737, %v9943
        %v9976 = vsel %vm9912, %v9742, %v9944
        %v9977 = vsel %vm9913, %v9747, %v9945
        %v9978 = vsel %vm9914, %v9752, %v9946
        %v9979 = vsel %vm9915, %v9757, %v9947
        %v9980 = vsel %vm9916, %v9762, %v9948
        %v9981 = vsel %vm9917, %v9767, %v9949
        %v9982 = vsel %vm9918, %v9772, %v9950
        %v9983 = vsel %vm9919, %v9777, %v9951
        %v9984 = vsel %vm9920, %v9782, %v9952
        %v9985 = vsel %vm9921, %v9787, %v9953
        %v9986 = vsel %vm9922, %v9792, %v9954
        %v9987 = vadd.f32 %v9859, %v9955
        %v9988 = vadd.f32 %v9860, %v9956
        %v9989 = vadd.f32 %v9861, %v9957
        %v9990 = vadd.f32 %v9862, %v9958
        %v9991 = vadd.f32 %v9863, %v9959
        %v9992 = vadd.f32 %v9864, %v9960
        %v9993 = vadd.f32 %v9865, %v9961
        %v9994 = vadd.f32 %v9866, %v9962
        %v9995 = vadd.f32 %v9867, %v9963
        %v9996 = vadd.f32 %v9868, %v9964
        %v9997 = vadd.f32 %v9869, %v9965
        %v9998 = vadd.f32 %v9870, %v9966
        %v9999 = vadd.f32 %v9871, %v9967
        %v10000 = vadd.f32 %v9872, %v9968
        %v10001 = vadd.f32 %v9873, %v9969
        %v10002 = vadd.f32 %v9874, %v9970
        %v10003 = vadd.f32 %v9875, %v9971
        %v10004 = vadd.f32 %v9876, %v9972
        %v10005 = vadd.f32 %v9877, %v9973
        %v10006 = vadd.f32 %v9878, %v9974
        %v10007 = vadd.f32 %v9879, %v9975
        %v10008 = vadd.f32 %v9880, %v9976
        %v10009 = vadd.f32 %v9881, %v9977
        %v10010 = vadd.f32 %v9882, %v9978
        %v10011 = vadd.f32 %v9883, %v9979
        %v10012 = vadd.f32 %v9884, %v9980
        %v10013 = vadd.f32 %v9885, %v9981
        %v10014 = vadd.f32 %v9886, %v9982
        %v10015 = vadd.f32 %v9887, %v9983
        %v10016 = vadd.f32 %v9888, %v9984
        %v10017 = vadd.f32 %v9889, %v9985
        %v10018 = vadd.f32 %v9890, %v9986
        %10019 = vst [vmem:[%s177] sm:$0xff] %v9987
        %10020 = vst [vmem:[%s177 + $0x8] sm:$0xff] %v9988
        %10021 = vst [vmem:[%s177 + $0x10] sm:$0xff] %v9989
        %10022 = vst [vmem:[%s177 + $0x18] sm:$0xff] %v9990
        %10023 = vst [vmem:[%s177 + $0x20] sm:$0xff] %v9991
        %10024 = vst [vmem:[%s177 + $0x28] sm:$0xff] %v9992
        %10025 = vst [vmem:[%s177 + $0x30] sm:$0xff] %v9993
        %10026 = vst [vmem:[%s177 + $0x38] sm:$0xff] %v9994
        %10027 = vst [vmem:[%s177 + $0x40] sm:$0xff] %v9995
        %10028 = vst [vmem:[%s177 + $0x48] sm:$0xff] %v9996
        %10029 = vst [vmem:[%s177 + $0x50] sm:$0xff] %v9997
        %10030 = vst [vmem:[%s177 + $0x58] sm:$0xff] %v9998
        %10031 = vst [vmem:[%s177 + $0x60] sm:$0xff] %v9999
        %10032 = vst [vmem:[%s177 + $0x68] sm:$0xff] %v10000
        %10033 = vst [vmem:[%s177 + $0x70] sm:$0xff] %v10001
        %10034 = vst [vmem:[%s177 + $0x78] sm:$0xff] %v10002
        %10035 = vst [vmem:[%s177 + $0x80] sm:$0xff] %v10003
        %10036 = vst [vmem:[%s177 + $0x88] sm:$0xff] %v10004
        %10037 = vst [vmem:[%s177 + $0x90] sm:$0xff] %v10005
        %10038 = vst [vmem:[%s177 + $0x98] sm:$0xff] %v10006
        %10039 = vst [vmem:[%s177 + $0xa0] sm:$0xff] %v10007
        %10040 = vst [vmem:[%s177 + $0xa8] sm:$0xff] %v10008
        %10041 = vst [vmem:[%s177 + $0xb0] sm:$0xff] %v10009
        %10042 = vst [vmem:[%s177 + $0xb8] sm:$0xff] %v10010
        %10043 = vst [vmem:[%s177 + $0xc0] sm:$0xff] %v10011
        %10044 = vst [vmem:[%s177 + $0xc8] sm:$0xff] %v10012
        %10045 = vst [vmem:[%s177 + $0xd0] sm:$0xff] %v10013
        %10046 = vst [vmem:[%s177 + $0xd8] sm:$0xff] %v10014
        %10047 = vst [vmem:[%s177 + $0xe0] sm:$0xff] %v10015
        %10048 = vst [vmem:[%s177 + $0xe8] sm:$0xff] %v10016
        %10049 = vst [vmem:[%s177 + $0xf0] sm:$0xff] %v10017
        %10050 = vst [vmem:[%s177 + $0xf8] sm:$0xff] %v10018
        %s10051 = sand.u32 %s107, 1
        %s10052 = scalar_lea.sflag [#allocation3], %s10051
        %s10053 = sand.u32 %s107, 1
        %s10054 = smul.addr %s10053, 256
        %s10055 = scalar_lea.vmem [#allocation2], %s10054
        // Predicated region
        $region33: #{tpu_custom_call.1} parent=31 // pred_check
          %p10056 = pneg %p117
        $region34: #{tpu_custom_call.1} parent=31 // pred_check_branch
          %10058 = sbr.rel (%p10056) target = $region36
        $region35: #{tpu_custom_call.1} parent=31 // pred_region
          %s10060 = ssub.s32 4096, 4096
          %10061 = vsyncadd %s10052, %s10060
          %s10062 = smul.addr %s22, 32
          %s10063 = smul.addr %s21, 128
          %s10064 = sadd.s32 %s10062, %s10063
          %s10065 = smul.addr %s10064, 128
          %s10066 = scalar_lea.hbm %s3, %s10065
          %s10067 = sshll.u32 %s10055, 4
          %s10068 = int_to_ptr.vmem [resolvable:$true] %s10067
          %10073 = dma.vmem_to_hbm [thread:$0]  %s10068, 4096, %s10066, %s10052, 128, 128, 8
        $region36: #{tpu_custom_call.1} parent=31 // pred_fallthru
          _
      $region32: #{tpu_custom_call.1} parent=5 // pred_fallthru
        _
      %p10074 = scmp.le.s32.totalorder 2, %s12
      // Predicated region
      $region37: #{tpu_custom_call.1} parent=5 // pred_check
        %p10075 = pneg %p10074
      $region38: #{tpu_custom_call.1} parent=5 // pred_check_branch
        %10077 = sbr.rel (%p10075) target = $region40
      $region39: #{tpu_custom_call.1} parent=5 // pred_region
        %s10078 = ssub.s32 %s12, 2
        // Predicated region
        $region41: #{tpu_custom_call.1} parent=39 // pred_check
          %p10079 = pneg %p123
        $region42: #{tpu_custom_call.1} parent=39 // pred_check_branch
          %10081 = sbr.rel (%p10079) target = $region44
        $region43: #{tpu_custom_call.1} parent=39 // pred_region
          %s10082 = sand.u32 %s108, 1
          %s10083 = scalar_lea.sflag [#allocation3], %s10082
          %s10084 = sand.u32 %s108, 1
          %s10085 = smul.addr %s10084, 256
          %s10086 = scalar_lea.vmem [#allocation2], %s10085
          %10087 = dma.done %s10083, 4096
        $region44: #{tpu_custom_call.1} parent=39 // pred_fallthru
          _
      $region40: #{tpu_custom_call.1} parent=5 // pred_fallthru
        _
    $region6: #{tpu_custom_call.1} parent=1 // loop_footer
      %s16 = sadd.s32 1, %s12
    $region7: #{tpu_custom_call.1} parent=1 // loop_footer_branch
      %11 = sbr.rel target = $region3
    $region8: #{tpu_custom_call.1} parent=1 // loop_exit
      _
    %10088 = vsyncpa [#allocation3], 1
    %s10089 = scalar_lea.sflag [#allocation3], 1
    %10090 = vsyncpa %s10089, 1

</llo_original>
